<compile_context>
chip_gen: v7x
topology: tpu7x:2x2x1
jax: 0.10.0
libtpu: 0.0.40
codegen_flags: <defaults>
</compile_context>

<pallas_src>
import functools
import math

import jax
import jax.numpy as jnp
from jax.experimental import pallas as pl
from jax.experimental.pallas import tpu as pltpu

H = 100          # true hidden width (nn.Linear(1, 100) etc.)
HP = 128         # padded hidden width (lane width)
TM = 1024        # batch tile (rows per grid step); sweepable 512..2048
N_HEADS = 5      # u, w, q, z, theta
OUT_LANES = 8    # heads padded to 8 output lanes (full last dim of the output)
HEAD_NAMES = ("out_u", "out_w", "out_q", "out_z", "out_theta")

_SQRT_2_OVER_PI = 0.7978845608028654
_GELU_C = 0.044715


def _gelu_tanh(x):
    """tanh-form GELU: the tanh lands on the EUP slot, the rest is a few VPU ops."""
    inner = _SQRT_2_OVER_PI * (x + _GELU_C * (x * x * x))
    return 0.5 * x * (1.0 + jnp.tanh(inner))


def _mlp_math(t, smalls, w_hidden, w_head, b_head):
    """Shared forward math on plain arrays.

    t:        (M, 1)      f32
    smalls:   (5, HP)     f32   rows = [fc1 weight row, b1, b2, b3, b4]
    w_hidden: (3, HP, HP) f32 or bf16 (fc2, fc3, fc4 weights)
    w_head:   (HP, 8)     f32   columns 0..4 = u, w, q, z, theta heads
    b_head:   (1, 8)      f32
    returns   (M, 8)      f32
    """
    # Layer 1: fan_in == 1 -> outer product; do it as a VPU broadcast multiply.
    x = _gelu_tanh(t * smalls[0:1, :] + smalls[1:2, :])          # (M, HP) f32
    # Layers 2-4: MXU matmuls (bf16 inputs on v6e/v7x, f32 accumulation).
    for layer in range(3):
        w = w_hidden[layer]
        x = _gelu_tanh(
            jnp.dot(x.astype(w.dtype), w, preferred_element_type=jnp.float32)
            + smalls[2 + layer:3 + layer, :])
    # Packed 5-head projection into 8 output lanes (kept f32; tiny matmul).
    return jnp.dot(x, w_head, preferred_element_type=jnp.float32) + b_head


def pinn_kernel(t_ref, smalls_ref, w_hidden_ref, w_head_ref, b_head_ref, out_ref):
    out_ref[...] = _mlp_math(
        t_ref[...],
        smalls_ref[...],
        w_hidden_ref,          # indexed per-layer inside _mlp_math (static ints)
        w_head_ref[...],
        b_head_ref[...],
    )


def init_params(key):
    """Deterministic parameter init mimicking nn.Linear's default init."""
    def linear(k, fan_in, fan_out):
        k1, k2 = jax.random.split(k)
        bound = 1.0 / math.sqrt(fan_in)
        w = jax.random.uniform(k1, (fan_in, fan_out), jnp.float32, -bound, bound)
        b = jax.random.uniform(k2, (fan_out,), jnp.float32, -bound, bound)
        return w, b

    keys = jax.random.split(key, 9)
    params = {
        "fc1": linear(keys[0], 1, H),
        "fc2": linear(keys[1], H, H),
        "fc3": linear(keys[2], H, H),
        "fc4": linear(keys[3], H, H),
        "out_u": linear(keys[4], H, 1),
        "out_w": linear(keys[5], H, 1),
        "out_q": linear(keys[6], H, 1),
        "out_z": linear(keys[7], H, 1),
        "out_theta": linear(keys[8], H, 1),
    }
    # NOTE: the 13 hydrodynamic nn.Parameter scalars (X_uu, ..., M_uu_delta_s)
    # are not used in forward(); they only appear in physics_model.
    return params


def pack_params(params, matmul_dtype=jnp.bfloat16):
    """Pack / pad parameters into the 4 kernel operands."""
    def pad_w(w):
        fi, fo = w.shape
        return jnp.zeros((HP, HP), jnp.float32).at[:fi, :fo].set(w)

    def pad_row(v):
        return jnp.zeros((HP,), jnp.float32).at[: v.shape[0]].set(v)

    smalls = jnp.stack(
        [
            pad_row(params["fc1"][0][0, :]),   # fc1 weight row (fan_in == 1)
            pad_row(params["fc1"][1]),         # b1
            pad_row(params["fc2"][1]),         # b2
            pad_row(params["fc3"][1]),         # b3
            pad_row(params["fc4"][1]),         # b4
        ],
        axis=0,
    )                                          # (5, HP) f32

    w_hidden = jnp.stack(
        [pad_w(params[n][0]) for n in ("fc2", "fc3", "fc4")], axis=0
    ).astype(matmul_dtype)                     # (3, HP, HP)

    w_head = jnp.zeros((HP, OUT_LANES), jnp.float32)
    b_head = jnp.zeros((1, OUT_LANES), jnp.float32)
    for j, name in enumerate(HEAD_NAMES):
        wj, bj = params[name]
        w_head = w_head.at[:H, j].set(wj[:, 0])
        b_head = b_head.at[0, j].set(bj[0])
    return (smalls, w_hidden, w_head, b_head)


@functools.partial(jax.jit, static_argnames=("tm",))
def pinn_forward(t, packed, tm=TM):
    """t: (N, 1) float32 -> (u, w, q, z, theta), each (N, 1) float32."""
    smalls, w_hidden, w_head, b_head = packed
    n = t.shape[0]

    if n <= tm:
        # Small-batch fast path: a single fused XLA chain beats kernel dispatch.
        out = _mlp_math(t, smalls, w_hidden, w_head, b_head)
    else:
        const2 = lambda i: (0, 0)
        const3 = lambda i: (0, 0, 0)
        out = pl.pallas_call(
            pinn_kernel,
            out_shape=jax.ShapeDtypeStruct((n, OUT_LANES), jnp.float32),
            grid_spec=pltpu.PrefetchScalarGridSpec(
                num_scalar_prefetch=0,
                grid=(pl.cdiv(n, tm),),
                in_specs=[
                    pl.BlockSpec((tm, 1), lambda i: (i, 0)),        # t column
                    pl.BlockSpec((5, HP), const2),                  # fc1 row + biases
                    pl.BlockSpec((3, HP, HP), const3),              # fc2/3/4 weights
                    pl.BlockSpec((HP, OUT_LANES), const2),          # packed heads
                    pl.BlockSpec((1, OUT_LANES), const2),           # head biases
                ],
                out_specs=pl.BlockSpec((tm, OUT_LANES), lambda i: (i, 0)),
            ),
            compiler_params=pltpu.CompilerParams(
                dimension_semantics=("parallel",)),   # megacore / 2-TC sharding
        )(t, smalls, w_hidden, w_head, b_head)

    heads = out[:, :N_HEADS]
    return tuple(heads[:, j:j + 1] for j in range(N_HEADS))


def pinn_forward_ref(t, params, approximate):
    """Pure-JAX f32 reference.  approximate=False matches PyTorch nn.GELU()
    exactly; approximate=True matches the tanh-form GELU used in the kernel."""
    x = t
    for name in ("fc1", "fc2", "fc3", "fc4"):
        w, b = params[name]
        x = jax.nn.gelu(x @ w + b, approximate=approximate)
    outs = []
    for name in HEAD_NAMES:
        w, b = params[name]
        outs.append(x @ w + b)
    return tuple(outs)


# TODO(synk): physics_model (torch.inverse of a 3x3, bmm, out-of-range index
# slicing dot[:, :, 10000]) is training-time glue, not the forward pass; it is
# intentionally not ported to the kernel.

if __name__ == "__main__":
    key = jax.random.PRNGKey(0)
    pkey, tkey = jax.random.split(key)

    params = init_params(pkey)
    packed_bf16 = pack_params(params, jnp.bfloat16)   # default fast path (v6e/v7x MXU)
    packed_f32 = pack_params(params, jnp.float32)     # precision-critical option

    # Moderate time-sample batch: exercises the Pallas path with a multi-step
    # grid (3 tiles of 1024) and a ragged last block.
    N = 2500
    t = jax.random.uniform(tkey, (N, 1), jnp.float32, 0.0, 10.0)

    refs_tanh = pinn_forward_ref(t, params, approximate=True)   # kernel's GELU form
    refs_erf = pinn_forward_ref(t, params, approximate=False)   # PyTorch nn.GELU()

    # --- f32 kernel path: tight check of structure / semantics. ---
    outs_f32 = jax.block_until_ready(pinn_forward(t, packed_f32))
    for o, rt, re in zip(outs_f32, refs_tanh, refs_erf):
        assert o.shape == (N, 1) and o.dtype == jnp.float32
        assert jnp.max(jnp.abs(o - rt)) < 2e-3, "f32 kernel mismatch vs tanh-GELU ref"
        # tanh-form GELU deviates from exact-erf GELU; keep a documented envelope.
        assert jnp.max(jnp.abs(o - re)) < 1e-2, "drifted from exact-erf semantics"

    # --- bf16-matmul kernel path (default): check against identical-math XLA
    #     reference (tight) and the f32 tanh reference (loose bf16 envelope). ---
    same_math = _mlp_math(t, *packed_bf16)[:, :N_HEADS]
    outs_bf16 = jax.block_until_ready(pinn_forward(t, packed_bf16))
    for j, (o, rt) in enumerate(zip(outs_bf16, refs_tanh)):
        assert o.shape == (N, 1) and o.dtype == jnp.float32
        assert jnp.max(jnp.abs(o - same_math[:, j:j + 1])) < 2e-3, \
            "bf16 kernel mismatch vs identical-math XLA reference"
        assert jnp.max(jnp.abs(o - rt)) < 1e-1, \
            "bf16 kernel drifted too far from f32 reference"

    # --- tiny-batch XLA fast path. ---
    t_small = t[:8]
    refs_small = pinn_forward_ref(t_small, params, approximate=True)
    outs_small = jax.block_until_ready(pinn_forward(t_small, packed_f32))
    for o, r in zip(outs_small, refs_small):
        assert o.shape == (8, 1)
        assert jnp.max(jnp.abs(o - r)) < 2e-3, "small-batch fast path mismatch"

    print("KERNEL_OK")
</pallas_src>

<mosaic_0001>
module attributes {stable_mosaic.version = 11 : i64} {
  func.func @pinn_kernel(%arg0: i32, %arg1: memref<1024x1xf32, #tpu.memory_space<vmem>>, %arg2: memref<5x128xf32, #tpu.memory_space<vmem>>, %arg3: memref<3x128x128xf32, #tpu.memory_space<vmem>>, %arg4: memref<128x8xf32, #tpu.memory_space<vmem>>, %arg5: memref<1x8xf32, #tpu.memory_space<vmem>>, %arg6: memref<1024x8xf32, #tpu.memory_space<vmem>>) attributes {dimension_semantics = [#tpu.dimension_semantics<parallel>], iteration_bounds = array<i64: 3>, scalar_prefetch = 0 : i64, scratch_operands = 0 : i64, tpu.core_type = #tpu.core_type<tc>, window_params = [{transform_indices = @transform_0, window_bounds = array<i64: 1024, 1>}, {pipeline_mode = #tpu.pipeline_mode<synchronous>, transform_indices = @transform_1, window_bounds = array<i64: 5, 128>}, {pipeline_mode = #tpu.pipeline_mode<synchronous>, transform_indices = @transform_2, window_bounds = array<i64: 3, 128, 128>}, {pipeline_mode = #tpu.pipeline_mode<synchronous>, transform_indices = @transform_3, window_bounds = array<i64: 128, 8>}, {pipeline_mode = #tpu.pipeline_mode<synchronous>, transform_indices = @transform_4, window_bounds = array<i64: 1, 8>}, {transform_indices = @transform_5, window_bounds = array<i64: 1024, 8>}]} {
    %c0 = arith.constant 0 : index
    %c0_0 = arith.constant 0 : index
    %0 = vector.load %arg1[%c0, %c0_0] : memref<1024x1xf32, #tpu.memory_space<vmem>>, vector<1024x1xf32>
    %c0_1 = arith.constant 0 : index
    %c0_2 = arith.constant 0 : index
    %1 = vector.load %arg2[%c0_1, %c0_2] : memref<5x128xf32, #tpu.memory_space<vmem>>, vector<5x128xf32>
    %c0_3 = arith.constant 0 : index
    %c0_4 = arith.constant 0 : index
    %2 = vector.load %arg4[%c0_3, %c0_4] : memref<128x8xf32, #tpu.memory_space<vmem>>, vector<128x8xf32>
    %c0_5 = arith.constant 0 : index
    %c0_6 = arith.constant 0 : index
    %3 = vector.load %arg5[%c0_5, %c0_6] : memref<1x8xf32, #tpu.memory_space<vmem>>, vector<1x8xf32>
    %4 = vector.extract_strided_slice %1 {offsets = [0, 0], sizes = [1, 128], strides = [1, 1]} : vector<5x128xf32> to vector<1x128xf32>
    %5 = vector.broadcast %0 : vector<1024x1xf32> to vector<1024x128xf32>
    %6 = vector.broadcast %4 : vector<1x128xf32> to vector<1024x128xf32>
    %7 = arith.mulf %5, %6 : vector<1024x128xf32>
    %8 = vector.extract_strided_slice %1 {offsets = [1, 0], sizes = [1, 128], strides = [1, 1]} : vector<5x128xf32> to vector<1x128xf32>
    %9 = vector.broadcast %8 : vector<1x128xf32> to vector<1024x128xf32>
    %10 = arith.addf %7, %9 : vector<1024x128xf32>
    %11 = arith.mulf %10, %10 : vector<1024x128xf32>
    %12 = arith.mulf %11, %10 : vector<1024x128xf32>
    %cst = arith.constant 4.471500e-02 : f32
    %13 = vector.broadcast %cst : f32 to vector<1024x128xf32>
    %14 = arith.mulf %13, %12 : vector<1024x128xf32>
    %15 = arith.addf %10, %14 : vector<1024x128xf32>
    %cst_7 = arith.constant 0.797884583 : f32
    %16 = vector.broadcast %cst_7 : f32 to vector<1024x128xf32>
    %17 = arith.mulf %16, %15 : vector<1024x128xf32>
    %cst_8 = arith.constant 5.000000e-01 : f32
    %18 = vector.broadcast %cst_8 : f32 to vector<1024x128xf32>
    %19 = arith.mulf %18, %10 : vector<1024x128xf32>
    %20 = math.tanh %17 : vector<1024x128xf32>
    %cst_9 = arith.constant 1.000000e+00 : f32
    %21 = vector.broadcast %cst_9 : f32 to vector<1024x128xf32>
    %22 = arith.addf %21, %20 : vector<1024x128xf32>
    %23 = arith.mulf %19, %22 : vector<1024x128xf32>
    %c0_10 = arith.constant 0 : index
    %c0_11 = arith.constant 0 : index
    %c0_12 = arith.constant 0 : index
    %24 = vector.load %arg3[%c0_10, %c0_11, %c0_12] : memref<3x128x128xf32, #tpu.memory_space<vmem>>, vector<1x128x128xf32>
    %25 = vector.shape_cast %24 : vector<1x128x128xf32> to vector<128x128xf32>
    %cst_13 = arith.constant dense<0.000000e+00> : vector<1024x128xf32>
    %26 = tpu.matmul %23, %25, %cst_13 {dimension_numbers = #tpu.dot_dimension_numbers<[1], [0], [0], [1], [0, 0, 1, 1], [], []>} : vector<1024x128xf32>, vector<128x128xf32>, vector<1024x128xf32> -> vector<1024x128xf32>
    %27 = vector.extract_strided_slice %1 {offsets = [2, 0], sizes = [1, 128], strides = [1, 1]} : vector<5x128xf32> to vector<1x128xf32>
    %28 = vector.broadcast %27 : vector<1x128xf32> to vector<1024x128xf32>
    %29 = arith.addf %26, %28 : vector<1024x128xf32>
    %30 = arith.mulf %29, %29 : vector<1024x128xf32>
    %31 = arith.mulf %30, %29 : vector<1024x128xf32>
    %cst_14 = arith.constant 4.471500e-02 : f32
    %32 = vector.broadcast %cst_14 : f32 to vector<1024x128xf32>
    %33 = arith.mulf %32, %31 : vector<1024x128xf32>
    %34 = arith.addf %29, %33 : vector<1024x128xf32>
    %cst_15 = arith.constant 0.797884583 : f32
    %35 = vector.broadcast %cst_15 : f32 to vector<1024x128xf32>
    %36 = arith.mulf %35, %34 : vector<1024x128xf32>
    %cst_16 = arith.constant 5.000000e-01 : f32
    %37 = vector.broadcast %cst_16 : f32 to vector<1024x128xf32>
    %38 = arith.mulf %37, %29 : vector<1024x128xf32>
    %39 = math.tanh %36 : vector<1024x128xf32>
    %cst_17 = arith.constant 1.000000e+00 : f32
    %40 = vector.broadcast %cst_17 : f32 to vector<1024x128xf32>
    %41 = arith.addf %40, %39 : vector<1024x128xf32>
    %42 = arith.mulf %38, %41 : vector<1024x128xf32>
    %c1 = arith.constant 1 : index
    %c0_18 = arith.constant 0 : index
    %c0_19 = arith.constant 0 : index
    %43 = vector.load %arg3[%c1, %c0_18, %c0_19] : memref<3x128x128xf32, #tpu.memory_space<vmem>>, vector<1x128x128xf32>
    %44 = vector.shape_cast %43 : vector<1x128x128xf32> to vector<128x128xf32>
    %cst_20 = arith.constant dense<0.000000e+00> : vector<1024x128xf32>
    %45 = tpu.matmul %42, %44, %cst_20 {dimension_numbers = #tpu.dot_dimension_numbers<[1], [0], [0], [1], [0, 0, 1, 1], [], []>} : vector<1024x128xf32>, vector<128x128xf32>, vector<1024x128xf32> -> vector<1024x128xf32>
    %46 = vector.extract_strided_slice %1 {offsets = [3, 0], sizes = [1, 128], strides = [1, 1]} : vector<5x128xf32> to vector<1x128xf32>
    %47 = vector.broadcast %46 : vector<1x128xf32> to vector<1024x128xf32>
    %48 = arith.addf %45, %47 : vector<1024x128xf32>
    %49 = arith.mulf %48, %48 : vector<1024x128xf32>
    %50 = arith.mulf %49, %48 : vector<1024x128xf32>
    %cst_21 = arith.constant 4.471500e-02 : f32
    %51 = vector.broadcast %cst_21 : f32 to vector<1024x128xf32>
    %52 = arith.mulf %51, %50 : vector<1024x128xf32>
    %53 = arith.addf %48, %52 : vector<1024x128xf32>
    %cst_22 = arith.constant 0.797884583 : f32
    %54 = vector.broadcast %cst_22 : f32 to vector<1024x128xf32>
    %55 = arith.mulf %54, %53 : vector<1024x128xf32>
    %cst_23 = arith.constant 5.000000e-01 : f32
    %56 = vector.broadcast %cst_23 : f32 to vector<1024x128xf32>
    %57 = arith.mulf %56, %48 : vector<1024x128xf32>
    %58 = math.tanh %55 : vector<1024x128xf32>
    %cst_24 = arith.constant 1.000000e+00 : f32
    %59 = vector.broadcast %cst_24 : f32 to vector<1024x128xf32>
    %60 = arith.addf %59, %58 : vector<1024x128xf32>
    %61 = arith.mulf %57, %60 : vector<1024x128xf32>
    %c2 = arith.constant 2 : index
    %c0_25 = arith.constant 0 : index
    %c0_26 = arith.constant 0 : index
    %62 = vector.load %arg3[%c2, %c0_25, %c0_26] : memref<3x128x128xf32, #tpu.memory_space<vmem>>, vector<1x128x128xf32>
    %63 = vector.shape_cast %62 : vector<1x128x128xf32> to vector<128x128xf32>
    %cst_27 = arith.constant dense<0.000000e+00> : vector<1024x128xf32>
    %64 = tpu.matmul %61, %63, %cst_27 {dimension_numbers = #tpu.dot_dimension_numbers<[1], [0], [0], [1], [0, 0, 1, 1], [], []>} : vector<1024x128xf32>, vector<128x128xf32>, vector<1024x128xf32> -> vector<1024x128xf32>
    %65 = vector.extract_strided_slice %1 {offsets = [4, 0], sizes = [1, 128], strides = [1, 1]} : vector<5x128xf32> to vector<1x128xf32>
    %66 = vector.broadcast %65 : vector<1x128xf32> to vector<1024x128xf32>
    %67 = arith.addf %64, %66 : vector<1024x128xf32>
    %68 = arith.mulf %67, %67 : vector<1024x128xf32>
    %69 = arith.mulf %68, %67 : vector<1024x128xf32>
    %cst_28 = arith.constant 4.471500e-02 : f32
    %70 = vector.broadcast %cst_28 : f32 to vector<1024x128xf32>
    %71 = arith.mulf %70, %69 : vector<1024x128xf32>
    %72 = arith.addf %67, %71 : vector<1024x128xf32>
    %cst_29 = arith.constant 0.797884583 : f32
    %73 = vector.broadcast %cst_29 : f32 to vector<1024x128xf32>
    %74 = arith.mulf %73, %72 : vector<1024x128xf32>
    %cst_30 = arith.constant 5.000000e-01 : f32
    %75 = vector.broadcast %cst_30 : f32 to vector<1024x128xf32>
    %76 = arith.mulf %75, %67 : vector<1024x128xf32>
    %77 = math.tanh %74 : vector<1024x128xf32>
    %cst_31 = arith.constant 1.000000e+00 : f32
    %78 = vector.broadcast %cst_31 : f32 to vector<1024x128xf32>
    %79 = arith.addf %78, %77 : vector<1024x128xf32>
    %80 = arith.mulf %76, %79 : vector<1024x128xf32>
    %cst_32 = arith.constant dense<0.000000e+00> : vector<1024x8xf32>
    %81 = tpu.matmul %80, %2, %cst_32 {dimension_numbers = #tpu.dot_dimension_numbers<[1], [0], [0], [1], [0, 0, 1, 1], [], []>} : vector<1024x128xf32>, vector<128x8xf32>, vector<1024x8xf32> -> vector<1024x8xf32>
    %82 = vector.broadcast %3 : vector<1x8xf32> to vector<1024x8xf32>
    %83 = arith.addf %81, %82 : vector<1024x8xf32>
    %c0_33 = arith.constant 0 : index
    %c0_34 = arith.constant 0 : index
    %84 = vector.load %arg6[%c0_33, %c0_34] : memref<1024x8xf32, #tpu.memory_space<vmem>>, vector<1024x8xf32>
    tpu.vector_store %arg6[%c0_33, %c0_34], %83 {strides = array<i32>} : memref<1024x8xf32, #tpu.memory_space<vmem>>, vector<1024x8xf32>,
    return
  }
  func.func @transform_0(%arg0: i32) -> (i32, i32) {
    %c0_i32 = arith.constant 0 : i32
    %c0_i32_0 = arith.constant 0 : i32
    return %arg0, %c0_i32 : i32, i32
  }
  func.func @transform_1(%arg0: i32) -> (i32, i32) {
    %c0_i32 = arith.constant 0 : i32
    %c0_i32_0 = arith.constant 0 : i32
    %c0_i32_1 = arith.constant 0 : i32
    return %c0_i32, %c0_i32_0 : i32, i32
  }
  func.func @transform_2(%arg0: i32) -> (i32, i32, i32) {
    %c0_i32 = arith.constant 0 : i32
    %c0_i32_0 = arith.constant 0 : i32
    %c0_i32_1 = arith.constant 0 : i32
    %c0_i32_2 = arith.constant 0 : i32
    return %c0_i32, %c0_i32_0, %c0_i32_1 : i32, i32, i32
  }
  func.func @transform_3(%arg0: i32) -> (i32, i32) {
    %c0_i32 = arith.constant 0 : i32
    %c0_i32_0 = arith.constant 0 : i32
    %c0_i32_1 = arith.constant 0 : i32
    return %c0_i32, %c0_i32_0 : i32, i32
  }
  func.func @transform_4(%arg0: i32) -> (i32, i32) {
    %c0_i32 = arith.constant 0 : i32
    %c0_i32_0 = arith.constant 0 : i32
    %c0_i32_1 = arith.constant 0 : i32
    return %c0_i32, %c0_i32_0 : i32, i32
  }
  func.func @transform_5(%arg0: i32) -> (i32, i32) {
    %c0_i32 = arith.constant 0 : i32
    %c0_i32_0 = arith.constant 0 : i32
    return %arg0, %c0_i32 : i32, i32
  }
}

</mosaic_0001>

<llo_original>
// kernel: pinn_forward.1
$region0: #{pinn_forward.1}
  #allocation0 [shape = 'u32[]', space=smem, size = 0x4, offset = 0x4, fixed_abs, tag = 'smem constant byte address 0x4 - core index']
  #allocation1 [shape = 'u32[144,128]{1,0:T(1,128)}', space=vmem, size = 0x12000, scoped, tag = 'internal scratch']
  %s0 = inlined_call_operand.vmem [shape: f32[2500,1], index: 0, kind: input, shape index: {}]
  %s1 = inlined_call_operand.vmem [shape: f32[5,128], index: 1, kind: input, shape index: {}]
  %s2 = inlined_call_operand.vmem [shape: f32[3,128,128], index: 2, kind: input, shape index: {}]
  %s3 = inlined_call_operand.vmem [shape: f32[128,8], index: 3, kind: input, shape index: {}]
  %s4 = inlined_call_operand.vmem [shape: f32[1,8], index: 4, kind: input, shape index: {}]
  %s5 = inlined_call_operand.vmem [shape: f32[2500,8], index: 5, kind: output, shape index: {}]
  %s6 = sld [smem:[#allocation0]]
  $region101: #{pinn_forward.1} parent=0
    _
  %s8 = ssub.s32 1, %s6
  %s9 = scalar_select 0, %s8, %s6
  $region1: #{pinn_forward.1} parent=0
    #allocation2 [shape = 'u8[1048576]{0}', space=vmem, size = 0x100000, scoped, tag = 'output window, operand 0']
    loop: start=0, step=1, limit=5
    $region2: #{pinn_forward.1} parent=1 // loop_pre_header
      _
    $region3: #{pinn_forward.1} parent=1 // loop_header
      %s11 = sphi 0, %s15
      %p12 = scmp.ge.s32.totalorder %s11, 5
      %s21 = sphi 0, %s23
      %s24 = sphi 0, %s21
      %s25 = sphi 0, %s24
      %s41 = sphi 0, %s25
      %s45 = sphi 0, %s45
      %s47 = sphi 0, %s45
      %s48 = sphi 0, %s47
      %s62 = sphi 0, %s48
      %s66 = sphi 0, %s66
      %s68 = sphi 0, %s66
      %s69 = sphi 0, %s68
      %s83 = sphi 0, %s69
      %s87 = sphi 0, %s87
      %s89 = sphi 0, %s87
      %s90 = sphi 0, %s89
      %s104 = sphi 0, %s90
      %s108 = sphi 0, %s108
      %s110 = sphi 0, %s108
      %s111 = sphi 0, %s110
      %s125 = sphi 0, %s111
      %s131 = sphi 0, %s133
      %s134 = sphi 0, %s131
      %s135 = sphi 0, %s134
      %s151 = sphi 0, %s135
    $region4: #{pinn_forward.1} parent=1 // loop_header_branch
      %14 = sbr.rel (%p12) target = $region8
    $region5: #{pinn_forward.1} parent=1 // loop_body
      %s16 = ssub.s32 %s11, 1
      %s17 = ssub.s32 %s11, 2
      %s18 = sadd.s32 %s11, 1
      %s19 = ssub.s32 %s11, %s18
      %p20 = scmp.eq.s32.totalorder %s19, 0
      %s22 = sadd.s32 %s21, 1
      %s23 = scalar_select %p20, %s21, %s22
      %p26 = pneg %p20
      %p27 = scmp.eq.s32.totalorder %s11, 2
      %p28 = por %p26, %p27
      %p29 = scmp.ne.s32.totalorder %s21, %s24
      %p30 = scmp.eq.s32.totalorder %s11, 0
      %p31 = por %p29, %p30
      %p32 = scmp.ne.s32.totalorder %s21, %s24
      %p33 = scmp.eq.s32.totalorder %s16, 2
      %p34 = por %p32, %p33
      %p35 = scmp.ne.s32.totalorder %s24, %s25
      %p36 = scmp.eq.s32.totalorder %s16, 0
      %p37 = por %p35, %p36
      %p38 = scmp.ne.s32.totalorder %s24, %s25
      %p39 = scmp.eq.s32.totalorder %s17, 2
      %p40 = por %p38, %p39
      %p42 = scmp.ne.s32.totalorder %s25, %s41
      %p43 = scmp.eq.s32.totalorder %s17, 0
      %p44 = por %p42, %p43
      %s46 = sadd.s32 %s45, 1
      %p49 = scmp.eq.s32.totalorder %s11, 2
      %p50 = scmp.ne.s32.totalorder %s45, %s47
      %p51 = scmp.eq.s32.totalorder %s11, 0
      %p52 = por %p50, %p51
      %p53 = scmp.ne.s32.totalorder %s45, %s47
      %p54 = scmp.eq.s32.totalorder %s16, 2
      %p55 = por %p53, %p54
      %p56 = scmp.ne.s32.totalorder %s47, %s48
      %p57 = scmp.eq.s32.totalorder %s16, 0
      %p58 = por %p56, %p57
      %p59 = scmp.ne.s32.totalorder %s47, %s48
      %p60 = scmp.eq.s32.totalorder %s17, 2
      %p61 = por %p59, %p60
      %p63 = scmp.ne.s32.totalorder %s48, %s62
      %p64 = scmp.eq.s32.totalorder %s17, 0
      %p65 = por %p63, %p64
      %s67 = sadd.s32 %s66, 1
      %p70 = scmp.eq.s32.totalorder %s11, 2
      %p71 = scmp.ne.s32.totalorder %s66, %s68
      %p72 = scmp.eq.s32.totalorder %s11, 0
      %p73 = por %p71, %p72
      %p74 = scmp.ne.s32.totalorder %s66, %s68
      %p75 = scmp.eq.s32.totalorder %s16, 2
      %p76 = por %p74, %p75
      %p77 = scmp.ne.s32.totalorder %s68, %s69
      %p78 = scmp.eq.s32.totalorder %s16, 0
      %p79 = por %p77, %p78
      %p80 = scmp.ne.s32.totalorder %s68, %s69
      %p81 = scmp.eq.s32.totalorder %s17, 2
      %p82 = por %p80, %p81
      %p84 = scmp.ne.s32.totalorder %s69, %s83
      %p85 = scmp.eq.s32.totalorder %s17, 0
      %p86 = por %p84, %p85
      %s88 = sadd.s32 %s87, 1
      %p91 = scmp.eq.s32.totalorder %s11, 2
      %p92 = scmp.ne.s32.totalorder %s87, %s89
      %p93 = scmp.eq.s32.totalorder %s11, 0
      %p94 = por %p92, %p93
      %p95 = scmp.ne.s32.totalorder %s87, %s89
      %p96 = scmp.eq.s32.totalorder %s16, 2
      %p97 = por %p95, %p96
      %p98 = scmp.ne.s32.totalorder %s89, %s90
      %p99 = scmp.eq.s32.totalorder %s16, 0
      %p100 = por %p98, %p99
      %p101 = scmp.ne.s32.totalorder %s89, %s90
      %p102 = scmp.eq.s32.totalorder %s17, 2
      %p103 = por %p101, %p102
      %p105 = scmp.ne.s32.totalorder %s90, %s104
      %p106 = scmp.eq.s32.totalorder %s17, 0
      %p107 = por %p105, %p106
      %s109 = sadd.s32 %s108, 1
      %p112 = scmp.eq.s32.totalorder %s11, 2
      %p113 = scmp.ne.s32.totalorder %s108, %s110
      %p114 = scmp.eq.s32.totalorder %s11, 0
      %p115 = por %p113, %p114
      %p116 = scmp.ne.s32.totalorder %s108, %s110
      %p117 = scmp.eq.s32.totalorder %s16, 2
      %p118 = por %p116, %p117
      %p119 = scmp.ne.s32.totalorder %s110, %s111
      %p120 = scmp.eq.s32.totalorder %s16, 0
      %p121 = por %p119, %p120
      %p122 = scmp.ne.s32.totalorder %s110, %s111
      %p123 = scmp.eq.s32.totalorder %s17, 2
      %p124 = por %p122, %p123
      %p126 = scmp.ne.s32.totalorder %s111, %s125
      %p127 = scmp.eq.s32.totalorder %s17, 0
      %p128 = por %p126, %p127
      %s129 = ssub.s32 %s11, %s18
      %p130 = scmp.eq.s32.totalorder %s129, 0
      %s132 = sadd.s32 %s131, 1
      %s133 = scalar_select %p130, %s131, %s132
      %p136 = pneg %p130
      %p137 = scmp.eq.s32.totalorder %s11, 2
      %p138 = por %p136, %p137
      %p139 = scmp.ne.s32.totalorder %s131, %s134
      %p140 = scmp.eq.s32.totalorder %s11, 0
      %p141 = por %p139, %p140
      %p142 = scmp.ne.s32.totalorder %s131, %s134
      %p143 = scmp.eq.s32.totalorder %s16, 2
      %p144 = por %p142, %p143
      %p145 = scmp.ne.s32.totalorder %s134, %s135
      %p146 = scmp.eq.s32.totalorder %s16, 0
      %p147 = por %p145, %p146
      %p148 = scmp.ne.s32.totalorder %s134, %s135
      %p149 = scmp.eq.s32.totalorder %s17, 2
      %p150 = por %p148, %p149
      %p152 = scmp.ne.s32.totalorder %s135, %s151
      %p153 = scmp.eq.s32.totalorder %s17, 0
      %p154 = por %p152, %p153
      %p155 = scmp.le.s32.totalorder 1, %s11
      %p156 = scmp.lt.s32.totalorder %s11, 4
      %p157 = pnand %p155, %p156
      %p158 = pneg %p157
      // Predicated region
      $region9: #{pinn_forward.1} parent=5 // pred_check
        _
      $region10: #{pinn_forward.1} parent=5 // pred_check_branch
        %160 = sbr.rel (%p157) target = $region12
      $region11: #{pinn_forward.1} parent=5 // pred_region
        %s161 = ssub.s32 %s11, 1
        // Predicated region
        $region13: #{pinn_forward.1} parent=11 // pred_check
          %p162 = pneg %p58
        $region14: #{pinn_forward.1} parent=11 // pred_check_branch
          %164 = sbr.rel (%p162) target = $region16
        $region15: #{pinn_forward.1} parent=11 // pred_region
          _
        $region16: #{pinn_forward.1} parent=11 // pred_fallthru
          _
        // Predicated region
        $region17: #{pinn_forward.1} parent=11 // pred_check
          %p165 = pneg %p79
        $region18: #{pinn_forward.1} parent=11 // pred_check_branch
          %167 = sbr.rel (%p165) target = $region20
        $region19: #{pinn_forward.1} parent=11 // pred_region
          _
        $region20: #{pinn_forward.1} parent=11 // pred_fallthru
          _
        // Predicated region
        $region21: #{pinn_forward.1} parent=11 // pred_check
          %p168 = pneg %p100
        $region22: #{pinn_forward.1} parent=11 // pred_check_branch
          %170 = sbr.rel (%p168) target = $region24
        $region23: #{pinn_forward.1} parent=11 // pred_region
          _
        $region24: #{pinn_forward.1} parent=11 // pred_fallthru
          _
        // Predicated region
        $region25: #{pinn_forward.1} parent=11 // pred_check
          %p171 = pneg %p121
        $region26: #{pinn_forward.1} parent=11 // pred_check_branch
          %173 = sbr.rel (%p171) target = $region28
        $region27: #{pinn_forward.1} parent=11 // pred_region
          _
        $region28: #{pinn_forward.1} parent=11 // pred_fallthru
          _
      $region12: #{pinn_forward.1} parent=5 // pred_fallthru
        _
      %p174 = scmp.lt.s32.totalorder %s11, 3
      // Predicated region
      $region29: #{pinn_forward.1} parent=5 // pred_check
        %p175 = pneg %p174
      $region30: #{pinn_forward.1} parent=5 // pred_check_branch
        %177 = sbr.rel (%p175) target = $region32
      $region31: #{pinn_forward.1} parent=5 // pred_region
        // Predicated region
        $region33: #{pinn_forward.1} parent=31 // pred_check
          %p178 = pneg %p31
        $region34: #{pinn_forward.1} parent=31 // pred_check_branch
          %180 = sbr.rel (%p178) target = $region36
        $region35: #{pinn_forward.1} parent=31 // pred_region
          %s181 = smul.u32 128, %s11
          %s182 = ssub.s32 313, %s181
          %p183 = scmp.lt.s32.totalorder %s182, 128
          %s184 = scalar_select %p183, %s182, 128
          %s185 = smul.u32 128, %s184
          %p186 = scmp.lt.s32.totalorder %s181, 312
          %s187 = scalar_select %p186, %s181, 312
          %s188 = smul.addr %s187, 8
          %s189 = scalar_lea.vmem %s0, %s188
          %s190 = smul.u32 128, %s11
          %s191 = ssub.s32 313, %s190
          %p192 = scmp.lt.s32.totalorder %s191, 128
          %s193 = scalar_select %p192, %s191, 128
          %s194 = smul.u32 128, %s193
        $region36: #{pinn_forward.1} parent=31 // pred_fallthru
          _
      $region32: #{pinn_forward.1} parent=5 // pred_fallthru
        _
      %p195 = scmp.le.s32.totalorder 1, %s11
      %p196 = scmp.lt.s32.totalorder %s11, 4
      %p197 = pnand %p195, %p196
      %p198 = pneg %p197
      // Predicated region
      $region37: #{pinn_forward.1} parent=5 // pred_check
        _
      $region38: #{pinn_forward.1} parent=5 // pred_check_branch
        %200 = sbr.rel (%p197) target = $region40
      $region39: #{pinn_forward.1} parent=5 // pred_region
        %s201 = ssub.s32 %s11, 1
        %s202 = smul.u32 128, %s16
        %s203 = ssub.s32 313, %s202
        %p204 = scmp.lt.s32.totalorder %s203, 128
        %s205 = scalar_select %p204, %s203, 128
        %s206 = smul.u32 128, %s205
        %p207 = scmp.lt.s32.totalorder %s202, 312
        %s208 = scalar_select %p207, %s202, 312
        %s209 = smul.addr %s208, 8
        %s210 = scalar_lea.vmem %s0, %s209
        %p211 = pneg %p37
        %p212 = pneg %p34
        %p213 = pneg %p58
        %p214 = pneg %p55
        %p215 = pneg %p79
        %p216 = pneg %p76
        %p217 = pneg %p100
        %p218 = pneg %p97
        %p219 = pneg %p121
        %p220 = pneg %p118
        %p221 = pneg %p147
        %p222 = pneg %p144
        %s223 = sand.u32 %s134, 1
        %s224 = sand.u32 %s134, 1
        %s225 = smul.addr %s224, 1024
        %s226 = scalar_lea.vmem [#allocation2], %s225
        %s227 = smul.u32 128, %s16
        %s228 = ssub.s32 313, %s227
        %p229 = scmp.lt.s32.totalorder %s228, 128
        %s230 = scalar_select %p229, %s228, 128
        %s231 = smul.u32 128, %s230
        %p232 = scmp.lt.s32.totalorder %s227, 312
        %s233 = scalar_select %p232, %s227, 312
        %s234 = smul.addr %s233, 8
        %s235 = scalar_lea.vmem %s0, %s234
        %s236 = smul.u32 128, %s16
        %s237 = ssub.s32 313, %s236
        %p238 = scmp.lt.s32.totalorder %s237, 128
        %s239 = scalar_select %p238, %s237, 128
        %s240 = smul.u32 128, %s239
        %s241 = smul.u32 128, %s16
        %s242 = ssub.s32 313, %s241
        %p243 = scmp.lt.s32.totalorder %s242, 128
        %s244 = scalar_select %p243, %s242, 128
        %s245 = smul.u32 128, %s244
        %v246 = vld [vmem:[%s235] sm:$0xff]
        %v247 = vld [vmem:[%s235 + $0x8] sm:$0xff]
        %v248 = vld [vmem:[%s235 + $0x10] sm:$0xff]
        %v249 = vld [vmem:[%s235 + $0x18] sm:$0xff]
        %v250 = vld [vmem:[%s235 + $0x20] sm:$0xff]
        %v251 = vld [vmem:[%s235 + $0x28] sm:$0xff]
        %v252 = vld [vmem:[%s235 + $0x30] sm:$0xff]
        %v253 = vld [vmem:[%s235 + $0x38] sm:$0xff]
        %v254 = vld [vmem:[%s235 + $0x40] sm:$0xff]
        %v255 = vld [vmem:[%s235 + $0x48] sm:$0xff]
        %v256 = vld [vmem:[%s235 + $0x50] sm:$0xff]
        %v257 = vld [vmem:[%s235 + $0x58] sm:$0xff]
        %v258 = vld [vmem:[%s235 + $0x60] sm:$0xff]
        %v259 = vld [vmem:[%s235 + $0x68] sm:$0xff]
        %v260 = vld [vmem:[%s235 + $0x70] sm:$0xff]
        %v261 = vld [vmem:[%s235 + $0x78] sm:$0xff]
        %v262 = vld [vmem:[%s235 + $0x80] sm:$0xff]
        %v263 = vld [vmem:[%s235 + $0x88] sm:$0xff]
        %v264 = vld [vmem:[%s235 + $0x90] sm:$0xff]
        %v265 = vld [vmem:[%s235 + $0x98] sm:$0xff]
        %v266 = vld [vmem:[%s235 + $0xa0] sm:$0xff]
        %v267 = vld [vmem:[%s235 + $0xa8] sm:$0xff]
        %v268 = vld [vmem:[%s235 + $0xb0] sm:$0xff]
        %v269 = vld [vmem:[%s235 + $0xb8] sm:$0xff]
        %v270 = vld [vmem:[%s235 + $0xc0] sm:$0xff]
        %v271 = vld [vmem:[%s235 + $0xc8] sm:$0xff]
        %v272 = vld [vmem:[%s235 + $0xd0] sm:$0xff]
        %v273 = vld [vmem:[%s235 + $0xd8] sm:$0xff]
        %v274 = vld [vmem:[%s235 + $0xe0] sm:$0xff]
        %v275 = vld [vmem:[%s235 + $0xe8] sm:$0xff]
        %v276 = vld [vmem:[%s235 + $0xf0] sm:$0xff]
        %v277 = vld [vmem:[%s235 + $0xf8] sm:$0xff]
        %v278 = vld [vmem:[%s235 + $0x100] sm:$0xff]
        %v279 = vld [vmem:[%s235 + $0x108] sm:$0xff]
        %v280 = vld [vmem:[%s235 + $0x110] sm:$0xff]
        %v281 = vld [vmem:[%s235 + $0x118] sm:$0xff]
        %v282 = vld [vmem:[%s235 + $0x120] sm:$0xff]
        %v283 = vld [vmem:[%s235 + $0x128] sm:$0xff]
        %v284 = vld [vmem:[%s235 + $0x130] sm:$0xff]
        %v285 = vld [vmem:[%s235 + $0x138] sm:$0xff]
        %v286 = vld [vmem:[%s235 + $0x140] sm:$0xff]
        %v287 = vld [vmem:[%s235 + $0x148] sm:$0xff]
        %v288 = vld [vmem:[%s235 + $0x150] sm:$0xff]
        %v289 = vld [vmem:[%s235 + $0x158] sm:$0xff]
        %v290 = vld [vmem:[%s235 + $0x160] sm:$0xff]
        %v291 = vld [vmem:[%s235 + $0x168] sm:$0xff]
        %v292 = vld [vmem:[%s235 + $0x170] sm:$0xff]
        %v293 = vld [vmem:[%s235 + $0x178] sm:$0xff]
        %v294 = vld [vmem:[%s235 + $0x180] sm:$0xff]
        %v295 = vld [vmem:[%s235 + $0x188] sm:$0xff]
        %v296 = vld [vmem:[%s235 + $0x190] sm:$0xff]
        %v297 = vld [vmem:[%s235 + $0x198] sm:$0xff]
        %v298 = vld [vmem:[%s235 + $0x1a0] sm:$0xff]
        %v299 = vld [vmem:[%s235 + $0x1a8] sm:$0xff]
        %v300 = vld [vmem:[%s235 + $0x1b0] sm:$0xff]
        %v301 = vld [vmem:[%s235 + $0x1b8] sm:$0xff]
        %v302 = vld [vmem:[%s235 + $0x1c0] sm:$0xff]
        %v303 = vld [vmem:[%s235 + $0x1c8] sm:$0xff]
        %v304 = vld [vmem:[%s235 + $0x1d0] sm:$0xff]
        %v305 = vld [vmem:[%s235 + $0x1d8] sm:$0xff]
        %v306 = vld [vmem:[%s235 + $0x1e0] sm:$0xff]
        %v307 = vld [vmem:[%s235 + $0x1e8] sm:$0xff]
        %v308 = vld [vmem:[%s235 + $0x1f0] sm:$0xff]
        %v309 = vld [vmem:[%s235 + $0x1f8] sm:$0xff]
        %v310 = vld [vmem:[%s235 + $0x200] sm:$0xff]
        %v311 = vld [vmem:[%s235 + $0x208] sm:$0xff]
        %v312 = vld [vmem:[%s235 + $0x210] sm:$0xff]
        %v313 = vld [vmem:[%s235 + $0x218] sm:$0xff]
        %v314 = vld [vmem:[%s235 + $0x220] sm:$0xff]
        %v315 = vld [vmem:[%s235 + $0x228] sm:$0xff]
        %v316 = vld [vmem:[%s235 + $0x230] sm:$0xff]
        %v317 = vld [vmem:[%s235 + $0x238] sm:$0xff]
        %v318 = vld [vmem:[%s235 + $0x240] sm:$0xff]
        %v319 = vld [vmem:[%s235 + $0x248] sm:$0xff]
        %v320 = vld [vmem:[%s235 + $0x250] sm:$0xff]
        %v321 = vld [vmem:[%s235 + $0x258] sm:$0xff]
        %v322 = vld [vmem:[%s235 + $0x260] sm:$0xff]
        %v323 = vld [vmem:[%s235 + $0x268] sm:$0xff]
        %v324 = vld [vmem:[%s235 + $0x270] sm:$0xff]
        %v325 = vld [vmem:[%s235 + $0x278] sm:$0xff]
        %v326 = vld [vmem:[%s235 + $0x280] sm:$0xff]
        %v327 = vld [vmem:[%s235 + $0x288] sm:$0xff]
        %v328 = vld [vmem:[%s235 + $0x290] sm:$0xff]
        %v329 = vld [vmem:[%s235 + $0x298] sm:$0xff]
        %v330 = vld [vmem:[%s235 + $0x2a0] sm:$0xff]
        %v331 = vld [vmem:[%s235 + $0x2a8] sm:$0xff]
        %v332 = vld [vmem:[%s235 + $0x2b0] sm:$0xff]
        %v333 = vld [vmem:[%s235 + $0x2b8] sm:$0xff]
        %v334 = vld [vmem:[%s235 + $0x2c0] sm:$0xff]
        %v335 = vld [vmem:[%s235 + $0x2c8] sm:$0xff]
        %v336 = vld [vmem:[%s235 + $0x2d0] sm:$0xff]
        %v337 = vld [vmem:[%s235 + $0x2d8] sm:$0xff]
        %v338 = vld [vmem:[%s235 + $0x2e0] sm:$0xff]
        %v339 = vld [vmem:[%s235 + $0x2e8] sm:$0xff]
        %v340 = vld [vmem:[%s235 + $0x2f0] sm:$0xff]
        %v341 = vld [vmem:[%s235 + $0x2f8] sm:$0xff]
        %v342 = vld [vmem:[%s235 + $0x300] sm:$0xff]
        %v343 = vld [vmem:[%s235 + $0x308] sm:$0xff]
        %v344 = vld [vmem:[%s235 + $0x310] sm:$0xff]
        %v345 = vld [vmem:[%s235 + $0x318] sm:$0xff]
        %v346 = vld [vmem:[%s235 + $0x320] sm:$0xff]
        %v347 = vld [vmem:[%s235 + $0x328] sm:$0xff]
        %v348 = vld [vmem:[%s235 + $0x330] sm:$0xff]
        %v349 = vld [vmem:[%s235 + $0x338] sm:$0xff]
        %v350 = vld [vmem:[%s235 + $0x340] sm:$0xff]
        %v351 = vld [vmem:[%s235 + $0x348] sm:$0xff]
        %v352 = vld [vmem:[%s235 + $0x350] sm:$0xff]
        %v353 = vld [vmem:[%s235 + $0x358] sm:$0xff]
        %v354 = vld [vmem:[%s235 + $0x360] sm:$0xff]
        %v355 = vld [vmem:[%s235 + $0x368] sm:$0xff]
        %v356 = vld [vmem:[%s235 + $0x370] sm:$0xff]
        %v357 = vld [vmem:[%s235 + $0x378] sm:$0xff]
        %v358 = vld [vmem:[%s235 + $0x380] sm:$0xff]
        %v359 = vld [vmem:[%s235 + $0x388] sm:$0xff]
        %v360 = vld [vmem:[%s235 + $0x390] sm:$0xff]
        %v361 = vld [vmem:[%s235 + $0x398] sm:$0xff]
        %v362 = vld [vmem:[%s235 + $0x3a0] sm:$0xff]
        %v363 = vld [vmem:[%s235 + $0x3a8] sm:$0xff]
        %v364 = vld [vmem:[%s235 + $0x3b0] sm:$0xff]
        %v365 = vld [vmem:[%s235 + $0x3b8] sm:$0xff]
        %v366 = vld [vmem:[%s235 + $0x3c0] sm:$0xff]
        %v367 = vld [vmem:[%s235 + $0x3c8] sm:$0xff]
        %v368 = vld [vmem:[%s235 + $0x3d0] sm:$0xff]
        %v369 = vld [vmem:[%s235 + $0x3d8] sm:$0xff]
        %v370 = vld [vmem:[%s235 + $0x3e0] sm:$0xff]
        %v371 = vld [vmem:[%s235 + $0x3e8] sm:$0xff]
        %v372 = vld [vmem:[%s235 + $0x3f0] sm:$0xff]
        %v373 = vld [vmem:[%s235 + $0x3f8] sm:$0xff]
        %v374 = vld [vmem:[%s1] sm:$0x1f]
        %v375 = vld [vmem:[%s3] sm:$0xff]
        %v376 = vld [vmem:[%s3 + $0x8] sm:$0xff]
        %v377 = vld [vmem:[%s3 + $0x10] sm:$0xff]
        %v378 = vld [vmem:[%s3 + $0x18] sm:$0xff]
        %v379 = vld [vmem:[%s3 + $0x20] sm:$0xff]
        %v380 = vld [vmem:[%s3 + $0x28] sm:$0xff]
        %v381 = vld [vmem:[%s3 + $0x30] sm:$0xff]
        %v382 = vld [vmem:[%s3 + $0x38] sm:$0xff]
        %v383 = vld [vmem:[%s3 + $0x40] sm:$0xff]
        %v384 = vld [vmem:[%s3 + $0x48] sm:$0xff]
        %v385 = vld [vmem:[%s3 + $0x50] sm:$0xff]
        %v386 = vld [vmem:[%s3 + $0x58] sm:$0xff]
        %v387 = vld [vmem:[%s3 + $0x60] sm:$0xff]
        %v388 = vld [vmem:[%s3 + $0x68] sm:$0xff]
        %v389 = vld [vmem:[%s3 + $0x70] sm:$0xff]
        %v390 = vld [vmem:[%s3 + $0x78] sm:$0xff]
        %v391 = vld [vmem:[%s4] sm:$0x1]
        %393 = vset.pattern.permute.xlu0 0
        %394 = vperm.xlu0 %393, %v246
        %v395 = vpop.permute.xlu0 %394
        %398 = vset.pattern.permute.xlu0 0
        %399 = vperm.xlu0 %398, %v247
        %v400 = vpop.permute.xlu0 %399
        %403 = vset.pattern.permute.xlu0 0
        %404 = vperm.xlu0 %403, %v248
        %v405 = vpop.permute.xlu0 %404
        %408 = vset.pattern.permute.xlu0 0
        %409 = vperm.xlu0 %408, %v249
        %v410 = vpop.permute.xlu0 %409
        %413 = vset.pattern.permute.xlu0 0
        %414 = vperm.xlu0 %413, %v250
        %v415 = vpop.permute.xlu0 %414
        %418 = vset.pattern.permute.xlu0 0
        %419 = vperm.xlu0 %418, %v251
        %v420 = vpop.permute.xlu0 %419
        %423 = vset.pattern.permute.xlu0 0
        %424 = vperm.xlu0 %423, %v252
        %v425 = vpop.permute.xlu0 %424
        %428 = vset.pattern.permute.xlu0 0
        %429 = vperm.xlu0 %428, %v253
        %v430 = vpop.permute.xlu0 %429
        %433 = vset.pattern.permute.xlu0 0
        %434 = vperm.xlu0 %433, %v254
        %v435 = vpop.permute.xlu0 %434
        %438 = vset.pattern.permute.xlu0 0
        %439 = vperm.xlu0 %438, %v255
        %v440 = vpop.permute.xlu0 %439
        %443 = vset.pattern.permute.xlu0 0
        %444 = vperm.xlu0 %443, %v256
        %v445 = vpop.permute.xlu0 %444
        %448 = vset.pattern.permute.xlu0 0
        %449 = vperm.xlu0 %448, %v257
        %v450 = vpop.permute.xlu0 %449
        %453 = vset.pattern.permute.xlu0 0
        %454 = vperm.xlu0 %453, %v258
        %v455 = vpop.permute.xlu0 %454
        %458 = vset.pattern.permute.xlu0 0
        %459 = vperm.xlu0 %458, %v259
        %v460 = vpop.permute.xlu0 %459
        %463 = vset.pattern.permute.xlu0 0
        %464 = vperm.xlu0 %463, %v260
        %v465 = vpop.permute.xlu0 %464
        %468 = vset.pattern.permute.xlu0 0
        %469 = vperm.xlu0 %468, %v261
        %v470 = vpop.permute.xlu0 %469
        %473 = vset.pattern.permute.xlu0 0
        %474 = vperm.xlu0 %473, %v262
        %v475 = vpop.permute.xlu0 %474
        %478 = vset.pattern.permute.xlu0 0
        %479 = vperm.xlu0 %478, %v263
        %v480 = vpop.permute.xlu0 %479
        %483 = vset.pattern.permute.xlu0 0
        %484 = vperm.xlu0 %483, %v264
        %v485 = vpop.permute.xlu0 %484
        %488 = vset.pattern.permute.xlu0 0
        %489 = vperm.xlu0 %488, %v265
        %v490 = vpop.permute.xlu0 %489
        %493 = vset.pattern.permute.xlu0 0
        %494 = vperm.xlu0 %493, %v266
        %v495 = vpop.permute.xlu0 %494
        %498 = vset.pattern.permute.xlu0 0
        %499 = vperm.xlu0 %498, %v267
        %v500 = vpop.permute.xlu0 %499
        %503 = vset.pattern.permute.xlu0 0
        %504 = vperm.xlu0 %503, %v268
        %v505 = vpop.permute.xlu0 %504
        %508 = vset.pattern.permute.xlu0 0
        %509 = vperm.xlu0 %508, %v269
        %v510 = vpop.permute.xlu0 %509
        %513 = vset.pattern.permute.xlu0 0
        %514 = vperm.xlu0 %513, %v270
        %v515 = vpop.permute.xlu0 %514
        %518 = vset.pattern.permute.xlu0 0
        %519 = vperm.xlu0 %518, %v271
        %v520 = vpop.permute.xlu0 %519
        %523 = vset.pattern.permute.xlu0 0
        %524 = vperm.xlu0 %523, %v272
        %v525 = vpop.permute.xlu0 %524
        %528 = vset.pattern.permute.xlu0 0
        %529 = vperm.xlu0 %528, %v273
        %v530 = vpop.permute.xlu0 %529
        %533 = vset.pattern.permute.xlu0 0
        %534 = vperm.xlu0 %533, %v274
        %v535 = vpop.permute.xlu0 %534
        %538 = vset.pattern.permute.xlu0 0
        %539 = vperm.xlu0 %538, %v275
        %v540 = vpop.permute.xlu0 %539
        %543 = vset.pattern.permute.xlu0 0
        %544 = vperm.xlu0 %543, %v276
        %v545 = vpop.permute.xlu0 %544
        %548 = vset.pattern.permute.xlu0 0
        %549 = vperm.xlu0 %548, %v277
        %v550 = vpop.permute.xlu0 %549
        %553 = vset.pattern.permute.xlu0 0
        %554 = vperm.xlu0 %553, %v278
        %v555 = vpop.permute.xlu0 %554
        %558 = vset.pattern.permute.xlu0 0
        %559 = vperm.xlu0 %558, %v279
        %v560 = vpop.permute.xlu0 %559
        %563 = vset.pattern.permute.xlu0 0
        %564 = vperm.xlu0 %563, %v280
        %v565 = vpop.permute.xlu0 %564
        %568 = vset.pattern.permute.xlu0 0
        %569 = vperm.xlu0 %568, %v281
        %v570 = vpop.permute.xlu0 %569
        %573 = vset.pattern.permute.xlu0 0
        %574 = vperm.xlu0 %573, %v282
        %v575 = vpop.permute.xlu0 %574
        %578 = vset.pattern.permute.xlu0 0
        %579 = vperm.xlu0 %578, %v283
        %v580 = vpop.permute.xlu0 %579
        %583 = vset.pattern.permute.xlu0 0
        %584 = vperm.xlu0 %583, %v284
        %v585 = vpop.permute.xlu0 %584
        %588 = vset.pattern.permute.xlu0 0
        %589 = vperm.xlu0 %588, %v285
        %v590 = vpop.permute.xlu0 %589
        %593 = vset.pattern.permute.xlu0 0
        %594 = vperm.xlu0 %593, %v286
        %v595 = vpop.permute.xlu0 %594
        %598 = vset.pattern.permute.xlu0 0
        %599 = vperm.xlu0 %598, %v287
        %v600 = vpop.permute.xlu0 %599
        %603 = vset.pattern.permute.xlu0 0
        %604 = vperm.xlu0 %603, %v288
        %v605 = vpop.permute.xlu0 %604
        %608 = vset.pattern.permute.xlu0 0
        %609 = vperm.xlu0 %608, %v289
        %v610 = vpop.permute.xlu0 %609
        %613 = vset.pattern.permute.xlu0 0
        %614 = vperm.xlu0 %613, %v290
        %v615 = vpop.permute.xlu0 %614
        %618 = vset.pattern.permute.xlu0 0
        %619 = vperm.xlu0 %618, %v291
        %v620 = vpop.permute.xlu0 %619
        %623 = vset.pattern.permute.xlu0 0
        %624 = vperm.xlu0 %623, %v292
        %v625 = vpop.permute.xlu0 %624
        %628 = vset.pattern.permute.xlu0 0
        %629 = vperm.xlu0 %628, %v293
        %v630 = vpop.permute.xlu0 %629
        %633 = vset.pattern.permute.xlu0 0
        %634 = vperm.xlu0 %633, %v294
        %v635 = vpop.permute.xlu0 %634
        %638 = vset.pattern.permute.xlu0 0
        %639 = vperm.xlu0 %638, %v295
        %v640 = vpop.permute.xlu0 %639
        %643 = vset.pattern.permute.xlu0 0
        %644 = vperm.xlu0 %643, %v296
        %v645 = vpop.permute.xlu0 %644
        %648 = vset.pattern.permute.xlu0 0
        %649 = vperm.xlu0 %648, %v297
        %v650 = vpop.permute.xlu0 %649
        %653 = vset.pattern.permute.xlu0 0
        %654 = vperm.xlu0 %653, %v298
        %v655 = vpop.permute.xlu0 %654
        %658 = vset.pattern.permute.xlu0 0
        %659 = vperm.xlu0 %658, %v299
        %v660 = vpop.permute.xlu0 %659
        %663 = vset.pattern.permute.xlu0 0
        %664 = vperm.xlu0 %663, %v300
        %v665 = vpop.permute.xlu0 %664
        %668 = vset.pattern.permute.xlu0 0
        %669 = vperm.xlu0 %668, %v301
        %v670 = vpop.permute.xlu0 %669
        %673 = vset.pattern.permute.xlu0 0
        %674 = vperm.xlu0 %673, %v302
        %v675 = vpop.permute.xlu0 %674
        %678 = vset.pattern.permute.xlu0 0
        %679 = vperm.xlu0 %678, %v303
        %v680 = vpop.permute.xlu0 %679
        %683 = vset.pattern.permute.xlu0 0
        %684 = vperm.xlu0 %683, %v304
        %v685 = vpop.permute.xlu0 %684
        %688 = vset.pattern.permute.xlu0 0
        %689 = vperm.xlu0 %688, %v305
        %v690 = vpop.permute.xlu0 %689
        %693 = vset.pattern.permute.xlu0 0
        %694 = vperm.xlu0 %693, %v306
        %v695 = vpop.permute.xlu0 %694
        %698 = vset.pattern.permute.xlu0 0
        %699 = vperm.xlu0 %698, %v307
        %v700 = vpop.permute.xlu0 %699
        %703 = vset.pattern.permute.xlu0 0
        %704 = vperm.xlu0 %703, %v308
        %v705 = vpop.permute.xlu0 %704
        %708 = vset.pattern.permute.xlu0 0
        %709 = vperm.xlu0 %708, %v309
        %v710 = vpop.permute.xlu0 %709
        %713 = vset.pattern.permute.xlu0 0
        %714 = vperm.xlu0 %713, %v310
        %v715 = vpop.permute.xlu0 %714
        %718 = vset.pattern.permute.xlu0 0
        %719 = vperm.xlu0 %718, %v311
        %v720 = vpop.permute.xlu0 %719
        %723 = vset.pattern.permute.xlu0 0
        %724 = vperm.xlu0 %723, %v312
        %v725 = vpop.permute.xlu0 %724
        %728 = vset.pattern.permute.xlu0 0
        %729 = vperm.xlu0 %728, %v313
        %v730 = vpop.permute.xlu0 %729
        %733 = vset.pattern.permute.xlu0 0
        %734 = vperm.xlu0 %733, %v314
        %v735 = vpop.permute.xlu0 %734
        %738 = vset.pattern.permute.xlu0 0
        %739 = vperm.xlu0 %738, %v315
        %v740 = vpop.permute.xlu0 %739
        %743 = vset.pattern.permute.xlu0 0
        %744 = vperm.xlu0 %743, %v316
        %v745 = vpop.permute.xlu0 %744
        %748 = vset.pattern.permute.xlu0 0
        %749 = vperm.xlu0 %748, %v317
        %v750 = vpop.permute.xlu0 %749
        %753 = vset.pattern.permute.xlu0 0
        %754 = vperm.xlu0 %753, %v318
        %v755 = vpop.permute.xlu0 %754
        %758 = vset.pattern.permute.xlu0 0
        %759 = vperm.xlu0 %758, %v319
        %v760 = vpop.permute.xlu0 %759
        %763 = vset.pattern.permute.xlu0 0
        %764 = vperm.xlu0 %763, %v320
        %v765 = vpop.permute.xlu0 %764
        %768 = vset.pattern.permute.xlu0 0
        %769 = vperm.xlu0 %768, %v321
        %v770 = vpop.permute.xlu0 %769
        %773 = vset.pattern.permute.xlu0 0
        %774 = vperm.xlu0 %773, %v322
        %v775 = vpop.permute.xlu0 %774
        %778 = vset.pattern.permute.xlu0 0
        %779 = vperm.xlu0 %778, %v323
        %v780 = vpop.permute.xlu0 %779
        %783 = vset.pattern.permute.xlu0 0
        %784 = vperm.xlu0 %783, %v324
        %v785 = vpop.permute.xlu0 %784
        %788 = vset.pattern.permute.xlu0 0
        %789 = vperm.xlu0 %788, %v325
        %v790 = vpop.permute.xlu0 %789
        %793 = vset.pattern.permute.xlu0 0
        %794 = vperm.xlu0 %793, %v326
        %v795 = vpop.permute.xlu0 %794
        %798 = vset.pattern.permute.xlu0 0
        %799 = vperm.xlu0 %798, %v327
        %v800 = vpop.permute.xlu0 %799
        %803 = vset.pattern.permute.xlu0 0
        %804 = vperm.xlu0 %803, %v328
        %v805 = vpop.permute.xlu0 %804
        %808 = vset.pattern.permute.xlu0 0
        %809 = vperm.xlu0 %808, %v329
        %v810 = vpop.permute.xlu0 %809
        %813 = vset.pattern.permute.xlu0 0
        %814 = vperm.xlu0 %813, %v330
        %v815 = vpop.permute.xlu0 %814
        %818 = vset.pattern.permute.xlu0 0
        %819 = vperm.xlu0 %818, %v331
        %v820 = vpop.permute.xlu0 %819
        %823 = vset.pattern.permute.xlu0 0
        %824 = vperm.xlu0 %823, %v332
        %v825 = vpop.permute.xlu0 %824
        %828 = vset.pattern.permute.xlu0 0
        %829 = vperm.xlu0 %828, %v333
        %v830 = vpop.permute.xlu0 %829
        %833 = vset.pattern.permute.xlu0 0
        %834 = vperm.xlu0 %833, %v334
        %v835 = vpop.permute.xlu0 %834
        %838 = vset.pattern.permute.xlu0 0
        %839 = vperm.xlu0 %838, %v335
        %v840 = vpop.permute.xlu0 %839
        %843 = vset.pattern.permute.xlu0 0
        %844 = vperm.xlu0 %843, %v336
        %v845 = vpop.permute.xlu0 %844
        %848 = vset.pattern.permute.xlu0 0
        %849 = vperm.xlu0 %848, %v337
        %v850 = vpop.permute.xlu0 %849
        %853 = vset.pattern.permute.xlu0 0
        %854 = vperm.xlu0 %853, %v338
        %v855 = vpop.permute.xlu0 %854
        %858 = vset.pattern.permute.xlu0 0
        %859 = vperm.xlu0 %858, %v339
        %v860 = vpop.permute.xlu0 %859
        %863 = vset.pattern.permute.xlu0 0
        %864 = vperm.xlu0 %863, %v340
        %v865 = vpop.permute.xlu0 %864
        %868 = vset.pattern.permute.xlu0 0
        %869 = vperm.xlu0 %868, %v341
        %v870 = vpop.permute.xlu0 %869
        %873 = vset.pattern.permute.xlu0 0
        %874 = vperm.xlu0 %873, %v342
        %v875 = vpop.permute.xlu0 %874
        %878 = vset.pattern.permute.xlu0 0
        %879 = vperm.xlu0 %878, %v343
        %v880 = vpop.permute.xlu0 %879
        %883 = vset.pattern.permute.xlu0 0
        %884 = vperm.xlu0 %883, %v344
        %v885 = vpop.permute.xlu0 %884
        %888 = vset.pattern.permute.xlu0 0
        %889 = vperm.xlu0 %888, %v345
        %v890 = vpop.permute.xlu0 %889
        %893 = vset.pattern.permute.xlu0 0
        %894 = vperm.xlu0 %893, %v346
        %v895 = vpop.permute.xlu0 %894
        %898 = vset.pattern.permute.xlu0 0
        %899 = vperm.xlu0 %898, %v347
        %v900 = vpop.permute.xlu0 %899
        %903 = vset.pattern.permute.xlu0 0
        %904 = vperm.xlu0 %903, %v348
        %v905 = vpop.permute.xlu0 %904
        %908 = vset.pattern.permute.xlu0 0
        %909 = vperm.xlu0 %908, %v349
        %v910 = vpop.permute.xlu0 %909
        %913 = vset.pattern.permute.xlu0 0
        %914 = vperm.xlu0 %913, %v350
        %v915 = vpop.permute.xlu0 %914
        %918 = vset.pattern.permute.xlu0 0
        %919 = vperm.xlu0 %918, %v351
        %v920 = vpop.permute.xlu0 %919
        %923 = vset.pattern.permute.xlu0 0
        %924 = vperm.xlu0 %923, %v352
        %v925 = vpop.permute.xlu0 %924
        %928 = vset.pattern.permute.xlu0 0
        %929 = vperm.xlu0 %928, %v353
        %v930 = vpop.permute.xlu0 %929
        %933 = vset.pattern.permute.xlu0 0
        %934 = vperm.xlu0 %933, %v354
        %v935 = vpop.permute.xlu0 %934
        %938 = vset.pattern.permute.xlu0 0
        %939 = vperm.xlu0 %938, %v355
        %v940 = vpop.permute.xlu0 %939
        %943 = vset.pattern.permute.xlu0 0
        %944 = vperm.xlu0 %943, %v356
        %v945 = vpop.permute.xlu0 %944
        %948 = vset.pattern.permute.xlu0 0
        %949 = vperm.xlu0 %948, %v357
        %v950 = vpop.permute.xlu0 %949
        %953 = vset.pattern.permute.xlu0 0
        %954 = vperm.xlu0 %953, %v358
        %v955 = vpop.permute.xlu0 %954
        %958 = vset.pattern.permute.xlu0 0
        %959 = vperm.xlu0 %958, %v359
        %v960 = vpop.permute.xlu0 %959
        %963 = vset.pattern.permute.xlu0 0
        %964 = vperm.xlu0 %963, %v360
        %v965 = vpop.permute.xlu0 %964
        %968 = vset.pattern.permute.xlu0 0
        %969 = vperm.xlu0 %968, %v361
        %v970 = vpop.permute.xlu0 %969
        %973 = vset.pattern.permute.xlu0 0
        %974 = vperm.xlu0 %973, %v362
        %v975 = vpop.permute.xlu0 %974
        %978 = vset.pattern.permute.xlu0 0
        %979 = vperm.xlu0 %978, %v363
        %v980 = vpop.permute.xlu0 %979
        %983 = vset.pattern.permute.xlu0 0
        %984 = vperm.xlu0 %983, %v364
        %v985 = vpop.permute.xlu0 %984
        %988 = vset.pattern.permute.xlu0 0
        %989 = vperm.xlu0 %988, %v365
        %v990 = vpop.permute.xlu0 %989
        %993 = vset.pattern.permute.xlu0 0
        %994 = vperm.xlu0 %993, %v366
        %v995 = vpop.permute.xlu0 %994
        %998 = vset.pattern.permute.xlu0 0
        %999 = vperm.xlu0 %998, %v367
        %v1000 = vpop.permute.xlu0 %999
        %1003 = vset.pattern.permute.xlu0 0
        %1004 = vperm.xlu0 %1003, %v368
        %v1005 = vpop.permute.xlu0 %1004
        %1008 = vset.pattern.permute.xlu0 0
        %1009 = vperm.xlu0 %1008, %v369
        %v1010 = vpop.permute.xlu0 %1009
        %1013 = vset.pattern.permute.xlu0 0
        %1014 = vperm.xlu0 %1013, %v370
        %v1015 = vpop.permute.xlu0 %1014
        %1018 = vset.pattern.permute.xlu0 0
        %1019 = vperm.xlu0 %1018, %v371
        %v1020 = vpop.permute.xlu0 %1019
        %1023 = vset.pattern.permute.xlu0 0
        %1024 = vperm.xlu0 %1023, %v372
        %v1025 = vpop.permute.xlu0 %1024
        %1028 = vset.pattern.permute.xlu0 0
        %1029 = vperm.xlu0 %1028, %v373
        %v1030 = vpop.permute.xlu0 %1029
        %v1032 = vlaneseq
        %v1033 = vshrl.u32 %v1032, 7
        %v1034 = vsub.s32 0, %v1033
        %v1035 = vrot.slane %v374, %v1034
        %v1036 = vmul.f32 %v395, %v1035
        %v1037 = vmul.f32 %v400, %v1035
        %v1038 = vmul.f32 %v405, %v1035
        %v1039 = vmul.f32 %v410, %v1035
        %v1040 = vmul.f32 %v415, %v1035
        %v1041 = vmul.f32 %v420, %v1035
        %v1042 = vmul.f32 %v425, %v1035
        %v1043 = vmul.f32 %v430, %v1035
        %v1044 = vmul.f32 %v435, %v1035
        %v1045 = vmul.f32 %v440, %v1035
        %v1046 = vmul.f32 %v445, %v1035
        %v1047 = vmul.f32 %v450, %v1035
        %v1048 = vmul.f32 %v455, %v1035
        %v1049 = vmul.f32 %v460, %v1035
        %v1050 = vmul.f32 %v465, %v1035
        %v1051 = vmul.f32 %v470, %v1035
        %v1052 = vmul.f32 %v475, %v1035
        %v1053 = vmul.f32 %v480, %v1035
        %v1054 = vmul.f32 %v485, %v1035
        %v1055 = vmul.f32 %v490, %v1035
        %v1056 = vmul.f32 %v495, %v1035
        %v1057 = vmul.f32 %v500, %v1035
        %v1058 = vmul.f32 %v505, %v1035
        %v1059 = vmul.f32 %v510, %v1035
        %v1060 = vmul.f32 %v515, %v1035
        %v1061 = vmul.f32 %v520, %v1035
        %v1062 = vmul.f32 %v525, %v1035
        %v1063 = vmul.f32 %v530, %v1035
        %v1064 = vmul.f32 %v535, %v1035
        %v1065 = vmul.f32 %v540, %v1035
        %v1066 = vmul.f32 %v545, %v1035
        %v1067 = vmul.f32 %v550, %v1035
        %v1068 = vmul.f32 %v555, %v1035
        %v1069 = vmul.f32 %v560, %v1035
        %v1070 = vmul.f32 %v565, %v1035
        %v1071 = vmul.f32 %v570, %v1035
        %v1072 = vmul.f32 %v575, %v1035
        %v1073 = vmul.f32 %v580, %v1035
        %v1074 = vmul.f32 %v585, %v1035
        %v1075 = vmul.f32 %v590, %v1035
        %v1076 = vmul.f32 %v595, %v1035
        %v1077 = vmul.f32 %v600, %v1035
        %v1078 = vmul.f32 %v605, %v1035
        %v1079 = vmul.f32 %v610, %v1035
        %v1080 = vmul.f32 %v615, %v1035
        %v1081 = vmul.f32 %v620, %v1035
        %v1082 = vmul.f32 %v625, %v1035
        %v1083 = vmul.f32 %v630, %v1035
        %v1084 = vmul.f32 %v635, %v1035
        %v1085 = vmul.f32 %v640, %v1035
        %v1086 = vmul.f32 %v645, %v1035
        %v1087 = vmul.f32 %v650, %v1035
        %v1088 = vmul.f32 %v655, %v1035
        %v1089 = vmul.f32 %v660, %v1035
        %v1090 = vmul.f32 %v665, %v1035
        %v1091 = vmul.f32 %v670, %v1035
        %v1092 = vmul.f32 %v675, %v1035
        %v1093 = vmul.f32 %v680, %v1035
        %v1094 = vmul.f32 %v685, %v1035
        %v1095 = vmul.f32 %v690, %v1035
        %v1096 = vmul.f32 %v695, %v1035
        %v1097 = vmul.f32 %v700, %v1035
        %v1098 = vmul.f32 %v705, %v1035
        %v1099 = vmul.f32 %v710, %v1035
        %v1100 = vmul.f32 %v715, %v1035
        %v1101 = vmul.f32 %v720, %v1035
        %v1102 = vmul.f32 %v725, %v1035
        %v1103 = vmul.f32 %v730, %v1035
        %v1104 = vmul.f32 %v735, %v1035
        %v1105 = vmul.f32 %v740, %v1035
        %v1106 = vmul.f32 %v745, %v1035
        %v1107 = vmul.f32 %v750, %v1035
        %v1108 = vmul.f32 %v755, %v1035
        %v1109 = vmul.f32 %v760, %v1035
        %v1110 = vmul.f32 %v765, %v1035
        %v1111 = vmul.f32 %v770, %v1035
        %v1112 = vmul.f32 %v775, %v1035
        %v1113 = vmul.f32 %v780, %v1035
        %v1114 = vmul.f32 %v785, %v1035
        %v1115 = vmul.f32 %v790, %v1035
        %v1116 = vmul.f32 %v795, %v1035
        %v1117 = vmul.f32 %v800, %v1035
        %v1118 = vmul.f32 %v805, %v1035
        %v1119 = vmul.f32 %v810, %v1035
        %v1120 = vmul.f32 %v815, %v1035
        %v1121 = vmul.f32 %v820, %v1035
        %v1122 = vmul.f32 %v825, %v1035
        %v1123 = vmul.f32 %v830, %v1035
        %v1124 = vmul.f32 %v835, %v1035
        %v1125 = vmul.f32 %v840, %v1035
        %v1126 = vmul.f32 %v845, %v1035
        %v1127 = vmul.f32 %v850, %v1035
        %v1128 = vmul.f32 %v855, %v1035
        %v1129 = vmul.f32 %v860, %v1035
        %v1130 = vmul.f32 %v865, %v1035
        %v1131 = vmul.f32 %v870, %v1035
        %v1132 = vmul.f32 %v875, %v1035
        %v1133 = vmul.f32 %v880, %v1035
        %v1134 = vmul.f32 %v885, %v1035
        %v1135 = vmul.f32 %v890, %v1035
        %v1136 = vmul.f32 %v895, %v1035
        %v1137 = vmul.f32 %v900, %v1035
        %v1138 = vmul.f32 %v905, %v1035
        %v1139 = vmul.f32 %v910, %v1035
        %v1140 = vmul.f32 %v915, %v1035
        %v1141 = vmul.f32 %v920, %v1035
        %v1142 = vmul.f32 %v925, %v1035
        %v1143 = vmul.f32 %v930, %v1035
        %v1144 = vmul.f32 %v935, %v1035
        %v1145 = vmul.f32 %v940, %v1035
        %v1146 = vmul.f32 %v945, %v1035
        %v1147 = vmul.f32 %v950, %v1035
        %v1148 = vmul.f32 %v955, %v1035
        %v1149 = vmul.f32 %v960, %v1035
        %v1150 = vmul.f32 %v965, %v1035
        %v1151 = vmul.f32 %v970, %v1035
        %v1152 = vmul.f32 %v975, %v1035
        %v1153 = vmul.f32 %v980, %v1035
        %v1154 = vmul.f32 %v985, %v1035
        %v1155 = vmul.f32 %v990, %v1035
        %v1156 = vmul.f32 %v995, %v1035
        %v1157 = vmul.f32 %v1000, %v1035
        %v1158 = vmul.f32 %v1005, %v1035
        %v1159 = vmul.f32 %v1010, %v1035
        %v1160 = vmul.f32 %v1015, %v1035
        %v1161 = vmul.f32 %v1020, %v1035
        %v1162 = vmul.f32 %v1025, %v1035
        %v1163 = vmul.f32 %v1030, %v1035
        %v1164 = vlaneseq
        %v1165 = vshrl.u32 %v1164, 7
        %v1166 = vsub.s32 1, %v1165
        %v1167 = vrot.slane %v374, %v1166
        %v1168 = vadd.f32 %v1036, %v1167
        %v1169 = vadd.f32 %v1037, %v1167
        %v1170 = vadd.f32 %v1038, %v1167
        %v1171 = vadd.f32 %v1039, %v1167
        %v1172 = vadd.f32 %v1040, %v1167
        %v1173 = vadd.f32 %v1041, %v1167
        %v1174 = vadd.f32 %v1042, %v1167
        %v1175 = vadd.f32 %v1043, %v1167
        %v1176 = vadd.f32 %v1044, %v1167
        %v1177 = vadd.f32 %v1045, %v1167
        %v1178 = vadd.f32 %v1046, %v1167
        %v1179 = vadd.f32 %v1047, %v1167
        %v1180 = vadd.f32 %v1048, %v1167
        %v1181 = vadd.f32 %v1049, %v1167
        %v1182 = vadd.f32 %v1050, %v1167
        %v1183 = vadd.f32 %v1051, %v1167
        %v1184 = vadd.f32 %v1052, %v1167
        %v1185 = vadd.f32 %v1053, %v1167
        %v1186 = vadd.f32 %v1054, %v1167
        %v1187 = vadd.f32 %v1055, %v1167
        %v1188 = vadd.f32 %v1056, %v1167
        %v1189 = vadd.f32 %v1057, %v1167
        %v1190 = vadd.f32 %v1058, %v1167
        %v1191 = vadd.f32 %v1059, %v1167
        %v1192 = vadd.f32 %v1060, %v1167
        %v1193 = vadd.f32 %v1061, %v1167
        %v1194 = vadd.f32 %v1062, %v1167
        %v1195 = vadd.f32 %v1063, %v1167
        %v1196 = vadd.f32 %v1064, %v1167
        %v1197 = vadd.f32 %v1065, %v1167
        %v1198 = vadd.f32 %v1066, %v1167
        %v1199 = vadd.f32 %v1067, %v1167
        %v1200 = vadd.f32 %v1068, %v1167
        %v1201 = vadd.f32 %v1069, %v1167
        %v1202 = vadd.f32 %v1070, %v1167
        %v1203 = vadd.f32 %v1071, %v1167
        %v1204 = vadd.f32 %v1072, %v1167
        %v1205 = vadd.f32 %v1073, %v1167
        %v1206 = vadd.f32 %v1074, %v1167
        %v1207 = vadd.f32 %v1075, %v1167
        %v1208 = vadd.f32 %v1076, %v1167
        %v1209 = vadd.f32 %v1077, %v1167
        %v1210 = vadd.f32 %v1078, %v1167
        %v1211 = vadd.f32 %v1079, %v1167
        %v1212 = vadd.f32 %v1080, %v1167
        %v1213 = vadd.f32 %v1081, %v1167
        %v1214 = vadd.f32 %v1082, %v1167
        %v1215 = vadd.f32 %v1083, %v1167
        %v1216 = vadd.f32 %v1084, %v1167
        %v1217 = vadd.f32 %v1085, %v1167
        %v1218 = vadd.f32 %v1086, %v1167
        %v1219 = vadd.f32 %v1087, %v1167
        %v1220 = vadd.f32 %v1088, %v1167
        %v1221 = vadd.f32 %v1089, %v1167
        %v1222 = vadd.f32 %v1090, %v1167
        %v1223 = vadd.f32 %v1091, %v1167
        %v1224 = vadd.f32 %v1092, %v1167
        %v1225 = vadd.f32 %v1093, %v1167
        %v1226 = vadd.f32 %v1094, %v1167
        %v1227 = vadd.f32 %v1095, %v1167
        %v1228 = vadd.f32 %v1096, %v1167
        %v1229 = vadd.f32 %v1097, %v1167
        %v1230 = vadd.f32 %v1098, %v1167
        %v1231 = vadd.f32 %v1099, %v1167
        %v1232 = vadd.f32 %v1100, %v1167
        %v1233 = vadd.f32 %v1101, %v1167
        %v1234 = vadd.f32 %v1102, %v1167
        %v1235 = vadd.f32 %v1103, %v1167
        %v1236 = vadd.f32 %v1104, %v1167
        %v1237 = vadd.f32 %v1105, %v1167
        %v1238 = vadd.f32 %v1106, %v1167
        %v1239 = vadd.f32 %v1107, %v1167
        %v1240 = vadd.f32 %v1108, %v1167
        %v1241 = vadd.f32 %v1109, %v1167
        %v1242 = vadd.f32 %v1110, %v1167
        %v1243 = vadd.f32 %v1111, %v1167
        %v1244 = vadd.f32 %v1112, %v1167
        %v1245 = vadd.f32 %v1113, %v1167
        %v1246 = vadd.f32 %v1114, %v1167
        %v1247 = vadd.f32 %v1115, %v1167
        %v1248 = vadd.f32 %v1116, %v1167
        %v1249 = vadd.f32 %v1117, %v1167
        %v1250 = vadd.f32 %v1118, %v1167
        %v1251 = vadd.f32 %v1119, %v1167
        %v1252 = vadd.f32 %v1120, %v1167
        %v1253 = vadd.f32 %v1121, %v1167
        %v1254 = vadd.f32 %v1122, %v1167
        %v1255 = vadd.f32 %v1123, %v1167
        %v1256 = vadd.f32 %v1124, %v1167
        %v1257 = vadd.f32 %v1125, %v1167
        %v1258 = vadd.f32 %v1126, %v1167
        %v1259 = vadd.f32 %v1127, %v1167
        %v1260 = vadd.f32 %v1128, %v1167
        %v1261 = vadd.f32 %v1129, %v1167
        %v1262 = vadd.f32 %v1130, %v1167
        %v1263 = vadd.f32 %v1131, %v1167
        %v1264 = vadd.f32 %v1132, %v1167
        %v1265 = vadd.f32 %v1133, %v1167
        %v1266 = vadd.f32 %v1134, %v1167
        %v1267 = vadd.f32 %v1135, %v1167
        %v1268 = vadd.f32 %v1136, %v1167
        %v1269 = vadd.f32 %v1137, %v1167
        %v1270 = vadd.f32 %v1138, %v1167
        %v1271 = vadd.f32 %v1139, %v1167
        %v1272 = vadd.f32 %v1140, %v1167
        %v1273 = vadd.f32 %v1141, %v1167
        %v1274 = vadd.f32 %v1142, %v1167
        %v1275 = vadd.f32 %v1143, %v1167
        %v1276 = vadd.f32 %v1144, %v1167
        %v1277 = vadd.f32 %v1145, %v1167
        %v1278 = vadd.f32 %v1146, %v1167
        %v1279 = vadd.f32 %v1147, %v1167
        %v1280 = vadd.f32 %v1148, %v1167
        %v1281 = vadd.f32 %v1149, %v1167
        %v1282 = vadd.f32 %v1150, %v1167
        %v1283 = vadd.f32 %v1151, %v1167
        %v1284 = vadd.f32 %v1152, %v1167
        %v1285 = vadd.f32 %v1153, %v1167
        %v1286 = vadd.f32 %v1154, %v1167
        %v1287 = vadd.f32 %v1155, %v1167
        %v1288 = vadd.f32 %v1156, %v1167
        %v1289 = vadd.f32 %v1157, %v1167
        %v1290 = vadd.f32 %v1158, %v1167
        %v1291 = vadd.f32 %v1159, %v1167
        %v1292 = vadd.f32 %v1160, %v1167
        %v1293 = vadd.f32 %v1161, %v1167
        %v1294 = vadd.f32 %v1162, %v1167
        %v1295 = vadd.f32 %v1163, %v1167
        %v1296 = vmul.f32 %v1168, %v1168
        %v1297 = vmul.f32 %v1169, %v1169
        %v1298 = vmul.f32 %v1170, %v1170
        %v1299 = vmul.f32 %v1171, %v1171
        %v1300 = vmul.f32 %v1172, %v1172
        %v1301 = vmul.f32 %v1173, %v1173
        %v1302 = vmul.f32 %v1174, %v1174
        %v1303 = vmul.f32 %v1175, %v1175
        %v1304 = vmul.f32 %v1176, %v1176
        %v1305 = vmul.f32 %v1177, %v1177
        %v1306 = vmul.f32 %v1178, %v1178
        %v1307 = vmul.f32 %v1179, %v1179
        %v1308 = vmul.f32 %v1180, %v1180
        %v1309 = vmul.f32 %v1181, %v1181
        %v1310 = vmul.f32 %v1182, %v1182
        %v1311 = vmul.f32 %v1183, %v1183
        %v1312 = vmul.f32 %v1184, %v1184
        %v1313 = vmul.f32 %v1185, %v1185
        %v1314 = vmul.f32 %v1186, %v1186
        %v1315 = vmul.f32 %v1187, %v1187
        %v1316 = vmul.f32 %v1188, %v1188
        %v1317 = vmul.f32 %v1189, %v1189
        %v1318 = vmul.f32 %v1190, %v1190
        %v1319 = vmul.f32 %v1191, %v1191
        %v1320 = vmul.f32 %v1192, %v1192
        %v1321 = vmul.f32 %v1193, %v1193
        %v1322 = vmul.f32 %v1194, %v1194
        %v1323 = vmul.f32 %v1195, %v1195
        %v1324 = vmul.f32 %v1196, %v1196
        %v1325 = vmul.f32 %v1197, %v1197
        %v1326 = vmul.f32 %v1198, %v1198
        %v1327 = vmul.f32 %v1199, %v1199
        %v1328 = vmul.f32 %v1200, %v1200
        %v1329 = vmul.f32 %v1201, %v1201
        %v1330 = vmul.f32 %v1202, %v1202
        %v1331 = vmul.f32 %v1203, %v1203
        %v1332 = vmul.f32 %v1204, %v1204
        %v1333 = vmul.f32 %v1205, %v1205
        %v1334 = vmul.f32 %v1206, %v1206
        %v1335 = vmul.f32 %v1207, %v1207
        %v1336 = vmul.f32 %v1208, %v1208
        %v1337 = vmul.f32 %v1209, %v1209
        %v1338 = vmul.f32 %v1210, %v1210
        %v1339 = vmul.f32 %v1211, %v1211
        %v1340 = vmul.f32 %v1212, %v1212
        %v1341 = vmul.f32 %v1213, %v1213
        %v1342 = vmul.f32 %v1214, %v1214
        %v1343 = vmul.f32 %v1215, %v1215
        %v1344 = vmul.f32 %v1216, %v1216
        %v1345 = vmul.f32 %v1217, %v1217
        %v1346 = vmul.f32 %v1218, %v1218
        %v1347 = vmul.f32 %v1219, %v1219
        %v1348 = vmul.f32 %v1220, %v1220
        %v1349 = vmul.f32 %v1221, %v1221
        %v1350 = vmul.f32 %v1222, %v1222
        %v1351 = vmul.f32 %v1223, %v1223
        %v1352 = vmul.f32 %v1224, %v1224
        %v1353 = vmul.f32 %v1225, %v1225
        %v1354 = vmul.f32 %v1226, %v1226
        %v1355 = vmul.f32 %v1227, %v1227
        %v1356 = vmul.f32 %v1228, %v1228
        %v1357 = vmul.f32 %v1229, %v1229
        %v1358 = vmul.f32 %v1230, %v1230
        %v1359 = vmul.f32 %v1231, %v1231
        %v1360 = vmul.f32 %v1232, %v1232
        %v1361 = vmul.f32 %v1233, %v1233
        %v1362 = vmul.f32 %v1234, %v1234
        %v1363 = vmul.f32 %v1235, %v1235
        %v1364 = vmul.f32 %v1236, %v1236
        %v1365 = vmul.f32 %v1237, %v1237
        %v1366 = vmul.f32 %v1238, %v1238
        %v1367 = vmul.f32 %v1239, %v1239
        %v1368 = vmul.f32 %v1240, %v1240
        %v1369 = vmul.f32 %v1241, %v1241
        %v1370 = vmul.f32 %v1242, %v1242
        %v1371 = vmul.f32 %v1243, %v1243
        %v1372 = vmul.f32 %v1244, %v1244
        %v1373 = vmul.f32 %v1245, %v1245
        %v1374 = vmul.f32 %v1246, %v1246
        %v1375 = vmul.f32 %v1247, %v1247
        %v1376 = vmul.f32 %v1248, %v1248
        %v1377 = vmul.f32 %v1249, %v1249
        %v1378 = vmul.f32 %v1250, %v1250
        %v1379 = vmul.f32 %v1251, %v1251
        %v1380 = vmul.f32 %v1252, %v1252
        %v1381 = vmul.f32 %v1253, %v1253
        %v1382 = vmul.f32 %v1254, %v1254
        %v1383 = vmul.f32 %v1255, %v1255
        %v1384 = vmul.f32 %v1256, %v1256
        %v1385 = vmul.f32 %v1257, %v1257
        %v1386 = vmul.f32 %v1258, %v1258
        %v1387 = vmul.f32 %v1259, %v1259
        %v1388 = vmul.f32 %v1260, %v1260
        %v1389 = vmul.f32 %v1261, %v1261
        %v1390 = vmul.f32 %v1262, %v1262
        %v1391 = vmul.f32 %v1263, %v1263
        %v1392 = vmul.f32 %v1264, %v1264
        %v1393 = vmul.f32 %v1265, %v1265
        %v1394 = vmul.f32 %v1266, %v1266
        %v1395 = vmul.f32 %v1267, %v1267
        %v1396 = vmul.f32 %v1268, %v1268
        %v1397 = vmul.f32 %v1269, %v1269
        %v1398 = vmul.f32 %v1270, %v1270
        %v1399 = vmul.f32 %v1271, %v1271
        %v1400 = vmul.f32 %v1272, %v1272
        %v1401 = vmul.f32 %v1273, %v1273
        %v1402 = vmul.f32 %v1274, %v1274
        %v1403 = vmul.f32 %v1275, %v1275
        %v1404 = vmul.f32 %v1276, %v1276
        %v1405 = vmul.f32 %v1277, %v1277
        %v1406 = vmul.f32 %v1278, %v1278
        %v1407 = vmul.f32 %v1279, %v1279
        %v1408 = vmul.f32 %v1280, %v1280
        %v1409 = vmul.f32 %v1281, %v1281
        %v1410 = vmul.f32 %v1282, %v1282
        %v1411 = vmul.f32 %v1283, %v1283
        %v1412 = vmul.f32 %v1284, %v1284
        %v1413 = vmul.f32 %v1285, %v1285
        %v1414 = vmul.f32 %v1286, %v1286
        %v1415 = vmul.f32 %v1287, %v1287
        %v1416 = vmul.f32 %v1288, %v1288
        %v1417 = vmul.f32 %v1289, %v1289
        %v1418 = vmul.f32 %v1290, %v1290
        %v1419 = vmul.f32 %v1291, %v1291
        %v1420 = vmul.f32 %v1292, %v1292
        %v1421 = vmul.f32 %v1293, %v1293
        %v1422 = vmul.f32 %v1294, %v1294
        %v1423 = vmul.f32 %v1295, %v1295
        %v1424 = vmul.f32 %v1296, %v1168
        %v1425 = vmul.f32 %v1297, %v1169
        %v1426 = vmul.f32 %v1298, %v1170
        %v1427 = vmul.f32 %v1299, %v1171
        %v1428 = vmul.f32 %v1300, %v1172
        %v1429 = vmul.f32 %v1301, %v1173
        %v1430 = vmul.f32 %v1302, %v1174
        %v1431 = vmul.f32 %v1303, %v1175
        %v1432 = vmul.f32 %v1304, %v1176
        %v1433 = vmul.f32 %v1305, %v1177
        %v1434 = vmul.f32 %v1306, %v1178
        %v1435 = vmul.f32 %v1307, %v1179
        %v1436 = vmul.f32 %v1308, %v1180
        %v1437 = vmul.f32 %v1309, %v1181
        %v1438 = vmul.f32 %v1310, %v1182
        %v1439 = vmul.f32 %v1311, %v1183
        %v1440 = vmul.f32 %v1312, %v1184
        %v1441 = vmul.f32 %v1313, %v1185
        %v1442 = vmul.f32 %v1314, %v1186
        %v1443 = vmul.f32 %v1315, %v1187
        %v1444 = vmul.f32 %v1316, %v1188
        %v1445 = vmul.f32 %v1317, %v1189
        %v1446 = vmul.f32 %v1318, %v1190
        %v1447 = vmul.f32 %v1319, %v1191
        %v1448 = vmul.f32 %v1320, %v1192
        %v1449 = vmul.f32 %v1321, %v1193
        %v1450 = vmul.f32 %v1322, %v1194
        %v1451 = vmul.f32 %v1323, %v1195
        %v1452 = vmul.f32 %v1324, %v1196
        %v1453 = vmul.f32 %v1325, %v1197
        %v1454 = vmul.f32 %v1326, %v1198
        %v1455 = vmul.f32 %v1327, %v1199
        %v1456 = vmul.f32 %v1328, %v1200
        %v1457 = vmul.f32 %v1329, %v1201
        %v1458 = vmul.f32 %v1330, %v1202
        %v1459 = vmul.f32 %v1331, %v1203
        %v1460 = vmul.f32 %v1332, %v1204
        %v1461 = vmul.f32 %v1333, %v1205
        %v1462 = vmul.f32 %v1334, %v1206
        %v1463 = vmul.f32 %v1335, %v1207
        %v1464 = vmul.f32 %v1336, %v1208
        %v1465 = vmul.f32 %v1337, %v1209
        %v1466 = vmul.f32 %v1338, %v1210
        %v1467 = vmul.f32 %v1339, %v1211
        %v1468 = vmul.f32 %v1340, %v1212
        %v1469 = vmul.f32 %v1341, %v1213
        %v1470 = vmul.f32 %v1342, %v1214
        %v1471 = vmul.f32 %v1343, %v1215
        %v1472 = vmul.f32 %v1344, %v1216
        %v1473 = vmul.f32 %v1345, %v1217
        %v1474 = vmul.f32 %v1346, %v1218
        %v1475 = vmul.f32 %v1347, %v1219
        %v1476 = vmul.f32 %v1348, %v1220
        %v1477 = vmul.f32 %v1349, %v1221
        %v1478 = vmul.f32 %v1350, %v1222
        %v1479 = vmul.f32 %v1351, %v1223
        %v1480 = vmul.f32 %v1352, %v1224
        %v1481 = vmul.f32 %v1353, %v1225
        %v1482 = vmul.f32 %v1354, %v1226
        %v1483 = vmul.f32 %v1355, %v1227
        %v1484 = vmul.f32 %v1356, %v1228
        %v1485 = vmul.f32 %v1357, %v1229
        %v1486 = vmul.f32 %v1358, %v1230
        %v1487 = vmul.f32 %v1359, %v1231
        %v1488 = vmul.f32 %v1360, %v1232
        %v1489 = vmul.f32 %v1361, %v1233
        %v1490 = vmul.f32 %v1362, %v1234
        %v1491 = vmul.f32 %v1363, %v1235
        %v1492 = vmul.f32 %v1364, %v1236
        %v1493 = vmul.f32 %v1365, %v1237
        %v1494 = vmul.f32 %v1366, %v1238
        %v1495 = vmul.f32 %v1367, %v1239
        %v1496 = vmul.f32 %v1368, %v1240
        %v1497 = vmul.f32 %v1369, %v1241
        %v1498 = vmul.f32 %v1370, %v1242
        %v1499 = vmul.f32 %v1371, %v1243
        %v1500 = vmul.f32 %v1372, %v1244
        %v1501 = vmul.f32 %v1373, %v1245
        %v1502 = vmul.f32 %v1374, %v1246
        %v1503 = vmul.f32 %v1375, %v1247
        %v1504 = vmul.f32 %v1376, %v1248
        %v1505 = vmul.f32 %v1377, %v1249
        %v1506 = vmul.f32 %v1378, %v1250
        %v1507 = vmul.f32 %v1379, %v1251
        %v1508 = vmul.f32 %v1380, %v1252
        %v1509 = vmul.f32 %v1381, %v1253
        %v1510 = vmul.f32 %v1382, %v1254
        %v1511 = vmul.f32 %v1383, %v1255
        %v1512 = vmul.f32 %v1384, %v1256
        %v1513 = vmul.f32 %v1385, %v1257
        %v1514 = vmul.f32 %v1386, %v1258
        %v1515 = vmul.f32 %v1387, %v1259
        %v1516 = vmul.f32 %v1388, %v1260
        %v1517 = vmul.f32 %v1389, %v1261
        %v1518 = vmul.f32 %v1390, %v1262
        %v1519 = vmul.f32 %v1391, %v1263
        %v1520 = vmul.f32 %v1392, %v1264
        %v1521 = vmul.f32 %v1393, %v1265
        %v1522 = vmul.f32 %v1394, %v1266
        %v1523 = vmul.f32 %v1395, %v1267
        %v1524 = vmul.f32 %v1396, %v1268
        %v1525 = vmul.f32 %v1397, %v1269
        %v1526 = vmul.f32 %v1398, %v1270
        %v1527 = vmul.f32 %v1399, %v1271
        %v1528 = vmul.f32 %v1400, %v1272
        %v1529 = vmul.f32 %v1401, %v1273
        %v1530 = vmul.f32 %v1402, %v1274
        %v1531 = vmul.f32 %v1403, %v1275
        %v1532 = vmul.f32 %v1404, %v1276
        %v1533 = vmul.f32 %v1405, %v1277
        %v1534 = vmul.f32 %v1406, %v1278
        %v1535 = vmul.f32 %v1407, %v1279
        %v1536 = vmul.f32 %v1408, %v1280
        %v1537 = vmul.f32 %v1409, %v1281
        %v1538 = vmul.f32 %v1410, %v1282
        %v1539 = vmul.f32 %v1411, %v1283
        %v1540 = vmul.f32 %v1412, %v1284
        %v1541 = vmul.f32 %v1413, %v1285
        %v1542 = vmul.f32 %v1414, %v1286
        %v1543 = vmul.f32 %v1415, %v1287
        %v1544 = vmul.f32 %v1416, %v1288
        %v1545 = vmul.f32 %v1417, %v1289
        %v1546 = vmul.f32 %v1418, %v1290
        %v1547 = vmul.f32 %v1419, %v1291
        %v1548 = vmul.f32 %v1420, %v1292
        %v1549 = vmul.f32 %v1421, %v1293
        %v1550 = vmul.f32 %v1422, %v1294
        %v1551 = vmul.f32 %v1423, %v1295
        %v1552 = vmul.f32 %v1424, 0.044715
        %v1553 = vmul.f32 %v1425, 0.044715
        %v1554 = vmul.f32 %v1426, 0.044715
        %v1555 = vmul.f32 %v1427, 0.044715
        %v1556 = vmul.f32 %v1428, 0.044715
        %v1557 = vmul.f32 %v1429, 0.044715
        %v1558 = vmul.f32 %v1430, 0.044715
        %v1559 = vmul.f32 %v1431, 0.044715
        %v1560 = vmul.f32 %v1432, 0.044715
        %v1561 = vmul.f32 %v1433, 0.044715
        %v1562 = vmul.f32 %v1434, 0.044715
        %v1563 = vmul.f32 %v1435, 0.044715
        %v1564 = vmul.f32 %v1436, 0.044715
        %v1565 = vmul.f32 %v1437, 0.044715
        %v1566 = vmul.f32 %v1438, 0.044715
        %v1567 = vmul.f32 %v1439, 0.044715
        %v1568 = vmul.f32 %v1440, 0.044715
        %v1569 = vmul.f32 %v1441, 0.044715
        %v1570 = vmul.f32 %v1442, 0.044715
        %v1571 = vmul.f32 %v1443, 0.044715
        %v1572 = vmul.f32 %v1444, 0.044715
        %v1573 = vmul.f32 %v1445, 0.044715
        %v1574 = vmul.f32 %v1446, 0.044715
        %v1575 = vmul.f32 %v1447, 0.044715
        %v1576 = vmul.f32 %v1448, 0.044715
        %v1577 = vmul.f32 %v1449, 0.044715
        %v1578 = vmul.f32 %v1450, 0.044715
        %v1579 = vmul.f32 %v1451, 0.044715
        %v1580 = vmul.f32 %v1452, 0.044715
        %v1581 = vmul.f32 %v1453, 0.044715
        %v1582 = vmul.f32 %v1454, 0.044715
        %v1583 = vmul.f32 %v1455, 0.044715
        %v1584 = vmul.f32 %v1456, 0.044715
        %v1585 = vmul.f32 %v1457, 0.044715
        %v1586 = vmul.f32 %v1458, 0.044715
        %v1587 = vmul.f32 %v1459, 0.044715
        %v1588 = vmul.f32 %v1460, 0.044715
        %v1589 = vmul.f32 %v1461, 0.044715
        %v1590 = vmul.f32 %v1462, 0.044715
        %v1591 = vmul.f32 %v1463, 0.044715
        %v1592 = vmul.f32 %v1464, 0.044715
        %v1593 = vmul.f32 %v1465, 0.044715
        %v1594 = vmul.f32 %v1466, 0.044715
        %v1595 = vmul.f32 %v1467, 0.044715
        %v1596 = vmul.f32 %v1468, 0.044715
        %v1597 = vmul.f32 %v1469, 0.044715
        %v1598 = vmul.f32 %v1470, 0.044715
        %v1599 = vmul.f32 %v1471, 0.044715
        %v1600 = vmul.f32 %v1472, 0.044715
        %v1601 = vmul.f32 %v1473, 0.044715
        %v1602 = vmul.f32 %v1474, 0.044715
        %v1603 = vmul.f32 %v1475, 0.044715
        %v1604 = vmul.f32 %v1476, 0.044715
        %v1605 = vmul.f32 %v1477, 0.044715
        %v1606 = vmul.f32 %v1478, 0.044715
        %v1607 = vmul.f32 %v1479, 0.044715
        %v1608 = vmul.f32 %v1480, 0.044715
        %v1609 = vmul.f32 %v1481, 0.044715
        %v1610 = vmul.f32 %v1482, 0.044715
        %v1611 = vmul.f32 %v1483, 0.044715
        %v1612 = vmul.f32 %v1484, 0.044715
        %v1613 = vmul.f32 %v1485, 0.044715
        %v1614 = vmul.f32 %v1486, 0.044715
        %v1615 = vmul.f32 %v1487, 0.044715
        %v1616 = vmul.f32 %v1488, 0.044715
        %v1617 = vmul.f32 %v1489, 0.044715
        %v1618 = vmul.f32 %v1490, 0.044715
        %v1619 = vmul.f32 %v1491, 0.044715
        %v1620 = vmul.f32 %v1492, 0.044715
        %v1621 = vmul.f32 %v1493, 0.044715
        %v1622 = vmul.f32 %v1494, 0.044715
        %v1623 = vmul.f32 %v1495, 0.044715
        %v1624 = vmul.f32 %v1496, 0.044715
        %v1625 = vmul.f32 %v1497, 0.044715
        %v1626 = vmul.f32 %v1498, 0.044715
        %v1627 = vmul.f32 %v1499, 0.044715
        %v1628 = vmul.f32 %v1500, 0.044715
        %v1629 = vmul.f32 %v1501, 0.044715
        %v1630 = vmul.f32 %v1502, 0.044715
        %v1631 = vmul.f32 %v1503, 0.044715
        %v1632 = vmul.f32 %v1504, 0.044715
        %v1633 = vmul.f32 %v1505, 0.044715
        %v1634 = vmul.f32 %v1506, 0.044715
        %v1635 = vmul.f32 %v1507, 0.044715
        %v1636 = vmul.f32 %v1508, 0.044715
        %v1637 = vmul.f32 %v1509, 0.044715
        %v1638 = vmul.f32 %v1510, 0.044715
        %v1639 = vmul.f32 %v1511, 0.044715
        %v1640 = vmul.f32 %v1512, 0.044715
        %v1641 = vmul.f32 %v1513, 0.044715
        %v1642 = vmul.f32 %v1514, 0.044715
        %v1643 = vmul.f32 %v1515, 0.044715
        %v1644 = vmul.f32 %v1516, 0.044715
        %v1645 = vmul.f32 %v1517, 0.044715
        %v1646 = vmul.f32 %v1518, 0.044715
        %v1647 = vmul.f32 %v1519, 0.044715
        %v1648 = vmul.f32 %v1520, 0.044715
        %v1649 = vmul.f32 %v1521, 0.044715
        %v1650 = vmul.f32 %v1522, 0.044715
        %v1651 = vmul.f32 %v1523, 0.044715
        %v1652 = vmul.f32 %v1524, 0.044715
        %v1653 = vmul.f32 %v1525, 0.044715
        %v1654 = vmul.f32 %v1526, 0.044715
        %v1655 = vmul.f32 %v1527, 0.044715
        %v1656 = vmul.f32 %v1528, 0.044715
        %v1657 = vmul.f32 %v1529, 0.044715
        %v1658 = vmul.f32 %v1530, 0.044715
        %v1659 = vmul.f32 %v1531, 0.044715
        %v1660 = vmul.f32 %v1532, 0.044715
        %v1661 = vmul.f32 %v1533, 0.044715
        %v1662 = vmul.f32 %v1534, 0.044715
        %v1663 = vmul.f32 %v1535, 0.044715
        %v1664 = vmul.f32 %v1536, 0.044715
        %v1665 = vmul.f32 %v1537, 0.044715
        %v1666 = vmul.f32 %v1538, 0.044715
        %v1667 = vmul.f32 %v1539, 0.044715
        %v1668 = vmul.f32 %v1540, 0.044715
        %v1669 = vmul.f32 %v1541, 0.044715
        %v1670 = vmul.f32 %v1542, 0.044715
        %v1671 = vmul.f32 %v1543, 0.044715
        %v1672 = vmul.f32 %v1544, 0.044715
        %v1673 = vmul.f32 %v1545, 0.044715
        %v1674 = vmul.f32 %v1546, 0.044715
        %v1675 = vmul.f32 %v1547, 0.044715
        %v1676 = vmul.f32 %v1548, 0.044715
        %v1677 = vmul.f32 %v1549, 0.044715
        %v1678 = vmul.f32 %v1550, 0.044715
        %v1679 = vmul.f32 %v1551, 0.044715
        %v1680 = vadd.f32 %v1168, %v1552
        %v1681 = vadd.f32 %v1169, %v1553
        %v1682 = vadd.f32 %v1170, %v1554
        %v1683 = vadd.f32 %v1171, %v1555
        %v1684 = vadd.f32 %v1172, %v1556
        %v1685 = vadd.f32 %v1173, %v1557
        %v1686 = vadd.f32 %v1174, %v1558
        %v1687 = vadd.f32 %v1175, %v1559
        %v1688 = vadd.f32 %v1176, %v1560
        %v1689 = vadd.f32 %v1177, %v1561
        %v1690 = vadd.f32 %v1178, %v1562
        %v1691 = vadd.f32 %v1179, %v1563
        %v1692 = vadd.f32 %v1180, %v1564
        %v1693 = vadd.f32 %v1181, %v1565
        %v1694 = vadd.f32 %v1182, %v1566
        %v1695 = vadd.f32 %v1183, %v1567
        %v1696 = vadd.f32 %v1184, %v1568
        %v1697 = vadd.f32 %v1185, %v1569
        %v1698 = vadd.f32 %v1186, %v1570
        %v1699 = vadd.f32 %v1187, %v1571
        %v1700 = vadd.f32 %v1188, %v1572
        %v1701 = vadd.f32 %v1189, %v1573
        %v1702 = vadd.f32 %v1190, %v1574
        %v1703 = vadd.f32 %v1191, %v1575
        %v1704 = vadd.f32 %v1192, %v1576
        %v1705 = vadd.f32 %v1193, %v1577
        %v1706 = vadd.f32 %v1194, %v1578
        %v1707 = vadd.f32 %v1195, %v1579
        %v1708 = vadd.f32 %v1196, %v1580
        %v1709 = vadd.f32 %v1197, %v1581
        %v1710 = vadd.f32 %v1198, %v1582
        %v1711 = vadd.f32 %v1199, %v1583
        %v1712 = vadd.f32 %v1200, %v1584
        %v1713 = vadd.f32 %v1201, %v1585
        %v1714 = vadd.f32 %v1202, %v1586
        %v1715 = vadd.f32 %v1203, %v1587
        %v1716 = vadd.f32 %v1204, %v1588
        %v1717 = vadd.f32 %v1205, %v1589
        %v1718 = vadd.f32 %v1206, %v1590
        %v1719 = vadd.f32 %v1207, %v1591
        %v1720 = vadd.f32 %v1208, %v1592
        %v1721 = vadd.f32 %v1209, %v1593
        %v1722 = vadd.f32 %v1210, %v1594
        %v1723 = vadd.f32 %v1211, %v1595
        %v1724 = vadd.f32 %v1212, %v1596
        %v1725 = vadd.f32 %v1213, %v1597
        %v1726 = vadd.f32 %v1214, %v1598
        %v1727 = vadd.f32 %v1215, %v1599
        %v1728 = vadd.f32 %v1216, %v1600
        %v1729 = vadd.f32 %v1217, %v1601
        %v1730 = vadd.f32 %v1218, %v1602
        %v1731 = vadd.f32 %v1219, %v1603
        %v1732 = vadd.f32 %v1220, %v1604
        %v1733 = vadd.f32 %v1221, %v1605
        %v1734 = vadd.f32 %v1222, %v1606
        %v1735 = vadd.f32 %v1223, %v1607
        %v1736 = vadd.f32 %v1224, %v1608
        %v1737 = vadd.f32 %v1225, %v1609
        %v1738 = vadd.f32 %v1226, %v1610
        %v1739 = vadd.f32 %v1227, %v1611
        %v1740 = vadd.f32 %v1228, %v1612
        %v1741 = vadd.f32 %v1229, %v1613
        %v1742 = vadd.f32 %v1230, %v1614
        %v1743 = vadd.f32 %v1231, %v1615
        %v1744 = vadd.f32 %v1232, %v1616
        %v1745 = vadd.f32 %v1233, %v1617
        %v1746 = vadd.f32 %v1234, %v1618
        %v1747 = vadd.f32 %v1235, %v1619
        %v1748 = vadd.f32 %v1236, %v1620
        %v1749 = vadd.f32 %v1237, %v1621
        %v1750 = vadd.f32 %v1238, %v1622
        %v1751 = vadd.f32 %v1239, %v1623
        %v1752 = vadd.f32 %v1240, %v1624
        %v1753 = vadd.f32 %v1241, %v1625
        %v1754 = vadd.f32 %v1242, %v1626
        %v1755 = vadd.f32 %v1243, %v1627
        %v1756 = vadd.f32 %v1244, %v1628
        %v1757 = vadd.f32 %v1245, %v1629
        %v1758 = vadd.f32 %v1246, %v1630
        %v1759 = vadd.f32 %v1247, %v1631
        %v1760 = vadd.f32 %v1248, %v1632
        %v1761 = vadd.f32 %v1249, %v1633
        %v1762 = vadd.f32 %v1250, %v1634
        %v1763 = vadd.f32 %v1251, %v1635
        %v1764 = vadd.f32 %v1252, %v1636
        %v1765 = vadd.f32 %v1253, %v1637
        %v1766 = vadd.f32 %v1254, %v1638
        %v1767 = vadd.f32 %v1255, %v1639
        %v1768 = vadd.f32 %v1256, %v1640
        %v1769 = vadd.f32 %v1257, %v1641
        %v1770 = vadd.f32 %v1258, %v1642
        %v1771 = vadd.f32 %v1259, %v1643
        %v1772 = vadd.f32 %v1260, %v1644
        %v1773 = vadd.f32 %v1261, %v1645
        %v1774 = vadd.f32 %v1262, %v1646
        %v1775 = vadd.f32 %v1263, %v1647
        %v1776 = vadd.f32 %v1264, %v1648
        %v1777 = vadd.f32 %v1265, %v1649
        %v1778 = vadd.f32 %v1266, %v1650
        %v1779 = vadd.f32 %v1267, %v1651
        %v1780 = vadd.f32 %v1268, %v1652
        %v1781 = vadd.f32 %v1269, %v1653
        %v1782 = vadd.f32 %v1270, %v1654
        %v1783 = vadd.f32 %v1271, %v1655
        %v1784 = vadd.f32 %v1272, %v1656
        %v1785 = vadd.f32 %v1273, %v1657
        %v1786 = vadd.f32 %v1274, %v1658
        %v1787 = vadd.f32 %v1275, %v1659
        %v1788 = vadd.f32 %v1276, %v1660
        %v1789 = vadd.f32 %v1277, %v1661
        %v1790 = vadd.f32 %v1278, %v1662
        %v1791 = vadd.f32 %v1279, %v1663
        %v1792 = vadd.f32 %v1280, %v1664
        %v1793 = vadd.f32 %v1281, %v1665
        %v1794 = vadd.f32 %v1282, %v1666
        %v1795 = vadd.f32 %v1283, %v1667
        %v1796 = vadd.f32 %v1284, %v1668
        %v1797 = vadd.f32 %v1285, %v1669
        %v1798 = vadd.f32 %v1286, %v1670
        %v1799 = vadd.f32 %v1287, %v1671
        %v1800 = vadd.f32 %v1288, %v1672
        %v1801 = vadd.f32 %v1289, %v1673
        %v1802 = vadd.f32 %v1290, %v1674
        %v1803 = vadd.f32 %v1291, %v1675
        %v1804 = vadd.f32 %v1292, %v1676
        %v1805 = vadd.f32 %v1293, %v1677
        %v1806 = vadd.f32 %v1294, %v1678
        %v1807 = vadd.f32 %v1295, %v1679
        %v1808 = vmul.f32 %v1680, 0.7978846
        %v1809 = vmul.f32 %v1681, 0.7978846
        %v1810 = vmul.f32 %v1682, 0.7978846
        %v1811 = vmul.f32 %v1683, 0.7978846
        %v1812 = vmul.f32 %v1684, 0.7978846
        %v1813 = vmul.f32 %v1685, 0.7978846
        %v1814 = vmul.f32 %v1686, 0.7978846
        %v1815 = vmul.f32 %v1687, 0.7978846
        %v1816 = vmul.f32 %v1688, 0.7978846
        %v1817 = vmul.f32 %v1689, 0.7978846
        %v1818 = vmul.f32 %v1690, 0.7978846
        %v1819 = vmul.f32 %v1691, 0.7978846
        %v1820 = vmul.f32 %v1692, 0.7978846
        %v1821 = vmul.f32 %v1693, 0.7978846
        %v1822 = vmul.f32 %v1694, 0.7978846
        %v1823 = vmul.f32 %v1695, 0.7978846
        %v1824 = vmul.f32 %v1696, 0.7978846
        %v1825 = vmul.f32 %v1697, 0.7978846
        %v1826 = vmul.f32 %v1698, 0.7978846
        %v1827 = vmul.f32 %v1699, 0.7978846
        %v1828 = vmul.f32 %v1700, 0.7978846
        %v1829 = vmul.f32 %v1701, 0.7978846
        %v1830 = vmul.f32 %v1702, 0.7978846
        %v1831 = vmul.f32 %v1703, 0.7978846
        %v1832 = vmul.f32 %v1704, 0.7978846
        %v1833 = vmul.f32 %v1705, 0.7978846
        %v1834 = vmul.f32 %v1706, 0.7978846
        %v1835 = vmul.f32 %v1707, 0.7978846
        %v1836 = vmul.f32 %v1708, 0.7978846
        %v1837 = vmul.f32 %v1709, 0.7978846
        %v1838 = vmul.f32 %v1710, 0.7978846
        %v1839 = vmul.f32 %v1711, 0.7978846
        %v1840 = vmul.f32 %v1712, 0.7978846
        %v1841 = vmul.f32 %v1713, 0.7978846
        %v1842 = vmul.f32 %v1714, 0.7978846
        %v1843 = vmul.f32 %v1715, 0.7978846
        %v1844 = vmul.f32 %v1716, 0.7978846
        %v1845 = vmul.f32 %v1717, 0.7978846
        %v1846 = vmul.f32 %v1718, 0.7978846
        %v1847 = vmul.f32 %v1719, 0.7978846
        %v1848 = vmul.f32 %v1720, 0.7978846
        %v1849 = vmul.f32 %v1721, 0.7978846
        %v1850 = vmul.f32 %v1722, 0.7978846
        %v1851 = vmul.f32 %v1723, 0.7978846
        %v1852 = vmul.f32 %v1724, 0.7978846
        %v1853 = vmul.f32 %v1725, 0.7978846
        %v1854 = vmul.f32 %v1726, 0.7978846
        %v1855 = vmul.f32 %v1727, 0.7978846
        %v1856 = vmul.f32 %v1728, 0.7978846
        %v1857 = vmul.f32 %v1729, 0.7978846
        %v1858 = vmul.f32 %v1730, 0.7978846
        %v1859 = vmul.f32 %v1731, 0.7978846
        %v1860 = vmul.f32 %v1732, 0.7978846
        %v1861 = vmul.f32 %v1733, 0.7978846
        %v1862 = vmul.f32 %v1734, 0.7978846
        %v1863 = vmul.f32 %v1735, 0.7978846
        %v1864 = vmul.f32 %v1736, 0.7978846
        %v1865 = vmul.f32 %v1737, 0.7978846
        %v1866 = vmul.f32 %v1738, 0.7978846
        %v1867 = vmul.f32 %v1739, 0.7978846
        %v1868 = vmul.f32 %v1740, 0.7978846
        %v1869 = vmul.f32 %v1741, 0.7978846
        %v1870 = vmul.f32 %v1742, 0.7978846
        %v1871 = vmul.f32 %v1743, 0.7978846
        %v1872 = vmul.f32 %v1744, 0.7978846
        %v1873 = vmul.f32 %v1745, 0.7978846
        %v1874 = vmul.f32 %v1746, 0.7978846
        %v1875 = vmul.f32 %v1747, 0.7978846
        %v1876 = vmul.f32 %v1748, 0.7978846
        %v1877 = vmul.f32 %v1749, 0.7978846
        %v1878 = vmul.f32 %v1750, 0.7978846
        %v1879 = vmul.f32 %v1751, 0.7978846
        %v1880 = vmul.f32 %v1752, 0.7978846
        %v1881 = vmul.f32 %v1753, 0.7978846
        %v1882 = vmul.f32 %v1754, 0.7978846
        %v1883 = vmul.f32 %v1755, 0.7978846
        %v1884 = vmul.f32 %v1756, 0.7978846
        %v1885 = vmul.f32 %v1757, 0.7978846
        %v1886 = vmul.f32 %v1758, 0.7978846
        %v1887 = vmul.f32 %v1759, 0.7978846
        %v1888 = vmul.f32 %v1760, 0.7978846
        %v1889 = vmul.f32 %v1761, 0.7978846
        %v1890 = vmul.f32 %v1762, 0.7978846
        %v1891 = vmul.f32 %v1763, 0.7978846
        %v1892 = vmul.f32 %v1764, 0.7978846
        %v1893 = vmul.f32 %v1765, 0.7978846
        %v1894 = vmul.f32 %v1766, 0.7978846
        %v1895 = vmul.f32 %v1767, 0.7978846
        %v1896 = vmul.f32 %v1768, 0.7978846
        %v1897 = vmul.f32 %v1769, 0.7978846
        %v1898 = vmul.f32 %v1770, 0.7978846
        %v1899 = vmul.f32 %v1771, 0.7978846
        %v1900 = vmul.f32 %v1772, 0.7978846
        %v1901 = vmul.f32 %v1773, 0.7978846
        %v1902 = vmul.f32 %v1774, 0.7978846
        %v1903 = vmul.f32 %v1775, 0.7978846
        %v1904 = vmul.f32 %v1776, 0.7978846
        %v1905 = vmul.f32 %v1777, 0.7978846
        %v1906 = vmul.f32 %v1778, 0.7978846
        %v1907 = vmul.f32 %v1779, 0.7978846
        %v1908 = vmul.f32 %v1780, 0.7978846
        %v1909 = vmul.f32 %v1781, 0.7978846
        %v1910 = vmul.f32 %v1782, 0.7978846
        %v1911 = vmul.f32 %v1783, 0.7978846
        %v1912 = vmul.f32 %v1784, 0.7978846
        %v1913 = vmul.f32 %v1785, 0.7978846
        %v1914 = vmul.f32 %v1786, 0.7978846
        %v1915 = vmul.f32 %v1787, 0.7978846
        %v1916 = vmul.f32 %v1788, 0.7978846
        %v1917 = vmul.f32 %v1789, 0.7978846
        %v1918 = vmul.f32 %v1790, 0.7978846
        %v1919 = vmul.f32 %v1791, 0.7978846
        %v1920 = vmul.f32 %v1792, 0.7978846
        %v1921 = vmul.f32 %v1793, 0.7978846
        %v1922 = vmul.f32 %v1794, 0.7978846
        %v1923 = vmul.f32 %v1795, 0.7978846
        %v1924 = vmul.f32 %v1796, 0.7978846
        %v1925 = vmul.f32 %v1797, 0.7978846
        %v1926 = vmul.f32 %v1798, 0.7978846
        %v1927 = vmul.f32 %v1799, 0.7978846
        %v1928 = vmul.f32 %v1800, 0.7978846
        %v1929 = vmul.f32 %v1801, 0.7978846
        %v1930 = vmul.f32 %v1802, 0.7978846
        %v1931 = vmul.f32 %v1803, 0.7978846
        %v1932 = vmul.f32 %v1804, 0.7978846
        %v1933 = vmul.f32 %v1805, 0.7978846
        %v1934 = vmul.f32 %v1806, 0.7978846
        %v1935 = vmul.f32 %v1807, 0.7978846
        %v1936 = vmul.f32 %v1168, 0.5
        %v1937 = vmul.f32 %v1169, 0.5
        %v1938 = vmul.f32 %v1170, 0.5
        %v1939 = vmul.f32 %v1171, 0.5
        %v1940 = vmul.f32 %v1172, 0.5
        %v1941 = vmul.f32 %v1173, 0.5
        %v1942 = vmul.f32 %v1174, 0.5
        %v1943 = vmul.f32 %v1175, 0.5
        %v1944 = vmul.f32 %v1176, 0.5
        %v1945 = vmul.f32 %v1177, 0.5
        %v1946 = vmul.f32 %v1178, 0.5
        %v1947 = vmul.f32 %v1179, 0.5
        %v1948 = vmul.f32 %v1180, 0.5
        %v1949 = vmul.f32 %v1181, 0.5
        %v1950 = vmul.f32 %v1182, 0.5
        %v1951 = vmul.f32 %v1183, 0.5
        %v1952 = vmul.f32 %v1184, 0.5
        %v1953 = vmul.f32 %v1185, 0.5
        %v1954 = vmul.f32 %v1186, 0.5
        %v1955 = vmul.f32 %v1187, 0.5
        %v1956 = vmul.f32 %v1188, 0.5
        %v1957 = vmul.f32 %v1189, 0.5
        %v1958 = vmul.f32 %v1190, 0.5
        %v1959 = vmul.f32 %v1191, 0.5
        %v1960 = vmul.f32 %v1192, 0.5
        %v1961 = vmul.f32 %v1193, 0.5
        %v1962 = vmul.f32 %v1194, 0.5
        %v1963 = vmul.f32 %v1195, 0.5
        %v1964 = vmul.f32 %v1196, 0.5
        %v1965 = vmul.f32 %v1197, 0.5
        %v1966 = vmul.f32 %v1198, 0.5
        %v1967 = vmul.f32 %v1199, 0.5
        %v1968 = vmul.f32 %v1200, 0.5
        %v1969 = vmul.f32 %v1201, 0.5
        %v1970 = vmul.f32 %v1202, 0.5
        %v1971 = vmul.f32 %v1203, 0.5
        %v1972 = vmul.f32 %v1204, 0.5
        %v1973 = vmul.f32 %v1205, 0.5
        %v1974 = vmul.f32 %v1206, 0.5
        %v1975 = vmul.f32 %v1207, 0.5
        %v1976 = vmul.f32 %v1208, 0.5
        %v1977 = vmul.f32 %v1209, 0.5
        %v1978 = vmul.f32 %v1210, 0.5
        %v1979 = vmul.f32 %v1211, 0.5
        %v1980 = vmul.f32 %v1212, 0.5
        %v1981 = vmul.f32 %v1213, 0.5
        %v1982 = vmul.f32 %v1214, 0.5
        %v1983 = vmul.f32 %v1215, 0.5
        %v1984 = vmul.f32 %v1216, 0.5
        %v1985 = vmul.f32 %v1217, 0.5
        %v1986 = vmul.f32 %v1218, 0.5
        %v1987 = vmul.f32 %v1219, 0.5
        %v1988 = vmul.f32 %v1220, 0.5
        %v1989 = vmul.f32 %v1221, 0.5
        %v1990 = vmul.f32 %v1222, 0.5
        %v1991 = vmul.f32 %v1223, 0.5
        %v1992 = vmul.f32 %v1224, 0.5
        %v1993 = vmul.f32 %v1225, 0.5
        %v1994 = vmul.f32 %v1226, 0.5
        %v1995 = vmul.f32 %v1227, 0.5
        %v1996 = vmul.f32 %v1228, 0.5
        %v1997 = vmul.f32 %v1229, 0.5
        %v1998 = vmul.f32 %v1230, 0.5
        %v1999 = vmul.f32 %v1231, 0.5
        %v2000 = vmul.f32 %v1232, 0.5
        %v2001 = vmul.f32 %v1233, 0.5
        %v2002 = vmul.f32 %v1234, 0.5
        %v2003 = vmul.f32 %v1235, 0.5
        %v2004 = vmul.f32 %v1236, 0.5
        %v2005 = vmul.f32 %v1237, 0.5
        %v2006 = vmul.f32 %v1238, 0.5
        %v2007 = vmul.f32 %v1239, 0.5
        %v2008 = vmul.f32 %v1240, 0.5
        %v2009 = vmul.f32 %v1241, 0.5
        %v2010 = vmul.f32 %v1242, 0.5
        %v2011 = vmul.f32 %v1243, 0.5
        %v2012 = vmul.f32 %v1244, 0.5
        %v2013 = vmul.f32 %v1245, 0.5
        %v2014 = vmul.f32 %v1246, 0.5
        %v2015 = vmul.f32 %v1247, 0.5
        %v2016 = vmul.f32 %v1248, 0.5
        %v2017 = vmul.f32 %v1249, 0.5
        %v2018 = vmul.f32 %v1250, 0.5
        %v2019 = vmul.f32 %v1251, 0.5
        %v2020 = vmul.f32 %v1252, 0.5
        %v2021 = vmul.f32 %v1253, 0.5
        %v2022 = vmul.f32 %v1254, 0.5
        %v2023 = vmul.f32 %v1255, 0.5
        %v2024 = vmul.f32 %v1256, 0.5
        %v2025 = vmul.f32 %v1257, 0.5
        %v2026 = vmul.f32 %v1258, 0.5
        %v2027 = vmul.f32 %v1259, 0.5
        %v2028 = vmul.f32 %v1260, 0.5
        %v2029 = vmul.f32 %v1261, 0.5
        %v2030 = vmul.f32 %v1262, 0.5
        %v2031 = vmul.f32 %v1263, 0.5
        %v2032 = vmul.f32 %v1264, 0.5
        %v2033 = vmul.f32 %v1265, 0.5
        %v2034 = vmul.f32 %v1266, 0.5
        %v2035 = vmul.f32 %v1267, 0.5
        %v2036 = vmul.f32 %v1268, 0.5
        %v2037 = vmul.f32 %v1269, 0.5
        %v2038 = vmul.f32 %v1270, 0.5
        %v2039 = vmul.f32 %v1271, 0.5
        %v2040 = vmul.f32 %v1272, 0.5
        %v2041 = vmul.f32 %v1273, 0.5
        %v2042 = vmul.f32 %v1274, 0.5
        %v2043 = vmul.f32 %v1275, 0.5
        %v2044 = vmul.f32 %v1276, 0.5
        %v2045 = vmul.f32 %v1277, 0.5
        %v2046 = vmul.f32 %v1278, 0.5
        %v2047 = vmul.f32 %v1279, 0.5
        %v2048 = vmul.f32 %v1280, 0.5
        %v2049 = vmul.f32 %v1281, 0.5
        %v2050 = vmul.f32 %v1282, 0.5
        %v2051 = vmul.f32 %v1283, 0.5
        %v2052 = vmul.f32 %v1284, 0.5
        %v2053 = vmul.f32 %v1285, 0.5
        %v2054 = vmul.f32 %v1286, 0.5
        %v2055 = vmul.f32 %v1287, 0.5
        %v2056 = vmul.f32 %v1288, 0.5
        %v2057 = vmul.f32 %v1289, 0.5
        %v2058 = vmul.f32 %v1290, 0.5
        %v2059 = vmul.f32 %v1291, 0.5
        %v2060 = vmul.f32 %v1292, 0.5
        %v2061 = vmul.f32 %v1293, 0.5
        %v2062 = vmul.f32 %v1294, 0.5
        %v2063 = vmul.f32 %v1295, 0.5
        %v2064 = vtanh.pop %v1808
        %v2065 = vtanh.pop %v1809
        %v2066 = vtanh.pop %v1810
        %v2067 = vtanh.pop %v1811
        %v2068 = vtanh.pop %v1812
        %v2069 = vtanh.pop %v1813
        %v2070 = vtanh.pop %v1814
        %v2071 = vtanh.pop %v1815
        %v2072 = vtanh.pop %v1816
        %v2073 = vtanh.pop %v1817
        %v2074 = vtanh.pop %v1818
        %v2075 = vtanh.pop %v1819
        %v2076 = vtanh.pop %v1820
        %v2077 = vtanh.pop %v1821
        %v2078 = vtanh.pop %v1822
        %v2079 = vtanh.pop %v1823
        %v2080 = vtanh.pop %v1824
        %v2081 = vtanh.pop %v1825
        %v2082 = vtanh.pop %v1826
        %v2083 = vtanh.pop %v1827
        %v2084 = vtanh.pop %v1828
        %v2085 = vtanh.pop %v1829
        %v2086 = vtanh.pop %v1830
        %v2087 = vtanh.pop %v1831
        %v2088 = vtanh.pop %v1832
        %v2089 = vtanh.pop %v1833
        %v2090 = vtanh.pop %v1834
        %v2091 = vtanh.pop %v1835
        %v2092 = vtanh.pop %v1836
        %v2093 = vtanh.pop %v1837
        %v2094 = vtanh.pop %v1838
        %v2095 = vtanh.pop %v1839
        %v2096 = vtanh.pop %v1840
        %v2097 = vtanh.pop %v1841
        %v2098 = vtanh.pop %v1842
        %v2099 = vtanh.pop %v1843
        %v2100 = vtanh.pop %v1844
        %v2101 = vtanh.pop %v1845
        %v2102 = vtanh.pop %v1846
        %v2103 = vtanh.pop %v1847
        %v2104 = vtanh.pop %v1848
        %v2105 = vtanh.pop %v1849
        %v2106 = vtanh.pop %v1850
        %v2107 = vtanh.pop %v1851
        %v2108 = vtanh.pop %v1852
        %v2109 = vtanh.pop %v1853
        %v2110 = vtanh.pop %v1854
        %v2111 = vtanh.pop %v1855
        %v2112 = vtanh.pop %v1856
        %v2113 = vtanh.pop %v1857
        %v2114 = vtanh.pop %v1858
        %v2115 = vtanh.pop %v1859
        %v2116 = vtanh.pop %v1860
        %v2117 = vtanh.pop %v1861
        %v2118 = vtanh.pop %v1862
        %v2119 = vtanh.pop %v1863
        %v2120 = vtanh.pop %v1864
        %v2121 = vtanh.pop %v1865
        %v2122 = vtanh.pop %v1866
        %v2123 = vtanh.pop %v1867
        %v2124 = vtanh.pop %v1868
        %v2125 = vtanh.pop %v1869
        %v2126 = vtanh.pop %v1870
        %v2127 = vtanh.pop %v1871
        %v2128 = vtanh.pop %v1872
        %v2129 = vtanh.pop %v1873
        %v2130 = vtanh.pop %v1874
        %v2131 = vtanh.pop %v1875
        %v2132 = vtanh.pop %v1876
        %v2133 = vtanh.pop %v1877
        %v2134 = vtanh.pop %v1878
        %v2135 = vtanh.pop %v1879
        %v2136 = vtanh.pop %v1880
        %v2137 = vtanh.pop %v1881
        %v2138 = vtanh.pop %v1882
        %v2139 = vtanh.pop %v1883
        %v2140 = vtanh.pop %v1884
        %v2141 = vtanh.pop %v1885
        %v2142 = vtanh.pop %v1886
        %v2143 = vtanh.pop %v1887
        %v2144 = vtanh.pop %v1888
        %v2145 = vtanh.pop %v1889
        %v2146 = vtanh.pop %v1890
        %v2147 = vtanh.pop %v1891
        %v2148 = vtanh.pop %v1892
        %v2149 = vtanh.pop %v1893
        %v2150 = vtanh.pop %v1894
        %v2151 = vtanh.pop %v1895
        %v2152 = vtanh.pop %v1896
        %v2153 = vtanh.pop %v1897
        %v2154 = vtanh.pop %v1898
        %v2155 = vtanh.pop %v1899
        %v2156 = vtanh.pop %v1900
        %v2157 = vtanh.pop %v1901
        %v2158 = vtanh.pop %v1902
        %v2159 = vtanh.pop %v1903
        %v2160 = vtanh.pop %v1904
        %v2161 = vtanh.pop %v1905
        %v2162 = vtanh.pop %v1906
        %v2163 = vtanh.pop %v1907
        %v2164 = vtanh.pop %v1908
        %v2165 = vtanh.pop %v1909
        %v2166 = vtanh.pop %v1910
        %v2167 = vtanh.pop %v1911
        %v2168 = vtanh.pop %v1912
        %v2169 = vtanh.pop %v1913
        %v2170 = vtanh.pop %v1914
        %v2171 = vtanh.pop %v1915
        %v2172 = vtanh.pop %v1916
        %v2173 = vtanh.pop %v1917
        %v2174 = vtanh.pop %v1918
        %v2175 = vtanh.pop %v1919
        %v2176 = vtanh.pop %v1920
        %v2177 = vtanh.pop %v1921
        %v2178 = vtanh.pop %v1922
        %v2179 = vtanh.pop %v1923
        %v2180 = vtanh.pop %v1924
        %v2181 = vtanh.pop %v1925
        %v2182 = vtanh.pop %v1926
        %v2183 = vtanh.pop %v1927
        %v2184 = vtanh.pop %v1928
        %v2185 = vtanh.pop %v1929
        %v2186 = vtanh.pop %v1930
        %v2187 = vtanh.pop %v1931
        %v2188 = vtanh.pop %v1932
        %v2189 = vtanh.pop %v1933
        %v2190 = vtanh.pop %v1934
        %v2191 = vtanh.pop %v1935
        %v2192 = vadd.f32 %v2064, 1.0
        %v2193 = vadd.f32 %v2065, 1.0
        %v2194 = vadd.f32 %v2066, 1.0
        %v2195 = vadd.f32 %v2067, 1.0
        %v2196 = vadd.f32 %v2068, 1.0
        %v2197 = vadd.f32 %v2069, 1.0
        %v2198 = vadd.f32 %v2070, 1.0
        %v2199 = vadd.f32 %v2071, 1.0
        %v2200 = vadd.f32 %v2072, 1.0
        %v2201 = vadd.f32 %v2073, 1.0
        %v2202 = vadd.f32 %v2074, 1.0
        %v2203 = vadd.f32 %v2075, 1.0
        %v2204 = vadd.f32 %v2076, 1.0
        %v2205 = vadd.f32 %v2077, 1.0
        %v2206 = vadd.f32 %v2078, 1.0
        %v2207 = vadd.f32 %v2079, 1.0
        %v2208 = vadd.f32 %v2080, 1.0
        %v2209 = vadd.f32 %v2081, 1.0
        %v2210 = vadd.f32 %v2082, 1.0
        %v2211 = vadd.f32 %v2083, 1.0
        %v2212 = vadd.f32 %v2084, 1.0
        %v2213 = vadd.f32 %v2085, 1.0
        %v2214 = vadd.f32 %v2086, 1.0
        %v2215 = vadd.f32 %v2087, 1.0
        %v2216 = vadd.f32 %v2088, 1.0
        %v2217 = vadd.f32 %v2089, 1.0
        %v2218 = vadd.f32 %v2090, 1.0
        %v2219 = vadd.f32 %v2091, 1.0
        %v2220 = vadd.f32 %v2092, 1.0
        %v2221 = vadd.f32 %v2093, 1.0
        %v2222 = vadd.f32 %v2094, 1.0
        %v2223 = vadd.f32 %v2095, 1.0
        %v2224 = vadd.f32 %v2096, 1.0
        %v2225 = vadd.f32 %v2097, 1.0
        %v2226 = vadd.f32 %v2098, 1.0
        %v2227 = vadd.f32 %v2099, 1.0
        %v2228 = vadd.f32 %v2100, 1.0
        %v2229 = vadd.f32 %v2101, 1.0
        %v2230 = vadd.f32 %v2102, 1.0
        %v2231 = vadd.f32 %v2103, 1.0
        %v2232 = vadd.f32 %v2104, 1.0
        %v2233 = vadd.f32 %v2105, 1.0
        %v2234 = vadd.f32 %v2106, 1.0
        %v2235 = vadd.f32 %v2107, 1.0
        %v2236 = vadd.f32 %v2108, 1.0
        %v2237 = vadd.f32 %v2109, 1.0
        %v2238 = vadd.f32 %v2110, 1.0
        %v2239 = vadd.f32 %v2111, 1.0
        %v2240 = vadd.f32 %v2112, 1.0
        %v2241 = vadd.f32 %v2113, 1.0
        %v2242 = vadd.f32 %v2114, 1.0
        %v2243 = vadd.f32 %v2115, 1.0
        %v2244 = vadd.f32 %v2116, 1.0
        %v2245 = vadd.f32 %v2117, 1.0
        %v2246 = vadd.f32 %v2118, 1.0
        %v2247 = vadd.f32 %v2119, 1.0
        %v2248 = vadd.f32 %v2120, 1.0
        %v2249 = vadd.f32 %v2121, 1.0
        %v2250 = vadd.f32 %v2122, 1.0
        %v2251 = vadd.f32 %v2123, 1.0
        %v2252 = vadd.f32 %v2124, 1.0
        %v2253 = vadd.f32 %v2125, 1.0
        %v2254 = vadd.f32 %v2126, 1.0
        %v2255 = vadd.f32 %v2127, 1.0
        %v2256 = vadd.f32 %v2128, 1.0
        %v2257 = vadd.f32 %v2129, 1.0
        %v2258 = vadd.f32 %v2130, 1.0
        %v2259 = vadd.f32 %v2131, 1.0
        %v2260 = vadd.f32 %v2132, 1.0
        %v2261 = vadd.f32 %v2133, 1.0
        %v2262 = vadd.f32 %v2134, 1.0
        %v2263 = vadd.f32 %v2135, 1.0
        %v2264 = vadd.f32 %v2136, 1.0
        %v2265 = vadd.f32 %v2137, 1.0
        %v2266 = vadd.f32 %v2138, 1.0
        %v2267 = vadd.f32 %v2139, 1.0
        %v2268 = vadd.f32 %v2140, 1.0
        %v2269 = vadd.f32 %v2141, 1.0
        %v2270 = vadd.f32 %v2142, 1.0
        %v2271 = vadd.f32 %v2143, 1.0
        %v2272 = vadd.f32 %v2144, 1.0
        %v2273 = vadd.f32 %v2145, 1.0
        %v2274 = vadd.f32 %v2146, 1.0
        %v2275 = vadd.f32 %v2147, 1.0
        %v2276 = vadd.f32 %v2148, 1.0
        %v2277 = vadd.f32 %v2149, 1.0
        %v2278 = vadd.f32 %v2150, 1.0
        %v2279 = vadd.f32 %v2151, 1.0
        %v2280 = vadd.f32 %v2152, 1.0
        %v2281 = vadd.f32 %v2153, 1.0
        %v2282 = vadd.f32 %v2154, 1.0
        %v2283 = vadd.f32 %v2155, 1.0
        %v2284 = vadd.f32 %v2156, 1.0
        %v2285 = vadd.f32 %v2157, 1.0
        %v2286 = vadd.f32 %v2158, 1.0
        %v2287 = vadd.f32 %v2159, 1.0
        %v2288 = vadd.f32 %v2160, 1.0
        %v2289 = vadd.f32 %v2161, 1.0
        %v2290 = vadd.f32 %v2162, 1.0
        %v2291 = vadd.f32 %v2163, 1.0
        %v2292 = vadd.f32 %v2164, 1.0
        %v2293 = vadd.f32 %v2165, 1.0
        %v2294 = vadd.f32 %v2166, 1.0
        %v2295 = vadd.f32 %v2167, 1.0
        %v2296 = vadd.f32 %v2168, 1.0
        %v2297 = vadd.f32 %v2169, 1.0
        %v2298 = vadd.f32 %v2170, 1.0
        %v2299 = vadd.f32 %v2171, 1.0
        %v2300 = vadd.f32 %v2172, 1.0
        %v2301 = vadd.f32 %v2173, 1.0
        %v2302 = vadd.f32 %v2174, 1.0
        %v2303 = vadd.f32 %v2175, 1.0
        %v2304 = vadd.f32 %v2176, 1.0
        %v2305 = vadd.f32 %v2177, 1.0
        %v2306 = vadd.f32 %v2178, 1.0
        %v2307 = vadd.f32 %v2179, 1.0
        %v2308 = vadd.f32 %v2180, 1.0
        %v2309 = vadd.f32 %v2181, 1.0
        %v2310 = vadd.f32 %v2182, 1.0
        %v2311 = vadd.f32 %v2183, 1.0
        %v2312 = vadd.f32 %v2184, 1.0
        %v2313 = vadd.f32 %v2185, 1.0
        %v2314 = vadd.f32 %v2186, 1.0
        %v2315 = vadd.f32 %v2187, 1.0
        %v2316 = vadd.f32 %v2188, 1.0
        %v2317 = vadd.f32 %v2189, 1.0
        %v2318 = vadd.f32 %v2190, 1.0
        %v2319 = vadd.f32 %v2191, 1.0
        %v2320 = vmul.f32 %v1936, %v2192
        %v2321 = vmul.f32 %v1937, %v2193
        %v2322 = vmul.f32 %v1938, %v2194
        %v2323 = vmul.f32 %v1939, %v2195
        %v2324 = vmul.f32 %v1940, %v2196
        %v2325 = vmul.f32 %v1941, %v2197
        %v2326 = vmul.f32 %v1942, %v2198
        %v2327 = vmul.f32 %v1943, %v2199
        %v2328 = vmul.f32 %v1944, %v2200
        %v2329 = vmul.f32 %v1945, %v2201
        %v2330 = vmul.f32 %v1946, %v2202
        %v2331 = vmul.f32 %v1947, %v2203
        %v2332 = vmul.f32 %v1948, %v2204
        %v2333 = vmul.f32 %v1949, %v2205
        %v2334 = vmul.f32 %v1950, %v2206
        %v2335 = vmul.f32 %v1951, %v2207
        %v2336 = vmul.f32 %v1952, %v2208
        %v2337 = vmul.f32 %v1953, %v2209
        %v2338 = vmul.f32 %v1954, %v2210
        %v2339 = vmul.f32 %v1955, %v2211
        %v2340 = vmul.f32 %v1956, %v2212
        %v2341 = vmul.f32 %v1957, %v2213
        %v2342 = vmul.f32 %v1958, %v2214
        %v2343 = vmul.f32 %v1959, %v2215
        %v2344 = vmul.f32 %v1960, %v2216
        %v2345 = vmul.f32 %v1961, %v2217
        %v2346 = vmul.f32 %v1962, %v2218
        %v2347 = vmul.f32 %v1963, %v2219
        %v2348 = vmul.f32 %v1964, %v2220
        %v2349 = vmul.f32 %v1965, %v2221
        %v2350 = vmul.f32 %v1966, %v2222
        %v2351 = vmul.f32 %v1967, %v2223
        %v2352 = vmul.f32 %v1968, %v2224
        %v2353 = vmul.f32 %v1969, %v2225
        %v2354 = vmul.f32 %v1970, %v2226
        %v2355 = vmul.f32 %v1971, %v2227
        %v2356 = vmul.f32 %v1972, %v2228
        %v2357 = vmul.f32 %v1973, %v2229
        %v2358 = vmul.f32 %v1974, %v2230
        %v2359 = vmul.f32 %v1975, %v2231
        %v2360 = vmul.f32 %v1976, %v2232
        %v2361 = vmul.f32 %v1977, %v2233
        %v2362 = vmul.f32 %v1978, %v2234
        %v2363 = vmul.f32 %v1979, %v2235
        %v2364 = vmul.f32 %v1980, %v2236
        %v2365 = vmul.f32 %v1981, %v2237
        %v2366 = vmul.f32 %v1982, %v2238
        %v2367 = vmul.f32 %v1983, %v2239
        %v2368 = vmul.f32 %v1984, %v2240
        %v2369 = vmul.f32 %v1985, %v2241
        %v2370 = vmul.f32 %v1986, %v2242
        %v2371 = vmul.f32 %v1987, %v2243
        %v2372 = vmul.f32 %v1988, %v2244
        %v2373 = vmul.f32 %v1989, %v2245
        %v2374 = vmul.f32 %v1990, %v2246
        %v2375 = vmul.f32 %v1991, %v2247
        %v2376 = vmul.f32 %v1992, %v2248
        %v2377 = vmul.f32 %v1993, %v2249
        %v2378 = vmul.f32 %v1994, %v2250
        %v2379 = vmul.f32 %v1995, %v2251
        %v2380 = vmul.f32 %v1996, %v2252
        %v2381 = vmul.f32 %v1997, %v2253
        %v2382 = vmul.f32 %v1998, %v2254
        %v2383 = vmul.f32 %v1999, %v2255
        %v2384 = vmul.f32 %v2000, %v2256
        %v2385 = vmul.f32 %v2001, %v2257
        %v2386 = vmul.f32 %v2002, %v2258
        %v2387 = vmul.f32 %v2003, %v2259
        %v2388 = vmul.f32 %v2004, %v2260
        %v2389 = vmul.f32 %v2005, %v2261
        %v2390 = vmul.f32 %v2006, %v2262
        %v2391 = vmul.f32 %v2007, %v2263
        %v2392 = vmul.f32 %v2008, %v2264
        %v2393 = vmul.f32 %v2009, %v2265
        %v2394 = vmul.f32 %v2010, %v2266
        %v2395 = vmul.f32 %v2011, %v2267
        %v2396 = vmul.f32 %v2012, %v2268
        %v2397 = vmul.f32 %v2013, %v2269
        %v2398 = vmul.f32 %v2014, %v2270
        %v2399 = vmul.f32 %v2015, %v2271
        %v2400 = vmul.f32 %v2016, %v2272
        %v2401 = vmul.f32 %v2017, %v2273
        %v2402 = vmul.f32 %v2018, %v2274
        %v2403 = vmul.f32 %v2019, %v2275
        %v2404 = vmul.f32 %v2020, %v2276
        %v2405 = vmul.f32 %v2021, %v2277
        %v2406 = vmul.f32 %v2022, %v2278
        %v2407 = vmul.f32 %v2023, %v2279
        %v2408 = vmul.f32 %v2024, %v2280
        %v2409 = vmul.f32 %v2025, %v2281
        %v2410 = vmul.f32 %v2026, %v2282
        %v2411 = vmul.f32 %v2027, %v2283
        %v2412 = vmul.f32 %v2028, %v2284
        %v2413 = vmul.f32 %v2029, %v2285
        %v2414 = vmul.f32 %v2030, %v2286
        %v2415 = vmul.f32 %v2031, %v2287
        %v2416 = vmul.f32 %v2032, %v2288
        %v2417 = vmul.f32 %v2033, %v2289
        %v2418 = vmul.f32 %v2034, %v2290
        %v2419 = vmul.f32 %v2035, %v2291
        %v2420 = vmul.f32 %v2036, %v2292
        %v2421 = vmul.f32 %v2037, %v2293
        %v2422 = vmul.f32 %v2038, %v2294
        %v2423 = vmul.f32 %v2039, %v2295
        %v2424 = vmul.f32 %v2040, %v2296
        %v2425 = vmul.f32 %v2041, %v2297
        %v2426 = vmul.f32 %v2042, %v2298
        %v2427 = vmul.f32 %v2043, %v2299
        %v2428 = vmul.f32 %v2044, %v2300
        %v2429 = vmul.f32 %v2045, %v2301
        %v2430 = vmul.f32 %v2046, %v2302
        %v2431 = vmul.f32 %v2047, %v2303
        %v2432 = vmul.f32 %v2048, %v2304
        %v2433 = vmul.f32 %v2049, %v2305
        %v2434 = vmul.f32 %v2050, %v2306
        %v2435 = vmul.f32 %v2051, %v2307
        %v2436 = vmul.f32 %v2052, %v2308
        %v2437 = vmul.f32 %v2053, %v2309
        %v2438 = vmul.f32 %v2054, %v2310
        %v2439 = vmul.f32 %v2055, %v2311
        %v2440 = vmul.f32 %v2056, %v2312
        %v2441 = vmul.f32 %v2057, %v2313
        %v2442 = vmul.f32 %v2058, %v2314
        %v2443 = vmul.f32 %v2059, %v2315
        %v2444 = vmul.f32 %v2060, %v2316
        %v2445 = vmul.f32 %v2061, %v2317
        %v2446 = vmul.f32 %v2062, %v2318
        %v2447 = vmul.f32 %v2063, %v2319
        %v2448 = vld [vmem:[%s2] sm:$0xff]
        %v2449 = vld [vmem:[%s2 + $0x8] sm:$0xff]
        %v2450 = vld [vmem:[%s2 + $0x10] sm:$0xff]
        %v2451 = vld [vmem:[%s2 + $0x18] sm:$0xff]
        %v2452 = vld [vmem:[%s2 + $0x20] sm:$0xff]
        %v2453 = vld [vmem:[%s2 + $0x28] sm:$0xff]
        %v2454 = vld [vmem:[%s2 + $0x30] sm:$0xff]
        %v2455 = vld [vmem:[%s2 + $0x38] sm:$0xff]
        %v2456 = vld [vmem:[%s2 + $0x40] sm:$0xff]
        %v2457 = vld [vmem:[%s2 + $0x48] sm:$0xff]
        %v2458 = vld [vmem:[%s2 + $0x50] sm:$0xff]
        %v2459 = vld [vmem:[%s2 + $0x58] sm:$0xff]
        %v2460 = vld [vmem:[%s2 + $0x60] sm:$0xff]
        %v2461 = vld [vmem:[%s2 + $0x68] sm:$0xff]
        %v2462 = vld [vmem:[%s2 + $0x70] sm:$0xff]
        %v2463 = vld [vmem:[%s2 + $0x78] sm:$0xff]
        %v2464 = vlaneseq
        %v2465 = vshrl.u32 %v2464, 7
        %v2466 = vsub.s32 2, %v2465
        %v2467 = vrot.slane %v374, %v2466
        %2468 = vmatprep.subr.mxu0 0.0
        %2469 = vmatpush1.msra.mxu0 %v2448
        %2470 = vmatprep.subr.mxu0 0.0
        %2471 = vmatpush1.msra.mxu0 %v2449
        %2472 = vmatprep.subr.mxu0 0.0
        %2473 = vmatpush1.msra.mxu0 %v2450
        %2474 = vmatprep.subr.mxu0 0.0
        %2475 = vmatpush1.msra.mxu0 %v2451
        %2476 = vmatprep.subr.mxu0 0.0
        %2477 = vmatpush1.msra.mxu0 %v2452
        %2478 = vmatprep.subr.mxu0 0.0
        %2479 = vmatpush1.msra.mxu0 %v2453
        %2480 = vmatprep.subr.mxu0 0.0
        %2481 = vmatpush1.msra.mxu0 %v2454
        %2482 = vmatprep.subr.mxu0 0.0
        %2483 = vmatpush1.msra.mxu0 %v2455
        %2484 = vmatprep.subr.mxu0 0.0
        %2485 = vmatpush1.msra.mxu0 %v2456
        %2486 = vmatprep.subr.mxu0 0.0
        %2487 = vmatpush1.msra.mxu0 %v2457
        %2488 = vmatprep.subr.mxu0 0.0
        %2489 = vmatpush1.msra.mxu0 %v2458
        %2490 = vmatprep.subr.mxu0 0.0
        %2491 = vmatpush1.msra.mxu0 %v2459
        %2492 = vmatprep.subr.mxu0 0.0
        %2493 = vmatpush1.msra.mxu0 %v2460
        %2494 = vmatprep.subr.mxu0 0.0
        %2495 = vmatpush1.msra.mxu0 %v2461
        %2496 = vmatprep.subr.mxu0 0.0
        %2497 = vmatpush1.msra.mxu0 %v2462
        %2498 = vmatprep.subr.mxu0 0.0
        %2499 = vmatpush1.msra.mxu0 %v2463
        %2500 = vmatprep.subr.mxu0 0.0
        %2501 = vmatpush1.msra.mxu0 0.0
        %2502 = vmatprep.subr.mxu0 0.0
        %2503 = vmatpush1.msra.mxu0 0.0
        %2504 = vmatprep.subr.mxu0 0.0
        %2505 = vmatpush1.msra.mxu0 0.0
        %2506 = vmatprep.subr.mxu0 0.0
        %2507 = vmatpush1.msra.mxu0 0.0
        %2508 = vmatprep.subr.mxu0 0.0
        %2509 = vmatpush1.msra.mxu0 0.0
        %2510 = vmatprep.subr.mxu0 0.0
        %2511 = vmatpush1.msra.mxu0 0.0
        %2512 = vmatprep.subr.mxu0 0.0
        %2513 = vmatpush1.msra.mxu0 0.0
        %2514 = vmatprep.subr.mxu0 0.0
        %2515 = vmatpush1.msra.mxu0 0.0
        %2516 = vmatprep.subr.mxu0 0.0
        %2517 = vmatpush1.msra.mxu0 0.0
        %2518 = vmatprep.subr.mxu0 0.0
        %2519 = vmatpush1.msra.mxu0 0.0
        %2520 = vmatprep.subr.mxu0 0.0
        %2521 = vmatpush1.msra.mxu0 0.0
        %2522 = vmatprep.subr.mxu0 0.0
        %2523 = vmatpush1.msra.mxu0 0.0
        %2524 = vmatprep.subr.mxu0 0.0
        %2525 = vmatpush1.msra.mxu0 0.0
        %2526 = vmatprep.subr.mxu0 0.0
        %2527 = vmatpush1.msra.mxu0 0.0
        %2528 = vmatprep.subr.mxu0 0.0
        %2529 = vmatpush1.msra.mxu0 0.0
        %2530 = vmatprep.subr.mxu0 0.0
        %2531 = vmatpush1.msra.mxu0 0.0
        %2532 = vmatprep.mubr.f32.mxu0 0.0
        %2533 = vmatmul.mubr.f32.gmra.mrb[0].mxu0 %v2320
        %v2534 = vpop.f32.mrb[0].mxu0
        %v2535 = vadd.f32 %v2467, %v2534
        %v2536 = vpop.f32.mrb[0].mxu0
        %2537 = vmatprep.mubr.f32.mxu0 0.0
        %2538 = vmatmul.mubr.f32.gmra.mrb[0].mxu0 %v2321
        %v2539 = vpop.f32.mrb[0].mxu0
        %v2540 = vadd.f32 %v2467, %v2539
        %v2541 = vpop.f32.mrb[0].mxu0
        %2542 = vmatprep.mubr.f32.mxu0 0.0
        %2543 = vmatmul.mubr.f32.gmra.mrb[0].mxu0 %v2322
        %v2544 = vpop.f32.mrb[0].mxu0
        %v2545 = vadd.f32 %v2467, %v2544
        %v2546 = vpop.f32.mrb[0].mxu0
        %2547 = vmatprep.mubr.f32.mxu0 0.0
        %2548 = vmatmul.mubr.f32.gmra.mrb[0].mxu0 %v2323
        %v2549 = vpop.f32.mrb[0].mxu0
        %v2550 = vadd.f32 %v2467, %v2549
        %v2551 = vpop.f32.mrb[0].mxu0
        %2552 = vmatprep.mubr.f32.mxu0 0.0
        %2553 = vmatmul.mubr.f32.gmra.mrb[0].mxu0 %v2324
        %v2554 = vpop.f32.mrb[0].mxu0
        %v2555 = vadd.f32 %v2467, %v2554
        %v2556 = vpop.f32.mrb[0].mxu0
        %2557 = vmatprep.mubr.f32.mxu0 0.0
        %2558 = vmatmul.mubr.f32.gmra.mrb[0].mxu0 %v2325
        %v2559 = vpop.f32.mrb[0].mxu0
        %v2560 = vadd.f32 %v2467, %v2559
        %v2561 = vpop.f32.mrb[0].mxu0
        %2562 = vmatprep.mubr.f32.mxu0 0.0
        %2563 = vmatmul.mubr.f32.gmra.mrb[0].mxu0 %v2326
        %v2564 = vpop.f32.mrb[0].mxu0
        %v2565 = vadd.f32 %v2467, %v2564
        %v2566 = vpop.f32.mrb[0].mxu0
        %2567 = vmatprep.mubr.f32.mxu0 0.0
        %2568 = vmatmul.mubr.f32.gmra.mrb[0].mxu0 %v2327
        %v2569 = vpop.f32.mrb[0].mxu0
        %v2570 = vadd.f32 %v2467, %v2569
        %v2571 = vpop.f32.mrb[0].mxu0
        %2572 = vmatprep.mubr.f32.mxu0 0.0
        %2573 = vmatmul.mubr.f32.gmra.mrb[0].mxu0 %v2328
        %v2574 = vpop.f32.mrb[0].mxu0
        %v2575 = vadd.f32 %v2467, %v2574
        %v2576 = vpop.f32.mrb[0].mxu0
        %2577 = vmatprep.mubr.f32.mxu0 0.0
        %2578 = vmatmul.mubr.f32.gmra.mrb[0].mxu0 %v2329
        %v2579 = vpop.f32.mrb[0].mxu0
        %v2580 = vadd.f32 %v2467, %v2579
        %v2581 = vpop.f32.mrb[0].mxu0
        %2582 = vmatprep.mubr.f32.mxu0 0.0
        %2583 = vmatmul.mubr.f32.gmra.mrb[0].mxu0 %v2330
        %v2584 = vpop.f32.mrb[0].mxu0
        %v2585 = vadd.f32 %v2467, %v2584
        %v2586 = vpop.f32.mrb[0].mxu0
        %2587 = vmatprep.mubr.f32.mxu0 0.0
        %2588 = vmatmul.mubr.f32.gmra.mrb[0].mxu0 %v2331
        %v2589 = vpop.f32.mrb[0].mxu0
        %v2590 = vadd.f32 %v2467, %v2589
        %v2591 = vpop.f32.mrb[0].mxu0
        %2592 = vmatprep.mubr.f32.mxu0 0.0
        %2593 = vmatmul.mubr.f32.gmra.mrb[0].mxu0 %v2332
        %v2594 = vpop.f32.mrb[0].mxu0
        %v2595 = vadd.f32 %v2467, %v2594
        %v2596 = vpop.f32.mrb[0].mxu0
        %2597 = vmatprep.mubr.f32.mxu0 0.0
        %2598 = vmatmul.mubr.f32.gmra.mrb[0].mxu0 %v2333
        %v2599 = vpop.f32.mrb[0].mxu0
        %v2600 = vadd.f32 %v2467, %v2599
        %v2601 = vpop.f32.mrb[0].mxu0
        %2602 = vmatprep.mubr.f32.mxu0 0.0
        %2603 = vmatmul.mubr.f32.gmra.mrb[0].mxu0 %v2334
        %v2604 = vpop.f32.mrb[0].mxu0
        %v2605 = vadd.f32 %v2467, %v2604
        %v2606 = vpop.f32.mrb[0].mxu0
        %2607 = vmatprep.mubr.f32.mxu0 0.0
        %2608 = vmatmul.mubr.f32.gmra.mrb[0].mxu0 %v2335
        %v2609 = vpop.f32.mrb[0].mxu0
        %v2610 = vadd.f32 %v2467, %v2609
        %v2611 = vpop.f32.mrb[0].mxu0
        %2612 = vmatprep.mubr.f32.mxu0 0.0
        %2613 = vmatmul.mubr.f32.gmra.mrb[0].mxu0 %v2336
        %v2614 = vpop.f32.mrb[0].mxu0
        %v2615 = vadd.f32 %v2467, %v2614
        %v2616 = vpop.f32.mrb[0].mxu0
        %2617 = vmatprep.mubr.f32.mxu0 0.0
        %2618 = vmatmul.mubr.f32.gmra.mrb[0].mxu0 %v2337
        %v2619 = vpop.f32.mrb[0].mxu0
        %v2620 = vadd.f32 %v2467, %v2619
        %v2621 = vpop.f32.mrb[0].mxu0
        %2622 = vmatprep.mubr.f32.mxu0 0.0
        %2623 = vmatmul.mubr.f32.gmra.mrb[0].mxu0 %v2338
        %v2624 = vpop.f32.mrb[0].mxu0
        %v2625 = vadd.f32 %v2467, %v2624
        %v2626 = vpop.f32.mrb[0].mxu0
        %2627 = vmatprep.mubr.f32.mxu0 0.0
        %2628 = vmatmul.mubr.f32.gmra.mrb[0].mxu0 %v2339
        %v2629 = vpop.f32.mrb[0].mxu0
        %v2630 = vadd.f32 %v2467, %v2629
        %v2631 = vpop.f32.mrb[0].mxu0
        %2632 = vmatprep.mubr.f32.mxu0 0.0
        %2633 = vmatmul.mubr.f32.gmra.mrb[0].mxu0 %v2340
        %v2634 = vpop.f32.mrb[0].mxu0
        %v2635 = vadd.f32 %v2467, %v2634
        %v2636 = vpop.f32.mrb[0].mxu0
        %2637 = vmatprep.mubr.f32.mxu0 0.0
        %2638 = vmatmul.mubr.f32.gmra.mrb[0].mxu0 %v2341
        %v2639 = vpop.f32.mrb[0].mxu0
        %v2640 = vadd.f32 %v2467, %v2639
        %v2641 = vpop.f32.mrb[0].mxu0
        %2642 = vmatprep.mubr.f32.mxu0 0.0
        %2643 = vmatmul.mubr.f32.gmra.mrb[0].mxu0 %v2342
        %v2644 = vpop.f32.mrb[0].mxu0
        %v2645 = vadd.f32 %v2467, %v2644
        %v2646 = vpop.f32.mrb[0].mxu0
        %2647 = vmatprep.mubr.f32.mxu0 0.0
        %2648 = vmatmul.mubr.f32.gmra.mrb[0].mxu0 %v2343
        %v2649 = vpop.f32.mrb[0].mxu0
        %v2650 = vadd.f32 %v2467, %v2649
        %v2651 = vpop.f32.mrb[0].mxu0
        %2652 = vmatprep.mubr.f32.mxu0 0.0
        %2653 = vmatmul.mubr.f32.gmra.mrb[0].mxu0 %v2344
        %v2654 = vpop.f32.mrb[0].mxu0
        %v2655 = vadd.f32 %v2467, %v2654
        %v2656 = vpop.f32.mrb[0].mxu0
        %2657 = vmatprep.mubr.f32.mxu0 0.0
        %2658 = vmatmul.mubr.f32.gmra.mrb[0].mxu0 %v2345
        %v2659 = vpop.f32.mrb[0].mxu0
        %v2660 = vadd.f32 %v2467, %v2659
        %v2661 = vpop.f32.mrb[0].mxu0
        %2662 = vmatprep.mubr.f32.mxu0 0.0
        %2663 = vmatmul.mubr.f32.gmra.mrb[0].mxu0 %v2346
        %v2664 = vpop.f32.mrb[0].mxu0
        %v2665 = vadd.f32 %v2467, %v2664
        %v2666 = vpop.f32.mrb[0].mxu0
        %2667 = vmatprep.mubr.f32.mxu0 0.0
        %2668 = vmatmul.mubr.f32.gmra.mrb[0].mxu0 %v2347
        %v2669 = vpop.f32.mrb[0].mxu0
        %v2670 = vadd.f32 %v2467, %v2669
        %v2671 = vpop.f32.mrb[0].mxu0
        %2672 = vmatprep.mubr.f32.mxu0 0.0
        %2673 = vmatmul.mubr.f32.gmra.mrb[0].mxu0 %v2348
        %v2674 = vpop.f32.mrb[0].mxu0
        %v2675 = vadd.f32 %v2467, %v2674
        %v2676 = vpop.f32.mrb[0].mxu0
        %2677 = vmatprep.mubr.f32.mxu0 0.0
        %2678 = vmatmul.mubr.f32.gmra.mrb[0].mxu0 %v2349
        %v2679 = vpop.f32.mrb[0].mxu0
        %v2680 = vadd.f32 %v2467, %v2679
        %v2681 = vpop.f32.mrb[0].mxu0
        %2682 = vmatprep.mubr.f32.mxu0 0.0
        %2683 = vmatmul.mubr.f32.gmra.mrb[0].mxu0 %v2350
        %v2684 = vpop.f32.mrb[0].mxu0
        %v2685 = vadd.f32 %v2467, %v2684
        %v2686 = vpop.f32.mrb[0].mxu0
        %2687 = vmatprep.mubr.f32.mxu0 0.0
        %2688 = vmatmul.mubr.f32.gmra.mrb[0].mxu0 %v2351
        %v2689 = vpop.f32.mrb[0].mxu0
        %v2690 = vadd.f32 %v2467, %v2689
        %v2691 = vpop.f32.mrb[0].mxu0
        %2692 = vmatprep.mubr.f32.mxu0 0.0
        %2693 = vmatmul.mubr.f32.gmra.mrb[0].mxu0 %v2352
        %v2694 = vpop.f32.mrb[0].mxu0
        %v2695 = vadd.f32 %v2467, %v2694
        %v2696 = vpop.f32.mrb[0].mxu0
        %2697 = vmatprep.mubr.f32.mxu0 0.0
        %2698 = vmatmul.mubr.f32.gmra.mrb[0].mxu0 %v2353
        %v2699 = vpop.f32.mrb[0].mxu0
        %v2700 = vadd.f32 %v2467, %v2699
        %v2701 = vpop.f32.mrb[0].mxu0
        %2702 = vmatprep.mubr.f32.mxu0 0.0
        %2703 = vmatmul.mubr.f32.gmra.mrb[0].mxu0 %v2354
        %v2704 = vpop.f32.mrb[0].mxu0
        %v2705 = vadd.f32 %v2467, %v2704
        %v2706 = vpop.f32.mrb[0].mxu0
        %2707 = vmatprep.mubr.f32.mxu0 0.0
        %2708 = vmatmul.mubr.f32.gmra.mrb[0].mxu0 %v2355
        %v2709 = vpop.f32.mrb[0].mxu0
        %v2710 = vadd.f32 %v2467, %v2709
        %v2711 = vpop.f32.mrb[0].mxu0
        %2712 = vmatprep.mubr.f32.mxu0 0.0
        %2713 = vmatmul.mubr.f32.gmra.mrb[0].mxu0 %v2356
        %v2714 = vpop.f32.mrb[0].mxu0
        %v2715 = vadd.f32 %v2467, %v2714
        %v2716 = vpop.f32.mrb[0].mxu0
        %2717 = vmatprep.mubr.f32.mxu0 0.0
        %2718 = vmatmul.mubr.f32.gmra.mrb[0].mxu0 %v2357
        %v2719 = vpop.f32.mrb[0].mxu0
        %v2720 = vadd.f32 %v2467, %v2719
        %v2721 = vpop.f32.mrb[0].mxu0
        %2722 = vmatprep.mubr.f32.mxu0 0.0
        %2723 = vmatmul.mubr.f32.gmra.mrb[0].mxu0 %v2358
        %v2724 = vpop.f32.mrb[0].mxu0
        %v2725 = vadd.f32 %v2467, %v2724
        %v2726 = vpop.f32.mrb[0].mxu0
        %2727 = vmatprep.mubr.f32.mxu0 0.0
        %2728 = vmatmul.mubr.f32.gmra.mrb[0].mxu0 %v2359
        %v2729 = vpop.f32.mrb[0].mxu0
        %v2730 = vadd.f32 %v2467, %v2729
        %v2731 = vpop.f32.mrb[0].mxu0
        %2732 = vmatprep.mubr.f32.mxu0 0.0
        %2733 = vmatmul.mubr.f32.gmra.mrb[0].mxu0 %v2360
        %v2734 = vpop.f32.mrb[0].mxu0
        %v2735 = vadd.f32 %v2467, %v2734
        %v2736 = vpop.f32.mrb[0].mxu0
        %2737 = vmatprep.mubr.f32.mxu0 0.0
        %2738 = vmatmul.mubr.f32.gmra.mrb[0].mxu0 %v2361
        %v2739 = vpop.f32.mrb[0].mxu0
        %v2740 = vadd.f32 %v2467, %v2739
        %v2741 = vpop.f32.mrb[0].mxu0
        %2742 = vmatprep.mubr.f32.mxu0 0.0
        %2743 = vmatmul.mubr.f32.gmra.mrb[0].mxu0 %v2362
        %v2744 = vpop.f32.mrb[0].mxu0
        %v2745 = vadd.f32 %v2467, %v2744
        %v2746 = vpop.f32.mrb[0].mxu0
        %2747 = vmatprep.mubr.f32.mxu0 0.0
        %2748 = vmatmul.mubr.f32.gmra.mrb[0].mxu0 %v2363
        %v2749 = vpop.f32.mrb[0].mxu0
        %v2750 = vadd.f32 %v2467, %v2749
        %v2751 = vpop.f32.mrb[0].mxu0
        %2752 = vmatprep.mubr.f32.mxu0 0.0
        %2753 = vmatmul.mubr.f32.gmra.mrb[0].mxu0 %v2364
        %v2754 = vpop.f32.mrb[0].mxu0
        %v2755 = vadd.f32 %v2467, %v2754
        %v2756 = vpop.f32.mrb[0].mxu0
        %2757 = vmatprep.mubr.f32.mxu0 0.0
        %2758 = vmatmul.mubr.f32.gmra.mrb[0].mxu0 %v2365
        %v2759 = vpop.f32.mrb[0].mxu0
        %v2760 = vadd.f32 %v2467, %v2759
        %v2761 = vpop.f32.mrb[0].mxu0
        %2762 = vmatprep.mubr.f32.mxu0 0.0
        %2763 = vmatmul.mubr.f32.gmra.mrb[0].mxu0 %v2366
        %v2764 = vpop.f32.mrb[0].mxu0
        %v2765 = vadd.f32 %v2467, %v2764
        %v2766 = vpop.f32.mrb[0].mxu0
        %2767 = vmatprep.mubr.f32.mxu0 0.0
        %2768 = vmatmul.mubr.f32.gmra.mrb[0].mxu0 %v2367
        %v2769 = vpop.f32.mrb[0].mxu0
        %v2770 = vadd.f32 %v2467, %v2769
        %v2771 = vpop.f32.mrb[0].mxu0
        %2772 = vmatprep.mubr.f32.mxu0 0.0
        %2773 = vmatmul.mubr.f32.gmra.mrb[0].mxu0 %v2368
        %v2774 = vpop.f32.mrb[0].mxu0
        %v2775 = vadd.f32 %v2467, %v2774
        %v2776 = vpop.f32.mrb[0].mxu0
        %2777 = vmatprep.mubr.f32.mxu0 0.0
        %2778 = vmatmul.mubr.f32.gmra.mrb[0].mxu0 %v2369
        %v2779 = vpop.f32.mrb[0].mxu0
        %v2780 = vadd.f32 %v2467, %v2779
        %v2781 = vpop.f32.mrb[0].mxu0
        %2782 = vmatprep.mubr.f32.mxu0 0.0
        %2783 = vmatmul.mubr.f32.gmra.mrb[0].mxu0 %v2370
        %v2784 = vpop.f32.mrb[0].mxu0
        %v2785 = vadd.f32 %v2467, %v2784
        %v2786 = vpop.f32.mrb[0].mxu0
        %2787 = vmatprep.mubr.f32.mxu0 0.0
        %2788 = vmatmul.mubr.f32.gmra.mrb[0].mxu0 %v2371
        %v2789 = vpop.f32.mrb[0].mxu0
        %v2790 = vadd.f32 %v2467, %v2789
        %v2791 = vpop.f32.mrb[0].mxu0
        %2792 = vmatprep.mubr.f32.mxu0 0.0
        %2793 = vmatmul.mubr.f32.gmra.mrb[0].mxu0 %v2372
        %v2794 = vpop.f32.mrb[0].mxu0
        %v2795 = vadd.f32 %v2467, %v2794
        %v2796 = vpop.f32.mrb[0].mxu0
        %2797 = vmatprep.mubr.f32.mxu0 0.0
        %2798 = vmatmul.mubr.f32.gmra.mrb[0].mxu0 %v2373
        %v2799 = vpop.f32.mrb[0].mxu0
        %v2800 = vadd.f32 %v2467, %v2799
        %v2801 = vpop.f32.mrb[0].mxu0
        %2802 = vmatprep.mubr.f32.mxu0 0.0
        %2803 = vmatmul.mubr.f32.gmra.mrb[0].mxu0 %v2374
        %v2804 = vpop.f32.mrb[0].mxu0
        %v2805 = vadd.f32 %v2467, %v2804
        %v2806 = vpop.f32.mrb[0].mxu0
        %2807 = vmatprep.mubr.f32.mxu0 0.0
        %2808 = vmatmul.mubr.f32.gmra.mrb[0].mxu0 %v2375
        %v2809 = vpop.f32.mrb[0].mxu0
        %v2810 = vadd.f32 %v2467, %v2809
        %v2811 = vpop.f32.mrb[0].mxu0
        %2812 = vmatprep.mubr.f32.mxu0 0.0
        %2813 = vmatmul.mubr.f32.gmra.mrb[0].mxu0 %v2376
        %v2814 = vpop.f32.mrb[0].mxu0
        %v2815 = vadd.f32 %v2467, %v2814
        %v2816 = vpop.f32.mrb[0].mxu0
        %2817 = vmatprep.mubr.f32.mxu0 0.0
        %2818 = vmatmul.mubr.f32.gmra.mrb[0].mxu0 %v2377
        %v2819 = vpop.f32.mrb[0].mxu0
        %v2820 = vadd.f32 %v2467, %v2819
        %v2821 = vpop.f32.mrb[0].mxu0
        %2822 = vmatprep.mubr.f32.mxu0 0.0
        %2823 = vmatmul.mubr.f32.gmra.mrb[0].mxu0 %v2378
        %v2824 = vpop.f32.mrb[0].mxu0
        %v2825 = vadd.f32 %v2467, %v2824
        %v2826 = vpop.f32.mrb[0].mxu0
        %2827 = vmatprep.mubr.f32.mxu0 0.0
        %2828 = vmatmul.mubr.f32.gmra.mrb[0].mxu0 %v2379
        %v2829 = vpop.f32.mrb[0].mxu0
        %v2830 = vadd.f32 %v2467, %v2829
        %v2831 = vpop.f32.mrb[0].mxu0
        %2832 = vmatprep.mubr.f32.mxu0 0.0
        %2833 = vmatmul.mubr.f32.gmra.mrb[0].mxu0 %v2380
        %v2834 = vpop.f32.mrb[0].mxu0
        %v2835 = vadd.f32 %v2467, %v2834
        %v2836 = vpop.f32.mrb[0].mxu0
        %2837 = vmatprep.mubr.f32.mxu0 0.0
        %2838 = vmatmul.mubr.f32.gmra.mrb[0].mxu0 %v2381
        %v2839 = vpop.f32.mrb[0].mxu0
        %v2840 = vadd.f32 %v2467, %v2839
        %v2841 = vpop.f32.mrb[0].mxu0
        %2842 = vmatprep.mubr.f32.mxu0 0.0
        %2843 = vmatmul.mubr.f32.gmra.mrb[0].mxu0 %v2382
        %v2844 = vpop.f32.mrb[0].mxu0
        %v2845 = vadd.f32 %v2467, %v2844
        %v2846 = vpop.f32.mrb[0].mxu0
        %2847 = vmatprep.mubr.f32.mxu0 0.0
        %2848 = vmatmul.mubr.f32.gmra.mrb[0].mxu0 %v2383
        %v2849 = vpop.f32.mrb[0].mxu0
        %v2850 = vadd.f32 %v2467, %v2849
        %v2851 = vpop.f32.mrb[0].mxu0
        %2852 = vmatprep.mubr.f32.mxu0 0.0
        %2853 = vmatmul.mubr.f32.gmra.mrb[0].mxu0 %v2384
        %v2854 = vpop.f32.mrb[0].mxu0
        %v2855 = vadd.f32 %v2467, %v2854
        %v2856 = vpop.f32.mrb[0].mxu0
        %2857 = vmatprep.mubr.f32.mxu0 0.0
        %2858 = vmatmul.mubr.f32.gmra.mrb[0].mxu0 %v2385
        %v2859 = vpop.f32.mrb[0].mxu0
        %v2860 = vadd.f32 %v2467, %v2859
        %v2861 = vpop.f32.mrb[0].mxu0
        %2862 = vmatprep.mubr.f32.mxu0 0.0
        %2863 = vmatmul.mubr.f32.gmra.mrb[0].mxu0 %v2386
        %v2864 = vpop.f32.mrb[0].mxu0
        %v2865 = vadd.f32 %v2467, %v2864
        %v2866 = vpop.f32.mrb[0].mxu0
        %2867 = vmatprep.mubr.f32.mxu0 0.0
        %2868 = vmatmul.mubr.f32.gmra.mrb[0].mxu0 %v2387
        %v2869 = vpop.f32.mrb[0].mxu0
        %v2870 = vadd.f32 %v2467, %v2869
        %v2871 = vpop.f32.mrb[0].mxu0
        %2872 = vmatprep.mubr.f32.mxu0 0.0
        %2873 = vmatmul.mubr.f32.gmra.mrb[0].mxu0 %v2388
        %v2874 = vpop.f32.mrb[0].mxu0
        %v2875 = vadd.f32 %v2467, %v2874
        %v2876 = vpop.f32.mrb[0].mxu0
        %2877 = vmatprep.mubr.f32.mxu0 0.0
        %2878 = vmatmul.mubr.f32.gmra.mrb[0].mxu0 %v2389
        %v2879 = vpop.f32.mrb[0].mxu0
        %v2880 = vadd.f32 %v2467, %v2879
        %v2881 = vpop.f32.mrb[0].mxu0
        %2882 = vmatprep.mubr.f32.mxu0 0.0
        %2883 = vmatmul.mubr.f32.gmra.mrb[0].mxu0 %v2390
        %v2884 = vpop.f32.mrb[0].mxu0
        %v2885 = vadd.f32 %v2467, %v2884
        %v2886 = vpop.f32.mrb[0].mxu0
        %2887 = vmatprep.mubr.f32.mxu0 0.0
        %2888 = vmatmul.mubr.f32.gmra.mrb[0].mxu0 %v2391
        %v2889 = vpop.f32.mrb[0].mxu0
        %v2890 = vadd.f32 %v2467, %v2889
        %v2891 = vpop.f32.mrb[0].mxu0
        %2892 = vmatprep.mubr.f32.mxu0 0.0
        %2893 = vmatmul.mubr.f32.gmra.mrb[0].mxu0 %v2392
        %v2894 = vpop.f32.mrb[0].mxu0
        %v2895 = vadd.f32 %v2467, %v2894
        %v2896 = vpop.f32.mrb[0].mxu0
        %2897 = vmatprep.mubr.f32.mxu0 0.0
        %2898 = vmatmul.mubr.f32.gmra.mrb[0].mxu0 %v2393
        %v2899 = vpop.f32.mrb[0].mxu0
        %v2900 = vadd.f32 %v2467, %v2899
        %v2901 = vpop.f32.mrb[0].mxu0
        %2902 = vmatprep.mubr.f32.mxu0 0.0
        %2903 = vmatmul.mubr.f32.gmra.mrb[0].mxu0 %v2394
        %v2904 = vpop.f32.mrb[0].mxu0
        %v2905 = vadd.f32 %v2467, %v2904
        %v2906 = vpop.f32.mrb[0].mxu0
        %2907 = vmatprep.mubr.f32.mxu0 0.0
        %2908 = vmatmul.mubr.f32.gmra.mrb[0].mxu0 %v2395
        %v2909 = vpop.f32.mrb[0].mxu0
        %v2910 = vadd.f32 %v2467, %v2909
        %v2911 = vpop.f32.mrb[0].mxu0
        %2912 = vmatprep.mubr.f32.mxu0 0.0
        %2913 = vmatmul.mubr.f32.gmra.mrb[0].mxu0 %v2396
        %v2914 = vpop.f32.mrb[0].mxu0
        %v2915 = vadd.f32 %v2467, %v2914
        %v2916 = vpop.f32.mrb[0].mxu0
        %2917 = vmatprep.mubr.f32.mxu0 0.0
        %2918 = vmatmul.mubr.f32.gmra.mrb[0].mxu0 %v2397
        %v2919 = vpop.f32.mrb[0].mxu0
        %v2920 = vadd.f32 %v2467, %v2919
        %v2921 = vpop.f32.mrb[0].mxu0
        %2922 = vmatprep.mubr.f32.mxu0 0.0
        %2923 = vmatmul.mubr.f32.gmra.mrb[0].mxu0 %v2398
        %v2924 = vpop.f32.mrb[0].mxu0
        %v2925 = vadd.f32 %v2467, %v2924
        %v2926 = vpop.f32.mrb[0].mxu0
        %2927 = vmatprep.mubr.f32.mxu0 0.0
        %2928 = vmatmul.mubr.f32.gmra.mrb[0].mxu0 %v2399
        %v2929 = vpop.f32.mrb[0].mxu0
        %v2930 = vadd.f32 %v2467, %v2929
        %v2931 = vpop.f32.mrb[0].mxu0
        %2932 = vmatprep.mubr.f32.mxu0 0.0
        %2933 = vmatmul.mubr.f32.gmra.mrb[0].mxu0 %v2400
        %v2934 = vpop.f32.mrb[0].mxu0
        %v2935 = vadd.f32 %v2467, %v2934
        %v2936 = vpop.f32.mrb[0].mxu0
        %2937 = vmatprep.mubr.f32.mxu0 0.0
        %2938 = vmatmul.mubr.f32.gmra.mrb[0].mxu0 %v2401
        %v2939 = vpop.f32.mrb[0].mxu0
        %v2940 = vadd.f32 %v2467, %v2939
        %v2941 = vpop.f32.mrb[0].mxu0
        %2942 = vmatprep.mubr.f32.mxu0 0.0
        %2943 = vmatmul.mubr.f32.gmra.mrb[0].mxu0 %v2402
        %v2944 = vpop.f32.mrb[0].mxu0
        %v2945 = vadd.f32 %v2467, %v2944
        %v2946 = vpop.f32.mrb[0].mxu0
        %2947 = vmatprep.mubr.f32.mxu0 0.0
        %2948 = vmatmul.mubr.f32.gmra.mrb[0].mxu0 %v2403
        %v2949 = vpop.f32.mrb[0].mxu0
        %v2950 = vadd.f32 %v2467, %v2949
        %v2951 = vpop.f32.mrb[0].mxu0
        %2952 = vmatprep.mubr.f32.mxu0 0.0
        %2953 = vmatmul.mubr.f32.gmra.mrb[0].mxu0 %v2404
        %v2954 = vpop.f32.mrb[0].mxu0
        %v2955 = vadd.f32 %v2467, %v2954
        %v2956 = vpop.f32.mrb[0].mxu0
        %2957 = vmatprep.mubr.f32.mxu0 0.0
        %2958 = vmatmul.mubr.f32.gmra.mrb[0].mxu0 %v2405
        %v2959 = vpop.f32.mrb[0].mxu0
        %v2960 = vadd.f32 %v2467, %v2959
        %v2961 = vpop.f32.mrb[0].mxu0
        %2962 = vmatprep.mubr.f32.mxu0 0.0
        %2963 = vmatmul.mubr.f32.gmra.mrb[0].mxu0 %v2406
        %v2964 = vpop.f32.mrb[0].mxu0
        %v2965 = vadd.f32 %v2467, %v2964
        %v2966 = vpop.f32.mrb[0].mxu0
        %2967 = vmatprep.mubr.f32.mxu0 0.0
        %2968 = vmatmul.mubr.f32.gmra.mrb[0].mxu0 %v2407
        %v2969 = vpop.f32.mrb[0].mxu0
        %v2970 = vadd.f32 %v2467, %v2969
        %v2971 = vpop.f32.mrb[0].mxu0
        %2972 = vmatprep.mubr.f32.mxu0 0.0
        %2973 = vmatmul.mubr.f32.gmra.mrb[0].mxu0 %v2408
        %v2974 = vpop.f32.mrb[0].mxu0
        %v2975 = vadd.f32 %v2467, %v2974
        %v2976 = vpop.f32.mrb[0].mxu0
        %2977 = vmatprep.mubr.f32.mxu0 0.0
        %2978 = vmatmul.mubr.f32.gmra.mrb[0].mxu0 %v2409
        %v2979 = vpop.f32.mrb[0].mxu0
        %v2980 = vadd.f32 %v2467, %v2979
        %v2981 = vpop.f32.mrb[0].mxu0
        %2982 = vmatprep.mubr.f32.mxu0 0.0
        %2983 = vmatmul.mubr.f32.gmra.mrb[0].mxu0 %v2410
        %v2984 = vpop.f32.mrb[0].mxu0
        %v2985 = vadd.f32 %v2467, %v2984
        %v2986 = vpop.f32.mrb[0].mxu0
        %2987 = vmatprep.mubr.f32.mxu0 0.0
        %2988 = vmatmul.mubr.f32.gmra.mrb[0].mxu0 %v2411
        %v2989 = vpop.f32.mrb[0].mxu0
        %v2990 = vadd.f32 %v2467, %v2989
        %v2991 = vpop.f32.mrb[0].mxu0
        %2992 = vmatprep.mubr.f32.mxu0 0.0
        %2993 = vmatmul.mubr.f32.gmra.mrb[0].mxu0 %v2412
        %v2994 = vpop.f32.mrb[0].mxu0
        %v2995 = vadd.f32 %v2467, %v2994
        %v2996 = vpop.f32.mrb[0].mxu0
        %2997 = vmatprep.mubr.f32.mxu0 0.0
        %2998 = vmatmul.mubr.f32.gmra.mrb[0].mxu0 %v2413
        %v2999 = vpop.f32.mrb[0].mxu0
        %v3000 = vadd.f32 %v2467, %v2999
        %v3001 = vpop.f32.mrb[0].mxu0
        %3002 = vmatprep.mubr.f32.mxu0 0.0
        %3003 = vmatmul.mubr.f32.gmra.mrb[0].mxu0 %v2414
        %v3004 = vpop.f32.mrb[0].mxu0
        %v3005 = vadd.f32 %v2467, %v3004
        %v3006 = vpop.f32.mrb[0].mxu0
        %3007 = vmatprep.mubr.f32.mxu0 0.0
        %3008 = vmatmul.mubr.f32.gmra.mrb[0].mxu0 %v2415
        %v3009 = vpop.f32.mrb[0].mxu0
        %v3010 = vadd.f32 %v2467, %v3009
        %v3011 = vpop.f32.mrb[0].mxu0
        %3012 = vmatprep.mubr.f32.mxu0 0.0
        %3013 = vmatmul.mubr.f32.gmra.mrb[0].mxu0 %v2416
        %v3014 = vpop.f32.mrb[0].mxu0
        %v3015 = vadd.f32 %v2467, %v3014
        %v3016 = vpop.f32.mrb[0].mxu0
        %3017 = vmatprep.mubr.f32.mxu0 0.0
        %3018 = vmatmul.mubr.f32.gmra.mrb[0].mxu0 %v2417
        %v3019 = vpop.f32.mrb[0].mxu0
        %v3020 = vadd.f32 %v2467, %v3019
        %v3021 = vpop.f32.mrb[0].mxu0
        %3022 = vmatprep.mubr.f32.mxu0 0.0
        %3023 = vmatmul.mubr.f32.gmra.mrb[0].mxu0 %v2418
        %v3024 = vpop.f32.mrb[0].mxu0
        %v3025 = vadd.f32 %v2467, %v3024
        %v3026 = vpop.f32.mrb[0].mxu0
        %3027 = vmatprep.mubr.f32.mxu0 0.0
        %3028 = vmatmul.mubr.f32.gmra.mrb[0].mxu0 %v2419
        %v3029 = vpop.f32.mrb[0].mxu0
        %v3030 = vadd.f32 %v2467, %v3029
        %v3031 = vpop.f32.mrb[0].mxu0
        %3032 = vmatprep.mubr.f32.mxu0 0.0
        %3033 = vmatmul.mubr.f32.gmra.mrb[0].mxu0 %v2420
        %v3034 = vpop.f32.mrb[0].mxu0
        %v3035 = vadd.f32 %v2467, %v3034
        %v3036 = vpop.f32.mrb[0].mxu0
        %3037 = vmatprep.mubr.f32.mxu0 0.0
        %3038 = vmatmul.mubr.f32.gmra.mrb[0].mxu0 %v2421
        %v3039 = vpop.f32.mrb[0].mxu0
        %v3040 = vadd.f32 %v2467, %v3039
        %v3041 = vpop.f32.mrb[0].mxu0
        %3042 = vmatprep.mubr.f32.mxu0 0.0
        %3043 = vmatmul.mubr.f32.gmra.mrb[0].mxu0 %v2422
        %v3044 = vpop.f32.mrb[0].mxu0
        %v3045 = vadd.f32 %v2467, %v3044
        %v3046 = vpop.f32.mrb[0].mxu0
        %3047 = vmatprep.mubr.f32.mxu0 0.0
        %3048 = vmatmul.mubr.f32.gmra.mrb[0].mxu0 %v2423
        %v3049 = vpop.f32.mrb[0].mxu0
        %v3050 = vadd.f32 %v2467, %v3049
        %v3051 = vpop.f32.mrb[0].mxu0
        %3052 = vmatprep.mubr.f32.mxu0 0.0
        %3053 = vmatmul.mubr.f32.gmra.mrb[0].mxu0 %v2424
        %v3054 = vpop.f32.mrb[0].mxu0
        %v3055 = vadd.f32 %v2467, %v3054
        %v3056 = vpop.f32.mrb[0].mxu0
        %3057 = vmatprep.mubr.f32.mxu0 0.0
        %3058 = vmatmul.mubr.f32.gmra.mrb[0].mxu0 %v2425
        %v3059 = vpop.f32.mrb[0].mxu0
        %v3060 = vadd.f32 %v2467, %v3059
        %v3061 = vpop.f32.mrb[0].mxu0
        %3062 = vmatprep.mubr.f32.mxu0 0.0
        %3063 = vmatmul.mubr.f32.gmra.mrb[0].mxu0 %v2426
        %v3064 = vpop.f32.mrb[0].mxu0
        %v3065 = vadd.f32 %v2467, %v3064
        %v3066 = vpop.f32.mrb[0].mxu0
        %3067 = vmatprep.mubr.f32.mxu0 0.0
        %3068 = vmatmul.mubr.f32.gmra.mrb[0].mxu0 %v2427
        %v3069 = vpop.f32.mrb[0].mxu0
        %v3070 = vadd.f32 %v2467, %v3069
        %v3071 = vpop.f32.mrb[0].mxu0
        %3072 = vmatprep.mubr.f32.mxu0 0.0
        %3073 = vmatmul.mubr.f32.gmra.mrb[0].mxu0 %v2428
        %v3074 = vpop.f32.mrb[0].mxu0
        %v3075 = vadd.f32 %v2467, %v3074
        %v3076 = vpop.f32.mrb[0].mxu0
        %3077 = vmatprep.mubr.f32.mxu0 0.0
        %3078 = vmatmul.mubr.f32.gmra.mrb[0].mxu0 %v2429
        %v3079 = vpop.f32.mrb[0].mxu0
        %v3080 = vadd.f32 %v2467, %v3079
        %v3081 = vpop.f32.mrb[0].mxu0
        %3082 = vmatprep.mubr.f32.mxu0 0.0
        %3083 = vmatmul.mubr.f32.gmra.mrb[0].mxu0 %v2430
        %v3084 = vpop.f32.mrb[0].mxu0
        %v3085 = vadd.f32 %v2467, %v3084
        %v3086 = vpop.f32.mrb[0].mxu0
        %3087 = vmatprep.mubr.f32.mxu0 0.0
        %3088 = vmatmul.mubr.f32.gmra.mrb[0].mxu0 %v2431
        %v3089 = vpop.f32.mrb[0].mxu0
        %v3090 = vadd.f32 %v2467, %v3089
        %v3091 = vpop.f32.mrb[0].mxu0
        %3092 = vmatprep.mubr.f32.mxu0 0.0
        %3093 = vmatmul.mubr.f32.gmra.mrb[0].mxu0 %v2432
        %v3094 = vpop.f32.mrb[0].mxu0
        %v3095 = vadd.f32 %v2467, %v3094
        %v3096 = vpop.f32.mrb[0].mxu0
        %3097 = vmatprep.mubr.f32.mxu0 0.0
        %3098 = vmatmul.mubr.f32.gmra.mrb[0].mxu0 %v2433
        %v3099 = vpop.f32.mrb[0].mxu0
        %v3100 = vadd.f32 %v2467, %v3099
        %v3101 = vpop.f32.mrb[0].mxu0
        %3102 = vmatprep.mubr.f32.mxu0 0.0
        %3103 = vmatmul.mubr.f32.gmra.mrb[0].mxu0 %v2434
        %v3104 = vpop.f32.mrb[0].mxu0
        %v3105 = vadd.f32 %v2467, %v3104
        %v3106 = vpop.f32.mrb[0].mxu0
        %3107 = vmatprep.mubr.f32.mxu0 0.0
        %3108 = vmatmul.mubr.f32.gmra.mrb[0].mxu0 %v2435
        %v3109 = vpop.f32.mrb[0].mxu0
        %v3110 = vadd.f32 %v2467, %v3109
        %v3111 = vpop.f32.mrb[0].mxu0
        %3112 = vmatprep.mubr.f32.mxu0 0.0
        %3113 = vmatmul.mubr.f32.gmra.mrb[0].mxu0 %v2436
        %v3114 = vpop.f32.mrb[0].mxu0
        %v3115 = vadd.f32 %v2467, %v3114
        %v3116 = vpop.f32.mrb[0].mxu0
        %3117 = vmatprep.mubr.f32.mxu0 0.0
        %3118 = vmatmul.mubr.f32.gmra.mrb[0].mxu0 %v2437
        %v3119 = vpop.f32.mrb[0].mxu0
        %v3120 = vadd.f32 %v2467, %v3119
        %v3121 = vpop.f32.mrb[0].mxu0
        %3122 = vmatprep.mubr.f32.mxu0 0.0
        %3123 = vmatmul.mubr.f32.gmra.mrb[0].mxu0 %v2438
        %v3124 = vpop.f32.mrb[0].mxu0
        %v3125 = vadd.f32 %v2467, %v3124
        %v3126 = vpop.f32.mrb[0].mxu0
        %3127 = vmatprep.mubr.f32.mxu0 0.0
        %3128 = vmatmul.mubr.f32.gmra.mrb[0].mxu0 %v2439
        %v3129 = vpop.f32.mrb[0].mxu0
        %v3130 = vadd.f32 %v2467, %v3129
        %v3131 = vpop.f32.mrb[0].mxu0
        %3132 = vmatprep.mubr.f32.mxu0 0.0
        %3133 = vmatmul.mubr.f32.gmra.mrb[0].mxu0 %v2440
        %v3134 = vpop.f32.mrb[0].mxu0
        %v3135 = vadd.f32 %v2467, %v3134
        %v3136 = vpop.f32.mrb[0].mxu0
        %3137 = vmatprep.mubr.f32.mxu0 0.0
        %3138 = vmatmul.mubr.f32.gmra.mrb[0].mxu0 %v2441
        %v3139 = vpop.f32.mrb[0].mxu0
        %v3140 = vadd.f32 %v2467, %v3139
        %v3141 = vpop.f32.mrb[0].mxu0
        %3142 = vmatprep.mubr.f32.mxu0 0.0
        %3143 = vmatmul.mubr.f32.gmra.mrb[0].mxu0 %v2442
        %v3144 = vpop.f32.mrb[0].mxu0
        %v3145 = vadd.f32 %v2467, %v3144
        %v3146 = vpop.f32.mrb[0].mxu0
        %3147 = vmatprep.mubr.f32.mxu0 0.0
        %3148 = vmatmul.mubr.f32.gmra.mrb[0].mxu0 %v2443
        %v3149 = vpop.f32.mrb[0].mxu0
        %v3150 = vadd.f32 %v2467, %v3149
        %v3151 = vpop.f32.mrb[0].mxu0
        %3152 = vmatprep.mubr.f32.mxu0 0.0
        %3153 = vmatmul.mubr.f32.gmra.mrb[0].mxu0 %v2444
        %v3154 = vpop.f32.mrb[0].mxu0
        %v3155 = vadd.f32 %v2467, %v3154
        %v3156 = vpop.f32.mrb[0].mxu0
        %3157 = vmatprep.mubr.f32.mxu0 0.0
        %3158 = vmatmul.mubr.f32.gmra.mrb[0].mxu0 %v2445
        %v3159 = vpop.f32.mrb[0].mxu0
        %v3160 = vadd.f32 %v2467, %v3159
        %v3161 = vpop.f32.mrb[0].mxu0
        %3162 = vmatprep.mubr.f32.mxu0 0.0
        %3163 = vmatmul.mubr.f32.gmra.mrb[0].mxu0 %v2446
        %v3164 = vpop.f32.mrb[0].mxu0
        %v3165 = vadd.f32 %v2467, %v3164
        %v3166 = vpop.f32.mrb[0].mxu0
        %3167 = vmatprep.mubr.f32.mxu0 0.0
        %3168 = vmatmul.mubr.f32.gmra.mrb[0].mxu0 %v2447
        %v3169 = vpop.f32.mrb[0].mxu0
        %v3170 = vadd.f32 %v2467, %v3169
        %v3171 = vpop.f32.mrb[0].mxu0
        %3172 = vdwg.mxu0
        %v3173 = vmul.f32 %v2535, %v2535
        %v3174 = vmul.f32 %v2540, %v2540
        %v3175 = vmul.f32 %v2545, %v2545
        %v3176 = vmul.f32 %v2550, %v2550
        %v3177 = vmul.f32 %v2555, %v2555
        %v3178 = vmul.f32 %v2560, %v2560
        %v3179 = vmul.f32 %v2565, %v2565
        %v3180 = vmul.f32 %v2570, %v2570
        %v3181 = vmul.f32 %v2575, %v2575
        %v3182 = vmul.f32 %v2580, %v2580
        %v3183 = vmul.f32 %v2585, %v2585
        %v3184 = vmul.f32 %v2590, %v2590
        %v3185 = vmul.f32 %v2595, %v2595
        %v3186 = vmul.f32 %v2600, %v2600
        %v3187 = vmul.f32 %v2605, %v2605
        %v3188 = vmul.f32 %v2610, %v2610
        %v3189 = vmul.f32 %v2615, %v2615
        %v3190 = vmul.f32 %v2620, %v2620
        %v3191 = vmul.f32 %v2625, %v2625
        %v3192 = vmul.f32 %v2630, %v2630
        %v3193 = vmul.f32 %v2635, %v2635
        %v3194 = vmul.f32 %v2640, %v2640
        %v3195 = vmul.f32 %v2645, %v2645
        %v3196 = vmul.f32 %v2650, %v2650
        %v3197 = vmul.f32 %v2655, %v2655
        %v3198 = vmul.f32 %v2660, %v2660
        %v3199 = vmul.f32 %v2665, %v2665
        %v3200 = vmul.f32 %v2670, %v2670
        %v3201 = vmul.f32 %v2675, %v2675
        %v3202 = vmul.f32 %v2680, %v2680
        %v3203 = vmul.f32 %v2685, %v2685
        %v3204 = vmul.f32 %v2690, %v2690
        %v3205 = vmul.f32 %v2695, %v2695
        %v3206 = vmul.f32 %v2700, %v2700
        %v3207 = vmul.f32 %v2705, %v2705
        %v3208 = vmul.f32 %v2710, %v2710
        %v3209 = vmul.f32 %v2715, %v2715
        %v3210 = vmul.f32 %v2720, %v2720
        %v3211 = vmul.f32 %v2725, %v2725
        %v3212 = vmul.f32 %v2730, %v2730
        %v3213 = vmul.f32 %v2735, %v2735
        %v3214 = vmul.f32 %v2740, %v2740
        %v3215 = vmul.f32 %v2745, %v2745
        %v3216 = vmul.f32 %v2750, %v2750
        %v3217 = vmul.f32 %v2755, %v2755
        %v3218 = vmul.f32 %v2760, %v2760
        %v3219 = vmul.f32 %v2765, %v2765
        %v3220 = vmul.f32 %v2770, %v2770
        %v3221 = vmul.f32 %v2775, %v2775
        %v3222 = vmul.f32 %v2780, %v2780
        %v3223 = vmul.f32 %v2785, %v2785
        %v3224 = vmul.f32 %v2790, %v2790
        %v3225 = vmul.f32 %v2795, %v2795
        %v3226 = vmul.f32 %v2800, %v2800
        %v3227 = vmul.f32 %v2805, %v2805
        %v3228 = vmul.f32 %v2810, %v2810
        %v3229 = vmul.f32 %v2815, %v2815
        %v3230 = vmul.f32 %v2820, %v2820
        %v3231 = vmul.f32 %v2825, %v2825
        %v3232 = vmul.f32 %v2830, %v2830
        %v3233 = vmul.f32 %v2835, %v2835
        %v3234 = vmul.f32 %v2840, %v2840
        %v3235 = vmul.f32 %v2845, %v2845
        %v3236 = vmul.f32 %v2850, %v2850
        %v3237 = vmul.f32 %v2855, %v2855
        %v3238 = vmul.f32 %v2860, %v2860
        %v3239 = vmul.f32 %v2865, %v2865
        %v3240 = vmul.f32 %v2870, %v2870
        %v3241 = vmul.f32 %v2875, %v2875
        %v3242 = vmul.f32 %v2880, %v2880
        %v3243 = vmul.f32 %v2885, %v2885
        %v3244 = vmul.f32 %v2890, %v2890
        %v3245 = vmul.f32 %v2895, %v2895
        %v3246 = vmul.f32 %v2900, %v2900
        %v3247 = vmul.f32 %v2905, %v2905
        %v3248 = vmul.f32 %v2910, %v2910
        %v3249 = vmul.f32 %v2915, %v2915
        %v3250 = vmul.f32 %v2920, %v2920
        %v3251 = vmul.f32 %v2925, %v2925
        %v3252 = vmul.f32 %v2930, %v2930
        %v3253 = vmul.f32 %v2935, %v2935
        %v3254 = vmul.f32 %v2940, %v2940
        %v3255 = vmul.f32 %v2945, %v2945
        %v3256 = vmul.f32 %v2950, %v2950
        %v3257 = vmul.f32 %v2955, %v2955
        %v3258 = vmul.f32 %v2960, %v2960
        %v3259 = vmul.f32 %v2965, %v2965
        %v3260 = vmul.f32 %v2970, %v2970
        %v3261 = vmul.f32 %v2975, %v2975
        %v3262 = vmul.f32 %v2980, %v2980
        %v3263 = vmul.f32 %v2985, %v2985
        %v3264 = vmul.f32 %v2990, %v2990
        %v3265 = vmul.f32 %v2995, %v2995
        %v3266 = vmul.f32 %v3000, %v3000
        %v3267 = vmul.f32 %v3005, %v3005
        %v3268 = vmul.f32 %v3010, %v3010
        %v3269 = vmul.f32 %v3015, %v3015
        %v3270 = vmul.f32 %v3020, %v3020
        %v3271 = vmul.f32 %v3025, %v3025
        %v3272 = vmul.f32 %v3030, %v3030
        %v3273 = vmul.f32 %v3035, %v3035
        %v3274 = vmul.f32 %v3040, %v3040
        %v3275 = vmul.f32 %v3045, %v3045
        %v3276 = vmul.f32 %v3050, %v3050
        %v3277 = vmul.f32 %v3055, %v3055
        %v3278 = vmul.f32 %v3060, %v3060
        %v3279 = vmul.f32 %v3065, %v3065
        %v3280 = vmul.f32 %v3070, %v3070
        %v3281 = vmul.f32 %v3075, %v3075
        %v3282 = vmul.f32 %v3080, %v3080
        %v3283 = vmul.f32 %v3085, %v3085
        %v3284 = vmul.f32 %v3090, %v3090
        %v3285 = vmul.f32 %v3095, %v3095
        %v3286 = vmul.f32 %v3100, %v3100
        %v3287 = vmul.f32 %v3105, %v3105
        %v3288 = vmul.f32 %v3110, %v3110
        %v3289 = vmul.f32 %v3115, %v3115
        %v3290 = vmul.f32 %v3120, %v3120
        %v3291 = vmul.f32 %v3125, %v3125
        %v3292 = vmul.f32 %v3130, %v3130
        %v3293 = vmul.f32 %v3135, %v3135
        %v3294 = vmul.f32 %v3140, %v3140
        %v3295 = vmul.f32 %v3145, %v3145
        %v3296 = vmul.f32 %v3150, %v3150
        %v3297 = vmul.f32 %v3155, %v3155
        %v3298 = vmul.f32 %v3160, %v3160
        %v3299 = vmul.f32 %v3165, %v3165
        %v3300 = vmul.f32 %v3170, %v3170
        %v3301 = vmul.f32 %v3173, %v2535
        %v3302 = vmul.f32 %v3174, %v2540
        %v3303 = vmul.f32 %v3175, %v2545
        %v3304 = vmul.f32 %v3176, %v2550
        %v3305 = vmul.f32 %v3177, %v2555
        %v3306 = vmul.f32 %v3178, %v2560
        %v3307 = vmul.f32 %v3179, %v2565
        %v3308 = vmul.f32 %v3180, %v2570
        %v3309 = vmul.f32 %v3181, %v2575
        %v3310 = vmul.f32 %v3182, %v2580
        %v3311 = vmul.f32 %v3183, %v2585
        %v3312 = vmul.f32 %v3184, %v2590
        %v3313 = vmul.f32 %v3185, %v2595
        %v3314 = vmul.f32 %v3186, %v2600
        %v3315 = vmul.f32 %v3187, %v2605
        %v3316 = vmul.f32 %v3188, %v2610
        %v3317 = vmul.f32 %v3189, %v2615
        %v3318 = vmul.f32 %v3190, %v2620
        %v3319 = vmul.f32 %v3191, %v2625
        %v3320 = vmul.f32 %v3192, %v2630
        %v3321 = vmul.f32 %v3193, %v2635
        %v3322 = vmul.f32 %v3194, %v2640
        %v3323 = vmul.f32 %v3195, %v2645
        %v3324 = vmul.f32 %v3196, %v2650
        %v3325 = vmul.f32 %v3197, %v2655
        %v3326 = vmul.f32 %v3198, %v2660
        %v3327 = vmul.f32 %v3199, %v2665
        %v3328 = vmul.f32 %v3200, %v2670
        %v3329 = vmul.f32 %v3201, %v2675
        %v3330 = vmul.f32 %v3202, %v2680
        %v3331 = vmul.f32 %v3203, %v2685
        %v3332 = vmul.f32 %v3204, %v2690
        %v3333 = vmul.f32 %v3205, %v2695
        %v3334 = vmul.f32 %v3206, %v2700
        %v3335 = vmul.f32 %v3207, %v2705
        %v3336 = vmul.f32 %v3208, %v2710
        %v3337 = vmul.f32 %v3209, %v2715
        %v3338 = vmul.f32 %v3210, %v2720
        %v3339 = vmul.f32 %v3211, %v2725
        %v3340 = vmul.f32 %v3212, %v2730
        %v3341 = vmul.f32 %v3213, %v2735
        %v3342 = vmul.f32 %v3214, %v2740
        %v3343 = vmul.f32 %v3215, %v2745
        %v3344 = vmul.f32 %v3216, %v2750
        %v3345 = vmul.f32 %v3217, %v2755
        %v3346 = vmul.f32 %v3218, %v2760
        %v3347 = vmul.f32 %v3219, %v2765
        %v3348 = vmul.f32 %v3220, %v2770
        %v3349 = vmul.f32 %v3221, %v2775
        %v3350 = vmul.f32 %v3222, %v2780
        %v3351 = vmul.f32 %v3223, %v2785
        %v3352 = vmul.f32 %v3224, %v2790
        %v3353 = vmul.f32 %v3225, %v2795
        %v3354 = vmul.f32 %v3226, %v2800
        %v3355 = vmul.f32 %v3227, %v2805
        %v3356 = vmul.f32 %v3228, %v2810
        %v3357 = vmul.f32 %v3229, %v2815
        %v3358 = vmul.f32 %v3230, %v2820
        %v3359 = vmul.f32 %v3231, %v2825
        %v3360 = vmul.f32 %v3232, %v2830
        %v3361 = vmul.f32 %v3233, %v2835
        %v3362 = vmul.f32 %v3234, %v2840
        %v3363 = vmul.f32 %v3235, %v2845
        %v3364 = vmul.f32 %v3236, %v2850
        %v3365 = vmul.f32 %v3237, %v2855
        %v3366 = vmul.f32 %v3238, %v2860
        %v3367 = vmul.f32 %v3239, %v2865
        %v3368 = vmul.f32 %v3240, %v2870
        %v3369 = vmul.f32 %v3241, %v2875
        %v3370 = vmul.f32 %v3242, %v2880
        %v3371 = vmul.f32 %v3243, %v2885
        %v3372 = vmul.f32 %v3244, %v2890
        %v3373 = vmul.f32 %v3245, %v2895
        %v3374 = vmul.f32 %v3246, %v2900
        %v3375 = vmul.f32 %v3247, %v2905
        %v3376 = vmul.f32 %v3248, %v2910
        %v3377 = vmul.f32 %v3249, %v2915
        %v3378 = vmul.f32 %v3250, %v2920
        %v3379 = vmul.f32 %v3251, %v2925
        %v3380 = vmul.f32 %v3252, %v2930
        %v3381 = vmul.f32 %v3253, %v2935
        %v3382 = vmul.f32 %v3254, %v2940
        %v3383 = vmul.f32 %v3255, %v2945
        %v3384 = vmul.f32 %v3256, %v2950
        %v3385 = vmul.f32 %v3257, %v2955
        %v3386 = vmul.f32 %v3258, %v2960
        %v3387 = vmul.f32 %v3259, %v2965
        %v3388 = vmul.f32 %v3260, %v2970
        %v3389 = vmul.f32 %v3261, %v2975
        %v3390 = vmul.f32 %v3262, %v2980
        %v3391 = vmul.f32 %v3263, %v2985
        %v3392 = vmul.f32 %v3264, %v2990
        %v3393 = vmul.f32 %v3265, %v2995
        %v3394 = vmul.f32 %v3266, %v3000
        %v3395 = vmul.f32 %v3267, %v3005
        %v3396 = vmul.f32 %v3268, %v3010
        %v3397 = vmul.f32 %v3269, %v3015
        %v3398 = vmul.f32 %v3270, %v3020
        %v3399 = vmul.f32 %v3271, %v3025
        %v3400 = vmul.f32 %v3272, %v3030
        %v3401 = vmul.f32 %v3273, %v3035
        %v3402 = vmul.f32 %v3274, %v3040
        %v3403 = vmul.f32 %v3275, %v3045
        %v3404 = vmul.f32 %v3276, %v3050
        %v3405 = vmul.f32 %v3277, %v3055
        %v3406 = vmul.f32 %v3278, %v3060
        %v3407 = vmul.f32 %v3279, %v3065
        %v3408 = vmul.f32 %v3280, %v3070
        %v3409 = vmul.f32 %v3281, %v3075
        %v3410 = vmul.f32 %v3282, %v3080
        %v3411 = vmul.f32 %v3283, %v3085
        %v3412 = vmul.f32 %v3284, %v3090
        %v3413 = vmul.f32 %v3285, %v3095
        %v3414 = vmul.f32 %v3286, %v3100
        %v3415 = vmul.f32 %v3287, %v3105
        %v3416 = vmul.f32 %v3288, %v3110
        %v3417 = vmul.f32 %v3289, %v3115
        %v3418 = vmul.f32 %v3290, %v3120
        %v3419 = vmul.f32 %v3291, %v3125
        %v3420 = vmul.f32 %v3292, %v3130
        %v3421 = vmul.f32 %v3293, %v3135
        %v3422 = vmul.f32 %v3294, %v3140
        %v3423 = vmul.f32 %v3295, %v3145
        %v3424 = vmul.f32 %v3296, %v3150
        %v3425 = vmul.f32 %v3297, %v3155
        %v3426 = vmul.f32 %v3298, %v3160
        %v3427 = vmul.f32 %v3299, %v3165
        %v3428 = vmul.f32 %v3300, %v3170
        %v3429 = vmul.f32 %v3301, 0.044715
        %v3430 = vmul.f32 %v3302, 0.044715
        %v3431 = vmul.f32 %v3303, 0.044715
        %v3432 = vmul.f32 %v3304, 0.044715
        %v3433 = vmul.f32 %v3305, 0.044715
        %v3434 = vmul.f32 %v3306, 0.044715
        %v3435 = vmul.f32 %v3307, 0.044715
        %v3436 = vmul.f32 %v3308, 0.044715
        %v3437 = vmul.f32 %v3309, 0.044715
        %v3438 = vmul.f32 %v3310, 0.044715
        %v3439 = vmul.f32 %v3311, 0.044715
        %v3440 = vmul.f32 %v3312, 0.044715
        %v3441 = vmul.f32 %v3313, 0.044715
        %v3442 = vmul.f32 %v3314, 0.044715
        %v3443 = vmul.f32 %v3315, 0.044715
        %v3444 = vmul.f32 %v3316, 0.044715
        %v3445 = vmul.f32 %v3317, 0.044715
        %v3446 = vmul.f32 %v3318, 0.044715
        %v3447 = vmul.f32 %v3319, 0.044715
        %v3448 = vmul.f32 %v3320, 0.044715
        %v3449 = vmul.f32 %v3321, 0.044715
        %v3450 = vmul.f32 %v3322, 0.044715
        %v3451 = vmul.f32 %v3323, 0.044715
        %v3452 = vmul.f32 %v3324, 0.044715
        %v3453 = vmul.f32 %v3325, 0.044715
        %v3454 = vmul.f32 %v3326, 0.044715
        %v3455 = vmul.f32 %v3327, 0.044715
        %v3456 = vmul.f32 %v3328, 0.044715
        %v3457 = vmul.f32 %v3329, 0.044715
        %v3458 = vmul.f32 %v3330, 0.044715
        %v3459 = vmul.f32 %v3331, 0.044715
        %v3460 = vmul.f32 %v3332, 0.044715
        %v3461 = vmul.f32 %v3333, 0.044715
        %v3462 = vmul.f32 %v3334, 0.044715
        %v3463 = vmul.f32 %v3335, 0.044715
        %v3464 = vmul.f32 %v3336, 0.044715
        %v3465 = vmul.f32 %v3337, 0.044715
        %v3466 = vmul.f32 %v3338, 0.044715
        %v3467 = vmul.f32 %v3339, 0.044715
        %v3468 = vmul.f32 %v3340, 0.044715
        %v3469 = vmul.f32 %v3341, 0.044715
        %v3470 = vmul.f32 %v3342, 0.044715
        %v3471 = vmul.f32 %v3343, 0.044715
        %v3472 = vmul.f32 %v3344, 0.044715
        %v3473 = vmul.f32 %v3345, 0.044715
        %v3474 = vmul.f32 %v3346, 0.044715
        %v3475 = vmul.f32 %v3347, 0.044715
        %v3476 = vmul.f32 %v3348, 0.044715
        %v3477 = vmul.f32 %v3349, 0.044715
        %v3478 = vmul.f32 %v3350, 0.044715
        %v3479 = vmul.f32 %v3351, 0.044715
        %v3480 = vmul.f32 %v3352, 0.044715
        %v3481 = vmul.f32 %v3353, 0.044715
        %v3482 = vmul.f32 %v3354, 0.044715
        %v3483 = vmul.f32 %v3355, 0.044715
        %v3484 = vmul.f32 %v3356, 0.044715
        %v3485 = vmul.f32 %v3357, 0.044715
        %v3486 = vmul.f32 %v3358, 0.044715
        %v3487 = vmul.f32 %v3359, 0.044715
        %v3488 = vmul.f32 %v3360, 0.044715
        %v3489 = vmul.f32 %v3361, 0.044715
        %v3490 = vmul.f32 %v3362, 0.044715
        %v3491 = vmul.f32 %v3363, 0.044715
        %v3492 = vmul.f32 %v3364, 0.044715
        %v3493 = vmul.f32 %v3365, 0.044715
        %v3494 = vmul.f32 %v3366, 0.044715
        %v3495 = vmul.f32 %v3367, 0.044715
        %v3496 = vmul.f32 %v3368, 0.044715
        %v3497 = vmul.f32 %v3369, 0.044715
        %v3498 = vmul.f32 %v3370, 0.044715
        %v3499 = vmul.f32 %v3371, 0.044715
        %v3500 = vmul.f32 %v3372, 0.044715
        %v3501 = vmul.f32 %v3373, 0.044715
        %v3502 = vmul.f32 %v3374, 0.044715
        %v3503 = vmul.f32 %v3375, 0.044715
        %v3504 = vmul.f32 %v3376, 0.044715
        %v3505 = vmul.f32 %v3377, 0.044715
        %v3506 = vmul.f32 %v3378, 0.044715
        %v3507 = vmul.f32 %v3379, 0.044715
        %v3508 = vmul.f32 %v3380, 0.044715
        %v3509 = vmul.f32 %v3381, 0.044715
        %v3510 = vmul.f32 %v3382, 0.044715
        %v3511 = vmul.f32 %v3383, 0.044715
        %v3512 = vmul.f32 %v3384, 0.044715
        %v3513 = vmul.f32 %v3385, 0.044715
        %v3514 = vmul.f32 %v3386, 0.044715
        %v3515 = vmul.f32 %v3387, 0.044715
        %v3516 = vmul.f32 %v3388, 0.044715
        %v3517 = vmul.f32 %v3389, 0.044715
        %v3518 = vmul.f32 %v3390, 0.044715
        %v3519 = vmul.f32 %v3391, 0.044715
        %v3520 = vmul.f32 %v3392, 0.044715
        %v3521 = vmul.f32 %v3393, 0.044715
        %v3522 = vmul.f32 %v3394, 0.044715
        %v3523 = vmul.f32 %v3395, 0.044715
        %v3524 = vmul.f32 %v3396, 0.044715
        %v3525 = vmul.f32 %v3397, 0.044715
        %v3526 = vmul.f32 %v3398, 0.044715
        %v3527 = vmul.f32 %v3399, 0.044715
        %v3528 = vmul.f32 %v3400, 0.044715
        %v3529 = vmul.f32 %v3401, 0.044715
        %v3530 = vmul.f32 %v3402, 0.044715
        %v3531 = vmul.f32 %v3403, 0.044715
        %v3532 = vmul.f32 %v3404, 0.044715
        %v3533 = vmul.f32 %v3405, 0.044715
        %v3534 = vmul.f32 %v3406, 0.044715
        %v3535 = vmul.f32 %v3407, 0.044715
        %v3536 = vmul.f32 %v3408, 0.044715
        %v3537 = vmul.f32 %v3409, 0.044715
        %v3538 = vmul.f32 %v3410, 0.044715
        %v3539 = vmul.f32 %v3411, 0.044715
        %v3540 = vmul.f32 %v3412, 0.044715
        %v3541 = vmul.f32 %v3413, 0.044715
        %v3542 = vmul.f32 %v3414, 0.044715
        %v3543 = vmul.f32 %v3415, 0.044715
        %v3544 = vmul.f32 %v3416, 0.044715
        %v3545 = vmul.f32 %v3417, 0.044715
        %v3546 = vmul.f32 %v3418, 0.044715
        %v3547 = vmul.f32 %v3419, 0.044715
        %v3548 = vmul.f32 %v3420, 0.044715
        %v3549 = vmul.f32 %v3421, 0.044715
        %v3550 = vmul.f32 %v3422, 0.044715
        %v3551 = vmul.f32 %v3423, 0.044715
        %v3552 = vmul.f32 %v3424, 0.044715
        %v3553 = vmul.f32 %v3425, 0.044715
        %v3554 = vmul.f32 %v3426, 0.044715
        %v3555 = vmul.f32 %v3427, 0.044715
        %v3556 = vmul.f32 %v3428, 0.044715
        %v3557 = vadd.f32 %v2535, %v3429
        %v3558 = vadd.f32 %v2540, %v3430
        %v3559 = vadd.f32 %v2545, %v3431
        %v3560 = vadd.f32 %v2550, %v3432
        %v3561 = vadd.f32 %v2555, %v3433
        %v3562 = vadd.f32 %v2560, %v3434
        %v3563 = vadd.f32 %v2565, %v3435
        %v3564 = vadd.f32 %v2570, %v3436
        %v3565 = vadd.f32 %v2575, %v3437
        %v3566 = vadd.f32 %v2580, %v3438
        %v3567 = vadd.f32 %v2585, %v3439
        %v3568 = vadd.f32 %v2590, %v3440
        %v3569 = vadd.f32 %v2595, %v3441
        %v3570 = vadd.f32 %v2600, %v3442
        %v3571 = vadd.f32 %v2605, %v3443
        %v3572 = vadd.f32 %v2610, %v3444
        %v3573 = vadd.f32 %v2615, %v3445
        %v3574 = vadd.f32 %v2620, %v3446
        %v3575 = vadd.f32 %v2625, %v3447
        %v3576 = vadd.f32 %v2630, %v3448
        %v3577 = vadd.f32 %v2635, %v3449
        %v3578 = vadd.f32 %v2640, %v3450
        %v3579 = vadd.f32 %v2645, %v3451
        %v3580 = vadd.f32 %v2650, %v3452
        %v3581 = vadd.f32 %v2655, %v3453
        %v3582 = vadd.f32 %v2660, %v3454
        %v3583 = vadd.f32 %v2665, %v3455
        %v3584 = vadd.f32 %v2670, %v3456
        %v3585 = vadd.f32 %v2675, %v3457
        %v3586 = vadd.f32 %v2680, %v3458
        %v3587 = vadd.f32 %v2685, %v3459
        %v3588 = vadd.f32 %v2690, %v3460
        %v3589 = vadd.f32 %v2695, %v3461
        %v3590 = vadd.f32 %v2700, %v3462
        %v3591 = vadd.f32 %v2705, %v3463
        %v3592 = vadd.f32 %v2710, %v3464
        %v3593 = vadd.f32 %v2715, %v3465
        %v3594 = vadd.f32 %v2720, %v3466
        %v3595 = vadd.f32 %v2725, %v3467
        %v3596 = vadd.f32 %v2730, %v3468
        %v3597 = vadd.f32 %v2735, %v3469
        %v3598 = vadd.f32 %v2740, %v3470
        %v3599 = vadd.f32 %v2745, %v3471
        %v3600 = vadd.f32 %v2750, %v3472
        %v3601 = vadd.f32 %v2755, %v3473
        %v3602 = vadd.f32 %v2760, %v3474
        %v3603 = vadd.f32 %v2765, %v3475
        %v3604 = vadd.f32 %v2770, %v3476
        %v3605 = vadd.f32 %v2775, %v3477
        %v3606 = vadd.f32 %v2780, %v3478
        %v3607 = vadd.f32 %v2785, %v3479
        %v3608 = vadd.f32 %v2790, %v3480
        %v3609 = vadd.f32 %v2795, %v3481
        %v3610 = vadd.f32 %v2800, %v3482
        %v3611 = vadd.f32 %v2805, %v3483
        %v3612 = vadd.f32 %v2810, %v3484
        %v3613 = vadd.f32 %v2815, %v3485
        %v3614 = vadd.f32 %v2820, %v3486
        %v3615 = vadd.f32 %v2825, %v3487
        %v3616 = vadd.f32 %v2830, %v3488
        %v3617 = vadd.f32 %v2835, %v3489
        %v3618 = vadd.f32 %v2840, %v3490
        %v3619 = vadd.f32 %v2845, %v3491
        %v3620 = vadd.f32 %v2850, %v3492
        %v3621 = vadd.f32 %v2855, %v3493
        %v3622 = vadd.f32 %v2860, %v3494
        %v3623 = vadd.f32 %v2865, %v3495
        %v3624 = vadd.f32 %v2870, %v3496
        %v3625 = vadd.f32 %v2875, %v3497
        %v3626 = vadd.f32 %v2880, %v3498
        %v3627 = vadd.f32 %v2885, %v3499
        %v3628 = vadd.f32 %v2890, %v3500
        %v3629 = vadd.f32 %v2895, %v3501
        %v3630 = vadd.f32 %v2900, %v3502
        %v3631 = vadd.f32 %v2905, %v3503
        %v3632 = vadd.f32 %v2910, %v3504
        %v3633 = vadd.f32 %v2915, %v3505
        %v3634 = vadd.f32 %v2920, %v3506
        %v3635 = vadd.f32 %v2925, %v3507
        %v3636 = vadd.f32 %v2930, %v3508
        %v3637 = vadd.f32 %v2935, %v3509
        %v3638 = vadd.f32 %v2940, %v3510
        %v3639 = vadd.f32 %v2945, %v3511
        %v3640 = vadd.f32 %v2950, %v3512
        %v3641 = vadd.f32 %v2955, %v3513
        %v3642 = vadd.f32 %v2960, %v3514
        %v3643 = vadd.f32 %v2965, %v3515
        %v3644 = vadd.f32 %v2970, %v3516
        %v3645 = vadd.f32 %v2975, %v3517
        %v3646 = vadd.f32 %v2980, %v3518
        %v3647 = vadd.f32 %v2985, %v3519
        %v3648 = vadd.f32 %v2990, %v3520
        %v3649 = vadd.f32 %v2995, %v3521
        %v3650 = vadd.f32 %v3000, %v3522
        %v3651 = vadd.f32 %v3005, %v3523
        %v3652 = vadd.f32 %v3010, %v3524
        %v3653 = vadd.f32 %v3015, %v3525
        %v3654 = vadd.f32 %v3020, %v3526
        %v3655 = vadd.f32 %v3025, %v3527
        %v3656 = vadd.f32 %v3030, %v3528
        %v3657 = vadd.f32 %v3035, %v3529
        %v3658 = vadd.f32 %v3040, %v3530
        %v3659 = vadd.f32 %v3045, %v3531
        %v3660 = vadd.f32 %v3050, %v3532
        %v3661 = vadd.f32 %v3055, %v3533
        %v3662 = vadd.f32 %v3060, %v3534
        %v3663 = vadd.f32 %v3065, %v3535
        %v3664 = vadd.f32 %v3070, %v3536
        %v3665 = vadd.f32 %v3075, %v3537
        %v3666 = vadd.f32 %v3080, %v3538
        %v3667 = vadd.f32 %v3085, %v3539
        %v3668 = vadd.f32 %v3090, %v3540
        %v3669 = vadd.f32 %v3095, %v3541
        %v3670 = vadd.f32 %v3100, %v3542
        %v3671 = vadd.f32 %v3105, %v3543
        %v3672 = vadd.f32 %v3110, %v3544
        %v3673 = vadd.f32 %v3115, %v3545
        %v3674 = vadd.f32 %v3120, %v3546
        %v3675 = vadd.f32 %v3125, %v3547
        %v3676 = vadd.f32 %v3130, %v3548
        %v3677 = vadd.f32 %v3135, %v3549
        %v3678 = vadd.f32 %v3140, %v3550
        %v3679 = vadd.f32 %v3145, %v3551
        %v3680 = vadd.f32 %v3150, %v3552
        %v3681 = vadd.f32 %v3155, %v3553
        %v3682 = vadd.f32 %v3160, %v3554
        %v3683 = vadd.f32 %v3165, %v3555
        %v3684 = vadd.f32 %v3170, %v3556
        %v3685 = vmul.f32 %v3557, 0.7978846
        %v3686 = vmul.f32 %v3558, 0.7978846
        %v3687 = vmul.f32 %v3559, 0.7978846
        %v3688 = vmul.f32 %v3560, 0.7978846
        %v3689 = vmul.f32 %v3561, 0.7978846
        %v3690 = vmul.f32 %v3562, 0.7978846
        %v3691 = vmul.f32 %v3563, 0.7978846
        %v3692 = vmul.f32 %v3564, 0.7978846
        %v3693 = vmul.f32 %v3565, 0.7978846
        %v3694 = vmul.f32 %v3566, 0.7978846
        %v3695 = vmul.f32 %v3567, 0.7978846
        %v3696 = vmul.f32 %v3568, 0.7978846
        %v3697 = vmul.f32 %v3569, 0.7978846
        %v3698 = vmul.f32 %v3570, 0.7978846
        %v3699 = vmul.f32 %v3571, 0.7978846
        %v3700 = vmul.f32 %v3572, 0.7978846
        %v3701 = vmul.f32 %v3573, 0.7978846
        %v3702 = vmul.f32 %v3574, 0.7978846
        %v3703 = vmul.f32 %v3575, 0.7978846
        %v3704 = vmul.f32 %v3576, 0.7978846
        %v3705 = vmul.f32 %v3577, 0.7978846
        %v3706 = vmul.f32 %v3578, 0.7978846
        %v3707 = vmul.f32 %v3579, 0.7978846
        %v3708 = vmul.f32 %v3580, 0.7978846
        %v3709 = vmul.f32 %v3581, 0.7978846
        %v3710 = vmul.f32 %v3582, 0.7978846
        %v3711 = vmul.f32 %v3583, 0.7978846
        %v3712 = vmul.f32 %v3584, 0.7978846
        %v3713 = vmul.f32 %v3585, 0.7978846
        %v3714 = vmul.f32 %v3586, 0.7978846
        %v3715 = vmul.f32 %v3587, 0.7978846
        %v3716 = vmul.f32 %v3588, 0.7978846
        %v3717 = vmul.f32 %v3589, 0.7978846
        %v3718 = vmul.f32 %v3590, 0.7978846
        %v3719 = vmul.f32 %v3591, 0.7978846
        %v3720 = vmul.f32 %v3592, 0.7978846
        %v3721 = vmul.f32 %v3593, 0.7978846
        %v3722 = vmul.f32 %v3594, 0.7978846
        %v3723 = vmul.f32 %v3595, 0.7978846
        %v3724 = vmul.f32 %v3596, 0.7978846
        %v3725 = vmul.f32 %v3597, 0.7978846
        %v3726 = vmul.f32 %v3598, 0.7978846
        %v3727 = vmul.f32 %v3599, 0.7978846
        %v3728 = vmul.f32 %v3600, 0.7978846
        %v3729 = vmul.f32 %v3601, 0.7978846
        %v3730 = vmul.f32 %v3602, 0.7978846
        %v3731 = vmul.f32 %v3603, 0.7978846
        %v3732 = vmul.f32 %v3604, 0.7978846
        %v3733 = vmul.f32 %v3605, 0.7978846
        %v3734 = vmul.f32 %v3606, 0.7978846
        %v3735 = vmul.f32 %v3607, 0.7978846
        %v3736 = vmul.f32 %v3608, 0.7978846
        %v3737 = vmul.f32 %v3609, 0.7978846
        %v3738 = vmul.f32 %v3610, 0.7978846
        %v3739 = vmul.f32 %v3611, 0.7978846
        %v3740 = vmul.f32 %v3612, 0.7978846
        %v3741 = vmul.f32 %v3613, 0.7978846
        %v3742 = vmul.f32 %v3614, 0.7978846
        %v3743 = vmul.f32 %v3615, 0.7978846
        %v3744 = vmul.f32 %v3616, 0.7978846
        %v3745 = vmul.f32 %v3617, 0.7978846
        %v3746 = vmul.f32 %v3618, 0.7978846
        %v3747 = vmul.f32 %v3619, 0.7978846
        %v3748 = vmul.f32 %v3620, 0.7978846
        %v3749 = vmul.f32 %v3621, 0.7978846
        %v3750 = vmul.f32 %v3622, 0.7978846
        %v3751 = vmul.f32 %v3623, 0.7978846
        %v3752 = vmul.f32 %v3624, 0.7978846
        %v3753 = vmul.f32 %v3625, 0.7978846
        %v3754 = vmul.f32 %v3626, 0.7978846
        %v3755 = vmul.f32 %v3627, 0.7978846
        %v3756 = vmul.f32 %v3628, 0.7978846
        %v3757 = vmul.f32 %v3629, 0.7978846
        %v3758 = vmul.f32 %v3630, 0.7978846
        %v3759 = vmul.f32 %v3631, 0.7978846
        %v3760 = vmul.f32 %v3632, 0.7978846
        %v3761 = vmul.f32 %v3633, 0.7978846
        %v3762 = vmul.f32 %v3634, 0.7978846
        %v3763 = vmul.f32 %v3635, 0.7978846
        %v3764 = vmul.f32 %v3636, 0.7978846
        %v3765 = vmul.f32 %v3637, 0.7978846
        %v3766 = vmul.f32 %v3638, 0.7978846
        %v3767 = vmul.f32 %v3639, 0.7978846
        %v3768 = vmul.f32 %v3640, 0.7978846
        %v3769 = vmul.f32 %v3641, 0.7978846
        %v3770 = vmul.f32 %v3642, 0.7978846
        %v3771 = vmul.f32 %v3643, 0.7978846
        %v3772 = vmul.f32 %v3644, 0.7978846
        %v3773 = vmul.f32 %v3645, 0.7978846
        %v3774 = vmul.f32 %v3646, 0.7978846
        %v3775 = vmul.f32 %v3647, 0.7978846
        %v3776 = vmul.f32 %v3648, 0.7978846
        %v3777 = vmul.f32 %v3649, 0.7978846
        %v3778 = vmul.f32 %v3650, 0.7978846
        %v3779 = vmul.f32 %v3651, 0.7978846
        %v3780 = vmul.f32 %v3652, 0.7978846
        %v3781 = vmul.f32 %v3653, 0.7978846
        %v3782 = vmul.f32 %v3654, 0.7978846
        %v3783 = vmul.f32 %v3655, 0.7978846
        %v3784 = vmul.f32 %v3656, 0.7978846
        %v3785 = vmul.f32 %v3657, 0.7978846
        %v3786 = vmul.f32 %v3658, 0.7978846
        %v3787 = vmul.f32 %v3659, 0.7978846
        %v3788 = vmul.f32 %v3660, 0.7978846
        %v3789 = vmul.f32 %v3661, 0.7978846
        %v3790 = vmul.f32 %v3662, 0.7978846
        %v3791 = vmul.f32 %v3663, 0.7978846
        %v3792 = vmul.f32 %v3664, 0.7978846
        %v3793 = vmul.f32 %v3665, 0.7978846
        %v3794 = vmul.f32 %v3666, 0.7978846
        %v3795 = vmul.f32 %v3667, 0.7978846
        %v3796 = vmul.f32 %v3668, 0.7978846
        %v3797 = vmul.f32 %v3669, 0.7978846
        %v3798 = vmul.f32 %v3670, 0.7978846
        %v3799 = vmul.f32 %v3671, 0.7978846
        %v3800 = vmul.f32 %v3672, 0.7978846
        %v3801 = vmul.f32 %v3673, 0.7978846
        %v3802 = vmul.f32 %v3674, 0.7978846
        %v3803 = vmul.f32 %v3675, 0.7978846
        %v3804 = vmul.f32 %v3676, 0.7978846
        %v3805 = vmul.f32 %v3677, 0.7978846
        %v3806 = vmul.f32 %v3678, 0.7978846
        %v3807 = vmul.f32 %v3679, 0.7978846
        %v3808 = vmul.f32 %v3680, 0.7978846
        %v3809 = vmul.f32 %v3681, 0.7978846
        %v3810 = vmul.f32 %v3682, 0.7978846
        %v3811 = vmul.f32 %v3683, 0.7978846
        %v3812 = vmul.f32 %v3684, 0.7978846
        %v3813 = vmul.f32 %v2535, 0.5
        %v3814 = vmul.f32 %v2540, 0.5
        %v3815 = vmul.f32 %v2545, 0.5
        %v3816 = vmul.f32 %v2550, 0.5
        %v3817 = vmul.f32 %v2555, 0.5
        %v3818 = vmul.f32 %v2560, 0.5
        %v3819 = vmul.f32 %v2565, 0.5
        %v3820 = vmul.f32 %v2570, 0.5
        %v3821 = vmul.f32 %v2575, 0.5
        %v3822 = vmul.f32 %v2580, 0.5
        %v3823 = vmul.f32 %v2585, 0.5
        %v3824 = vmul.f32 %v2590, 0.5
        %v3825 = vmul.f32 %v2595, 0.5
        %v3826 = vmul.f32 %v2600, 0.5
        %v3827 = vmul.f32 %v2605, 0.5
        %v3828 = vmul.f32 %v2610, 0.5
        %v3829 = vmul.f32 %v2615, 0.5
        %v3830 = vmul.f32 %v2620, 0.5
        %v3831 = vmul.f32 %v2625, 0.5
        %v3832 = vmul.f32 %v2630, 0.5
        %v3833 = vmul.f32 %v2635, 0.5
        %v3834 = vmul.f32 %v2640, 0.5
        %v3835 = vmul.f32 %v2645, 0.5
        %v3836 = vmul.f32 %v2650, 0.5
        %v3837 = vmul.f32 %v2655, 0.5
        %v3838 = vmul.f32 %v2660, 0.5
        %v3839 = vmul.f32 %v2665, 0.5
        %v3840 = vmul.f32 %v2670, 0.5
        %v3841 = vmul.f32 %v2675, 0.5
        %v3842 = vmul.f32 %v2680, 0.5
        %v3843 = vmul.f32 %v2685, 0.5
        %v3844 = vmul.f32 %v2690, 0.5
        %v3845 = vmul.f32 %v2695, 0.5
        %v3846 = vmul.f32 %v2700, 0.5
        %v3847 = vmul.f32 %v2705, 0.5
        %v3848 = vmul.f32 %v2710, 0.5
        %v3849 = vmul.f32 %v2715, 0.5
        %v3850 = vmul.f32 %v2720, 0.5
        %v3851 = vmul.f32 %v2725, 0.5
        %v3852 = vmul.f32 %v2730, 0.5
        %v3853 = vmul.f32 %v2735, 0.5
        %v3854 = vmul.f32 %v2740, 0.5
        %v3855 = vmul.f32 %v2745, 0.5
        %v3856 = vmul.f32 %v2750, 0.5
        %v3857 = vmul.f32 %v2755, 0.5
        %v3858 = vmul.f32 %v2760, 0.5
        %v3859 = vmul.f32 %v2765, 0.5
        %v3860 = vmul.f32 %v2770, 0.5
        %v3861 = vmul.f32 %v2775, 0.5
        %v3862 = vmul.f32 %v2780, 0.5
        %v3863 = vmul.f32 %v2785, 0.5
        %v3864 = vmul.f32 %v2790, 0.5
        %v3865 = vmul.f32 %v2795, 0.5
        %v3866 = vmul.f32 %v2800, 0.5
        %v3867 = vmul.f32 %v2805, 0.5
        %v3868 = vmul.f32 %v2810, 0.5
        %v3869 = vmul.f32 %v2815, 0.5
        %v3870 = vmul.f32 %v2820, 0.5
        %v3871 = vmul.f32 %v2825, 0.5
        %v3872 = vmul.f32 %v2830, 0.5
        %v3873 = vmul.f32 %v2835, 0.5
        %v3874 = vmul.f32 %v2840, 0.5
        %v3875 = vmul.f32 %v2845, 0.5
        %v3876 = vmul.f32 %v2850, 0.5
        %v3877 = vmul.f32 %v2855, 0.5
        %v3878 = vmul.f32 %v2860, 0.5
        %v3879 = vmul.f32 %v2865, 0.5
        %v3880 = vmul.f32 %v2870, 0.5
        %v3881 = vmul.f32 %v2875, 0.5
        %v3882 = vmul.f32 %v2880, 0.5
        %v3883 = vmul.f32 %v2885, 0.5
        %v3884 = vmul.f32 %v2890, 0.5
        %v3885 = vmul.f32 %v2895, 0.5
        %v3886 = vmul.f32 %v2900, 0.5
        %v3887 = vmul.f32 %v2905, 0.5
        %v3888 = vmul.f32 %v2910, 0.5
        %v3889 = vmul.f32 %v2915, 0.5
        %v3890 = vmul.f32 %v2920, 0.5
        %v3891 = vmul.f32 %v2925, 0.5
        %v3892 = vmul.f32 %v2930, 0.5
        %v3893 = vmul.f32 %v2935, 0.5
        %v3894 = vmul.f32 %v2940, 0.5
        %v3895 = vmul.f32 %v2945, 0.5
        %v3896 = vmul.f32 %v2950, 0.5
        %v3897 = vmul.f32 %v2955, 0.5
        %v3898 = vmul.f32 %v2960, 0.5
        %v3899 = vmul.f32 %v2965, 0.5
        %v3900 = vmul.f32 %v2970, 0.5
        %v3901 = vmul.f32 %v2975, 0.5
        %v3902 = vmul.f32 %v2980, 0.5
        %v3903 = vmul.f32 %v2985, 0.5
        %v3904 = vmul.f32 %v2990, 0.5
        %v3905 = vmul.f32 %v2995, 0.5
        %v3906 = vmul.f32 %v3000, 0.5
        %v3907 = vmul.f32 %v3005, 0.5
        %v3908 = vmul.f32 %v3010, 0.5
        %v3909 = vmul.f32 %v3015, 0.5
        %v3910 = vmul.f32 %v3020, 0.5
        %v3911 = vmul.f32 %v3025, 0.5
        %v3912 = vmul.f32 %v3030, 0.5
        %v3913 = vmul.f32 %v3035, 0.5
        %v3914 = vmul.f32 %v3040, 0.5
        %v3915 = vmul.f32 %v3045, 0.5
        %v3916 = vmul.f32 %v3050, 0.5
        %v3917 = vmul.f32 %v3055, 0.5
        %v3918 = vmul.f32 %v3060, 0.5
        %v3919 = vmul.f32 %v3065, 0.5
        %v3920 = vmul.f32 %v3070, 0.5
        %v3921 = vmul.f32 %v3075, 0.5
        %v3922 = vmul.f32 %v3080, 0.5
        %v3923 = vmul.f32 %v3085, 0.5
        %v3924 = vmul.f32 %v3090, 0.5
        %v3925 = vmul.f32 %v3095, 0.5
        %v3926 = vmul.f32 %v3100, 0.5
        %v3927 = vmul.f32 %v3105, 0.5
        %v3928 = vmul.f32 %v3110, 0.5
        %v3929 = vmul.f32 %v3115, 0.5
        %v3930 = vmul.f32 %v3120, 0.5
        %v3931 = vmul.f32 %v3125, 0.5
        %v3932 = vmul.f32 %v3130, 0.5
        %v3933 = vmul.f32 %v3135, 0.5
        %v3934 = vmul.f32 %v3140, 0.5
        %v3935 = vmul.f32 %v3145, 0.5
        %v3936 = vmul.f32 %v3150, 0.5
        %v3937 = vmul.f32 %v3155, 0.5
        %v3938 = vmul.f32 %v3160, 0.5
        %v3939 = vmul.f32 %v3165, 0.5
        %v3940 = vmul.f32 %v3170, 0.5
        %v3941 = vtanh.pop %v3685
        %v3942 = vtanh.pop %v3686
        %v3943 = vtanh.pop %v3687
        %v3944 = vtanh.pop %v3688
        %v3945 = vtanh.pop %v3689
        %v3946 = vtanh.pop %v3690
        %v3947 = vtanh.pop %v3691
        %v3948 = vtanh.pop %v3692
        %v3949 = vtanh.pop %v3693
        %v3950 = vtanh.pop %v3694
        %v3951 = vtanh.pop %v3695
        %v3952 = vtanh.pop %v3696
        %v3953 = vtanh.pop %v3697
        %v3954 = vtanh.pop %v3698
        %v3955 = vtanh.pop %v3699
        %v3956 = vtanh.pop %v3700
        %v3957 = vtanh.pop %v3701
        %v3958 = vtanh.pop %v3702
        %v3959 = vtanh.pop %v3703
        %v3960 = vtanh.pop %v3704
        %v3961 = vtanh.pop %v3705
        %v3962 = vtanh.pop %v3706
        %v3963 = vtanh.pop %v3707
        %v3964 = vtanh.pop %v3708
        %v3965 = vtanh.pop %v3709
        %v3966 = vtanh.pop %v3710
        %v3967 = vtanh.pop %v3711
        %v3968 = vtanh.pop %v3712
        %v3969 = vtanh.pop %v3713
        %v3970 = vtanh.pop %v3714
        %v3971 = vtanh.pop %v3715
        %v3972 = vtanh.pop %v3716
        %v3973 = vtanh.pop %v3717
        %v3974 = vtanh.pop %v3718
        %v3975 = vtanh.pop %v3719
        %v3976 = vtanh.pop %v3720
        %v3977 = vtanh.pop %v3721
        %v3978 = vtanh.pop %v3722
        %v3979 = vtanh.pop %v3723
        %v3980 = vtanh.pop %v3724
        %v3981 = vtanh.pop %v3725
        %v3982 = vtanh.pop %v3726
        %v3983 = vtanh.pop %v3727
        %v3984 = vtanh.pop %v3728
        %v3985 = vtanh.pop %v3729
        %v3986 = vtanh.pop %v3730
        %v3987 = vtanh.pop %v3731
        %v3988 = vtanh.pop %v3732
        %v3989 = vtanh.pop %v3733
        %v3990 = vtanh.pop %v3734
        %v3991 = vtanh.pop %v3735
        %v3992 = vtanh.pop %v3736
        %v3993 = vtanh.pop %v3737
        %v3994 = vtanh.pop %v3738
        %v3995 = vtanh.pop %v3739
        %v3996 = vtanh.pop %v3740
        %v3997 = vtanh.pop %v3741
        %v3998 = vtanh.pop %v3742
        %v3999 = vtanh.pop %v3743
        %v4000 = vtanh.pop %v3744
        %v4001 = vtanh.pop %v3745
        %v4002 = vtanh.pop %v3746
        %v4003 = vtanh.pop %v3747
        %v4004 = vtanh.pop %v3748
        %v4005 = vtanh.pop %v3749
        %v4006 = vtanh.pop %v3750
        %v4007 = vtanh.pop %v3751
        %v4008 = vtanh.pop %v3752
        %v4009 = vtanh.pop %v3753
        %v4010 = vtanh.pop %v3754
        %v4011 = vtanh.pop %v3755
        %v4012 = vtanh.pop %v3756
        %v4013 = vtanh.pop %v3757
        %v4014 = vtanh.pop %v3758
        %v4015 = vtanh.pop %v3759
        %v4016 = vtanh.pop %v3760
        %v4017 = vtanh.pop %v3761
        %v4018 = vtanh.pop %v3762
        %v4019 = vtanh.pop %v3763
        %v4020 = vtanh.pop %v3764
        %v4021 = vtanh.pop %v3765
        %v4022 = vtanh.pop %v3766
        %v4023 = vtanh.pop %v3767
        %v4024 = vtanh.pop %v3768
        %v4025 = vtanh.pop %v3769
        %v4026 = vtanh.pop %v3770
        %v4027 = vtanh.pop %v3771
        %v4028 = vtanh.pop %v3772
        %v4029 = vtanh.pop %v3773
        %v4030 = vtanh.pop %v3774
        %v4031 = vtanh.pop %v3775
        %v4032 = vtanh.pop %v3776
        %v4033 = vtanh.pop %v3777
        %v4034 = vtanh.pop %v3778
        %v4035 = vtanh.pop %v3779
        %v4036 = vtanh.pop %v3780
        %v4037 = vtanh.pop %v3781
        %v4038 = vtanh.pop %v3782
        %v4039 = vtanh.pop %v3783
        %v4040 = vtanh.pop %v3784
        %v4041 = vtanh.pop %v3785
        %v4042 = vtanh.pop %v3786
        %v4043 = vtanh.pop %v3787
        %v4044 = vtanh.pop %v3788
        %v4045 = vtanh.pop %v3789
        %v4046 = vtanh.pop %v3790
        %v4047 = vtanh.pop %v3791
        %v4048 = vtanh.pop %v3792
        %v4049 = vtanh.pop %v3793
        %v4050 = vtanh.pop %v3794
        %v4051 = vtanh.pop %v3795
        %v4052 = vtanh.pop %v3796
        %v4053 = vtanh.pop %v3797
        %v4054 = vtanh.pop %v3798
        %v4055 = vtanh.pop %v3799
        %v4056 = vtanh.pop %v3800
        %v4057 = vtanh.pop %v3801
        %v4058 = vtanh.pop %v3802
        %v4059 = vtanh.pop %v3803
        %v4060 = vtanh.pop %v3804
        %v4061 = vtanh.pop %v3805
        %v4062 = vtanh.pop %v3806
        %v4063 = vtanh.pop %v3807
        %v4064 = vtanh.pop %v3808
        %v4065 = vtanh.pop %v3809
        %v4066 = vtanh.pop %v3810
        %v4067 = vtanh.pop %v3811
        %v4068 = vtanh.pop %v3812
        %v4069 = vadd.f32 %v3941, 1.0
        %v4070 = vadd.f32 %v3942, 1.0
        %v4071 = vadd.f32 %v3943, 1.0
        %v4072 = vadd.f32 %v3944, 1.0
        %v4073 = vadd.f32 %v3945, 1.0
        %v4074 = vadd.f32 %v3946, 1.0
        %v4075 = vadd.f32 %v3947, 1.0
        %v4076 = vadd.f32 %v3948, 1.0
        %v4077 = vadd.f32 %v3949, 1.0
        %v4078 = vadd.f32 %v3950, 1.0
        %v4079 = vadd.f32 %v3951, 1.0
        %v4080 = vadd.f32 %v3952, 1.0
        %v4081 = vadd.f32 %v3953, 1.0
        %v4082 = vadd.f32 %v3954, 1.0
        %v4083 = vadd.f32 %v3955, 1.0
        %v4084 = vadd.f32 %v3956, 1.0
        %v4085 = vadd.f32 %v3957, 1.0
        %v4086 = vadd.f32 %v3958, 1.0
        %v4087 = vadd.f32 %v3959, 1.0
        %v4088 = vadd.f32 %v3960, 1.0
        %v4089 = vadd.f32 %v3961, 1.0
        %v4090 = vadd.f32 %v3962, 1.0
        %v4091 = vadd.f32 %v3963, 1.0
        %v4092 = vadd.f32 %v3964, 1.0
        %v4093 = vadd.f32 %v3965, 1.0
        %v4094 = vadd.f32 %v3966, 1.0
        %v4095 = vadd.f32 %v3967, 1.0
        %v4096 = vadd.f32 %v3968, 1.0
        %v4097 = vadd.f32 %v3969, 1.0
        %v4098 = vadd.f32 %v3970, 1.0
        %v4099 = vadd.f32 %v3971, 1.0
        %v4100 = vadd.f32 %v3972, 1.0
        %v4101 = vadd.f32 %v3973, 1.0
        %v4102 = vadd.f32 %v3974, 1.0
        %v4103 = vadd.f32 %v3975, 1.0
        %v4104 = vadd.f32 %v3976, 1.0
        %v4105 = vadd.f32 %v3977, 1.0
        %v4106 = vadd.f32 %v3978, 1.0
        %v4107 = vadd.f32 %v3979, 1.0
        %v4108 = vadd.f32 %v3980, 1.0
        %v4109 = vadd.f32 %v3981, 1.0
        %v4110 = vadd.f32 %v3982, 1.0
        %v4111 = vadd.f32 %v3983, 1.0
        %v4112 = vadd.f32 %v3984, 1.0
        %v4113 = vadd.f32 %v3985, 1.0
        %v4114 = vadd.f32 %v3986, 1.0
        %v4115 = vadd.f32 %v3987, 1.0
        %v4116 = vadd.f32 %v3988, 1.0
        %v4117 = vadd.f32 %v3989, 1.0
        %v4118 = vadd.f32 %v3990, 1.0
        %v4119 = vadd.f32 %v3991, 1.0
        %v4120 = vadd.f32 %v3992, 1.0
        %v4121 = vadd.f32 %v3993, 1.0
        %v4122 = vadd.f32 %v3994, 1.0
        %v4123 = vadd.f32 %v3995, 1.0
        %v4124 = vadd.f32 %v3996, 1.0
        %v4125 = vadd.f32 %v3997, 1.0
        %v4126 = vadd.f32 %v3998, 1.0
        %v4127 = vadd.f32 %v3999, 1.0
        %v4128 = vadd.f32 %v4000, 1.0
        %v4129 = vadd.f32 %v4001, 1.0
        %v4130 = vadd.f32 %v4002, 1.0
        %v4131 = vadd.f32 %v4003, 1.0
        %v4132 = vadd.f32 %v4004, 1.0
        %v4133 = vadd.f32 %v4005, 1.0
        %v4134 = vadd.f32 %v4006, 1.0
        %v4135 = vadd.f32 %v4007, 1.0
        %v4136 = vadd.f32 %v4008, 1.0
        %v4137 = vadd.f32 %v4009, 1.0
        %v4138 = vadd.f32 %v4010, 1.0
        %v4139 = vadd.f32 %v4011, 1.0
        %v4140 = vadd.f32 %v4012, 1.0
        %v4141 = vadd.f32 %v4013, 1.0
        %v4142 = vadd.f32 %v4014, 1.0
        %v4143 = vadd.f32 %v4015, 1.0
        %v4144 = vadd.f32 %v4016, 1.0
        %v4145 = vadd.f32 %v4017, 1.0
        %v4146 = vadd.f32 %v4018, 1.0
        %v4147 = vadd.f32 %v4019, 1.0
        %v4148 = vadd.f32 %v4020, 1.0
        %v4149 = vadd.f32 %v4021, 1.0
        %v4150 = vadd.f32 %v4022, 1.0
        %v4151 = vadd.f32 %v4023, 1.0
        %v4152 = vadd.f32 %v4024, 1.0
        %v4153 = vadd.f32 %v4025, 1.0
        %v4154 = vadd.f32 %v4026, 1.0
        %v4155 = vadd.f32 %v4027, 1.0
        %v4156 = vadd.f32 %v4028, 1.0
        %v4157 = vadd.f32 %v4029, 1.0
        %v4158 = vadd.f32 %v4030, 1.0
        %v4159 = vadd.f32 %v4031, 1.0
        %v4160 = vadd.f32 %v4032, 1.0
        %v4161 = vadd.f32 %v4033, 1.0
        %v4162 = vadd.f32 %v4034, 1.0
        %v4163 = vadd.f32 %v4035, 1.0
        %v4164 = vadd.f32 %v4036, 1.0
        %v4165 = vadd.f32 %v4037, 1.0
        %v4166 = vadd.f32 %v4038, 1.0
        %v4167 = vadd.f32 %v4039, 1.0
        %v4168 = vadd.f32 %v4040, 1.0
        %v4169 = vadd.f32 %v4041, 1.0
        %v4170 = vadd.f32 %v4042, 1.0
        %v4171 = vadd.f32 %v4043, 1.0
        %v4172 = vadd.f32 %v4044, 1.0
        %v4173 = vadd.f32 %v4045, 1.0
        %v4174 = vadd.f32 %v4046, 1.0
        %v4175 = vadd.f32 %v4047, 1.0
        %v4176 = vadd.f32 %v4048, 1.0
        %v4177 = vadd.f32 %v4049, 1.0
        %v4178 = vadd.f32 %v4050, 1.0
        %v4179 = vadd.f32 %v4051, 1.0
        %v4180 = vadd.f32 %v4052, 1.0
        %v4181 = vadd.f32 %v4053, 1.0
        %v4182 = vadd.f32 %v4054, 1.0
        %v4183 = vadd.f32 %v4055, 1.0
        %v4184 = vadd.f32 %v4056, 1.0
        %v4185 = vadd.f32 %v4057, 1.0
        %v4186 = vadd.f32 %v4058, 1.0
        %v4187 = vadd.f32 %v4059, 1.0
        %v4188 = vadd.f32 %v4060, 1.0
        %v4189 = vadd.f32 %v4061, 1.0
        %v4190 = vadd.f32 %v4062, 1.0
        %v4191 = vadd.f32 %v4063, 1.0
        %v4192 = vadd.f32 %v4064, 1.0
        %v4193 = vadd.f32 %v4065, 1.0
        %v4194 = vadd.f32 %v4066, 1.0
        %v4195 = vadd.f32 %v4067, 1.0
        %v4196 = vadd.f32 %v4068, 1.0
        %v4197 = vmul.f32 %v3813, %v4069
        %v4198 = vmul.f32 %v3814, %v4070
        %v4199 = vmul.f32 %v3815, %v4071
        %v4200 = vmul.f32 %v3816, %v4072
        %v4201 = vmul.f32 %v3817, %v4073
        %v4202 = vmul.f32 %v3818, %v4074
        %v4203 = vmul.f32 %v3819, %v4075
        %v4204 = vmul.f32 %v3820, %v4076
        %v4205 = vmul.f32 %v3821, %v4077
        %v4206 = vmul.f32 %v3822, %v4078
        %v4207 = vmul.f32 %v3823, %v4079
        %v4208 = vmul.f32 %v3824, %v4080
        %v4209 = vmul.f32 %v3825, %v4081
        %v4210 = vmul.f32 %v3826, %v4082
        %v4211 = vmul.f32 %v3827, %v4083
        %v4212 = vmul.f32 %v3828, %v4084
        %v4213 = vmul.f32 %v3829, %v4085
        %v4214 = vmul.f32 %v3830, %v4086
        %v4215 = vmul.f32 %v3831, %v4087
        %v4216 = vmul.f32 %v3832, %v4088
        %v4217 = vmul.f32 %v3833, %v4089
        %v4218 = vmul.f32 %v3834, %v4090
        %v4219 = vmul.f32 %v3835, %v4091
        %v4220 = vmul.f32 %v3836, %v4092
        %v4221 = vmul.f32 %v3837, %v4093
        %v4222 = vmul.f32 %v3838, %v4094
        %v4223 = vmul.f32 %v3839, %v4095
        %v4224 = vmul.f32 %v3840, %v4096
        %v4225 = vmul.f32 %v3841, %v4097
        %v4226 = vmul.f32 %v3842, %v4098
        %v4227 = vmul.f32 %v3843, %v4099
        %v4228 = vmul.f32 %v3844, %v4100
        %v4229 = vmul.f32 %v3845, %v4101
        %v4230 = vmul.f32 %v3846, %v4102
        %v4231 = vmul.f32 %v3847, %v4103
        %v4232 = vmul.f32 %v3848, %v4104
        %v4233 = vmul.f32 %v3849, %v4105
        %v4234 = vmul.f32 %v3850, %v4106
        %v4235 = vmul.f32 %v3851, %v4107
        %v4236 = vmul.f32 %v3852, %v4108
        %v4237 = vmul.f32 %v3853, %v4109
        %v4238 = vmul.f32 %v3854, %v4110
        %v4239 = vmul.f32 %v3855, %v4111
        %v4240 = vmul.f32 %v3856, %v4112
        %v4241 = vmul.f32 %v3857, %v4113
        %v4242 = vmul.f32 %v3858, %v4114
        %v4243 = vmul.f32 %v3859, %v4115
        %v4244 = vmul.f32 %v3860, %v4116
        %v4245 = vmul.f32 %v3861, %v4117
        %v4246 = vmul.f32 %v3862, %v4118
        %v4247 = vmul.f32 %v3863, %v4119
        %v4248 = vmul.f32 %v3864, %v4120
        %v4249 = vmul.f32 %v3865, %v4121
        %v4250 = vmul.f32 %v3866, %v4122
        %v4251 = vmul.f32 %v3867, %v4123
        %v4252 = vmul.f32 %v3868, %v4124
        %v4253 = vmul.f32 %v3869, %v4125
        %v4254 = vmul.f32 %v3870, %v4126
        %v4255 = vmul.f32 %v3871, %v4127
        %v4256 = vmul.f32 %v3872, %v4128
        %v4257 = vmul.f32 %v3873, %v4129
        %v4258 = vmul.f32 %v3874, %v4130
        %v4259 = vmul.f32 %v3875, %v4131
        %v4260 = vmul.f32 %v3876, %v4132
        %v4261 = vmul.f32 %v3877, %v4133
        %v4262 = vmul.f32 %v3878, %v4134
        %v4263 = vmul.f32 %v3879, %v4135
        %v4264 = vmul.f32 %v3880, %v4136
        %v4265 = vmul.f32 %v3881, %v4137
        %v4266 = vmul.f32 %v3882, %v4138
        %v4267 = vmul.f32 %v3883, %v4139
        %v4268 = vmul.f32 %v3884, %v4140
        %v4269 = vmul.f32 %v3885, %v4141
        %v4270 = vmul.f32 %v3886, %v4142
        %v4271 = vmul.f32 %v3887, %v4143
        %v4272 = vmul.f32 %v3888, %v4144
        %v4273 = vmul.f32 %v3889, %v4145
        %v4274 = vmul.f32 %v3890, %v4146
        %v4275 = vmul.f32 %v3891, %v4147
        %v4276 = vmul.f32 %v3892, %v4148
        %v4277 = vmul.f32 %v3893, %v4149
        %v4278 = vmul.f32 %v3894, %v4150
        %v4279 = vmul.f32 %v3895, %v4151
        %v4280 = vmul.f32 %v3896, %v4152
        %v4281 = vmul.f32 %v3897, %v4153
        %v4282 = vmul.f32 %v3898, %v4154
        %v4283 = vmul.f32 %v3899, %v4155
        %v4284 = vmul.f32 %v3900, %v4156
        %v4285 = vmul.f32 %v3901, %v4157
        %v4286 = vmul.f32 %v3902, %v4158
        %v4287 = vmul.f32 %v3903, %v4159
        %v4288 = vmul.f32 %v3904, %v4160
        %v4289 = vmul.f32 %v3905, %v4161
        %v4290 = vmul.f32 %v3906, %v4162
        %v4291 = vmul.f32 %v3907, %v4163
        %v4292 = vmul.f32 %v3908, %v4164
        %v4293 = vmul.f32 %v3909, %v4165
        %v4294 = vmul.f32 %v3910, %v4166
        %v4295 = vmul.f32 %v3911, %v4167
        %v4296 = vmul.f32 %v3912, %v4168
        %v4297 = vmul.f32 %v3913, %v4169
        %v4298 = vmul.f32 %v3914, %v4170
        %v4299 = vmul.f32 %v3915, %v4171
        %v4300 = vmul.f32 %v3916, %v4172
        %v4301 = vmul.f32 %v3917, %v4173
        %v4302 = vmul.f32 %v3918, %v4174
        %v4303 = vmul.f32 %v3919, %v4175
        %v4304 = vmul.f32 %v3920, %v4176
        %v4305 = vmul.f32 %v3921, %v4177
        %v4306 = vmul.f32 %v3922, %v4178
        %v4307 = vmul.f32 %v3923, %v4179
        %v4308 = vmul.f32 %v3924, %v4180
        %v4309 = vmul.f32 %v3925, %v4181
        %v4310 = vmul.f32 %v3926, %v4182
        %v4311 = vmul.f32 %v3927, %v4183
        %v4312 = vmul.f32 %v3928, %v4184
        %v4313 = vmul.f32 %v3929, %v4185
        %v4314 = vmul.f32 %v3930, %v4186
        %v4315 = vmul.f32 %v3931, %v4187
        %v4316 = vmul.f32 %v3932, %v4188
        %v4317 = vmul.f32 %v3933, %v4189
        %v4318 = vmul.f32 %v3934, %v4190
        %v4319 = vmul.f32 %v3935, %v4191
        %v4320 = vmul.f32 %v3936, %v4192
        %v4321 = vmul.f32 %v3937, %v4193
        %v4322 = vmul.f32 %v3938, %v4194
        %v4323 = vmul.f32 %v3939, %v4195
        %v4324 = vmul.f32 %v3940, %v4196
        %s4325 = scalar_lea.vmem %s2, 128
        %v4326 = vld [vmem:[%s4325] sm:$0xff]
        %v4327 = vld [vmem:[%s4325 + $0x8] sm:$0xff]
        %v4328 = vld [vmem:[%s4325 + $0x10] sm:$0xff]
        %v4329 = vld [vmem:[%s4325 + $0x18] sm:$0xff]
        %v4330 = vld [vmem:[%s4325 + $0x20] sm:$0xff]
        %v4331 = vld [vmem:[%s4325 + $0x28] sm:$0xff]
        %v4332 = vld [vmem:[%s4325 + $0x30] sm:$0xff]
        %v4333 = vld [vmem:[%s4325 + $0x38] sm:$0xff]
        %v4334 = vld [vmem:[%s4325 + $0x40] sm:$0xff]
        %v4335 = vld [vmem:[%s4325 + $0x48] sm:$0xff]
        %v4336 = vld [vmem:[%s4325 + $0x50] sm:$0xff]
        %v4337 = vld [vmem:[%s4325 + $0x58] sm:$0xff]
        %v4338 = vld [vmem:[%s4325 + $0x60] sm:$0xff]
        %v4339 = vld [vmem:[%s4325 + $0x68] sm:$0xff]
        %v4340 = vld [vmem:[%s4325 + $0x70] sm:$0xff]
        %v4341 = vld [vmem:[%s4325 + $0x78] sm:$0xff]
        %v4342 = vlaneseq
        %v4343 = vshrl.u32 %v4342, 7
        %v4344 = vsub.s32 3, %v4343
        %v4345 = vrot.slane %v374, %v4344
        %4346 = vmatprep.subr.mxu0 0.0
        %4347 = vmatpush1.msra.mxu0 %v4326
        %4348 = vmatprep.subr.mxu0 0.0
        %4349 = vmatpush1.msra.mxu0 %v4327
        %4350 = vmatprep.subr.mxu0 0.0
        %4351 = vmatpush1.msra.mxu0 %v4328
        %4352 = vmatprep.subr.mxu0 0.0
        %4353 = vmatpush1.msra.mxu0 %v4329
        %4354 = vmatprep.subr.mxu0 0.0
        %4355 = vmatpush1.msra.mxu0 %v4330
        %4356 = vmatprep.subr.mxu0 0.0
        %4357 = vmatpush1.msra.mxu0 %v4331
        %4358 = vmatprep.subr.mxu0 0.0
        %4359 = vmatpush1.msra.mxu0 %v4332
        %4360 = vmatprep.subr.mxu0 0.0
        %4361 = vmatpush1.msra.mxu0 %v4333
        %4362 = vmatprep.subr.mxu0 0.0
        %4363 = vmatpush1.msra.mxu0 %v4334
        %4364 = vmatprep.subr.mxu0 0.0
        %4365 = vmatpush1.msra.mxu0 %v4335
        %4366 = vmatprep.subr.mxu0 0.0
        %4367 = vmatpush1.msra.mxu0 %v4336
        %4368 = vmatprep.subr.mxu0 0.0
        %4369 = vmatpush1.msra.mxu0 %v4337
        %4370 = vmatprep.subr.mxu0 0.0
        %4371 = vmatpush1.msra.mxu0 %v4338
        %4372 = vmatprep.subr.mxu0 0.0
        %4373 = vmatpush1.msra.mxu0 %v4339
        %4374 = vmatprep.subr.mxu0 0.0
        %4375 = vmatpush1.msra.mxu0 %v4340
        %4376 = vmatprep.subr.mxu0 0.0
        %4377 = vmatpush1.msra.mxu0 %v4341
        %4378 = vmatprep.subr.mxu0 0.0
        %4379 = vmatpush1.msra.mxu0 0.0
        %4380 = vmatprep.subr.mxu0 0.0
        %4381 = vmatpush1.msra.mxu0 0.0
        %4382 = vmatprep.subr.mxu0 0.0
        %4383 = vmatpush1.msra.mxu0 0.0
        %4384 = vmatprep.subr.mxu0 0.0
        %4385 = vmatpush1.msra.mxu0 0.0
        %4386 = vmatprep.subr.mxu0 0.0
        %4387 = vmatpush1.msra.mxu0 0.0
        %4388 = vmatprep.subr.mxu0 0.0
        %4389 = vmatpush1.msra.mxu0 0.0
        %4390 = vmatprep.subr.mxu0 0.0
        %4391 = vmatpush1.msra.mxu0 0.0
        %4392 = vmatprep.subr.mxu0 0.0
        %4393 = vmatpush1.msra.mxu0 0.0
        %4394 = vmatprep.subr.mxu0 0.0
        %4395 = vmatpush1.msra.mxu0 0.0
        %4396 = vmatprep.subr.mxu0 0.0
        %4397 = vmatpush1.msra.mxu0 0.0
        %4398 = vmatprep.subr.mxu0 0.0
        %4399 = vmatpush1.msra.mxu0 0.0
        %4400 = vmatprep.subr.mxu0 0.0
        %4401 = vmatpush1.msra.mxu0 0.0
        %4402 = vmatprep.subr.mxu0 0.0
        %4403 = vmatpush1.msra.mxu0 0.0
        %4404 = vmatprep.subr.mxu0 0.0
        %4405 = vmatpush1.msra.mxu0 0.0
        %4406 = vmatprep.subr.mxu0 0.0
        %4407 = vmatpush1.msra.mxu0 0.0
        %4408 = vmatprep.subr.mxu0 0.0
        %4409 = vmatpush1.msra.mxu0 0.0
        %4410 = vmatprep.mubr.f32.mxu0 0.0
        %4411 = vmatmul.mubr.f32.gmra.mrb[0].mxu0 %v4197
        %v4412 = vpop.f32.mrb[0].mxu0
        %v4413 = vadd.f32 %v4345, %v4412
        %v4414 = vpop.f32.mrb[0].mxu0
        %4415 = vmatprep.mubr.f32.mxu0 0.0
        %4416 = vmatmul.mubr.f32.gmra.mrb[0].mxu0 %v4198
        %v4417 = vpop.f32.mrb[0].mxu0
        %v4418 = vadd.f32 %v4345, %v4417
        %v4419 = vpop.f32.mrb[0].mxu0
        %4420 = vmatprep.mubr.f32.mxu0 0.0
        %4421 = vmatmul.mubr.f32.gmra.mrb[0].mxu0 %v4199
        %v4422 = vpop.f32.mrb[0].mxu0
        %v4423 = vadd.f32 %v4345, %v4422
        %v4424 = vpop.f32.mrb[0].mxu0
        %4425 = vmatprep.mubr.f32.mxu0 0.0
        %4426 = vmatmul.mubr.f32.gmra.mrb[0].mxu0 %v4200
        %v4427 = vpop.f32.mrb[0].mxu0
        %v4428 = vadd.f32 %v4345, %v4427
        %v4429 = vpop.f32.mrb[0].mxu0
        %4430 = vmatprep.mubr.f32.mxu0 0.0
        %4431 = vmatmul.mubr.f32.gmra.mrb[0].mxu0 %v4201
        %v4432 = vpop.f32.mrb[0].mxu0
        %v4433 = vadd.f32 %v4345, %v4432
        %v4434 = vpop.f32.mrb[0].mxu0
        %4435 = vmatprep.mubr.f32.mxu0 0.0
        %4436 = vmatmul.mubr.f32.gmra.mrb[0].mxu0 %v4202
        %v4437 = vpop.f32.mrb[0].mxu0
        %v4438 = vadd.f32 %v4345, %v4437
        %v4439 = vpop.f32.mrb[0].mxu0
        %4440 = vmatprep.mubr.f32.mxu0 0.0
        %4441 = vmatmul.mubr.f32.gmra.mrb[0].mxu0 %v4203
        %v4442 = vpop.f32.mrb[0].mxu0
        %v4443 = vadd.f32 %v4345, %v4442
        %v4444 = vpop.f32.mrb[0].mxu0
        %4445 = vmatprep.mubr.f32.mxu0 0.0
        %4446 = vmatmul.mubr.f32.gmra.mrb[0].mxu0 %v4204
        %v4447 = vpop.f32.mrb[0].mxu0
        %v4448 = vadd.f32 %v4345, %v4447
        %v4449 = vpop.f32.mrb[0].mxu0
        %4450 = vmatprep.mubr.f32.mxu0 0.0
        %4451 = vmatmul.mubr.f32.gmra.mrb[0].mxu0 %v4205
        %v4452 = vpop.f32.mrb[0].mxu0
        %v4453 = vadd.f32 %v4345, %v4452
        %v4454 = vpop.f32.mrb[0].mxu0
        %4455 = vmatprep.mubr.f32.mxu0 0.0
        %4456 = vmatmul.mubr.f32.gmra.mrb[0].mxu0 %v4206
        %v4457 = vpop.f32.mrb[0].mxu0
        %v4458 = vadd.f32 %v4345, %v4457
        %v4459 = vpop.f32.mrb[0].mxu0
        %4460 = vmatprep.mubr.f32.mxu0 0.0
        %4461 = vmatmul.mubr.f32.gmra.mrb[0].mxu0 %v4207
        %v4462 = vpop.f32.mrb[0].mxu0
        %v4463 = vadd.f32 %v4345, %v4462
        %v4464 = vpop.f32.mrb[0].mxu0
        %4465 = vmatprep.mubr.f32.mxu0 0.0
        %4466 = vmatmul.mubr.f32.gmra.mrb[0].mxu0 %v4208
        %v4467 = vpop.f32.mrb[0].mxu0
        %v4468 = vadd.f32 %v4345, %v4467
        %v4469 = vpop.f32.mrb[0].mxu0
        %4470 = vmatprep.mubr.f32.mxu0 0.0
        %4471 = vmatmul.mubr.f32.gmra.mrb[0].mxu0 %v4209
        %v4472 = vpop.f32.mrb[0].mxu0
        %v4473 = vadd.f32 %v4345, %v4472
        %v4474 = vpop.f32.mrb[0].mxu0
        %4475 = vmatprep.mubr.f32.mxu0 0.0
        %4476 = vmatmul.mubr.f32.gmra.mrb[0].mxu0 %v4210
        %v4477 = vpop.f32.mrb[0].mxu0
        %v4478 = vadd.f32 %v4345, %v4477
        %v4479 = vpop.f32.mrb[0].mxu0
        %4480 = vmatprep.mubr.f32.mxu0 0.0
        %4481 = vmatmul.mubr.f32.gmra.mrb[0].mxu0 %v4211
        %v4482 = vpop.f32.mrb[0].mxu0
        %v4483 = vadd.f32 %v4345, %v4482
        %v4484 = vpop.f32.mrb[0].mxu0
        %4485 = vmatprep.mubr.f32.mxu0 0.0
        %4486 = vmatmul.mubr.f32.gmra.mrb[0].mxu0 %v4212
        %v4487 = vpop.f32.mrb[0].mxu0
        %v4488 = vadd.f32 %v4345, %v4487
        %v4489 = vpop.f32.mrb[0].mxu0
        %4490 = vmatprep.mubr.f32.mxu0 0.0
        %4491 = vmatmul.mubr.f32.gmra.mrb[0].mxu0 %v4213
        %v4492 = vpop.f32.mrb[0].mxu0
        %v4493 = vadd.f32 %v4345, %v4492
        %v4494 = vpop.f32.mrb[0].mxu0
        %4495 = vmatprep.mubr.f32.mxu0 0.0
        %4496 = vmatmul.mubr.f32.gmra.mrb[0].mxu0 %v4214
        %v4497 = vpop.f32.mrb[0].mxu0
        %v4498 = vadd.f32 %v4345, %v4497
        %v4499 = vpop.f32.mrb[0].mxu0
        %4500 = vmatprep.mubr.f32.mxu0 0.0
        %4501 = vmatmul.mubr.f32.gmra.mrb[0].mxu0 %v4215
        %v4502 = vpop.f32.mrb[0].mxu0
        %v4503 = vadd.f32 %v4345, %v4502
        %v4504 = vpop.f32.mrb[0].mxu0
        %4505 = vmatprep.mubr.f32.mxu0 0.0
        %4506 = vmatmul.mubr.f32.gmra.mrb[0].mxu0 %v4216
        %v4507 = vpop.f32.mrb[0].mxu0
        %v4508 = vadd.f32 %v4345, %v4507
        %v4509 = vpop.f32.mrb[0].mxu0
        %4510 = vmatprep.mubr.f32.mxu0 0.0
        %4511 = vmatmul.mubr.f32.gmra.mrb[0].mxu0 %v4217
        %v4512 = vpop.f32.mrb[0].mxu0
        %v4513 = vadd.f32 %v4345, %v4512
        %v4514 = vpop.f32.mrb[0].mxu0
        %4515 = vmatprep.mubr.f32.mxu0 0.0
        %4516 = vmatmul.mubr.f32.gmra.mrb[0].mxu0 %v4218
        %v4517 = vpop.f32.mrb[0].mxu0
        %v4518 = vadd.f32 %v4345, %v4517
        %v4519 = vpop.f32.mrb[0].mxu0
        %4520 = vmatprep.mubr.f32.mxu0 0.0
        %4521 = vmatmul.mubr.f32.gmra.mrb[0].mxu0 %v4219
        %v4522 = vpop.f32.mrb[0].mxu0
        %v4523 = vadd.f32 %v4345, %v4522
        %v4524 = vpop.f32.mrb[0].mxu0
        %4525 = vmatprep.mubr.f32.mxu0 0.0
        %4526 = vmatmul.mubr.f32.gmra.mrb[0].mxu0 %v4220
        %v4527 = vpop.f32.mrb[0].mxu0
        %v4528 = vadd.f32 %v4345, %v4527
        %v4529 = vpop.f32.mrb[0].mxu0
        %4530 = vmatprep.mubr.f32.mxu0 0.0
        %4531 = vmatmul.mubr.f32.gmra.mrb[0].mxu0 %v4221
        %v4532 = vpop.f32.mrb[0].mxu0
        %v4533 = vadd.f32 %v4345, %v4532
        %v4534 = vpop.f32.mrb[0].mxu0
        %4535 = vmatprep.mubr.f32.mxu0 0.0
        %4536 = vmatmul.mubr.f32.gmra.mrb[0].mxu0 %v4222
        %v4537 = vpop.f32.mrb[0].mxu0
        %v4538 = vadd.f32 %v4345, %v4537
        %v4539 = vpop.f32.mrb[0].mxu0
        %4540 = vmatprep.mubr.f32.mxu0 0.0
        %4541 = vmatmul.mubr.f32.gmra.mrb[0].mxu0 %v4223
        %v4542 = vpop.f32.mrb[0].mxu0
        %v4543 = vadd.f32 %v4345, %v4542
        %v4544 = vpop.f32.mrb[0].mxu0
        %4545 = vmatprep.mubr.f32.mxu0 0.0
        %4546 = vmatmul.mubr.f32.gmra.mrb[0].mxu0 %v4224
        %v4547 = vpop.f32.mrb[0].mxu0
        %v4548 = vadd.f32 %v4345, %v4547
        %v4549 = vpop.f32.mrb[0].mxu0
        %4550 = vmatprep.mubr.f32.mxu0 0.0
        %4551 = vmatmul.mubr.f32.gmra.mrb[0].mxu0 %v4225
        %v4552 = vpop.f32.mrb[0].mxu0
        %v4553 = vadd.f32 %v4345, %v4552
        %v4554 = vpop.f32.mrb[0].mxu0
        %4555 = vmatprep.mubr.f32.mxu0 0.0
        %4556 = vmatmul.mubr.f32.gmra.mrb[0].mxu0 %v4226
        %v4557 = vpop.f32.mrb[0].mxu0
        %v4558 = vadd.f32 %v4345, %v4557
        %v4559 = vpop.f32.mrb[0].mxu0
        %4560 = vmatprep.mubr.f32.mxu0 0.0
        %4561 = vmatmul.mubr.f32.gmra.mrb[0].mxu0 %v4227
        %v4562 = vpop.f32.mrb[0].mxu0
        %v4563 = vadd.f32 %v4345, %v4562
        %v4564 = vpop.f32.mrb[0].mxu0
        %4565 = vmatprep.mubr.f32.mxu0 0.0
        %4566 = vmatmul.mubr.f32.gmra.mrb[0].mxu0 %v4228
        %v4567 = vpop.f32.mrb[0].mxu0
        %v4568 = vadd.f32 %v4345, %v4567
        %v4569 = vpop.f32.mrb[0].mxu0
        %4570 = vmatprep.mubr.f32.mxu0 0.0
        %4571 = vmatmul.mubr.f32.gmra.mrb[0].mxu0 %v4229
        %v4572 = vpop.f32.mrb[0].mxu0
        %v4573 = vadd.f32 %v4345, %v4572
        %v4574 = vpop.f32.mrb[0].mxu0
        %4575 = vmatprep.mubr.f32.mxu0 0.0
        %4576 = vmatmul.mubr.f32.gmra.mrb[0].mxu0 %v4230
        %v4577 = vpop.f32.mrb[0].mxu0
        %v4578 = vadd.f32 %v4345, %v4577
        %v4579 = vpop.f32.mrb[0].mxu0
        %4580 = vmatprep.mubr.f32.mxu0 0.0
        %4581 = vmatmul.mubr.f32.gmra.mrb[0].mxu0 %v4231
        %v4582 = vpop.f32.mrb[0].mxu0
        %v4583 = vadd.f32 %v4345, %v4582
        %v4584 = vpop.f32.mrb[0].mxu0
        %4585 = vmatprep.mubr.f32.mxu0 0.0
        %4586 = vmatmul.mubr.f32.gmra.mrb[0].mxu0 %v4232
        %v4587 = vpop.f32.mrb[0].mxu0
        %v4588 = vadd.f32 %v4345, %v4587
        %v4589 = vpop.f32.mrb[0].mxu0
        %4590 = vmatprep.mubr.f32.mxu0 0.0
        %4591 = vmatmul.mubr.f32.gmra.mrb[0].mxu0 %v4233
        %v4592 = vpop.f32.mrb[0].mxu0
        %v4593 = vadd.f32 %v4345, %v4592
        %v4594 = vpop.f32.mrb[0].mxu0
        %4595 = vmatprep.mubr.f32.mxu0 0.0
        %4596 = vmatmul.mubr.f32.gmra.mrb[0].mxu0 %v4234
        %v4597 = vpop.f32.mrb[0].mxu0
        %v4598 = vadd.f32 %v4345, %v4597
        %v4599 = vpop.f32.mrb[0].mxu0
        %4600 = vmatprep.mubr.f32.mxu0 0.0
        %4601 = vmatmul.mubr.f32.gmra.mrb[0].mxu0 %v4235
        %v4602 = vpop.f32.mrb[0].mxu0
        %v4603 = vadd.f32 %v4345, %v4602
        %v4604 = vpop.f32.mrb[0].mxu0
        %4605 = vmatprep.mubr.f32.mxu0 0.0
        %4606 = vmatmul.mubr.f32.gmra.mrb[0].mxu0 %v4236
        %v4607 = vpop.f32.mrb[0].mxu0
        %v4608 = vadd.f32 %v4345, %v4607
        %v4609 = vpop.f32.mrb[0].mxu0
        %4610 = vmatprep.mubr.f32.mxu0 0.0
        %4611 = vmatmul.mubr.f32.gmra.mrb[0].mxu0 %v4237
        %v4612 = vpop.f32.mrb[0].mxu0
        %v4613 = vadd.f32 %v4345, %v4612
        %v4614 = vpop.f32.mrb[0].mxu0
        %4615 = vmatprep.mubr.f32.mxu0 0.0
        %4616 = vmatmul.mubr.f32.gmra.mrb[0].mxu0 %v4238
        %v4617 = vpop.f32.mrb[0].mxu0
        %v4618 = vadd.f32 %v4345, %v4617
        %v4619 = vpop.f32.mrb[0].mxu0
        %4620 = vmatprep.mubr.f32.mxu0 0.0
        %4621 = vmatmul.mubr.f32.gmra.mrb[0].mxu0 %v4239
        %v4622 = vpop.f32.mrb[0].mxu0
        %v4623 = vadd.f32 %v4345, %v4622
        %v4624 = vpop.f32.mrb[0].mxu0
        %4625 = vmatprep.mubr.f32.mxu0 0.0
        %4626 = vmatmul.mubr.f32.gmra.mrb[0].mxu0 %v4240
        %v4627 = vpop.f32.mrb[0].mxu0
        %v4628 = vadd.f32 %v4345, %v4627
        %v4629 = vpop.f32.mrb[0].mxu0
        %4630 = vmatprep.mubr.f32.mxu0 0.0
        %4631 = vmatmul.mubr.f32.gmra.mrb[0].mxu0 %v4241
        %v4632 = vpop.f32.mrb[0].mxu0
        %v4633 = vadd.f32 %v4345, %v4632
        %v4634 = vpop.f32.mrb[0].mxu0
        %4635 = vmatprep.mubr.f32.mxu0 0.0
        %4636 = vmatmul.mubr.f32.gmra.mrb[0].mxu0 %v4242
        %v4637 = vpop.f32.mrb[0].mxu0
        %v4638 = vadd.f32 %v4345, %v4637
        %v4639 = vpop.f32.mrb[0].mxu0
        %4640 = vmatprep.mubr.f32.mxu0 0.0
        %4641 = vmatmul.mubr.f32.gmra.mrb[0].mxu0 %v4243
        %v4642 = vpop.f32.mrb[0].mxu0
        %v4643 = vadd.f32 %v4345, %v4642
        %v4644 = vpop.f32.mrb[0].mxu0
        %4645 = vmatprep.mubr.f32.mxu0 0.0
        %4646 = vmatmul.mubr.f32.gmra.mrb[0].mxu0 %v4244
        %v4647 = vpop.f32.mrb[0].mxu0
        %v4648 = vadd.f32 %v4345, %v4647
        %v4649 = vpop.f32.mrb[0].mxu0
        %4650 = vmatprep.mubr.f32.mxu0 0.0
        %4651 = vmatmul.mubr.f32.gmra.mrb[0].mxu0 %v4245
        %v4652 = vpop.f32.mrb[0].mxu0
        %v4653 = vadd.f32 %v4345, %v4652
        %v4654 = vpop.f32.mrb[0].mxu0
        %4655 = vmatprep.mubr.f32.mxu0 0.0
        %4656 = vmatmul.mubr.f32.gmra.mrb[0].mxu0 %v4246
        %v4657 = vpop.f32.mrb[0].mxu0
        %v4658 = vadd.f32 %v4345, %v4657
        %v4659 = vpop.f32.mrb[0].mxu0
        %4660 = vmatprep.mubr.f32.mxu0 0.0
        %4661 = vmatmul.mubr.f32.gmra.mrb[0].mxu0 %v4247
        %v4662 = vpop.f32.mrb[0].mxu0
        %v4663 = vadd.f32 %v4345, %v4662
        %v4664 = vpop.f32.mrb[0].mxu0
        %4665 = vmatprep.mubr.f32.mxu0 0.0
        %4666 = vmatmul.mubr.f32.gmra.mrb[0].mxu0 %v4248
        %v4667 = vpop.f32.mrb[0].mxu0
        %v4668 = vadd.f32 %v4345, %v4667
        %v4669 = vpop.f32.mrb[0].mxu0
        %4670 = vmatprep.mubr.f32.mxu0 0.0
        %4671 = vmatmul.mubr.f32.gmra.mrb[0].mxu0 %v4249
        %v4672 = vpop.f32.mrb[0].mxu0
        %v4673 = vadd.f32 %v4345, %v4672
        %v4674 = vpop.f32.mrb[0].mxu0
        %4675 = vmatprep.mubr.f32.mxu0 0.0
        %4676 = vmatmul.mubr.f32.gmra.mrb[0].mxu0 %v4250
        %v4677 = vpop.f32.mrb[0].mxu0
        %v4678 = vadd.f32 %v4345, %v4677
        %v4679 = vpop.f32.mrb[0].mxu0
        %4680 = vmatprep.mubr.f32.mxu0 0.0
        %4681 = vmatmul.mubr.f32.gmra.mrb[0].mxu0 %v4251
        %v4682 = vpop.f32.mrb[0].mxu0
        %v4683 = vadd.f32 %v4345, %v4682
        %v4684 = vpop.f32.mrb[0].mxu0
        %4685 = vmatprep.mubr.f32.mxu0 0.0
        %4686 = vmatmul.mubr.f32.gmra.mrb[0].mxu0 %v4252
        %v4687 = vpop.f32.mrb[0].mxu0
        %v4688 = vadd.f32 %v4345, %v4687
        %v4689 = vpop.f32.mrb[0].mxu0
        %4690 = vmatprep.mubr.f32.mxu0 0.0
        %4691 = vmatmul.mubr.f32.gmra.mrb[0].mxu0 %v4253
        %v4692 = vpop.f32.mrb[0].mxu0
        %v4693 = vadd.f32 %v4345, %v4692
        %v4694 = vpop.f32.mrb[0].mxu0
        %4695 = vmatprep.mubr.f32.mxu0 0.0
        %4696 = vmatmul.mubr.f32.gmra.mrb[0].mxu0 %v4254
        %v4697 = vpop.f32.mrb[0].mxu0
        %v4698 = vadd.f32 %v4345, %v4697
        %v4699 = vpop.f32.mrb[0].mxu0
        %4700 = vmatprep.mubr.f32.mxu0 0.0
        %4701 = vmatmul.mubr.f32.gmra.mrb[0].mxu0 %v4255
        %v4702 = vpop.f32.mrb[0].mxu0
        %v4703 = vadd.f32 %v4345, %v4702
        %v4704 = vpop.f32.mrb[0].mxu0
        %4705 = vmatprep.mubr.f32.mxu0 0.0
        %4706 = vmatmul.mubr.f32.gmra.mrb[0].mxu0 %v4256
        %v4707 = vpop.f32.mrb[0].mxu0
        %v4708 = vadd.f32 %v4345, %v4707
        %v4709 = vpop.f32.mrb[0].mxu0
        %4710 = vmatprep.mubr.f32.mxu0 0.0
        %4711 = vmatmul.mubr.f32.gmra.mrb[0].mxu0 %v4257
        %v4712 = vpop.f32.mrb[0].mxu0
        %v4713 = vadd.f32 %v4345, %v4712
        %v4714 = vpop.f32.mrb[0].mxu0
        %4715 = vmatprep.mubr.f32.mxu0 0.0
        %4716 = vmatmul.mubr.f32.gmra.mrb[0].mxu0 %v4258
        %v4717 = vpop.f32.mrb[0].mxu0
        %v4718 = vadd.f32 %v4345, %v4717
        %v4719 = vpop.f32.mrb[0].mxu0
        %4720 = vmatprep.mubr.f32.mxu0 0.0
        %4721 = vmatmul.mubr.f32.gmra.mrb[0].mxu0 %v4259
        %v4722 = vpop.f32.mrb[0].mxu0
        %v4723 = vadd.f32 %v4345, %v4722
        %v4724 = vpop.f32.mrb[0].mxu0
        %4725 = vmatprep.mubr.f32.mxu0 0.0
        %4726 = vmatmul.mubr.f32.gmra.mrb[0].mxu0 %v4260
        %v4727 = vpop.f32.mrb[0].mxu0
        %v4728 = vadd.f32 %v4345, %v4727
        %v4729 = vpop.f32.mrb[0].mxu0
        %4730 = vmatprep.mubr.f32.mxu0 0.0
        %4731 = vmatmul.mubr.f32.gmra.mrb[0].mxu0 %v4261
        %v4732 = vpop.f32.mrb[0].mxu0
        %v4733 = vadd.f32 %v4345, %v4732
        %v4734 = vpop.f32.mrb[0].mxu0
        %4735 = vmatprep.mubr.f32.mxu0 0.0
        %4736 = vmatmul.mubr.f32.gmra.mrb[0].mxu0 %v4262
        %v4737 = vpop.f32.mrb[0].mxu0
        %v4738 = vadd.f32 %v4345, %v4737
        %v4739 = vpop.f32.mrb[0].mxu0
        %4740 = vmatprep.mubr.f32.mxu0 0.0
        %4741 = vmatmul.mubr.f32.gmra.mrb[0].mxu0 %v4263
        %v4742 = vpop.f32.mrb[0].mxu0
        %v4743 = vadd.f32 %v4345, %v4742
        %v4744 = vpop.f32.mrb[0].mxu0
        %4745 = vmatprep.mubr.f32.mxu0 0.0
        %4746 = vmatmul.mubr.f32.gmra.mrb[0].mxu0 %v4264
        %v4747 = vpop.f32.mrb[0].mxu0
        %v4748 = vadd.f32 %v4345, %v4747
        %v4749 = vpop.f32.mrb[0].mxu0
        %4750 = vmatprep.mubr.f32.mxu0 0.0
        %4751 = vmatmul.mubr.f32.gmra.mrb[0].mxu0 %v4265
        %v4752 = vpop.f32.mrb[0].mxu0
        %v4753 = vadd.f32 %v4345, %v4752
        %v4754 = vpop.f32.mrb[0].mxu0
        %4755 = vmatprep.mubr.f32.mxu0 0.0
        %4756 = vmatmul.mubr.f32.gmra.mrb[0].mxu0 %v4266
        %v4757 = vpop.f32.mrb[0].mxu0
        %v4758 = vadd.f32 %v4345, %v4757
        %v4759 = vpop.f32.mrb[0].mxu0
        %4760 = vmatprep.mubr.f32.mxu0 0.0
        %4761 = vmatmul.mubr.f32.gmra.mrb[0].mxu0 %v4267
        %v4762 = vpop.f32.mrb[0].mxu0
        %v4763 = vadd.f32 %v4345, %v4762
        %v4764 = vpop.f32.mrb[0].mxu0
        %4765 = vmatprep.mubr.f32.mxu0 0.0
        %4766 = vmatmul.mubr.f32.gmra.mrb[0].mxu0 %v4268
        %v4767 = vpop.f32.mrb[0].mxu0
        %v4768 = vadd.f32 %v4345, %v4767
        %v4769 = vpop.f32.mrb[0].mxu0
        %4770 = vmatprep.mubr.f32.mxu0 0.0
        %4771 = vmatmul.mubr.f32.gmra.mrb[0].mxu0 %v4269
        %v4772 = vpop.f32.mrb[0].mxu0
        %v4773 = vadd.f32 %v4345, %v4772
        %v4774 = vpop.f32.mrb[0].mxu0
        %4775 = vmatprep.mubr.f32.mxu0 0.0
        %4776 = vmatmul.mubr.f32.gmra.mrb[0].mxu0 %v4270
        %v4777 = vpop.f32.mrb[0].mxu0
        %v4778 = vadd.f32 %v4345, %v4777
        %v4779 = vpop.f32.mrb[0].mxu0
        %4780 = vmatprep.mubr.f32.mxu0 0.0
        %4781 = vmatmul.mubr.f32.gmra.mrb[0].mxu0 %v4271
        %v4782 = vpop.f32.mrb[0].mxu0
        %v4783 = vadd.f32 %v4345, %v4782
        %v4784 = vpop.f32.mrb[0].mxu0
        %4785 = vmatprep.mubr.f32.mxu0 0.0
        %4786 = vmatmul.mubr.f32.gmra.mrb[0].mxu0 %v4272
        %v4787 = vpop.f32.mrb[0].mxu0
        %v4788 = vadd.f32 %v4345, %v4787
        %v4789 = vpop.f32.mrb[0].mxu0
        %4790 = vmatprep.mubr.f32.mxu0 0.0
        %4791 = vmatmul.mubr.f32.gmra.mrb[0].mxu0 %v4273
        %v4792 = vpop.f32.mrb[0].mxu0
        %v4793 = vadd.f32 %v4345, %v4792
        %v4794 = vpop.f32.mrb[0].mxu0
        %4795 = vmatprep.mubr.f32.mxu0 0.0
        %4796 = vmatmul.mubr.f32.gmra.mrb[0].mxu0 %v4274
        %v4797 = vpop.f32.mrb[0].mxu0
        %v4798 = vadd.f32 %v4345, %v4797
        %v4799 = vpop.f32.mrb[0].mxu0
        %4800 = vmatprep.mubr.f32.mxu0 0.0
        %4801 = vmatmul.mubr.f32.gmra.mrb[0].mxu0 %v4275
        %v4802 = vpop.f32.mrb[0].mxu0
        %v4803 = vadd.f32 %v4345, %v4802
        %v4804 = vpop.f32.mrb[0].mxu0
        %4805 = vmatprep.mubr.f32.mxu0 0.0
        %4806 = vmatmul.mubr.f32.gmra.mrb[0].mxu0 %v4276
        %v4807 = vpop.f32.mrb[0].mxu0
        %v4808 = vadd.f32 %v4345, %v4807
        %v4809 = vpop.f32.mrb[0].mxu0
        %4810 = vmatprep.mubr.f32.mxu0 0.0
        %4811 = vmatmul.mubr.f32.gmra.mrb[0].mxu0 %v4277
        %v4812 = vpop.f32.mrb[0].mxu0
        %v4813 = vadd.f32 %v4345, %v4812
        %v4814 = vpop.f32.mrb[0].mxu0
        %4815 = vmatprep.mubr.f32.mxu0 0.0
        %4816 = vmatmul.mubr.f32.gmra.mrb[0].mxu0 %v4278
        %v4817 = vpop.f32.mrb[0].mxu0
        %v4818 = vadd.f32 %v4345, %v4817
        %v4819 = vpop.f32.mrb[0].mxu0
        %4820 = vmatprep.mubr.f32.mxu0 0.0
        %4821 = vmatmul.mubr.f32.gmra.mrb[0].mxu0 %v4279
        %v4822 = vpop.f32.mrb[0].mxu0
        %v4823 = vadd.f32 %v4345, %v4822
        %v4824 = vpop.f32.mrb[0].mxu0
        %4825 = vmatprep.mubr.f32.mxu0 0.0
        %4826 = vmatmul.mubr.f32.gmra.mrb[0].mxu0 %v4280
        %v4827 = vpop.f32.mrb[0].mxu0
        %v4828 = vadd.f32 %v4345, %v4827
        %v4829 = vpop.f32.mrb[0].mxu0
        %4830 = vmatprep.mubr.f32.mxu0 0.0
        %4831 = vmatmul.mubr.f32.gmra.mrb[0].mxu0 %v4281
        %v4832 = vpop.f32.mrb[0].mxu0
        %v4833 = vadd.f32 %v4345, %v4832
        %v4834 = vpop.f32.mrb[0].mxu0
        %4835 = vmatprep.mubr.f32.mxu0 0.0
        %4836 = vmatmul.mubr.f32.gmra.mrb[0].mxu0 %v4282
        %v4837 = vpop.f32.mrb[0].mxu0
        %v4838 = vadd.f32 %v4345, %v4837
        %v4839 = vpop.f32.mrb[0].mxu0
        %4840 = vmatprep.mubr.f32.mxu0 0.0
        %4841 = vmatmul.mubr.f32.gmra.mrb[0].mxu0 %v4283
        %v4842 = vpop.f32.mrb[0].mxu0
        %v4843 = vadd.f32 %v4345, %v4842
        %v4844 = vpop.f32.mrb[0].mxu0
        %4845 = vmatprep.mubr.f32.mxu0 0.0
        %4846 = vmatmul.mubr.f32.gmra.mrb[0].mxu0 %v4284
        %v4847 = vpop.f32.mrb[0].mxu0
        %v4848 = vadd.f32 %v4345, %v4847
        %v4849 = vpop.f32.mrb[0].mxu0
        %4850 = vmatprep.mubr.f32.mxu0 0.0
        %4851 = vmatmul.mubr.f32.gmra.mrb[0].mxu0 %v4285
        %v4852 = vpop.f32.mrb[0].mxu0
        %v4853 = vadd.f32 %v4345, %v4852
        %v4854 = vpop.f32.mrb[0].mxu0
        %4855 = vmatprep.mubr.f32.mxu0 0.0
        %4856 = vmatmul.mubr.f32.gmra.mrb[0].mxu0 %v4286
        %v4857 = vpop.f32.mrb[0].mxu0
        %v4858 = vadd.f32 %v4345, %v4857
        %v4859 = vpop.f32.mrb[0].mxu0
        %4860 = vmatprep.mubr.f32.mxu0 0.0
        %4861 = vmatmul.mubr.f32.gmra.mrb[0].mxu0 %v4287
        %v4862 = vpop.f32.mrb[0].mxu0
        %v4863 = vadd.f32 %v4345, %v4862
        %v4864 = vpop.f32.mrb[0].mxu0
        %4865 = vmatprep.mubr.f32.mxu0 0.0
        %4866 = vmatmul.mubr.f32.gmra.mrb[0].mxu0 %v4288
        %v4867 = vpop.f32.mrb[0].mxu0
        %v4868 = vadd.f32 %v4345, %v4867
        %v4869 = vpop.f32.mrb[0].mxu0
        %4870 = vmatprep.mubr.f32.mxu0 0.0
        %4871 = vmatmul.mubr.f32.gmra.mrb[0].mxu0 %v4289
        %v4872 = vpop.f32.mrb[0].mxu0
        %v4873 = vadd.f32 %v4345, %v4872
        %v4874 = vpop.f32.mrb[0].mxu0
        %4875 = vmatprep.mubr.f32.mxu0 0.0
        %4876 = vmatmul.mubr.f32.gmra.mrb[0].mxu0 %v4290
        %v4877 = vpop.f32.mrb[0].mxu0
        %v4878 = vadd.f32 %v4345, %v4877
        %v4879 = vpop.f32.mrb[0].mxu0
        %4880 = vmatprep.mubr.f32.mxu0 0.0
        %4881 = vmatmul.mubr.f32.gmra.mrb[0].mxu0 %v4291
        %v4882 = vpop.f32.mrb[0].mxu0
        %v4883 = vadd.f32 %v4345, %v4882
        %v4884 = vpop.f32.mrb[0].mxu0
        %4885 = vmatprep.mubr.f32.mxu0 0.0
        %4886 = vmatmul.mubr.f32.gmra.mrb[0].mxu0 %v4292
        %v4887 = vpop.f32.mrb[0].mxu0
        %v4888 = vadd.f32 %v4345, %v4887
        %v4889 = vpop.f32.mrb[0].mxu0
        %4890 = vmatprep.mubr.f32.mxu0 0.0
        %4891 = vmatmul.mubr.f32.gmra.mrb[0].mxu0 %v4293
        %v4892 = vpop.f32.mrb[0].mxu0
        %v4893 = vadd.f32 %v4345, %v4892
        %v4894 = vpop.f32.mrb[0].mxu0
        %4895 = vmatprep.mubr.f32.mxu0 0.0
        %4896 = vmatmul.mubr.f32.gmra.mrb[0].mxu0 %v4294
        %v4897 = vpop.f32.mrb[0].mxu0
        %v4898 = vadd.f32 %v4345, %v4897
        %v4899 = vpop.f32.mrb[0].mxu0
        %4900 = vmatprep.mubr.f32.mxu0 0.0
        %4901 = vmatmul.mubr.f32.gmra.mrb[0].mxu0 %v4295
        %v4902 = vpop.f32.mrb[0].mxu0
        %v4903 = vadd.f32 %v4345, %v4902
        %v4904 = vpop.f32.mrb[0].mxu0
        %4905 = vmatprep.mubr.f32.mxu0 0.0
        %4906 = vmatmul.mubr.f32.gmra.mrb[0].mxu0 %v4296
        %v4907 = vpop.f32.mrb[0].mxu0
        %v4908 = vadd.f32 %v4345, %v4907
        %v4909 = vpop.f32.mrb[0].mxu0
        %4910 = vmatprep.mubr.f32.mxu0 0.0
        %4911 = vmatmul.mubr.f32.gmra.mrb[0].mxu0 %v4297
        %v4912 = vpop.f32.mrb[0].mxu0
        %v4913 = vadd.f32 %v4345, %v4912
        %v4914 = vpop.f32.mrb[0].mxu0
        %4915 = vmatprep.mubr.f32.mxu0 0.0
        %4916 = vmatmul.mubr.f32.gmra.mrb[0].mxu0 %v4298
        %v4917 = vpop.f32.mrb[0].mxu0
        %v4918 = vadd.f32 %v4345, %v4917
        %v4919 = vpop.f32.mrb[0].mxu0
        %4920 = vmatprep.mubr.f32.mxu0 0.0
        %4921 = vmatmul.mubr.f32.gmra.mrb[0].mxu0 %v4299
        %v4922 = vpop.f32.mrb[0].mxu0
        %v4923 = vadd.f32 %v4345, %v4922
        %v4924 = vpop.f32.mrb[0].mxu0
        %4925 = vmatprep.mubr.f32.mxu0 0.0
        %4926 = vmatmul.mubr.f32.gmra.mrb[0].mxu0 %v4300
        %v4927 = vpop.f32.mrb[0].mxu0
        %v4928 = vadd.f32 %v4345, %v4927
        %v4929 = vpop.f32.mrb[0].mxu0
        %4930 = vmatprep.mubr.f32.mxu0 0.0
        %4931 = vmatmul.mubr.f32.gmra.mrb[0].mxu0 %v4301
        %v4932 = vpop.f32.mrb[0].mxu0
        %v4933 = vadd.f32 %v4345, %v4932
        %v4934 = vpop.f32.mrb[0].mxu0
        %4935 = vmatprep.mubr.f32.mxu0 0.0
        %4936 = vmatmul.mubr.f32.gmra.mrb[0].mxu0 %v4302
        %v4937 = vpop.f32.mrb[0].mxu0
        %v4938 = vadd.f32 %v4345, %v4937
        %v4939 = vpop.f32.mrb[0].mxu0
        %4940 = vmatprep.mubr.f32.mxu0 0.0
        %4941 = vmatmul.mubr.f32.gmra.mrb[0].mxu0 %v4303
        %v4942 = vpop.f32.mrb[0].mxu0
        %v4943 = vadd.f32 %v4345, %v4942
        %v4944 = vpop.f32.mrb[0].mxu0
        %4945 = vmatprep.mubr.f32.mxu0 0.0
        %4946 = vmatmul.mubr.f32.gmra.mrb[0].mxu0 %v4304
        %v4947 = vpop.f32.mrb[0].mxu0
        %v4948 = vadd.f32 %v4345, %v4947
        %v4949 = vpop.f32.mrb[0].mxu0
        %4950 = vmatprep.mubr.f32.mxu0 0.0
        %4951 = vmatmul.mubr.f32.gmra.mrb[0].mxu0 %v4305
        %v4952 = vpop.f32.mrb[0].mxu0
        %v4953 = vadd.f32 %v4345, %v4952
        %v4954 = vpop.f32.mrb[0].mxu0
        %4955 = vmatprep.mubr.f32.mxu0 0.0
        %4956 = vmatmul.mubr.f32.gmra.mrb[0].mxu0 %v4306
        %v4957 = vpop.f32.mrb[0].mxu0
        %v4958 = vadd.f32 %v4345, %v4957
        %v4959 = vpop.f32.mrb[0].mxu0
        %4960 = vmatprep.mubr.f32.mxu0 0.0
        %4961 = vmatmul.mubr.f32.gmra.mrb[0].mxu0 %v4307
        %v4962 = vpop.f32.mrb[0].mxu0
        %v4963 = vadd.f32 %v4345, %v4962
        %v4964 = vpop.f32.mrb[0].mxu0
        %4965 = vmatprep.mubr.f32.mxu0 0.0
        %4966 = vmatmul.mubr.f32.gmra.mrb[0].mxu0 %v4308
        %v4967 = vpop.f32.mrb[0].mxu0
        %v4968 = vadd.f32 %v4345, %v4967
        %v4969 = vpop.f32.mrb[0].mxu0
        %4970 = vmatprep.mubr.f32.mxu0 0.0
        %4971 = vmatmul.mubr.f32.gmra.mrb[0].mxu0 %v4309
        %v4972 = vpop.f32.mrb[0].mxu0
        %v4973 = vadd.f32 %v4345, %v4972
        %v4974 = vpop.f32.mrb[0].mxu0
        %4975 = vmatprep.mubr.f32.mxu0 0.0
        %4976 = vmatmul.mubr.f32.gmra.mrb[0].mxu0 %v4310
        %v4977 = vpop.f32.mrb[0].mxu0
        %v4978 = vadd.f32 %v4345, %v4977
        %v4979 = vpop.f32.mrb[0].mxu0
        %4980 = vmatprep.mubr.f32.mxu0 0.0
        %4981 = vmatmul.mubr.f32.gmra.mrb[0].mxu0 %v4311
        %v4982 = vpop.f32.mrb[0].mxu0
        %v4983 = vadd.f32 %v4345, %v4982
        %v4984 = vpop.f32.mrb[0].mxu0
        %4985 = vmatprep.mubr.f32.mxu0 0.0
        %4986 = vmatmul.mubr.f32.gmra.mrb[0].mxu0 %v4312
        %v4987 = vpop.f32.mrb[0].mxu0
        %v4988 = vadd.f32 %v4345, %v4987
        %v4989 = vpop.f32.mrb[0].mxu0
        %4990 = vmatprep.mubr.f32.mxu0 0.0
        %4991 = vmatmul.mubr.f32.gmra.mrb[0].mxu0 %v4313
        %v4992 = vpop.f32.mrb[0].mxu0
        %v4993 = vadd.f32 %v4345, %v4992
        %v4994 = vpop.f32.mrb[0].mxu0
        %4995 = vmatprep.mubr.f32.mxu0 0.0
        %4996 = vmatmul.mubr.f32.gmra.mrb[0].mxu0 %v4314
        %v4997 = vpop.f32.mrb[0].mxu0
        %v4998 = vadd.f32 %v4345, %v4997
        %v4999 = vpop.f32.mrb[0].mxu0
        %5000 = vmatprep.mubr.f32.mxu0 0.0
        %5001 = vmatmul.mubr.f32.gmra.mrb[0].mxu0 %v4315
        %v5002 = vpop.f32.mrb[0].mxu0
        %v5003 = vadd.f32 %v4345, %v5002
        %v5004 = vpop.f32.mrb[0].mxu0
        %5005 = vmatprep.mubr.f32.mxu0 0.0
        %5006 = vmatmul.mubr.f32.gmra.mrb[0].mxu0 %v4316
        %v5007 = vpop.f32.mrb[0].mxu0
        %v5008 = vadd.f32 %v4345, %v5007
        %v5009 = vpop.f32.mrb[0].mxu0
        %5010 = vmatprep.mubr.f32.mxu0 0.0
        %5011 = vmatmul.mubr.f32.gmra.mrb[0].mxu0 %v4317
        %v5012 = vpop.f32.mrb[0].mxu0
        %v5013 = vadd.f32 %v4345, %v5012
        %v5014 = vpop.f32.mrb[0].mxu0
        %5015 = vmatprep.mubr.f32.mxu0 0.0
        %5016 = vmatmul.mubr.f32.gmra.mrb[0].mxu0 %v4318
        %v5017 = vpop.f32.mrb[0].mxu0
        %v5018 = vadd.f32 %v4345, %v5017
        %v5019 = vpop.f32.mrb[0].mxu0
        %5020 = vmatprep.mubr.f32.mxu0 0.0
        %5021 = vmatmul.mubr.f32.gmra.mrb[0].mxu0 %v4319
        %v5022 = vpop.f32.mrb[0].mxu0
        %v5023 = vadd.f32 %v4345, %v5022
        %v5024 = vpop.f32.mrb[0].mxu0
        %5025 = vmatprep.mubr.f32.mxu0 0.0
        %5026 = vmatmul.mubr.f32.gmra.mrb[0].mxu0 %v4320
        %v5027 = vpop.f32.mrb[0].mxu0
        %v5028 = vadd.f32 %v4345, %v5027
        %v5029 = vpop.f32.mrb[0].mxu0
        %5030 = vmatprep.mubr.f32.mxu0 0.0
        %5031 = vmatmul.mubr.f32.gmra.mrb[0].mxu0 %v4321
        %v5032 = vpop.f32.mrb[0].mxu0
        %v5033 = vadd.f32 %v4345, %v5032
        %v5034 = vpop.f32.mrb[0].mxu0
        %5035 = vmatprep.mubr.f32.mxu0 0.0
        %5036 = vmatmul.mubr.f32.gmra.mrb[0].mxu0 %v4322
        %v5037 = vpop.f32.mrb[0].mxu0
        %v5038 = vadd.f32 %v4345, %v5037
        %v5039 = vpop.f32.mrb[0].mxu0
        %5040 = vmatprep.mubr.f32.mxu0 0.0
        %5041 = vmatmul.mubr.f32.gmra.mrb[0].mxu0 %v4323
        %v5042 = vpop.f32.mrb[0].mxu0
        %v5043 = vadd.f32 %v4345, %v5042
        %v5044 = vpop.f32.mrb[0].mxu0
        %5045 = vmatprep.mubr.f32.mxu0 0.0
        %5046 = vmatmul.mubr.f32.gmra.mrb[0].mxu0 %v4324
        %v5047 = vpop.f32.mrb[0].mxu0
        %v5048 = vadd.f32 %v4345, %v5047
        %v5049 = vpop.f32.mrb[0].mxu0
        %5050 = vdwg.mxu0
        %v5051 = vmul.f32 %v4413, %v4413
        %v5052 = vmul.f32 %v4418, %v4418
        %v5053 = vmul.f32 %v4423, %v4423
        %v5054 = vmul.f32 %v4428, %v4428
        %v5055 = vmul.f32 %v4433, %v4433
        %v5056 = vmul.f32 %v4438, %v4438
        %v5057 = vmul.f32 %v4443, %v4443
        %v5058 = vmul.f32 %v4448, %v4448
        %v5059 = vmul.f32 %v4453, %v4453
        %v5060 = vmul.f32 %v4458, %v4458
        %v5061 = vmul.f32 %v4463, %v4463
        %v5062 = vmul.f32 %v4468, %v4468
        %v5063 = vmul.f32 %v4473, %v4473
        %v5064 = vmul.f32 %v4478, %v4478
        %v5065 = vmul.f32 %v4483, %v4483
        %v5066 = vmul.f32 %v4488, %v4488
        %v5067 = vmul.f32 %v4493, %v4493
        %v5068 = vmul.f32 %v4498, %v4498
        %v5069 = vmul.f32 %v4503, %v4503
        %v5070 = vmul.f32 %v4508, %v4508
        %v5071 = vmul.f32 %v4513, %v4513
        %v5072 = vmul.f32 %v4518, %v4518
        %v5073 = vmul.f32 %v4523, %v4523
        %v5074 = vmul.f32 %v4528, %v4528
        %v5075 = vmul.f32 %v4533, %v4533
        %v5076 = vmul.f32 %v4538, %v4538
        %v5077 = vmul.f32 %v4543, %v4543
        %v5078 = vmul.f32 %v4548, %v4548
        %v5079 = vmul.f32 %v4553, %v4553
        %v5080 = vmul.f32 %v4558, %v4558
        %v5081 = vmul.f32 %v4563, %v4563
        %v5082 = vmul.f32 %v4568, %v4568
        %v5083 = vmul.f32 %v4573, %v4573
        %v5084 = vmul.f32 %v4578, %v4578
        %v5085 = vmul.f32 %v4583, %v4583
        %v5086 = vmul.f32 %v4588, %v4588
        %v5087 = vmul.f32 %v4593, %v4593
        %v5088 = vmul.f32 %v4598, %v4598
        %v5089 = vmul.f32 %v4603, %v4603
        %v5090 = vmul.f32 %v4608, %v4608
        %v5091 = vmul.f32 %v4613, %v4613
        %v5092 = vmul.f32 %v4618, %v4618
        %v5093 = vmul.f32 %v4623, %v4623
        %v5094 = vmul.f32 %v4628, %v4628
        %v5095 = vmul.f32 %v4633, %v4633
        %v5096 = vmul.f32 %v4638, %v4638
        %v5097 = vmul.f32 %v4643, %v4643
        %v5098 = vmul.f32 %v4648, %v4648
        %v5099 = vmul.f32 %v4653, %v4653
        %v5100 = vmul.f32 %v4658, %v4658
        %v5101 = vmul.f32 %v4663, %v4663
        %v5102 = vmul.f32 %v4668, %v4668
        %v5103 = vmul.f32 %v4673, %v4673
        %v5104 = vmul.f32 %v4678, %v4678
        %v5105 = vmul.f32 %v4683, %v4683
        %v5106 = vmul.f32 %v4688, %v4688
        %v5107 = vmul.f32 %v4693, %v4693
        %v5108 = vmul.f32 %v4698, %v4698
        %v5109 = vmul.f32 %v4703, %v4703
        %v5110 = vmul.f32 %v4708, %v4708
        %v5111 = vmul.f32 %v4713, %v4713
        %v5112 = vmul.f32 %v4718, %v4718
        %v5113 = vmul.f32 %v4723, %v4723
        %v5114 = vmul.f32 %v4728, %v4728
        %v5115 = vmul.f32 %v4733, %v4733
        %v5116 = vmul.f32 %v4738, %v4738
        %v5117 = vmul.f32 %v4743, %v4743
        %v5118 = vmul.f32 %v4748, %v4748
        %v5119 = vmul.f32 %v4753, %v4753
        %v5120 = vmul.f32 %v4758, %v4758
        %v5121 = vmul.f32 %v4763, %v4763
        %v5122 = vmul.f32 %v4768, %v4768
        %v5123 = vmul.f32 %v4773, %v4773
        %v5124 = vmul.f32 %v4778, %v4778
        %v5125 = vmul.f32 %v4783, %v4783
        %v5126 = vmul.f32 %v4788, %v4788
        %v5127 = vmul.f32 %v4793, %v4793
        %v5128 = vmul.f32 %v4798, %v4798
        %v5129 = vmul.f32 %v4803, %v4803
        %v5130 = vmul.f32 %v4808, %v4808
        %v5131 = vmul.f32 %v4813, %v4813
        %v5132 = vmul.f32 %v4818, %v4818
        %v5133 = vmul.f32 %v4823, %v4823
        %v5134 = vmul.f32 %v4828, %v4828
        %v5135 = vmul.f32 %v4833, %v4833
        %v5136 = vmul.f32 %v4838, %v4838
        %v5137 = vmul.f32 %v4843, %v4843
        %v5138 = vmul.f32 %v4848, %v4848
        %v5139 = vmul.f32 %v4853, %v4853
        %v5140 = vmul.f32 %v4858, %v4858
        %v5141 = vmul.f32 %v4863, %v4863
        %v5142 = vmul.f32 %v4868, %v4868
        %v5143 = vmul.f32 %v4873, %v4873
        %v5144 = vmul.f32 %v4878, %v4878
        %v5145 = vmul.f32 %v4883, %v4883
        %v5146 = vmul.f32 %v4888, %v4888
        %v5147 = vmul.f32 %v4893, %v4893
        %v5148 = vmul.f32 %v4898, %v4898
        %v5149 = vmul.f32 %v4903, %v4903
        %v5150 = vmul.f32 %v4908, %v4908
        %v5151 = vmul.f32 %v4913, %v4913
        %v5152 = vmul.f32 %v4918, %v4918
        %v5153 = vmul.f32 %v4923, %v4923
        %v5154 = vmul.f32 %v4928, %v4928
        %v5155 = vmul.f32 %v4933, %v4933
        %v5156 = vmul.f32 %v4938, %v4938
        %v5157 = vmul.f32 %v4943, %v4943
        %v5158 = vmul.f32 %v4948, %v4948
        %v5159 = vmul.f32 %v4953, %v4953
        %v5160 = vmul.f32 %v4958, %v4958
        %v5161 = vmul.f32 %v4963, %v4963
        %v5162 = vmul.f32 %v4968, %v4968
        %v5163 = vmul.f32 %v4973, %v4973
        %v5164 = vmul.f32 %v4978, %v4978
        %v5165 = vmul.f32 %v4983, %v4983
        %v5166 = vmul.f32 %v4988, %v4988
        %v5167 = vmul.f32 %v4993, %v4993
        %v5168 = vmul.f32 %v4998, %v4998
        %v5169 = vmul.f32 %v5003, %v5003
        %v5170 = vmul.f32 %v5008, %v5008
        %v5171 = vmul.f32 %v5013, %v5013
        %v5172 = vmul.f32 %v5018, %v5018
        %v5173 = vmul.f32 %v5023, %v5023
        %v5174 = vmul.f32 %v5028, %v5028
        %v5175 = vmul.f32 %v5033, %v5033
        %v5176 = vmul.f32 %v5038, %v5038
        %v5177 = vmul.f32 %v5043, %v5043
        %v5178 = vmul.f32 %v5048, %v5048
        %v5179 = vmul.f32 %v5051, %v4413
        %v5180 = vmul.f32 %v5052, %v4418
        %v5181 = vmul.f32 %v5053, %v4423
        %v5182 = vmul.f32 %v5054, %v4428
        %v5183 = vmul.f32 %v5055, %v4433
        %v5184 = vmul.f32 %v5056, %v4438
        %v5185 = vmul.f32 %v5057, %v4443
        %v5186 = vmul.f32 %v5058, %v4448
        %v5187 = vmul.f32 %v5059, %v4453
        %v5188 = vmul.f32 %v5060, %v4458
        %v5189 = vmul.f32 %v5061, %v4463
        %v5190 = vmul.f32 %v5062, %v4468
        %v5191 = vmul.f32 %v5063, %v4473
        %v5192 = vmul.f32 %v5064, %v4478
        %v5193 = vmul.f32 %v5065, %v4483
        %v5194 = vmul.f32 %v5066, %v4488
        %v5195 = vmul.f32 %v5067, %v4493
        %v5196 = vmul.f32 %v5068, %v4498
        %v5197 = vmul.f32 %v5069, %v4503
        %v5198 = vmul.f32 %v5070, %v4508
        %v5199 = vmul.f32 %v5071, %v4513
        %v5200 = vmul.f32 %v5072, %v4518
        %v5201 = vmul.f32 %v5073, %v4523
        %v5202 = vmul.f32 %v5074, %v4528
        %v5203 = vmul.f32 %v5075, %v4533
        %v5204 = vmul.f32 %v5076, %v4538
        %v5205 = vmul.f32 %v5077, %v4543
        %v5206 = vmul.f32 %v5078, %v4548
        %v5207 = vmul.f32 %v5079, %v4553
        %v5208 = vmul.f32 %v5080, %v4558
        %v5209 = vmul.f32 %v5081, %v4563
        %v5210 = vmul.f32 %v5082, %v4568
        %v5211 = vmul.f32 %v5083, %v4573
        %v5212 = vmul.f32 %v5084, %v4578
        %v5213 = vmul.f32 %v5085, %v4583
        %v5214 = vmul.f32 %v5086, %v4588
        %v5215 = vmul.f32 %v5087, %v4593
        %v5216 = vmul.f32 %v5088, %v4598
        %v5217 = vmul.f32 %v5089, %v4603
        %v5218 = vmul.f32 %v5090, %v4608
        %v5219 = vmul.f32 %v5091, %v4613
        %v5220 = vmul.f32 %v5092, %v4618
        %v5221 = vmul.f32 %v5093, %v4623
        %v5222 = vmul.f32 %v5094, %v4628
        %v5223 = vmul.f32 %v5095, %v4633
        %v5224 = vmul.f32 %v5096, %v4638
        %v5225 = vmul.f32 %v5097, %v4643
        %v5226 = vmul.f32 %v5098, %v4648
        %v5227 = vmul.f32 %v5099, %v4653
        %v5228 = vmul.f32 %v5100, %v4658
        %v5229 = vmul.f32 %v5101, %v4663
        %v5230 = vmul.f32 %v5102, %v4668
        %v5231 = vmul.f32 %v5103, %v4673
        %v5232 = vmul.f32 %v5104, %v4678
        %v5233 = vmul.f32 %v5105, %v4683
        %v5234 = vmul.f32 %v5106, %v4688
        %v5235 = vmul.f32 %v5107, %v4693
        %v5236 = vmul.f32 %v5108, %v4698
        %v5237 = vmul.f32 %v5109, %v4703
        %v5238 = vmul.f32 %v5110, %v4708
        %v5239 = vmul.f32 %v5111, %v4713
        %v5240 = vmul.f32 %v5112, %v4718
        %v5241 = vmul.f32 %v5113, %v4723
        %v5242 = vmul.f32 %v5114, %v4728
        %v5243 = vmul.f32 %v5115, %v4733
        %v5244 = vmul.f32 %v5116, %v4738
        %v5245 = vmul.f32 %v5117, %v4743
        %v5246 = vmul.f32 %v5118, %v4748
        %v5247 = vmul.f32 %v5119, %v4753
        %v5248 = vmul.f32 %v5120, %v4758
        %v5249 = vmul.f32 %v5121, %v4763
        %v5250 = vmul.f32 %v5122, %v4768
        %v5251 = vmul.f32 %v5123, %v4773
        %v5252 = vmul.f32 %v5124, %v4778
        %v5253 = vmul.f32 %v5125, %v4783
        %v5254 = vmul.f32 %v5126, %v4788
        %v5255 = vmul.f32 %v5127, %v4793
        %v5256 = vmul.f32 %v5128, %v4798
        %v5257 = vmul.f32 %v5129, %v4803
        %v5258 = vmul.f32 %v5130, %v4808
        %v5259 = vmul.f32 %v5131, %v4813
        %v5260 = vmul.f32 %v5132, %v4818
        %v5261 = vmul.f32 %v5133, %v4823
        %v5262 = vmul.f32 %v5134, %v4828
        %v5263 = vmul.f32 %v5135, %v4833
        %v5264 = vmul.f32 %v5136, %v4838
        %v5265 = vmul.f32 %v5137, %v4843
        %v5266 = vmul.f32 %v5138, %v4848
        %v5267 = vmul.f32 %v5139, %v4853
        %v5268 = vmul.f32 %v5140, %v4858
        %v5269 = vmul.f32 %v5141, %v4863
        %v5270 = vmul.f32 %v5142, %v4868
        %v5271 = vmul.f32 %v5143, %v4873
        %v5272 = vmul.f32 %v5144, %v4878
        %v5273 = vmul.f32 %v5145, %v4883
        %v5274 = vmul.f32 %v5146, %v4888
        %v5275 = vmul.f32 %v5147, %v4893
        %v5276 = vmul.f32 %v5148, %v4898
        %v5277 = vmul.f32 %v5149, %v4903
        %v5278 = vmul.f32 %v5150, %v4908
        %v5279 = vmul.f32 %v5151, %v4913
        %v5280 = vmul.f32 %v5152, %v4918
        %v5281 = vmul.f32 %v5153, %v4923
        %v5282 = vmul.f32 %v5154, %v4928
        %v5283 = vmul.f32 %v5155, %v4933
        %v5284 = vmul.f32 %v5156, %v4938
        %v5285 = vmul.f32 %v5157, %v4943
        %v5286 = vmul.f32 %v5158, %v4948
        %v5287 = vmul.f32 %v5159, %v4953
        %v5288 = vmul.f32 %v5160, %v4958
        %v5289 = vmul.f32 %v5161, %v4963
        %v5290 = vmul.f32 %v5162, %v4968
        %v5291 = vmul.f32 %v5163, %v4973
        %v5292 = vmul.f32 %v5164, %v4978
        %v5293 = vmul.f32 %v5165, %v4983
        %v5294 = vmul.f32 %v5166, %v4988
        %v5295 = vmul.f32 %v5167, %v4993
        %v5296 = vmul.f32 %v5168, %v4998
        %v5297 = vmul.f32 %v5169, %v5003
        %v5298 = vmul.f32 %v5170, %v5008
        %v5299 = vmul.f32 %v5171, %v5013
        %v5300 = vmul.f32 %v5172, %v5018
        %v5301 = vmul.f32 %v5173, %v5023
        %v5302 = vmul.f32 %v5174, %v5028
        %v5303 = vmul.f32 %v5175, %v5033
        %v5304 = vmul.f32 %v5176, %v5038
        %v5305 = vmul.f32 %v5177, %v5043
        %v5306 = vmul.f32 %v5178, %v5048
        %v5307 = vmul.f32 %v5179, 0.044715
        %v5308 = vmul.f32 %v5180, 0.044715
        %v5309 = vmul.f32 %v5181, 0.044715
        %v5310 = vmul.f32 %v5182, 0.044715
        %v5311 = vmul.f32 %v5183, 0.044715
        %v5312 = vmul.f32 %v5184, 0.044715
        %v5313 = vmul.f32 %v5185, 0.044715
        %v5314 = vmul.f32 %v5186, 0.044715
        %v5315 = vmul.f32 %v5187, 0.044715
        %v5316 = vmul.f32 %v5188, 0.044715
        %v5317 = vmul.f32 %v5189, 0.044715
        %v5318 = vmul.f32 %v5190, 0.044715
        %v5319 = vmul.f32 %v5191, 0.044715
        %v5320 = vmul.f32 %v5192, 0.044715
        %v5321 = vmul.f32 %v5193, 0.044715
        %v5322 = vmul.f32 %v5194, 0.044715
        %v5323 = vmul.f32 %v5195, 0.044715
        %v5324 = vmul.f32 %v5196, 0.044715
        %v5325 = vmul.f32 %v5197, 0.044715
        %v5326 = vmul.f32 %v5198, 0.044715
        %v5327 = vmul.f32 %v5199, 0.044715
        %v5328 = vmul.f32 %v5200, 0.044715
        %v5329 = vmul.f32 %v5201, 0.044715
        %v5330 = vmul.f32 %v5202, 0.044715
        %v5331 = vmul.f32 %v5203, 0.044715
        %v5332 = vmul.f32 %v5204, 0.044715
        %v5333 = vmul.f32 %v5205, 0.044715
        %v5334 = vmul.f32 %v5206, 0.044715
        %v5335 = vmul.f32 %v5207, 0.044715
        %v5336 = vmul.f32 %v5208, 0.044715
        %v5337 = vmul.f32 %v5209, 0.044715
        %v5338 = vmul.f32 %v5210, 0.044715
        %v5339 = vmul.f32 %v5211, 0.044715
        %v5340 = vmul.f32 %v5212, 0.044715
        %v5341 = vmul.f32 %v5213, 0.044715
        %v5342 = vmul.f32 %v5214, 0.044715
        %v5343 = vmul.f32 %v5215, 0.044715
        %v5344 = vmul.f32 %v5216, 0.044715
        %v5345 = vmul.f32 %v5217, 0.044715
        %v5346 = vmul.f32 %v5218, 0.044715
        %v5347 = vmul.f32 %v5219, 0.044715
        %v5348 = vmul.f32 %v5220, 0.044715
        %v5349 = vmul.f32 %v5221, 0.044715
        %v5350 = vmul.f32 %v5222, 0.044715
        %v5351 = vmul.f32 %v5223, 0.044715
        %v5352 = vmul.f32 %v5224, 0.044715
        %v5353 = vmul.f32 %v5225, 0.044715
        %v5354 = vmul.f32 %v5226, 0.044715
        %v5355 = vmul.f32 %v5227, 0.044715
        %v5356 = vmul.f32 %v5228, 0.044715
        %v5357 = vmul.f32 %v5229, 0.044715
        %v5358 = vmul.f32 %v5230, 0.044715
        %v5359 = vmul.f32 %v5231, 0.044715
        %v5360 = vmul.f32 %v5232, 0.044715
        %v5361 = vmul.f32 %v5233, 0.044715
        %v5362 = vmul.f32 %v5234, 0.044715
        %v5363 = vmul.f32 %v5235, 0.044715
        %v5364 = vmul.f32 %v5236, 0.044715
        %v5365 = vmul.f32 %v5237, 0.044715
        %v5366 = vmul.f32 %v5238, 0.044715
        %v5367 = vmul.f32 %v5239, 0.044715
        %v5368 = vmul.f32 %v5240, 0.044715
        %v5369 = vmul.f32 %v5241, 0.044715
        %v5370 = vmul.f32 %v5242, 0.044715
        %v5371 = vmul.f32 %v5243, 0.044715
        %v5372 = vmul.f32 %v5244, 0.044715
        %v5373 = vmul.f32 %v5245, 0.044715
        %v5374 = vmul.f32 %v5246, 0.044715
        %v5375 = vmul.f32 %v5247, 0.044715
        %v5376 = vmul.f32 %v5248, 0.044715
        %v5377 = vmul.f32 %v5249, 0.044715
        %v5378 = vmul.f32 %v5250, 0.044715
        %v5379 = vmul.f32 %v5251, 0.044715
        %v5380 = vmul.f32 %v5252, 0.044715
        %v5381 = vmul.f32 %v5253, 0.044715
        %v5382 = vmul.f32 %v5254, 0.044715
        %v5383 = vmul.f32 %v5255, 0.044715
        %v5384 = vmul.f32 %v5256, 0.044715
        %v5385 = vmul.f32 %v5257, 0.044715
        %v5386 = vmul.f32 %v5258, 0.044715
        %v5387 = vmul.f32 %v5259, 0.044715
        %v5388 = vmul.f32 %v5260, 0.044715
        %v5389 = vmul.f32 %v5261, 0.044715
        %v5390 = vmul.f32 %v5262, 0.044715
        %v5391 = vmul.f32 %v5263, 0.044715
        %v5392 = vmul.f32 %v5264, 0.044715
        %v5393 = vmul.f32 %v5265, 0.044715
        %v5394 = vmul.f32 %v5266, 0.044715
        %v5395 = vmul.f32 %v5267, 0.044715
        %v5396 = vmul.f32 %v5268, 0.044715
        %v5397 = vmul.f32 %v5269, 0.044715
        %v5398 = vmul.f32 %v5270, 0.044715
        %v5399 = vmul.f32 %v5271, 0.044715
        %v5400 = vmul.f32 %v5272, 0.044715
        %v5401 = vmul.f32 %v5273, 0.044715
        %v5402 = vmul.f32 %v5274, 0.044715
        %v5403 = vmul.f32 %v5275, 0.044715
        %v5404 = vmul.f32 %v5276, 0.044715
        %v5405 = vmul.f32 %v5277, 0.044715
        %v5406 = vmul.f32 %v5278, 0.044715
        %v5407 = vmul.f32 %v5279, 0.044715
        %v5408 = vmul.f32 %v5280, 0.044715
        %v5409 = vmul.f32 %v5281, 0.044715
        %v5410 = vmul.f32 %v5282, 0.044715
        %v5411 = vmul.f32 %v5283, 0.044715
        %v5412 = vmul.f32 %v5284, 0.044715
        %v5413 = vmul.f32 %v5285, 0.044715
        %v5414 = vmul.f32 %v5286, 0.044715
        %v5415 = vmul.f32 %v5287, 0.044715
        %v5416 = vmul.f32 %v5288, 0.044715
        %v5417 = vmul.f32 %v5289, 0.044715
        %v5418 = vmul.f32 %v5290, 0.044715
        %v5419 = vmul.f32 %v5291, 0.044715
        %v5420 = vmul.f32 %v5292, 0.044715
        %v5421 = vmul.f32 %v5293, 0.044715
        %v5422 = vmul.f32 %v5294, 0.044715
        %v5423 = vmul.f32 %v5295, 0.044715
        %v5424 = vmul.f32 %v5296, 0.044715
        %v5425 = vmul.f32 %v5297, 0.044715
        %v5426 = vmul.f32 %v5298, 0.044715
        %v5427 = vmul.f32 %v5299, 0.044715
        %v5428 = vmul.f32 %v5300, 0.044715
        %v5429 = vmul.f32 %v5301, 0.044715
        %v5430 = vmul.f32 %v5302, 0.044715
        %v5431 = vmul.f32 %v5303, 0.044715
        %v5432 = vmul.f32 %v5304, 0.044715
        %v5433 = vmul.f32 %v5305, 0.044715
        %v5434 = vmul.f32 %v5306, 0.044715
        %v5435 = vadd.f32 %v4413, %v5307
        %v5436 = vadd.f32 %v4418, %v5308
        %v5437 = vadd.f32 %v4423, %v5309
        %v5438 = vadd.f32 %v4428, %v5310
        %v5439 = vadd.f32 %v4433, %v5311
        %v5440 = vadd.f32 %v4438, %v5312
        %v5441 = vadd.f32 %v4443, %v5313
        %v5442 = vadd.f32 %v4448, %v5314
        %v5443 = vadd.f32 %v4453, %v5315
        %v5444 = vadd.f32 %v4458, %v5316
        %v5445 = vadd.f32 %v4463, %v5317
        %v5446 = vadd.f32 %v4468, %v5318
        %v5447 = vadd.f32 %v4473, %v5319
        %v5448 = vadd.f32 %v4478, %v5320
        %v5449 = vadd.f32 %v4483, %v5321
        %v5450 = vadd.f32 %v4488, %v5322
        %v5451 = vadd.f32 %v4493, %v5323
        %v5452 = vadd.f32 %v4498, %v5324
        %v5453 = vadd.f32 %v4503, %v5325
        %v5454 = vadd.f32 %v4508, %v5326
        %v5455 = vadd.f32 %v4513, %v5327
        %v5456 = vadd.f32 %v4518, %v5328
        %v5457 = vadd.f32 %v4523, %v5329
        %v5458 = vadd.f32 %v4528, %v5330
        %v5459 = vadd.f32 %v4533, %v5331
        %v5460 = vadd.f32 %v4538, %v5332
        %v5461 = vadd.f32 %v4543, %v5333
        %v5462 = vadd.f32 %v4548, %v5334
        %v5463 = vadd.f32 %v4553, %v5335
        %v5464 = vadd.f32 %v4558, %v5336
        %v5465 = vadd.f32 %v4563, %v5337
        %v5466 = vadd.f32 %v4568, %v5338
        %v5467 = vadd.f32 %v4573, %v5339
        %v5468 = vadd.f32 %v4578, %v5340
        %v5469 = vadd.f32 %v4583, %v5341
        %v5470 = vadd.f32 %v4588, %v5342
        %v5471 = vadd.f32 %v4593, %v5343
        %v5472 = vadd.f32 %v4598, %v5344
        %v5473 = vadd.f32 %v4603, %v5345
        %v5474 = vadd.f32 %v4608, %v5346
        %v5475 = vadd.f32 %v4613, %v5347
        %v5476 = vadd.f32 %v4618, %v5348
        %v5477 = vadd.f32 %v4623, %v5349
        %v5478 = vadd.f32 %v4628, %v5350
        %v5479 = vadd.f32 %v4633, %v5351
        %v5480 = vadd.f32 %v4638, %v5352
        %v5481 = vadd.f32 %v4643, %v5353
        %v5482 = vadd.f32 %v4648, %v5354
        %v5483 = vadd.f32 %v4653, %v5355
        %v5484 = vadd.f32 %v4658, %v5356
        %v5485 = vadd.f32 %v4663, %v5357
        %v5486 = vadd.f32 %v4668, %v5358
        %v5487 = vadd.f32 %v4673, %v5359
        %v5488 = vadd.f32 %v4678, %v5360
        %v5489 = vadd.f32 %v4683, %v5361
        %v5490 = vadd.f32 %v4688, %v5362
        %v5491 = vadd.f32 %v4693, %v5363
        %v5492 = vadd.f32 %v4698, %v5364
        %v5493 = vadd.f32 %v4703, %v5365
        %v5494 = vadd.f32 %v4708, %v5366
        %v5495 = vadd.f32 %v4713, %v5367
        %v5496 = vadd.f32 %v4718, %v5368
        %v5497 = vadd.f32 %v4723, %v5369
        %v5498 = vadd.f32 %v4728, %v5370
        %v5499 = vadd.f32 %v4733, %v5371
        %v5500 = vadd.f32 %v4738, %v5372
        %v5501 = vadd.f32 %v4743, %v5373
        %v5502 = vadd.f32 %v4748, %v5374
        %v5503 = vadd.f32 %v4753, %v5375
        %v5504 = vadd.f32 %v4758, %v5376
        %v5505 = vadd.f32 %v4763, %v5377
        %v5506 = vadd.f32 %v4768, %v5378
        %v5507 = vadd.f32 %v4773, %v5379
        %v5508 = vadd.f32 %v4778, %v5380
        %v5509 = vadd.f32 %v4783, %v5381
        %v5510 = vadd.f32 %v4788, %v5382
        %v5511 = vadd.f32 %v4793, %v5383
        %v5512 = vadd.f32 %v4798, %v5384
        %v5513 = vadd.f32 %v4803, %v5385
        %v5514 = vadd.f32 %v4808, %v5386
        %v5515 = vadd.f32 %v4813, %v5387
        %v5516 = vadd.f32 %v4818, %v5388
        %v5517 = vadd.f32 %v4823, %v5389
        %v5518 = vadd.f32 %v4828, %v5390
        %v5519 = vadd.f32 %v4833, %v5391
        %v5520 = vadd.f32 %v4838, %v5392
        %v5521 = vadd.f32 %v4843, %v5393
        %v5522 = vadd.f32 %v4848, %v5394
        %v5523 = vadd.f32 %v4853, %v5395
        %v5524 = vadd.f32 %v4858, %v5396
        %v5525 = vadd.f32 %v4863, %v5397
        %v5526 = vadd.f32 %v4868, %v5398
        %v5527 = vadd.f32 %v4873, %v5399
        %v5528 = vadd.f32 %v4878, %v5400
        %v5529 = vadd.f32 %v4883, %v5401
        %v5530 = vadd.f32 %v4888, %v5402
        %v5531 = vadd.f32 %v4893, %v5403
        %v5532 = vadd.f32 %v4898, %v5404
        %v5533 = vadd.f32 %v4903, %v5405
        %v5534 = vadd.f32 %v4908, %v5406
        %v5535 = vadd.f32 %v4913, %v5407
        %v5536 = vadd.f32 %v4918, %v5408
        %v5537 = vadd.f32 %v4923, %v5409
        %v5538 = vadd.f32 %v4928, %v5410
        %v5539 = vadd.f32 %v4933, %v5411
        %v5540 = vadd.f32 %v4938, %v5412
        %v5541 = vadd.f32 %v4943, %v5413
        %v5542 = vadd.f32 %v4948, %v5414
        %v5543 = vadd.f32 %v4953, %v5415
        %v5544 = vadd.f32 %v4958, %v5416
        %v5545 = vadd.f32 %v4963, %v5417
        %v5546 = vadd.f32 %v4968, %v5418
        %v5547 = vadd.f32 %v4973, %v5419
        %v5548 = vadd.f32 %v4978, %v5420
        %v5549 = vadd.f32 %v4983, %v5421
        %v5550 = vadd.f32 %v4988, %v5422
        %v5551 = vadd.f32 %v4993, %v5423
        %v5552 = vadd.f32 %v4998, %v5424
        %v5553 = vadd.f32 %v5003, %v5425
        %v5554 = vadd.f32 %v5008, %v5426
        %v5555 = vadd.f32 %v5013, %v5427
        %v5556 = vadd.f32 %v5018, %v5428
        %v5557 = vadd.f32 %v5023, %v5429
        %v5558 = vadd.f32 %v5028, %v5430
        %v5559 = vadd.f32 %v5033, %v5431
        %v5560 = vadd.f32 %v5038, %v5432
        %v5561 = vadd.f32 %v5043, %v5433
        %v5562 = vadd.f32 %v5048, %v5434
        %v5563 = vmul.f32 %v5435, 0.7978846
        %v5564 = vmul.f32 %v5436, 0.7978846
        %v5565 = vmul.f32 %v5437, 0.7978846
        %v5566 = vmul.f32 %v5438, 0.7978846
        %v5567 = vmul.f32 %v5439, 0.7978846
        %v5568 = vmul.f32 %v5440, 0.7978846
        %v5569 = vmul.f32 %v5441, 0.7978846
        %v5570 = vmul.f32 %v5442, 0.7978846
        %v5571 = vmul.f32 %v5443, 0.7978846
        %v5572 = vmul.f32 %v5444, 0.7978846
        %v5573 = vmul.f32 %v5445, 0.7978846
        %v5574 = vmul.f32 %v5446, 0.7978846
        %v5575 = vmul.f32 %v5447, 0.7978846
        %v5576 = vmul.f32 %v5448, 0.7978846
        %v5577 = vmul.f32 %v5449, 0.7978846
        %v5578 = vmul.f32 %v5450, 0.7978846
        %v5579 = vmul.f32 %v5451, 0.7978846
        %v5580 = vmul.f32 %v5452, 0.7978846
        %v5581 = vmul.f32 %v5453, 0.7978846
        %v5582 = vmul.f32 %v5454, 0.7978846
        %v5583 = vmul.f32 %v5455, 0.7978846
        %v5584 = vmul.f32 %v5456, 0.7978846
        %v5585 = vmul.f32 %v5457, 0.7978846
        %v5586 = vmul.f32 %v5458, 0.7978846
        %v5587 = vmul.f32 %v5459, 0.7978846
        %v5588 = vmul.f32 %v5460, 0.7978846
        %v5589 = vmul.f32 %v5461, 0.7978846
        %v5590 = vmul.f32 %v5462, 0.7978846
        %v5591 = vmul.f32 %v5463, 0.7978846
        %v5592 = vmul.f32 %v5464, 0.7978846
        %v5593 = vmul.f32 %v5465, 0.7978846
        %v5594 = vmul.f32 %v5466, 0.7978846
        %v5595 = vmul.f32 %v5467, 0.7978846
        %v5596 = vmul.f32 %v5468, 0.7978846
        %v5597 = vmul.f32 %v5469, 0.7978846
        %v5598 = vmul.f32 %v5470, 0.7978846
        %v5599 = vmul.f32 %v5471, 0.7978846
        %v5600 = vmul.f32 %v5472, 0.7978846
        %v5601 = vmul.f32 %v5473, 0.7978846
        %v5602 = vmul.f32 %v5474, 0.7978846
        %v5603 = vmul.f32 %v5475, 0.7978846
        %v5604 = vmul.f32 %v5476, 0.7978846
        %v5605 = vmul.f32 %v5477, 0.7978846
        %v5606 = vmul.f32 %v5478, 0.7978846
        %v5607 = vmul.f32 %v5479, 0.7978846
        %v5608 = vmul.f32 %v5480, 0.7978846
        %v5609 = vmul.f32 %v5481, 0.7978846
        %v5610 = vmul.f32 %v5482, 0.7978846
        %v5611 = vmul.f32 %v5483, 0.7978846
        %v5612 = vmul.f32 %v5484, 0.7978846
        %v5613 = vmul.f32 %v5485, 0.7978846
        %v5614 = vmul.f32 %v5486, 0.7978846
        %v5615 = vmul.f32 %v5487, 0.7978846
        %v5616 = vmul.f32 %v5488, 0.7978846
        %v5617 = vmul.f32 %v5489, 0.7978846
        %v5618 = vmul.f32 %v5490, 0.7978846
        %v5619 = vmul.f32 %v5491, 0.7978846
        %v5620 = vmul.f32 %v5492, 0.7978846
        %v5621 = vmul.f32 %v5493, 0.7978846
        %v5622 = vmul.f32 %v5494, 0.7978846
        %v5623 = vmul.f32 %v5495, 0.7978846
        %v5624 = vmul.f32 %v5496, 0.7978846
        %v5625 = vmul.f32 %v5497, 0.7978846
        %v5626 = vmul.f32 %v5498, 0.7978846
        %v5627 = vmul.f32 %v5499, 0.7978846
        %v5628 = vmul.f32 %v5500, 0.7978846
        %v5629 = vmul.f32 %v5501, 0.7978846
        %v5630 = vmul.f32 %v5502, 0.7978846
        %v5631 = vmul.f32 %v5503, 0.7978846
        %v5632 = vmul.f32 %v5504, 0.7978846
        %v5633 = vmul.f32 %v5505, 0.7978846
        %v5634 = vmul.f32 %v5506, 0.7978846
        %v5635 = vmul.f32 %v5507, 0.7978846
        %v5636 = vmul.f32 %v5508, 0.7978846
        %v5637 = vmul.f32 %v5509, 0.7978846
        %v5638 = vmul.f32 %v5510, 0.7978846
        %v5639 = vmul.f32 %v5511, 0.7978846
        %v5640 = vmul.f32 %v5512, 0.7978846
        %v5641 = vmul.f32 %v5513, 0.7978846
        %v5642 = vmul.f32 %v5514, 0.7978846
        %v5643 = vmul.f32 %v5515, 0.7978846
        %v5644 = vmul.f32 %v5516, 0.7978846
        %v5645 = vmul.f32 %v5517, 0.7978846
        %v5646 = vmul.f32 %v5518, 0.7978846
        %v5647 = vmul.f32 %v5519, 0.7978846
        %v5648 = vmul.f32 %v5520, 0.7978846
        %v5649 = vmul.f32 %v5521, 0.7978846
        %v5650 = vmul.f32 %v5522, 0.7978846
        %v5651 = vmul.f32 %v5523, 0.7978846
        %v5652 = vmul.f32 %v5524, 0.7978846
        %v5653 = vmul.f32 %v5525, 0.7978846
        %v5654 = vmul.f32 %v5526, 0.7978846
        %v5655 = vmul.f32 %v5527, 0.7978846
        %v5656 = vmul.f32 %v5528, 0.7978846
        %v5657 = vmul.f32 %v5529, 0.7978846
        %v5658 = vmul.f32 %v5530, 0.7978846
        %v5659 = vmul.f32 %v5531, 0.7978846
        %v5660 = vmul.f32 %v5532, 0.7978846
        %v5661 = vmul.f32 %v5533, 0.7978846
        %v5662 = vmul.f32 %v5534, 0.7978846
        %v5663 = vmul.f32 %v5535, 0.7978846
        %v5664 = vmul.f32 %v5536, 0.7978846
        %v5665 = vmul.f32 %v5537, 0.7978846
        %v5666 = vmul.f32 %v5538, 0.7978846
        %v5667 = vmul.f32 %v5539, 0.7978846
        %v5668 = vmul.f32 %v5540, 0.7978846
        %v5669 = vmul.f32 %v5541, 0.7978846
        %v5670 = vmul.f32 %v5542, 0.7978846
        %v5671 = vmul.f32 %v5543, 0.7978846
        %v5672 = vmul.f32 %v5544, 0.7978846
        %v5673 = vmul.f32 %v5545, 0.7978846
        %v5674 = vmul.f32 %v5546, 0.7978846
        %v5675 = vmul.f32 %v5547, 0.7978846
        %v5676 = vmul.f32 %v5548, 0.7978846
        %v5677 = vmul.f32 %v5549, 0.7978846
        %v5678 = vmul.f32 %v5550, 0.7978846
        %v5679 = vmul.f32 %v5551, 0.7978846
        %v5680 = vmul.f32 %v5552, 0.7978846
        %v5681 = vmul.f32 %v5553, 0.7978846
        %v5682 = vmul.f32 %v5554, 0.7978846
        %v5683 = vmul.f32 %v5555, 0.7978846
        %v5684 = vmul.f32 %v5556, 0.7978846
        %v5685 = vmul.f32 %v5557, 0.7978846
        %v5686 = vmul.f32 %v5558, 0.7978846
        %v5687 = vmul.f32 %v5559, 0.7978846
        %v5688 = vmul.f32 %v5560, 0.7978846
        %v5689 = vmul.f32 %v5561, 0.7978846
        %v5690 = vmul.f32 %v5562, 0.7978846
        %v5691 = vmul.f32 %v4413, 0.5
        %v5692 = vmul.f32 %v4418, 0.5
        %v5693 = vmul.f32 %v4423, 0.5
        %v5694 = vmul.f32 %v4428, 0.5
        %v5695 = vmul.f32 %v4433, 0.5
        %v5696 = vmul.f32 %v4438, 0.5
        %v5697 = vmul.f32 %v4443, 0.5
        %v5698 = vmul.f32 %v4448, 0.5
        %v5699 = vmul.f32 %v4453, 0.5
        %v5700 = vmul.f32 %v4458, 0.5
        %v5701 = vmul.f32 %v4463, 0.5
        %v5702 = vmul.f32 %v4468, 0.5
        %v5703 = vmul.f32 %v4473, 0.5
        %v5704 = vmul.f32 %v4478, 0.5
        %v5705 = vmul.f32 %v4483, 0.5
        %v5706 = vmul.f32 %v4488, 0.5
        %v5707 = vmul.f32 %v4493, 0.5
        %v5708 = vmul.f32 %v4498, 0.5
        %v5709 = vmul.f32 %v4503, 0.5
        %v5710 = vmul.f32 %v4508, 0.5
        %v5711 = vmul.f32 %v4513, 0.5
        %v5712 = vmul.f32 %v4518, 0.5
        %v5713 = vmul.f32 %v4523, 0.5
        %v5714 = vmul.f32 %v4528, 0.5
        %v5715 = vmul.f32 %v4533, 0.5
        %v5716 = vmul.f32 %v4538, 0.5
        %v5717 = vmul.f32 %v4543, 0.5
        %v5718 = vmul.f32 %v4548, 0.5
        %v5719 = vmul.f32 %v4553, 0.5
        %v5720 = vmul.f32 %v4558, 0.5
        %v5721 = vmul.f32 %v4563, 0.5
        %v5722 = vmul.f32 %v4568, 0.5
        %v5723 = vmul.f32 %v4573, 0.5
        %v5724 = vmul.f32 %v4578, 0.5
        %v5725 = vmul.f32 %v4583, 0.5
        %v5726 = vmul.f32 %v4588, 0.5
        %v5727 = vmul.f32 %v4593, 0.5
        %v5728 = vmul.f32 %v4598, 0.5
        %v5729 = vmul.f32 %v4603, 0.5
        %v5730 = vmul.f32 %v4608, 0.5
        %v5731 = vmul.f32 %v4613, 0.5
        %v5732 = vmul.f32 %v4618, 0.5
        %v5733 = vmul.f32 %v4623, 0.5
        %v5734 = vmul.f32 %v4628, 0.5
        %v5735 = vmul.f32 %v4633, 0.5
        %v5736 = vmul.f32 %v4638, 0.5
        %v5737 = vmul.f32 %v4643, 0.5
        %v5738 = vmul.f32 %v4648, 0.5
        %v5739 = vmul.f32 %v4653, 0.5
        %v5740 = vmul.f32 %v4658, 0.5
        %v5741 = vmul.f32 %v4663, 0.5
        %v5742 = vmul.f32 %v4668, 0.5
        %v5743 = vmul.f32 %v4673, 0.5
        %v5744 = vmul.f32 %v4678, 0.5
        %v5745 = vmul.f32 %v4683, 0.5
        %v5746 = vmul.f32 %v4688, 0.5
        %v5747 = vmul.f32 %v4693, 0.5
        %v5748 = vmul.f32 %v4698, 0.5
        %v5749 = vmul.f32 %v4703, 0.5
        %v5750 = vmul.f32 %v4708, 0.5
        %v5751 = vmul.f32 %v4713, 0.5
        %v5752 = vmul.f32 %v4718, 0.5
        %v5753 = vmul.f32 %v4723, 0.5
        %v5754 = vmul.f32 %v4728, 0.5
        %v5755 = vmul.f32 %v4733, 0.5
        %v5756 = vmul.f32 %v4738, 0.5
        %v5757 = vmul.f32 %v4743, 0.5
        %v5758 = vmul.f32 %v4748, 0.5
        %v5759 = vmul.f32 %v4753, 0.5
        %v5760 = vmul.f32 %v4758, 0.5
        %v5761 = vmul.f32 %v4763, 0.5
        %v5762 = vmul.f32 %v4768, 0.5
        %v5763 = vmul.f32 %v4773, 0.5
        %v5764 = vmul.f32 %v4778, 0.5
        %v5765 = vmul.f32 %v4783, 0.5
        %v5766 = vmul.f32 %v4788, 0.5
        %v5767 = vmul.f32 %v4793, 0.5
        %v5768 = vmul.f32 %v4798, 0.5
        %v5769 = vmul.f32 %v4803, 0.5
        %v5770 = vmul.f32 %v4808, 0.5
        %v5771 = vmul.f32 %v4813, 0.5
        %v5772 = vmul.f32 %v4818, 0.5
        %v5773 = vmul.f32 %v4823, 0.5
        %v5774 = vmul.f32 %v4828, 0.5
        %v5775 = vmul.f32 %v4833, 0.5
        %v5776 = vmul.f32 %v4838, 0.5
        %v5777 = vmul.f32 %v4843, 0.5
        %v5778 = vmul.f32 %v4848, 0.5
        %v5779 = vmul.f32 %v4853, 0.5
        %v5780 = vmul.f32 %v4858, 0.5
        %v5781 = vmul.f32 %v4863, 0.5
        %v5782 = vmul.f32 %v4868, 0.5
        %v5783 = vmul.f32 %v4873, 0.5
        %v5784 = vmul.f32 %v4878, 0.5
        %v5785 = vmul.f32 %v4883, 0.5
        %v5786 = vmul.f32 %v4888, 0.5
        %v5787 = vmul.f32 %v4893, 0.5
        %v5788 = vmul.f32 %v4898, 0.5
        %v5789 = vmul.f32 %v4903, 0.5
        %v5790 = vmul.f32 %v4908, 0.5
        %v5791 = vmul.f32 %v4913, 0.5
        %v5792 = vmul.f32 %v4918, 0.5
        %v5793 = vmul.f32 %v4923, 0.5
        %v5794 = vmul.f32 %v4928, 0.5
        %v5795 = vmul.f32 %v4933, 0.5
        %v5796 = vmul.f32 %v4938, 0.5
        %v5797 = vmul.f32 %v4943, 0.5
        %v5798 = vmul.f32 %v4948, 0.5
        %v5799 = vmul.f32 %v4953, 0.5
        %v5800 = vmul.f32 %v4958, 0.5
        %v5801 = vmul.f32 %v4963, 0.5
        %v5802 = vmul.f32 %v4968, 0.5
        %v5803 = vmul.f32 %v4973, 0.5
        %v5804 = vmul.f32 %v4978, 0.5
        %v5805 = vmul.f32 %v4983, 0.5
        %v5806 = vmul.f32 %v4988, 0.5
        %v5807 = vmul.f32 %v4993, 0.5
        %v5808 = vmul.f32 %v4998, 0.5
        %v5809 = vmul.f32 %v5003, 0.5
        %v5810 = vmul.f32 %v5008, 0.5
        %v5811 = vmul.f32 %v5013, 0.5
        %v5812 = vmul.f32 %v5018, 0.5
        %v5813 = vmul.f32 %v5023, 0.5
        %v5814 = vmul.f32 %v5028, 0.5
        %v5815 = vmul.f32 %v5033, 0.5
        %v5816 = vmul.f32 %v5038, 0.5
        %v5817 = vmul.f32 %v5043, 0.5
        %v5818 = vmul.f32 %v5048, 0.5
        %v5819 = vtanh.pop %v5563
        %v5820 = vtanh.pop %v5564
        %v5821 = vtanh.pop %v5565
        %v5822 = vtanh.pop %v5566
        %v5823 = vtanh.pop %v5567
        %v5824 = vtanh.pop %v5568
        %v5825 = vtanh.pop %v5569
        %v5826 = vtanh.pop %v5570
        %v5827 = vtanh.pop %v5571
        %v5828 = vtanh.pop %v5572
        %v5829 = vtanh.pop %v5573
        %v5830 = vtanh.pop %v5574
        %v5831 = vtanh.pop %v5575
        %v5832 = vtanh.pop %v5576
        %v5833 = vtanh.pop %v5577
        %v5834 = vtanh.pop %v5578
        %v5835 = vtanh.pop %v5579
        %v5836 = vtanh.pop %v5580
        %v5837 = vtanh.pop %v5581
        %v5838 = vtanh.pop %v5582
        %v5839 = vtanh.pop %v5583
        %v5840 = vtanh.pop %v5584
        %v5841 = vtanh.pop %v5585
        %v5842 = vtanh.pop %v5586
        %v5843 = vtanh.pop %v5587
        %v5844 = vtanh.pop %v5588
        %v5845 = vtanh.pop %v5589
        %v5846 = vtanh.pop %v5590
        %v5847 = vtanh.pop %v5591
        %v5848 = vtanh.pop %v5592
        %v5849 = vtanh.pop %v5593
        %v5850 = vtanh.pop %v5594
        %v5851 = vtanh.pop %v5595
        %v5852 = vtanh.pop %v5596
        %v5853 = vtanh.pop %v5597
        %v5854 = vtanh.pop %v5598
        %v5855 = vtanh.pop %v5599
        %v5856 = vtanh.pop %v5600
        %v5857 = vtanh.pop %v5601
        %v5858 = vtanh.pop %v5602
        %v5859 = vtanh.pop %v5603
        %v5860 = vtanh.pop %v5604
        %v5861 = vtanh.pop %v5605
        %v5862 = vtanh.pop %v5606
        %v5863 = vtanh.pop %v5607
        %v5864 = vtanh.pop %v5608
        %v5865 = vtanh.pop %v5609
        %v5866 = vtanh.pop %v5610
        %v5867 = vtanh.pop %v5611
        %v5868 = vtanh.pop %v5612
        %v5869 = vtanh.pop %v5613
        %v5870 = vtanh.pop %v5614
        %v5871 = vtanh.pop %v5615
        %v5872 = vtanh.pop %v5616
        %v5873 = vtanh.pop %v5617
        %v5874 = vtanh.pop %v5618
        %v5875 = vtanh.pop %v5619
        %v5876 = vtanh.pop %v5620
        %v5877 = vtanh.pop %v5621
        %v5878 = vtanh.pop %v5622
        %v5879 = vtanh.pop %v5623
        %v5880 = vtanh.pop %v5624
        %v5881 = vtanh.pop %v5625
        %v5882 = vtanh.pop %v5626
        %v5883 = vtanh.pop %v5627
        %v5884 = vtanh.pop %v5628
        %v5885 = vtanh.pop %v5629
        %v5886 = vtanh.pop %v5630
        %v5887 = vtanh.pop %v5631
        %v5888 = vtanh.pop %v5632
        %v5889 = vtanh.pop %v5633
        %v5890 = vtanh.pop %v5634
        %v5891 = vtanh.pop %v5635
        %v5892 = vtanh.pop %v5636
        %v5893 = vtanh.pop %v5637
        %v5894 = vtanh.pop %v5638
        %v5895 = vtanh.pop %v5639
        %v5896 = vtanh.pop %v5640
        %v5897 = vtanh.pop %v5641
        %v5898 = vtanh.pop %v5642
        %v5899 = vtanh.pop %v5643
        %v5900 = vtanh.pop %v5644
        %v5901 = vtanh.pop %v5645
        %v5902 = vtanh.pop %v5646
        %v5903 = vtanh.pop %v5647
        %v5904 = vtanh.pop %v5648
        %v5905 = vtanh.pop %v5649
        %v5906 = vtanh.pop %v5650
        %v5907 = vtanh.pop %v5651
        %v5908 = vtanh.pop %v5652
        %v5909 = vtanh.pop %v5653
        %v5910 = vtanh.pop %v5654
        %v5911 = vtanh.pop %v5655
        %v5912 = vtanh.pop %v5656
        %v5913 = vtanh.pop %v5657
        %v5914 = vtanh.pop %v5658
        %v5915 = vtanh.pop %v5659
        %v5916 = vtanh.pop %v5660
        %v5917 = vtanh.pop %v5661
        %v5918 = vtanh.pop %v5662
        %v5919 = vtanh.pop %v5663
        %v5920 = vtanh.pop %v5664
        %v5921 = vtanh.pop %v5665
        %v5922 = vtanh.pop %v5666
        %v5923 = vtanh.pop %v5667
        %v5924 = vtanh.pop %v5668
        %v5925 = vtanh.pop %v5669
        %v5926 = vtanh.pop %v5670
        %v5927 = vtanh.pop %v5671
        %v5928 = vtanh.pop %v5672
        %v5929 = vtanh.pop %v5673
        %v5930 = vtanh.pop %v5674
        %v5931 = vtanh.pop %v5675
        %v5932 = vtanh.pop %v5676
        %v5933 = vtanh.pop %v5677
        %v5934 = vtanh.pop %v5678
        %v5935 = vtanh.pop %v5679
        %v5936 = vtanh.pop %v5680
        %v5937 = vtanh.pop %v5681
        %v5938 = vtanh.pop %v5682
        %v5939 = vtanh.pop %v5683
        %v5940 = vtanh.pop %v5684
        %v5941 = vtanh.pop %v5685
        %v5942 = vtanh.pop %v5686
        %v5943 = vtanh.pop %v5687
        %v5944 = vtanh.pop %v5688
        %v5945 = vtanh.pop %v5689
        %v5946 = vtanh.pop %v5690
        %v5947 = vadd.f32 %v5819, 1.0
        %v5948 = vadd.f32 %v5820, 1.0
        %v5949 = vadd.f32 %v5821, 1.0
        %v5950 = vadd.f32 %v5822, 1.0
        %v5951 = vadd.f32 %v5823, 1.0
        %v5952 = vadd.f32 %v5824, 1.0
        %v5953 = vadd.f32 %v5825, 1.0
        %v5954 = vadd.f32 %v5826, 1.0
        %v5955 = vadd.f32 %v5827, 1.0
        %v5956 = vadd.f32 %v5828, 1.0
        %v5957 = vadd.f32 %v5829, 1.0
        %v5958 = vadd.f32 %v5830, 1.0
        %v5959 = vadd.f32 %v5831, 1.0
        %v5960 = vadd.f32 %v5832, 1.0
        %v5961 = vadd.f32 %v5833, 1.0
        %v5962 = vadd.f32 %v5834, 1.0
        %v5963 = vadd.f32 %v5835, 1.0
        %v5964 = vadd.f32 %v5836, 1.0
        %v5965 = vadd.f32 %v5837, 1.0
        %v5966 = vadd.f32 %v5838, 1.0
        %v5967 = vadd.f32 %v5839, 1.0
        %v5968 = vadd.f32 %v5840, 1.0
        %v5969 = vadd.f32 %v5841, 1.0
        %v5970 = vadd.f32 %v5842, 1.0
        %v5971 = vadd.f32 %v5843, 1.0
        %v5972 = vadd.f32 %v5844, 1.0
        %v5973 = vadd.f32 %v5845, 1.0
        %v5974 = vadd.f32 %v5846, 1.0
        %v5975 = vadd.f32 %v5847, 1.0
        %v5976 = vadd.f32 %v5848, 1.0
        %v5977 = vadd.f32 %v5849, 1.0
        %v5978 = vadd.f32 %v5850, 1.0
        %v5979 = vadd.f32 %v5851, 1.0
        %v5980 = vadd.f32 %v5852, 1.0
        %v5981 = vadd.f32 %v5853, 1.0
        %v5982 = vadd.f32 %v5854, 1.0
        %v5983 = vadd.f32 %v5855, 1.0
        %v5984 = vadd.f32 %v5856, 1.0
        %v5985 = vadd.f32 %v5857, 1.0
        %v5986 = vadd.f32 %v5858, 1.0
        %v5987 = vadd.f32 %v5859, 1.0
        %v5988 = vadd.f32 %v5860, 1.0
        %v5989 = vadd.f32 %v5861, 1.0
        %v5990 = vadd.f32 %v5862, 1.0
        %v5991 = vadd.f32 %v5863, 1.0
        %v5992 = vadd.f32 %v5864, 1.0
        %v5993 = vadd.f32 %v5865, 1.0
        %v5994 = vadd.f32 %v5866, 1.0
        %v5995 = vadd.f32 %v5867, 1.0
        %v5996 = vadd.f32 %v5868, 1.0
        %v5997 = vadd.f32 %v5869, 1.0
        %v5998 = vadd.f32 %v5870, 1.0
        %v5999 = vadd.f32 %v5871, 1.0
        %v6000 = vadd.f32 %v5872, 1.0
        %v6001 = vadd.f32 %v5873, 1.0
        %v6002 = vadd.f32 %v5874, 1.0
        %v6003 = vadd.f32 %v5875, 1.0
        %v6004 = vadd.f32 %v5876, 1.0
        %v6005 = vadd.f32 %v5877, 1.0
        %v6006 = vadd.f32 %v5878, 1.0
        %v6007 = vadd.f32 %v5879, 1.0
        %v6008 = vadd.f32 %v5880, 1.0
        %v6009 = vadd.f32 %v5881, 1.0
        %v6010 = vadd.f32 %v5882, 1.0
        %v6011 = vadd.f32 %v5883, 1.0
        %v6012 = vadd.f32 %v5884, 1.0
        %v6013 = vadd.f32 %v5885, 1.0
        %v6014 = vadd.f32 %v5886, 1.0
        %v6015 = vadd.f32 %v5887, 1.0
        %v6016 = vadd.f32 %v5888, 1.0
        %v6017 = vadd.f32 %v5889, 1.0
        %v6018 = vadd.f32 %v5890, 1.0
        %v6019 = vadd.f32 %v5891, 1.0
        %v6020 = vadd.f32 %v5892, 1.0
        %v6021 = vadd.f32 %v5893, 1.0
        %v6022 = vadd.f32 %v5894, 1.0
        %v6023 = vadd.f32 %v5895, 1.0
        %v6024 = vadd.f32 %v5896, 1.0
        %v6025 = vadd.f32 %v5897, 1.0
        %v6026 = vadd.f32 %v5898, 1.0
        %v6027 = vadd.f32 %v5899, 1.0
        %v6028 = vadd.f32 %v5900, 1.0
        %v6029 = vadd.f32 %v5901, 1.0
        %v6030 = vadd.f32 %v5902, 1.0
        %v6031 = vadd.f32 %v5903, 1.0
        %v6032 = vadd.f32 %v5904, 1.0
        %v6033 = vadd.f32 %v5905, 1.0
        %v6034 = vadd.f32 %v5906, 1.0
        %v6035 = vadd.f32 %v5907, 1.0
        %v6036 = vadd.f32 %v5908, 1.0
        %v6037 = vadd.f32 %v5909, 1.0
        %v6038 = vadd.f32 %v5910, 1.0
        %v6039 = vadd.f32 %v5911, 1.0
        %v6040 = vadd.f32 %v5912, 1.0
        %v6041 = vadd.f32 %v5913, 1.0
        %v6042 = vadd.f32 %v5914, 1.0
        %v6043 = vadd.f32 %v5915, 1.0
        %v6044 = vadd.f32 %v5916, 1.0
        %v6045 = vadd.f32 %v5917, 1.0
        %v6046 = vadd.f32 %v5918, 1.0
        %v6047 = vadd.f32 %v5919, 1.0
        %v6048 = vadd.f32 %v5920, 1.0
        %v6049 = vadd.f32 %v5921, 1.0
        %v6050 = vadd.f32 %v5922, 1.0
        %v6051 = vadd.f32 %v5923, 1.0
        %v6052 = vadd.f32 %v5924, 1.0
        %v6053 = vadd.f32 %v5925, 1.0
        %v6054 = vadd.f32 %v5926, 1.0
        %v6055 = vadd.f32 %v5927, 1.0
        %v6056 = vadd.f32 %v5928, 1.0
        %v6057 = vadd.f32 %v5929, 1.0
        %v6058 = vadd.f32 %v5930, 1.0
        %v6059 = vadd.f32 %v5931, 1.0
        %v6060 = vadd.f32 %v5932, 1.0
        %v6061 = vadd.f32 %v5933, 1.0
        %v6062 = vadd.f32 %v5934, 1.0
        %v6063 = vadd.f32 %v5935, 1.0
        %v6064 = vadd.f32 %v5936, 1.0
        %v6065 = vadd.f32 %v5937, 1.0
        %v6066 = vadd.f32 %v5938, 1.0
        %v6067 = vadd.f32 %v5939, 1.0
        %v6068 = vadd.f32 %v5940, 1.0
        %v6069 = vadd.f32 %v5941, 1.0
        %v6070 = vadd.f32 %v5942, 1.0
        %v6071 = vadd.f32 %v5943, 1.0
        %v6072 = vadd.f32 %v5944, 1.0
        %v6073 = vadd.f32 %v5945, 1.0
        %v6074 = vadd.f32 %v5946, 1.0
        %v6075 = vmul.f32 %v5691, %v5947
        %v6076 = vmul.f32 %v5692, %v5948
        %v6077 = vmul.f32 %v5693, %v5949
        %v6078 = vmul.f32 %v5694, %v5950
        %v6079 = vmul.f32 %v5695, %v5951
        %v6080 = vmul.f32 %v5696, %v5952
        %v6081 = vmul.f32 %v5697, %v5953
        %v6082 = vmul.f32 %v5698, %v5954
        %v6083 = vmul.f32 %v5699, %v5955
        %v6084 = vmul.f32 %v5700, %v5956
        %v6085 = vmul.f32 %v5701, %v5957
        %v6086 = vmul.f32 %v5702, %v5958
        %v6087 = vmul.f32 %v5703, %v5959
        %v6088 = vmul.f32 %v5704, %v5960
        %v6089 = vmul.f32 %v5705, %v5961
        %v6090 = vmul.f32 %v5706, %v5962
        %v6091 = vmul.f32 %v5707, %v5963
        %v6092 = vmul.f32 %v5708, %v5964
        %v6093 = vmul.f32 %v5709, %v5965
        %v6094 = vmul.f32 %v5710, %v5966
        %v6095 = vmul.f32 %v5711, %v5967
        %v6096 = vmul.f32 %v5712, %v5968
        %v6097 = vmul.f32 %v5713, %v5969
        %v6098 = vmul.f32 %v5714, %v5970
        %v6099 = vmul.f32 %v5715, %v5971
        %v6100 = vmul.f32 %v5716, %v5972
        %v6101 = vmul.f32 %v5717, %v5973
        %v6102 = vmul.f32 %v5718, %v5974
        %v6103 = vmul.f32 %v5719, %v5975
        %v6104 = vmul.f32 %v5720, %v5976
        %v6105 = vmul.f32 %v5721, %v5977
        %v6106 = vmul.f32 %v5722, %v5978
        %v6107 = vmul.f32 %v5723, %v5979
        %v6108 = vmul.f32 %v5724, %v5980
        %v6109 = vmul.f32 %v5725, %v5981
        %v6110 = vmul.f32 %v5726, %v5982
        %v6111 = vmul.f32 %v5727, %v5983
        %v6112 = vmul.f32 %v5728, %v5984
        %v6113 = vmul.f32 %v5729, %v5985
        %v6114 = vmul.f32 %v5730, %v5986
        %v6115 = vmul.f32 %v5731, %v5987
        %v6116 = vmul.f32 %v5732, %v5988
        %v6117 = vmul.f32 %v5733, %v5989
        %v6118 = vmul.f32 %v5734, %v5990
        %v6119 = vmul.f32 %v5735, %v5991
        %v6120 = vmul.f32 %v5736, %v5992
        %v6121 = vmul.f32 %v5737, %v5993
        %v6122 = vmul.f32 %v5738, %v5994
        %v6123 = vmul.f32 %v5739, %v5995
        %v6124 = vmul.f32 %v5740, %v5996
        %v6125 = vmul.f32 %v5741, %v5997
        %v6126 = vmul.f32 %v5742, %v5998
        %v6127 = vmul.f32 %v5743, %v5999
        %v6128 = vmul.f32 %v5744, %v6000
        %v6129 = vmul.f32 %v5745, %v6001
        %v6130 = vmul.f32 %v5746, %v6002
        %v6131 = vmul.f32 %v5747, %v6003
        %v6132 = vmul.f32 %v5748, %v6004
        %v6133 = vmul.f32 %v5749, %v6005
        %v6134 = vmul.f32 %v5750, %v6006
        %v6135 = vmul.f32 %v5751, %v6007
        %v6136 = vmul.f32 %v5752, %v6008
        %v6137 = vmul.f32 %v5753, %v6009
        %v6138 = vmul.f32 %v5754, %v6010
        %v6139 = vmul.f32 %v5755, %v6011
        %v6140 = vmul.f32 %v5756, %v6012
        %v6141 = vmul.f32 %v5757, %v6013
        %v6142 = vmul.f32 %v5758, %v6014
        %v6143 = vmul.f32 %v5759, %v6015
        %v6144 = vmul.f32 %v5760, %v6016
        %v6145 = vmul.f32 %v5761, %v6017
        %v6146 = vmul.f32 %v5762, %v6018
        %v6147 = vmul.f32 %v5763, %v6019
        %v6148 = vmul.f32 %v5764, %v6020
        %v6149 = vmul.f32 %v5765, %v6021
        %v6150 = vmul.f32 %v5766, %v6022
        %v6151 = vmul.f32 %v5767, %v6023
        %v6152 = vmul.f32 %v5768, %v6024
        %v6153 = vmul.f32 %v5769, %v6025
        %v6154 = vmul.f32 %v5770, %v6026
        %v6155 = vmul.f32 %v5771, %v6027
        %v6156 = vmul.f32 %v5772, %v6028
        %v6157 = vmul.f32 %v5773, %v6029
        %v6158 = vmul.f32 %v5774, %v6030
        %v6159 = vmul.f32 %v5775, %v6031
        %v6160 = vmul.f32 %v5776, %v6032
        %v6161 = vmul.f32 %v5777, %v6033
        %v6162 = vmul.f32 %v5778, %v6034
        %v6163 = vmul.f32 %v5779, %v6035
        %v6164 = vmul.f32 %v5780, %v6036
        %v6165 = vmul.f32 %v5781, %v6037
        %v6166 = vmul.f32 %v5782, %v6038
        %v6167 = vmul.f32 %v5783, %v6039
        %v6168 = vmul.f32 %v5784, %v6040
        %v6169 = vmul.f32 %v5785, %v6041
        %v6170 = vmul.f32 %v5786, %v6042
        %v6171 = vmul.f32 %v5787, %v6043
        %v6172 = vmul.f32 %v5788, %v6044
        %v6173 = vmul.f32 %v5789, %v6045
        %v6174 = vmul.f32 %v5790, %v6046
        %v6175 = vmul.f32 %v5791, %v6047
        %v6176 = vmul.f32 %v5792, %v6048
        %v6177 = vmul.f32 %v5793, %v6049
        %v6178 = vmul.f32 %v5794, %v6050
        %v6179 = vmul.f32 %v5795, %v6051
        %v6180 = vmul.f32 %v5796, %v6052
        %v6181 = vmul.f32 %v5797, %v6053
        %v6182 = vmul.f32 %v5798, %v6054
        %v6183 = vmul.f32 %v5799, %v6055
        %v6184 = vmul.f32 %v5800, %v6056
        %v6185 = vmul.f32 %v5801, %v6057
        %v6186 = vmul.f32 %v5802, %v6058
        %v6187 = vmul.f32 %v5803, %v6059
        %v6188 = vmul.f32 %v5804, %v6060
        %v6189 = vmul.f32 %v5805, %v6061
        %v6190 = vmul.f32 %v5806, %v6062
        %v6191 = vmul.f32 %v5807, %v6063
        %v6192 = vmul.f32 %v5808, %v6064
        %v6193 = vmul.f32 %v5809, %v6065
        %v6194 = vmul.f32 %v5810, %v6066
        %v6195 = vmul.f32 %v5811, %v6067
        %v6196 = vmul.f32 %v5812, %v6068
        %v6197 = vmul.f32 %v5813, %v6069
        %v6198 = vmul.f32 %v5814, %v6070
        %v6199 = vmul.f32 %v5815, %v6071
        %v6200 = vmul.f32 %v5816, %v6072
        %v6201 = vmul.f32 %v5817, %v6073
        %v6202 = vmul.f32 %v5818, %v6074
        %s6203 = scalar_lea.vmem %s2, 256
        %v6204 = vld [vmem:[%s6203] sm:$0xff]
        %v6205 = vld [vmem:[%s6203 + $0x8] sm:$0xff]
        %v6206 = vld [vmem:[%s6203 + $0x10] sm:$0xff]
        %v6207 = vld [vmem:[%s6203 + $0x18] sm:$0xff]
        %v6208 = vld [vmem:[%s6203 + $0x20] sm:$0xff]
        %v6209 = vld [vmem:[%s6203 + $0x28] sm:$0xff]
        %v6210 = vld [vmem:[%s6203 + $0x30] sm:$0xff]
        %v6211 = vld [vmem:[%s6203 + $0x38] sm:$0xff]
        %v6212 = vld [vmem:[%s6203 + $0x40] sm:$0xff]
        %v6213 = vld [vmem:[%s6203 + $0x48] sm:$0xff]
        %v6214 = vld [vmem:[%s6203 + $0x50] sm:$0xff]
        %v6215 = vld [vmem:[%s6203 + $0x58] sm:$0xff]
        %v6216 = vld [vmem:[%s6203 + $0x60] sm:$0xff]
        %v6217 = vld [vmem:[%s6203 + $0x68] sm:$0xff]
        %v6218 = vld [vmem:[%s6203 + $0x70] sm:$0xff]
        %v6219 = vld [vmem:[%s6203 + $0x78] sm:$0xff]
        %v6220 = vlaneseq
        %v6221 = vshrl.u32 %v6220, 7
        %v6222 = vsub.s32 4, %v6221
        %v6223 = vrot.slane %v374, %v6222
        %6224 = vmatprep.subr.mxu0 0.0
        %6225 = vmatpush1.msra.mxu0 %v6204
        %6226 = vmatprep.subr.mxu0 0.0
        %6227 = vmatpush1.msra.mxu0 %v6205
        %6228 = vmatprep.subr.mxu0 0.0
        %6229 = vmatpush1.msra.mxu0 %v6206
        %6230 = vmatprep.subr.mxu0 0.0
        %6231 = vmatpush1.msra.mxu0 %v6207
        %6232 = vmatprep.subr.mxu0 0.0
        %6233 = vmatpush1.msra.mxu0 %v6208
        %6234 = vmatprep.subr.mxu0 0.0
        %6235 = vmatpush1.msra.mxu0 %v6209
        %6236 = vmatprep.subr.mxu0 0.0
        %6237 = vmatpush1.msra.mxu0 %v6210
        %6238 = vmatprep.subr.mxu0 0.0
        %6239 = vmatpush1.msra.mxu0 %v6211
        %6240 = vmatprep.subr.mxu0 0.0
        %6241 = vmatpush1.msra.mxu0 %v6212
        %6242 = vmatprep.subr.mxu0 0.0
        %6243 = vmatpush1.msra.mxu0 %v6213
        %6244 = vmatprep.subr.mxu0 0.0
        %6245 = vmatpush1.msra.mxu0 %v6214
        %6246 = vmatprep.subr.mxu0 0.0
        %6247 = vmatpush1.msra.mxu0 %v6215
        %6248 = vmatprep.subr.mxu0 0.0
        %6249 = vmatpush1.msra.mxu0 %v6216
        %6250 = vmatprep.subr.mxu0 0.0
        %6251 = vmatpush1.msra.mxu0 %v6217
        %6252 = vmatprep.subr.mxu0 0.0
        %6253 = vmatpush1.msra.mxu0 %v6218
        %6254 = vmatprep.subr.mxu0 0.0
        %6255 = vmatpush1.msra.mxu0 %v6219
        %6256 = vmatprep.subr.mxu0 0.0
        %6257 = vmatpush1.msra.mxu0 0.0
        %6258 = vmatprep.subr.mxu0 0.0
        %6259 = vmatpush1.msra.mxu0 0.0
        %6260 = vmatprep.subr.mxu0 0.0
        %6261 = vmatpush1.msra.mxu0 0.0
        %6262 = vmatprep.subr.mxu0 0.0
        %6263 = vmatpush1.msra.mxu0 0.0
        %6264 = vmatprep.subr.mxu0 0.0
        %6265 = vmatpush1.msra.mxu0 0.0
        %6266 = vmatprep.subr.mxu0 0.0
        %6267 = vmatpush1.msra.mxu0 0.0
        %6268 = vmatprep.subr.mxu0 0.0
        %6269 = vmatpush1.msra.mxu0 0.0
        %6270 = vmatprep.subr.mxu0 0.0
        %6271 = vmatpush1.msra.mxu0 0.0
        %6272 = vmatprep.subr.mxu0 0.0
        %6273 = vmatpush1.msra.mxu0 0.0
        %6274 = vmatprep.subr.mxu0 0.0
        %6275 = vmatpush1.msra.mxu0 0.0
        %6276 = vmatprep.subr.mxu0 0.0
        %6277 = vmatpush1.msra.mxu0 0.0
        %6278 = vmatprep.subr.mxu0 0.0
        %6279 = vmatpush1.msra.mxu0 0.0
        %6280 = vmatprep.subr.mxu0 0.0
        %6281 = vmatpush1.msra.mxu0 0.0
        %6282 = vmatprep.subr.mxu0 0.0
        %6283 = vmatpush1.msra.mxu0 0.0
        %6284 = vmatprep.subr.mxu0 0.0
        %6285 = vmatpush1.msra.mxu0 0.0
        %6286 = vmatprep.subr.mxu0 0.0
        %6287 = vmatpush1.msra.mxu0 0.0
        %6288 = vmatprep.mubr.f32.mxu0 0.0
        %6289 = vmatmul.mubr.f32.gmra.mrb[0].mxu0 %v6075
        %v6290 = vpop.f32.mrb[0].mxu0
        %v6291 = vadd.f32 %v6223, %v6290
        %v6292 = vpop.f32.mrb[0].mxu0
        %6293 = vmatprep.mubr.f32.mxu0 0.0
        %6294 = vmatmul.mubr.f32.gmra.mrb[0].mxu0 %v6076
        %v6295 = vpop.f32.mrb[0].mxu0
        %v6296 = vadd.f32 %v6223, %v6295
        %v6297 = vpop.f32.mrb[0].mxu0
        %6298 = vmatprep.mubr.f32.mxu0 0.0
        %6299 = vmatmul.mubr.f32.gmra.mrb[0].mxu0 %v6077
        %v6300 = vpop.f32.mrb[0].mxu0
        %v6301 = vadd.f32 %v6223, %v6300
        %v6302 = vpop.f32.mrb[0].mxu0
        %6303 = vmatprep.mubr.f32.mxu0 0.0
        %6304 = vmatmul.mubr.f32.gmra.mrb[0].mxu0 %v6078
        %v6305 = vpop.f32.mrb[0].mxu0
        %v6306 = vadd.f32 %v6223, %v6305
        %v6307 = vpop.f32.mrb[0].mxu0
        %6308 = vmatprep.mubr.f32.mxu0 0.0
        %6309 = vmatmul.mubr.f32.gmra.mrb[0].mxu0 %v6079
        %v6310 = vpop.f32.mrb[0].mxu0
        %v6311 = vadd.f32 %v6223, %v6310
        %v6312 = vpop.f32.mrb[0].mxu0
        %6313 = vmatprep.mubr.f32.mxu0 0.0
        %6314 = vmatmul.mubr.f32.gmra.mrb[0].mxu0 %v6080
        %v6315 = vpop.f32.mrb[0].mxu0
        %v6316 = vadd.f32 %v6223, %v6315
        %v6317 = vpop.f32.mrb[0].mxu0
        %6318 = vmatprep.mubr.f32.mxu0 0.0
        %6319 = vmatmul.mubr.f32.gmra.mrb[0].mxu0 %v6081
        %v6320 = vpop.f32.mrb[0].mxu0
        %v6321 = vadd.f32 %v6223, %v6320
        %v6322 = vpop.f32.mrb[0].mxu0
        %6323 = vmatprep.mubr.f32.mxu0 0.0
        %6324 = vmatmul.mubr.f32.gmra.mrb[0].mxu0 %v6082
        %v6325 = vpop.f32.mrb[0].mxu0
        %v6326 = vadd.f32 %v6223, %v6325
        %v6327 = vpop.f32.mrb[0].mxu0
        %6328 = vmatprep.mubr.f32.mxu0 0.0
        %6329 = vmatmul.mubr.f32.gmra.mrb[0].mxu0 %v6083
        %v6330 = vpop.f32.mrb[0].mxu0
        %v6331 = vadd.f32 %v6223, %v6330
        %v6332 = vpop.f32.mrb[0].mxu0
        %6333 = vmatprep.mubr.f32.mxu0 0.0
        %6334 = vmatmul.mubr.f32.gmra.mrb[0].mxu0 %v6084
        %v6335 = vpop.f32.mrb[0].mxu0
        %v6336 = vadd.f32 %v6223, %v6335
        %v6337 = vpop.f32.mrb[0].mxu0
        %6338 = vmatprep.mubr.f32.mxu0 0.0
        %6339 = vmatmul.mubr.f32.gmra.mrb[0].mxu0 %v6085
        %v6340 = vpop.f32.mrb[0].mxu0
        %v6341 = vadd.f32 %v6223, %v6340
        %v6342 = vpop.f32.mrb[0].mxu0
        %6343 = vmatprep.mubr.f32.mxu0 0.0
        %6344 = vmatmul.mubr.f32.gmra.mrb[0].mxu0 %v6086
        %v6345 = vpop.f32.mrb[0].mxu0
        %v6346 = vadd.f32 %v6223, %v6345
        %v6347 = vpop.f32.mrb[0].mxu0
        %6348 = vmatprep.mubr.f32.mxu0 0.0
        %6349 = vmatmul.mubr.f32.gmra.mrb[0].mxu0 %v6087
        %v6350 = vpop.f32.mrb[0].mxu0
        %v6351 = vadd.f32 %v6223, %v6350
        %v6352 = vpop.f32.mrb[0].mxu0
        %6353 = vmatprep.mubr.f32.mxu0 0.0
        %6354 = vmatmul.mubr.f32.gmra.mrb[0].mxu0 %v6088
        %v6355 = vpop.f32.mrb[0].mxu0
        %v6356 = vadd.f32 %v6223, %v6355
        %v6357 = vpop.f32.mrb[0].mxu0
        %6358 = vmatprep.mubr.f32.mxu0 0.0
        %6359 = vmatmul.mubr.f32.gmra.mrb[0].mxu0 %v6089
        %v6360 = vpop.f32.mrb[0].mxu0
        %v6361 = vadd.f32 %v6223, %v6360
        %v6362 = vpop.f32.mrb[0].mxu0
        %6363 = vmatprep.mubr.f32.mxu0 0.0
        %6364 = vmatmul.mubr.f32.gmra.mrb[0].mxu0 %v6090
        %v6365 = vpop.f32.mrb[0].mxu0
        %v6366 = vadd.f32 %v6223, %v6365
        %v6367 = vpop.f32.mrb[0].mxu0
        %6368 = vmatprep.mubr.f32.mxu0 0.0
        %6369 = vmatmul.mubr.f32.gmra.mrb[0].mxu0 %v6091
        %v6370 = vpop.f32.mrb[0].mxu0
        %v6371 = vadd.f32 %v6223, %v6370
        %v6372 = vpop.f32.mrb[0].mxu0
        %6373 = vmatprep.mubr.f32.mxu0 0.0
        %6374 = vmatmul.mubr.f32.gmra.mrb[0].mxu0 %v6092
        %v6375 = vpop.f32.mrb[0].mxu0
        %v6376 = vadd.f32 %v6223, %v6375
        %v6377 = vpop.f32.mrb[0].mxu0
        %6378 = vmatprep.mubr.f32.mxu0 0.0
        %6379 = vmatmul.mubr.f32.gmra.mrb[0].mxu0 %v6093
        %v6380 = vpop.f32.mrb[0].mxu0
        %v6381 = vadd.f32 %v6223, %v6380
        %v6382 = vpop.f32.mrb[0].mxu0
        %6383 = vmatprep.mubr.f32.mxu0 0.0
        %6384 = vmatmul.mubr.f32.gmra.mrb[0].mxu0 %v6094
        %v6385 = vpop.f32.mrb[0].mxu0
        %v6386 = vadd.f32 %v6223, %v6385
        %v6387 = vpop.f32.mrb[0].mxu0
        %6388 = vmatprep.mubr.f32.mxu0 0.0
        %6389 = vmatmul.mubr.f32.gmra.mrb[0].mxu0 %v6095
        %v6390 = vpop.f32.mrb[0].mxu0
        %v6391 = vadd.f32 %v6223, %v6390
        %v6392 = vpop.f32.mrb[0].mxu0
        %6393 = vmatprep.mubr.f32.mxu0 0.0
        %6394 = vmatmul.mubr.f32.gmra.mrb[0].mxu0 %v6096
        %v6395 = vpop.f32.mrb[0].mxu0
        %v6396 = vadd.f32 %v6223, %v6395
        %v6397 = vpop.f32.mrb[0].mxu0
        %6398 = vmatprep.mubr.f32.mxu0 0.0
        %6399 = vmatmul.mubr.f32.gmra.mrb[0].mxu0 %v6097
        %v6400 = vpop.f32.mrb[0].mxu0
        %v6401 = vadd.f32 %v6223, %v6400
        %v6402 = vpop.f32.mrb[0].mxu0
        %6403 = vmatprep.mubr.f32.mxu0 0.0
        %6404 = vmatmul.mubr.f32.gmra.mrb[0].mxu0 %v6098
        %v6405 = vpop.f32.mrb[0].mxu0
        %v6406 = vadd.f32 %v6223, %v6405
        %v6407 = vpop.f32.mrb[0].mxu0
        %6408 = vmatprep.mubr.f32.mxu0 0.0
        %6409 = vmatmul.mubr.f32.gmra.mrb[0].mxu0 %v6099
        %v6410 = vpop.f32.mrb[0].mxu0
        %v6411 = vadd.f32 %v6223, %v6410
        %v6412 = vpop.f32.mrb[0].mxu0
        %6413 = vmatprep.mubr.f32.mxu0 0.0
        %6414 = vmatmul.mubr.f32.gmra.mrb[0].mxu0 %v6100
        %v6415 = vpop.f32.mrb[0].mxu0
        %v6416 = vadd.f32 %v6223, %v6415
        %v6417 = vpop.f32.mrb[0].mxu0
        %6418 = vmatprep.mubr.f32.mxu0 0.0
        %6419 = vmatmul.mubr.f32.gmra.mrb[0].mxu0 %v6101
        %v6420 = vpop.f32.mrb[0].mxu0
        %v6421 = vadd.f32 %v6223, %v6420
        %v6422 = vpop.f32.mrb[0].mxu0
        %6423 = vmatprep.mubr.f32.mxu0 0.0
        %6424 = vmatmul.mubr.f32.gmra.mrb[0].mxu0 %v6102
        %v6425 = vpop.f32.mrb[0].mxu0
        %v6426 = vadd.f32 %v6223, %v6425
        %v6427 = vpop.f32.mrb[0].mxu0
        %6428 = vmatprep.mubr.f32.mxu0 0.0
        %6429 = vmatmul.mubr.f32.gmra.mrb[0].mxu0 %v6103
        %v6430 = vpop.f32.mrb[0].mxu0
        %v6431 = vadd.f32 %v6223, %v6430
        %v6432 = vpop.f32.mrb[0].mxu0
        %6433 = vmatprep.mubr.f32.mxu0 0.0
        %6434 = vmatmul.mubr.f32.gmra.mrb[0].mxu0 %v6104
        %v6435 = vpop.f32.mrb[0].mxu0
        %v6436 = vadd.f32 %v6223, %v6435
        %v6437 = vpop.f32.mrb[0].mxu0
        %6438 = vmatprep.mubr.f32.mxu0 0.0
        %6439 = vmatmul.mubr.f32.gmra.mrb[0].mxu0 %v6105
        %v6440 = vpop.f32.mrb[0].mxu0
        %v6441 = vadd.f32 %v6223, %v6440
        %v6442 = vpop.f32.mrb[0].mxu0
        %6443 = vmatprep.mubr.f32.mxu0 0.0
        %6444 = vmatmul.mubr.f32.gmra.mrb[0].mxu0 %v6106
        %v6445 = vpop.f32.mrb[0].mxu0
        %v6446 = vadd.f32 %v6223, %v6445
        %v6447 = vpop.f32.mrb[0].mxu0
        %6448 = vmatprep.mubr.f32.mxu0 0.0
        %6449 = vmatmul.mubr.f32.gmra.mrb[0].mxu0 %v6107
        %v6450 = vpop.f32.mrb[0].mxu0
        %v6451 = vadd.f32 %v6223, %v6450
        %v6452 = vpop.f32.mrb[0].mxu0
        %6453 = vmatprep.mubr.f32.mxu0 0.0
        %6454 = vmatmul.mubr.f32.gmra.mrb[0].mxu0 %v6108
        %v6455 = vpop.f32.mrb[0].mxu0
        %v6456 = vadd.f32 %v6223, %v6455
        %v6457 = vpop.f32.mrb[0].mxu0
        %6458 = vmatprep.mubr.f32.mxu0 0.0
        %6459 = vmatmul.mubr.f32.gmra.mrb[0].mxu0 %v6109
        %v6460 = vpop.f32.mrb[0].mxu0
        %v6461 = vadd.f32 %v6223, %v6460
        %v6462 = vpop.f32.mrb[0].mxu0
        %6463 = vmatprep.mubr.f32.mxu0 0.0
        %6464 = vmatmul.mubr.f32.gmra.mrb[0].mxu0 %v6110
        %v6465 = vpop.f32.mrb[0].mxu0
        %v6466 = vadd.f32 %v6223, %v6465
        %v6467 = vpop.f32.mrb[0].mxu0
        %6468 = vmatprep.mubr.f32.mxu0 0.0
        %6469 = vmatmul.mubr.f32.gmra.mrb[0].mxu0 %v6111
        %v6470 = vpop.f32.mrb[0].mxu0
        %v6471 = vadd.f32 %v6223, %v6470
        %v6472 = vpop.f32.mrb[0].mxu0
        %6473 = vmatprep.mubr.f32.mxu0 0.0
        %6474 = vmatmul.mubr.f32.gmra.mrb[0].mxu0 %v6112
        %v6475 = vpop.f32.mrb[0].mxu0
        %v6476 = vadd.f32 %v6223, %v6475
        %v6477 = vpop.f32.mrb[0].mxu0
        %6478 = vmatprep.mubr.f32.mxu0 0.0
        %6479 = vmatmul.mubr.f32.gmra.mrb[0].mxu0 %v6113
        %v6480 = vpop.f32.mrb[0].mxu0
        %v6481 = vadd.f32 %v6223, %v6480
        %v6482 = vpop.f32.mrb[0].mxu0
        %6483 = vmatprep.mubr.f32.mxu0 0.0
        %6484 = vmatmul.mubr.f32.gmra.mrb[0].mxu0 %v6114
        %v6485 = vpop.f32.mrb[0].mxu0
        %v6486 = vadd.f32 %v6223, %v6485
        %v6487 = vpop.f32.mrb[0].mxu0
        %6488 = vmatprep.mubr.f32.mxu0 0.0
        %6489 = vmatmul.mubr.f32.gmra.mrb[0].mxu0 %v6115
        %v6490 = vpop.f32.mrb[0].mxu0
        %v6491 = vadd.f32 %v6223, %v6490
        %v6492 = vpop.f32.mrb[0].mxu0
        %6493 = vmatprep.mubr.f32.mxu0 0.0
        %6494 = vmatmul.mubr.f32.gmra.mrb[0].mxu0 %v6116
        %v6495 = vpop.f32.mrb[0].mxu0
        %v6496 = vadd.f32 %v6223, %v6495
        %v6497 = vpop.f32.mrb[0].mxu0
        %6498 = vmatprep.mubr.f32.mxu0 0.0
        %6499 = vmatmul.mubr.f32.gmra.mrb[0].mxu0 %v6117
        %v6500 = vpop.f32.mrb[0].mxu0
        %v6501 = vadd.f32 %v6223, %v6500
        %v6502 = vpop.f32.mrb[0].mxu0
        %6503 = vmatprep.mubr.f32.mxu0 0.0
        %6504 = vmatmul.mubr.f32.gmra.mrb[0].mxu0 %v6118
        %v6505 = vpop.f32.mrb[0].mxu0
        %v6506 = vadd.f32 %v6223, %v6505
        %v6507 = vpop.f32.mrb[0].mxu0
        %6508 = vmatprep.mubr.f32.mxu0 0.0
        %6509 = vmatmul.mubr.f32.gmra.mrb[0].mxu0 %v6119
        %v6510 = vpop.f32.mrb[0].mxu0
        %v6511 = vadd.f32 %v6223, %v6510
        %v6512 = vpop.f32.mrb[0].mxu0
        %6513 = vmatprep.mubr.f32.mxu0 0.0
        %6514 = vmatmul.mubr.f32.gmra.mrb[0].mxu0 %v6120
        %v6515 = vpop.f32.mrb[0].mxu0
        %v6516 = vadd.f32 %v6223, %v6515
        %v6517 = vpop.f32.mrb[0].mxu0
        %6518 = vmatprep.mubr.f32.mxu0 0.0
        %6519 = vmatmul.mubr.f32.gmra.mrb[0].mxu0 %v6121
        %v6520 = vpop.f32.mrb[0].mxu0
        %v6521 = vadd.f32 %v6223, %v6520
        %v6522 = vpop.f32.mrb[0].mxu0
        %6523 = vmatprep.mubr.f32.mxu0 0.0
        %6524 = vmatmul.mubr.f32.gmra.mrb[0].mxu0 %v6122
        %v6525 = vpop.f32.mrb[0].mxu0
        %v6526 = vadd.f32 %v6223, %v6525
        %v6527 = vpop.f32.mrb[0].mxu0
        %6528 = vmatprep.mubr.f32.mxu0 0.0
        %6529 = vmatmul.mubr.f32.gmra.mrb[0].mxu0 %v6123
        %v6530 = vpop.f32.mrb[0].mxu0
        %v6531 = vadd.f32 %v6223, %v6530
        %v6532 = vpop.f32.mrb[0].mxu0
        %6533 = vmatprep.mubr.f32.mxu0 0.0
        %6534 = vmatmul.mubr.f32.gmra.mrb[0].mxu0 %v6124
        %v6535 = vpop.f32.mrb[0].mxu0
        %v6536 = vadd.f32 %v6223, %v6535
        %v6537 = vpop.f32.mrb[0].mxu0
        %6538 = vmatprep.mubr.f32.mxu0 0.0
        %6539 = vmatmul.mubr.f32.gmra.mrb[0].mxu0 %v6125
        %v6540 = vpop.f32.mrb[0].mxu0
        %v6541 = vadd.f32 %v6223, %v6540
        %v6542 = vpop.f32.mrb[0].mxu0
        %6543 = vmatprep.mubr.f32.mxu0 0.0
        %6544 = vmatmul.mubr.f32.gmra.mrb[0].mxu0 %v6126
        %v6545 = vpop.f32.mrb[0].mxu0
        %v6546 = vadd.f32 %v6223, %v6545
        %v6547 = vpop.f32.mrb[0].mxu0
        %6548 = vmatprep.mubr.f32.mxu0 0.0
        %6549 = vmatmul.mubr.f32.gmra.mrb[0].mxu0 %v6127
        %v6550 = vpop.f32.mrb[0].mxu0
        %v6551 = vadd.f32 %v6223, %v6550
        %v6552 = vpop.f32.mrb[0].mxu0
        %6553 = vmatprep.mubr.f32.mxu0 0.0
        %6554 = vmatmul.mubr.f32.gmra.mrb[0].mxu0 %v6128
        %v6555 = vpop.f32.mrb[0].mxu0
        %v6556 = vadd.f32 %v6223, %v6555
        %v6557 = vpop.f32.mrb[0].mxu0
        %6558 = vmatprep.mubr.f32.mxu0 0.0
        %6559 = vmatmul.mubr.f32.gmra.mrb[0].mxu0 %v6129
        %v6560 = vpop.f32.mrb[0].mxu0
        %v6561 = vadd.f32 %v6223, %v6560
        %v6562 = vpop.f32.mrb[0].mxu0
        %6563 = vmatprep.mubr.f32.mxu0 0.0
        %6564 = vmatmul.mubr.f32.gmra.mrb[0].mxu0 %v6130
        %v6565 = vpop.f32.mrb[0].mxu0
        %v6566 = vadd.f32 %v6223, %v6565
        %v6567 = vpop.f32.mrb[0].mxu0
        %6568 = vmatprep.mubr.f32.mxu0 0.0
        %6569 = vmatmul.mubr.f32.gmra.mrb[0].mxu0 %v6131
        %v6570 = vpop.f32.mrb[0].mxu0
        %v6571 = vadd.f32 %v6223, %v6570
        %v6572 = vpop.f32.mrb[0].mxu0
        %6573 = vmatprep.mubr.f32.mxu0 0.0
        %6574 = vmatmul.mubr.f32.gmra.mrb[0].mxu0 %v6132
        %v6575 = vpop.f32.mrb[0].mxu0
        %v6576 = vadd.f32 %v6223, %v6575
        %v6577 = vpop.f32.mrb[0].mxu0
        %6578 = vmatprep.mubr.f32.mxu0 0.0
        %6579 = vmatmul.mubr.f32.gmra.mrb[0].mxu0 %v6133
        %v6580 = vpop.f32.mrb[0].mxu0
        %v6581 = vadd.f32 %v6223, %v6580
        %v6582 = vpop.f32.mrb[0].mxu0
        %6583 = vmatprep.mubr.f32.mxu0 0.0
        %6584 = vmatmul.mubr.f32.gmra.mrb[0].mxu0 %v6134
        %v6585 = vpop.f32.mrb[0].mxu0
        %v6586 = vadd.f32 %v6223, %v6585
        %v6587 = vpop.f32.mrb[0].mxu0
        %6588 = vmatprep.mubr.f32.mxu0 0.0
        %6589 = vmatmul.mubr.f32.gmra.mrb[0].mxu0 %v6135
        %v6590 = vpop.f32.mrb[0].mxu0
        %v6591 = vadd.f32 %v6223, %v6590
        %v6592 = vpop.f32.mrb[0].mxu0
        %6593 = vmatprep.mubr.f32.mxu0 0.0
        %6594 = vmatmul.mubr.f32.gmra.mrb[0].mxu0 %v6136
        %v6595 = vpop.f32.mrb[0].mxu0
        %v6596 = vadd.f32 %v6223, %v6595
        %v6597 = vpop.f32.mrb[0].mxu0
        %6598 = vmatprep.mubr.f32.mxu0 0.0
        %6599 = vmatmul.mubr.f32.gmra.mrb[0].mxu0 %v6137
        %v6600 = vpop.f32.mrb[0].mxu0
        %v6601 = vadd.f32 %v6223, %v6600
        %v6602 = vpop.f32.mrb[0].mxu0
        %6603 = vmatprep.mubr.f32.mxu0 0.0
        %6604 = vmatmul.mubr.f32.gmra.mrb[0].mxu0 %v6138
        %v6605 = vpop.f32.mrb[0].mxu0
        %v6606 = vadd.f32 %v6223, %v6605
        %v6607 = vpop.f32.mrb[0].mxu0
        %6608 = vmatprep.mubr.f32.mxu0 0.0
        %6609 = vmatmul.mubr.f32.gmra.mrb[0].mxu0 %v6139
        %v6610 = vpop.f32.mrb[0].mxu0
        %v6611 = vadd.f32 %v6223, %v6610
        %v6612 = vpop.f32.mrb[0].mxu0
        %6613 = vmatprep.mubr.f32.mxu0 0.0
        %6614 = vmatmul.mubr.f32.gmra.mrb[0].mxu0 %v6140
        %v6615 = vpop.f32.mrb[0].mxu0
        %v6616 = vadd.f32 %v6223, %v6615
        %v6617 = vpop.f32.mrb[0].mxu0
        %6618 = vmatprep.mubr.f32.mxu0 0.0
        %6619 = vmatmul.mubr.f32.gmra.mrb[0].mxu0 %v6141
        %v6620 = vpop.f32.mrb[0].mxu0
        %v6621 = vadd.f32 %v6223, %v6620
        %v6622 = vpop.f32.mrb[0].mxu0
        %6623 = vmatprep.mubr.f32.mxu0 0.0
        %6624 = vmatmul.mubr.f32.gmra.mrb[0].mxu0 %v6142
        %v6625 = vpop.f32.mrb[0].mxu0
        %v6626 = vadd.f32 %v6223, %v6625
        %v6627 = vpop.f32.mrb[0].mxu0
        %6628 = vmatprep.mubr.f32.mxu0 0.0
        %6629 = vmatmul.mubr.f32.gmra.mrb[0].mxu0 %v6143
        %v6630 = vpop.f32.mrb[0].mxu0
        %v6631 = vadd.f32 %v6223, %v6630
        %v6632 = vpop.f32.mrb[0].mxu0
        %6633 = vmatprep.mubr.f32.mxu0 0.0
        %6634 = vmatmul.mubr.f32.gmra.mrb[0].mxu0 %v6144
        %v6635 = vpop.f32.mrb[0].mxu0
        %v6636 = vadd.f32 %v6223, %v6635
        %v6637 = vpop.f32.mrb[0].mxu0
        %6638 = vmatprep.mubr.f32.mxu0 0.0
        %6639 = vmatmul.mubr.f32.gmra.mrb[0].mxu0 %v6145
        %v6640 = vpop.f32.mrb[0].mxu0
        %v6641 = vadd.f32 %v6223, %v6640
        %v6642 = vpop.f32.mrb[0].mxu0
        %6643 = vmatprep.mubr.f32.mxu0 0.0
        %6644 = vmatmul.mubr.f32.gmra.mrb[0].mxu0 %v6146
        %v6645 = vpop.f32.mrb[0].mxu0
        %v6646 = vadd.f32 %v6223, %v6645
        %v6647 = vpop.f32.mrb[0].mxu0
        %6648 = vmatprep.mubr.f32.mxu0 0.0
        %6649 = vmatmul.mubr.f32.gmra.mrb[0].mxu0 %v6147
        %v6650 = vpop.f32.mrb[0].mxu0
        %v6651 = vadd.f32 %v6223, %v6650
        %v6652 = vpop.f32.mrb[0].mxu0
        %6653 = vmatprep.mubr.f32.mxu0 0.0
        %6654 = vmatmul.mubr.f32.gmra.mrb[0].mxu0 %v6148
        %v6655 = vpop.f32.mrb[0].mxu0
        %v6656 = vadd.f32 %v6223, %v6655
        %v6657 = vpop.f32.mrb[0].mxu0
        %6658 = vmatprep.mubr.f32.mxu0 0.0
        %6659 = vmatmul.mubr.f32.gmra.mrb[0].mxu0 %v6149
        %v6660 = vpop.f32.mrb[0].mxu0
        %v6661 = vadd.f32 %v6223, %v6660
        %v6662 = vpop.f32.mrb[0].mxu0
        %6663 = vmatprep.mubr.f32.mxu0 0.0
        %6664 = vmatmul.mubr.f32.gmra.mrb[0].mxu0 %v6150
        %v6665 = vpop.f32.mrb[0].mxu0
        %v6666 = vadd.f32 %v6223, %v6665
        %v6667 = vpop.f32.mrb[0].mxu0
        %6668 = vmatprep.mubr.f32.mxu0 0.0
        %6669 = vmatmul.mubr.f32.gmra.mrb[0].mxu0 %v6151
        %v6670 = vpop.f32.mrb[0].mxu0
        %v6671 = vadd.f32 %v6223, %v6670
        %v6672 = vpop.f32.mrb[0].mxu0
        %6673 = vmatprep.mubr.f32.mxu0 0.0
        %6674 = vmatmul.mubr.f32.gmra.mrb[0].mxu0 %v6152
        %v6675 = vpop.f32.mrb[0].mxu0
        %v6676 = vadd.f32 %v6223, %v6675
        %v6677 = vpop.f32.mrb[0].mxu0
        %6678 = vmatprep.mubr.f32.mxu0 0.0
        %6679 = vmatmul.mubr.f32.gmra.mrb[0].mxu0 %v6153
        %v6680 = vpop.f32.mrb[0].mxu0
        %v6681 = vadd.f32 %v6223, %v6680
        %v6682 = vpop.f32.mrb[0].mxu0
        %6683 = vmatprep.mubr.f32.mxu0 0.0
        %6684 = vmatmul.mubr.f32.gmra.mrb[0].mxu0 %v6154
        %v6685 = vpop.f32.mrb[0].mxu0
        %v6686 = vadd.f32 %v6223, %v6685
        %v6687 = vpop.f32.mrb[0].mxu0
        %6688 = vmatprep.mubr.f32.mxu0 0.0
        %6689 = vmatmul.mubr.f32.gmra.mrb[0].mxu0 %v6155
        %v6690 = vpop.f32.mrb[0].mxu0
        %v6691 = vadd.f32 %v6223, %v6690
        %v6692 = vpop.f32.mrb[0].mxu0
        %6693 = vmatprep.mubr.f32.mxu0 0.0
        %6694 = vmatmul.mubr.f32.gmra.mrb[0].mxu0 %v6156
        %v6695 = vpop.f32.mrb[0].mxu0
        %v6696 = vadd.f32 %v6223, %v6695
        %v6697 = vpop.f32.mrb[0].mxu0
        %6698 = vmatprep.mubr.f32.mxu0 0.0
        %6699 = vmatmul.mubr.f32.gmra.mrb[0].mxu0 %v6157
        %v6700 = vpop.f32.mrb[0].mxu0
        %v6701 = vadd.f32 %v6223, %v6700
        %v6702 = vpop.f32.mrb[0].mxu0
        %6703 = vmatprep.mubr.f32.mxu0 0.0
        %6704 = vmatmul.mubr.f32.gmra.mrb[0].mxu0 %v6158
        %v6705 = vpop.f32.mrb[0].mxu0
        %v6706 = vadd.f32 %v6223, %v6705
        %v6707 = vpop.f32.mrb[0].mxu0
        %6708 = vmatprep.mubr.f32.mxu0 0.0
        %6709 = vmatmul.mubr.f32.gmra.mrb[0].mxu0 %v6159
        %v6710 = vpop.f32.mrb[0].mxu0
        %v6711 = vadd.f32 %v6223, %v6710
        %v6712 = vpop.f32.mrb[0].mxu0
        %6713 = vmatprep.mubr.f32.mxu0 0.0
        %6714 = vmatmul.mubr.f32.gmra.mrb[0].mxu0 %v6160
        %v6715 = vpop.f32.mrb[0].mxu0
        %v6716 = vadd.f32 %v6223, %v6715
        %v6717 = vpop.f32.mrb[0].mxu0
        %6718 = vmatprep.mubr.f32.mxu0 0.0
        %6719 = vmatmul.mubr.f32.gmra.mrb[0].mxu0 %v6161
        %v6720 = vpop.f32.mrb[0].mxu0
        %v6721 = vadd.f32 %v6223, %v6720
        %v6722 = vpop.f32.mrb[0].mxu0
        %6723 = vmatprep.mubr.f32.mxu0 0.0
        %6724 = vmatmul.mubr.f32.gmra.mrb[0].mxu0 %v6162
        %v6725 = vpop.f32.mrb[0].mxu0
        %v6726 = vadd.f32 %v6223, %v6725
        %v6727 = vpop.f32.mrb[0].mxu0
        %6728 = vmatprep.mubr.f32.mxu0 0.0
        %6729 = vmatmul.mubr.f32.gmra.mrb[0].mxu0 %v6163
        %v6730 = vpop.f32.mrb[0].mxu0
        %v6731 = vadd.f32 %v6223, %v6730
        %v6732 = vpop.f32.mrb[0].mxu0
        %6733 = vmatprep.mubr.f32.mxu0 0.0
        %6734 = vmatmul.mubr.f32.gmra.mrb[0].mxu0 %v6164
        %v6735 = vpop.f32.mrb[0].mxu0
        %v6736 = vadd.f32 %v6223, %v6735
        %v6737 = vpop.f32.mrb[0].mxu0
        %6738 = vmatprep.mubr.f32.mxu0 0.0
        %6739 = vmatmul.mubr.f32.gmra.mrb[0].mxu0 %v6165
        %v6740 = vpop.f32.mrb[0].mxu0
        %v6741 = vadd.f32 %v6223, %v6740
        %v6742 = vpop.f32.mrb[0].mxu0
        %6743 = vmatprep.mubr.f32.mxu0 0.0
        %6744 = vmatmul.mubr.f32.gmra.mrb[0].mxu0 %v6166
        %v6745 = vpop.f32.mrb[0].mxu0
        %v6746 = vadd.f32 %v6223, %v6745
        %v6747 = vpop.f32.mrb[0].mxu0
        %6748 = vmatprep.mubr.f32.mxu0 0.0
        %6749 = vmatmul.mubr.f32.gmra.mrb[0].mxu0 %v6167
        %v6750 = vpop.f32.mrb[0].mxu0
        %v6751 = vadd.f32 %v6223, %v6750
        %v6752 = vpop.f32.mrb[0].mxu0
        %6753 = vmatprep.mubr.f32.mxu0 0.0
        %6754 = vmatmul.mubr.f32.gmra.mrb[0].mxu0 %v6168
        %v6755 = vpop.f32.mrb[0].mxu0
        %v6756 = vadd.f32 %v6223, %v6755
        %v6757 = vpop.f32.mrb[0].mxu0
        %6758 = vmatprep.mubr.f32.mxu0 0.0
        %6759 = vmatmul.mubr.f32.gmra.mrb[0].mxu0 %v6169
        %v6760 = vpop.f32.mrb[0].mxu0
        %v6761 = vadd.f32 %v6223, %v6760
        %v6762 = vpop.f32.mrb[0].mxu0
        %6763 = vmatprep.mubr.f32.mxu0 0.0
        %6764 = vmatmul.mubr.f32.gmra.mrb[0].mxu0 %v6170
        %v6765 = vpop.f32.mrb[0].mxu0
        %v6766 = vadd.f32 %v6223, %v6765
        %v6767 = vpop.f32.mrb[0].mxu0
        %6768 = vmatprep.mubr.f32.mxu0 0.0
        %6769 = vmatmul.mubr.f32.gmra.mrb[0].mxu0 %v6171
        %v6770 = vpop.f32.mrb[0].mxu0
        %v6771 = vadd.f32 %v6223, %v6770
        %v6772 = vpop.f32.mrb[0].mxu0
        %6773 = vmatprep.mubr.f32.mxu0 0.0
        %6774 = vmatmul.mubr.f32.gmra.mrb[0].mxu0 %v6172
        %v6775 = vpop.f32.mrb[0].mxu0
        %v6776 = vadd.f32 %v6223, %v6775
        %v6777 = vpop.f32.mrb[0].mxu0
        %6778 = vmatprep.mubr.f32.mxu0 0.0
        %6779 = vmatmul.mubr.f32.gmra.mrb[0].mxu0 %v6173
        %v6780 = vpop.f32.mrb[0].mxu0
        %v6781 = vadd.f32 %v6223, %v6780
        %v6782 = vpop.f32.mrb[0].mxu0
        %6783 = vmatprep.mubr.f32.mxu0 0.0
        %6784 = vmatmul.mubr.f32.gmra.mrb[0].mxu0 %v6174
        %v6785 = vpop.f32.mrb[0].mxu0
        %v6786 = vadd.f32 %v6223, %v6785
        %v6787 = vpop.f32.mrb[0].mxu0
        %6788 = vmatprep.mubr.f32.mxu0 0.0
        %6789 = vmatmul.mubr.f32.gmra.mrb[0].mxu0 %v6175
        %v6790 = vpop.f32.mrb[0].mxu0
        %v6791 = vadd.f32 %v6223, %v6790
        %v6792 = vpop.f32.mrb[0].mxu0
        %6793 = vmatprep.mubr.f32.mxu0 0.0
        %6794 = vmatmul.mubr.f32.gmra.mrb[0].mxu0 %v6176
        %v6795 = vpop.f32.mrb[0].mxu0
        %v6796 = vadd.f32 %v6223, %v6795
        %v6797 = vpop.f32.mrb[0].mxu0
        %6798 = vmatprep.mubr.f32.mxu0 0.0
        %6799 = vmatmul.mubr.f32.gmra.mrb[0].mxu0 %v6177
        %v6800 = vpop.f32.mrb[0].mxu0
        %v6801 = vadd.f32 %v6223, %v6800
        %v6802 = vpop.f32.mrb[0].mxu0
        %6803 = vmatprep.mubr.f32.mxu0 0.0
        %6804 = vmatmul.mubr.f32.gmra.mrb[0].mxu0 %v6178
        %v6805 = vpop.f32.mrb[0].mxu0
        %v6806 = vadd.f32 %v6223, %v6805
        %v6807 = vpop.f32.mrb[0].mxu0
        %6808 = vmatprep.mubr.f32.mxu0 0.0
        %6809 = vmatmul.mubr.f32.gmra.mrb[0].mxu0 %v6179
        %v6810 = vpop.f32.mrb[0].mxu0
        %v6811 = vadd.f32 %v6223, %v6810
        %v6812 = vpop.f32.mrb[0].mxu0
        %6813 = vmatprep.mubr.f32.mxu0 0.0
        %6814 = vmatmul.mubr.f32.gmra.mrb[0].mxu0 %v6180
        %v6815 = vpop.f32.mrb[0].mxu0
        %v6816 = vadd.f32 %v6223, %v6815
        %v6817 = vpop.f32.mrb[0].mxu0
        %6818 = vmatprep.mubr.f32.mxu0 0.0
        %6819 = vmatmul.mubr.f32.gmra.mrb[0].mxu0 %v6181
        %v6820 = vpop.f32.mrb[0].mxu0
        %v6821 = vadd.f32 %v6223, %v6820
        %v6822 = vpop.f32.mrb[0].mxu0
        %6823 = vmatprep.mubr.f32.mxu0 0.0
        %6824 = vmatmul.mubr.f32.gmra.mrb[0].mxu0 %v6182
        %v6825 = vpop.f32.mrb[0].mxu0
        %v6826 = vadd.f32 %v6223, %v6825
        %v6827 = vpop.f32.mrb[0].mxu0
        %6828 = vmatprep.mubr.f32.mxu0 0.0
        %6829 = vmatmul.mubr.f32.gmra.mrb[0].mxu0 %v6183
        %v6830 = vpop.f32.mrb[0].mxu0
        %v6831 = vadd.f32 %v6223, %v6830
        %v6832 = vpop.f32.mrb[0].mxu0
        %6833 = vmatprep.mubr.f32.mxu0 0.0
        %6834 = vmatmul.mubr.f32.gmra.mrb[0].mxu0 %v6184
        %v6835 = vpop.f32.mrb[0].mxu0
        %v6836 = vadd.f32 %v6223, %v6835
        %v6837 = vpop.f32.mrb[0].mxu0
        %6838 = vmatprep.mubr.f32.mxu0 0.0
        %6839 = vmatmul.mubr.f32.gmra.mrb[0].mxu0 %v6185
        %v6840 = vpop.f32.mrb[0].mxu0
        %v6841 = vadd.f32 %v6223, %v6840
        %v6842 = vpop.f32.mrb[0].mxu0
        %6843 = vmatprep.mubr.f32.mxu0 0.0
        %6844 = vmatmul.mubr.f32.gmra.mrb[0].mxu0 %v6186
        %v6845 = vpop.f32.mrb[0].mxu0
        %v6846 = vadd.f32 %v6223, %v6845
        %v6847 = vpop.f32.mrb[0].mxu0
        %6848 = vmatprep.mubr.f32.mxu0 0.0
        %6849 = vmatmul.mubr.f32.gmra.mrb[0].mxu0 %v6187
        %v6850 = vpop.f32.mrb[0].mxu0
        %v6851 = vadd.f32 %v6223, %v6850
        %v6852 = vpop.f32.mrb[0].mxu0
        %6853 = vmatprep.mubr.f32.mxu0 0.0
        %6854 = vmatmul.mubr.f32.gmra.mrb[0].mxu0 %v6188
        %v6855 = vpop.f32.mrb[0].mxu0
        %v6856 = vadd.f32 %v6223, %v6855
        %v6857 = vpop.f32.mrb[0].mxu0
        %6858 = vmatprep.mubr.f32.mxu0 0.0
        %6859 = vmatmul.mubr.f32.gmra.mrb[0].mxu0 %v6189
        %v6860 = vpop.f32.mrb[0].mxu0
        %v6861 = vadd.f32 %v6223, %v6860
        %v6862 = vpop.f32.mrb[0].mxu0
        %6863 = vmatprep.mubr.f32.mxu0 0.0
        %6864 = vmatmul.mubr.f32.gmra.mrb[0].mxu0 %v6190
        %v6865 = vpop.f32.mrb[0].mxu0
        %v6866 = vadd.f32 %v6223, %v6865
        %v6867 = vpop.f32.mrb[0].mxu0
        %6868 = vmatprep.mubr.f32.mxu0 0.0
        %6869 = vmatmul.mubr.f32.gmra.mrb[0].mxu0 %v6191
        %v6870 = vpop.f32.mrb[0].mxu0
        %v6871 = vadd.f32 %v6223, %v6870
        %v6872 = vpop.f32.mrb[0].mxu0
        %6873 = vmatprep.mubr.f32.mxu0 0.0
        %6874 = vmatmul.mubr.f32.gmra.mrb[0].mxu0 %v6192
        %v6875 = vpop.f32.mrb[0].mxu0
        %v6876 = vadd.f32 %v6223, %v6875
        %v6877 = vpop.f32.mrb[0].mxu0
        %6878 = vmatprep.mubr.f32.mxu0 0.0
        %6879 = vmatmul.mubr.f32.gmra.mrb[0].mxu0 %v6193
        %v6880 = vpop.f32.mrb[0].mxu0
        %v6881 = vadd.f32 %v6223, %v6880
        %v6882 = vpop.f32.mrb[0].mxu0
        %6883 = vmatprep.mubr.f32.mxu0 0.0
        %6884 = vmatmul.mubr.f32.gmra.mrb[0].mxu0 %v6194
        %v6885 = vpop.f32.mrb[0].mxu0
        %v6886 = vadd.f32 %v6223, %v6885
        %v6887 = vpop.f32.mrb[0].mxu0
        %6888 = vmatprep.mubr.f32.mxu0 0.0
        %6889 = vmatmul.mubr.f32.gmra.mrb[0].mxu0 %v6195
        %v6890 = vpop.f32.mrb[0].mxu0
        %v6891 = vadd.f32 %v6223, %v6890
        %v6892 = vpop.f32.mrb[0].mxu0
        %6893 = vmatprep.mubr.f32.mxu0 0.0
        %6894 = vmatmul.mubr.f32.gmra.mrb[0].mxu0 %v6196
        %v6895 = vpop.f32.mrb[0].mxu0
        %v6896 = vadd.f32 %v6223, %v6895
        %v6897 = vpop.f32.mrb[0].mxu0
        %6898 = vmatprep.mubr.f32.mxu0 0.0
        %6899 = vmatmul.mubr.f32.gmra.mrb[0].mxu0 %v6197
        %v6900 = vpop.f32.mrb[0].mxu0
        %v6901 = vadd.f32 %v6223, %v6900
        %v6902 = vpop.f32.mrb[0].mxu0
        %6903 = vmatprep.mubr.f32.mxu0 0.0
        %6904 = vmatmul.mubr.f32.gmra.mrb[0].mxu0 %v6198
        %v6905 = vpop.f32.mrb[0].mxu0
        %v6906 = vadd.f32 %v6223, %v6905
        %v6907 = vpop.f32.mrb[0].mxu0
        %6908 = vmatprep.mubr.f32.mxu0 0.0
        %6909 = vmatmul.mubr.f32.gmra.mrb[0].mxu0 %v6199
        %v6910 = vpop.f32.mrb[0].mxu0
        %v6911 = vadd.f32 %v6223, %v6910
        %v6912 = vpop.f32.mrb[0].mxu0
        %6913 = vmatprep.mubr.f32.mxu0 0.0
        %6914 = vmatmul.mubr.f32.gmra.mrb[0].mxu0 %v6200
        %v6915 = vpop.f32.mrb[0].mxu0
        %v6916 = vadd.f32 %v6223, %v6915
        %v6917 = vpop.f32.mrb[0].mxu0
        %6918 = vmatprep.mubr.f32.mxu0 0.0
        %6919 = vmatmul.mubr.f32.gmra.mrb[0].mxu0 %v6201
        %v6920 = vpop.f32.mrb[0].mxu0
        %v6921 = vadd.f32 %v6223, %v6920
        %v6922 = vpop.f32.mrb[0].mxu0
        %6923 = vmatprep.mubr.f32.mxu0 0.0
        %6924 = vmatmul.mubr.f32.gmra.mrb[0].mxu0 %v6202
        %v6925 = vpop.f32.mrb[0].mxu0
        %v6926 = vadd.f32 %v6223, %v6925
        %v6927 = vpop.f32.mrb[0].mxu0
        %6928 = vdwg.mxu0
        %v6929 = vmul.f32 %v6291, %v6291
        %v6930 = vmul.f32 %v6296, %v6296
        %v6931 = vmul.f32 %v6301, %v6301
        %v6932 = vmul.f32 %v6306, %v6306
        %v6933 = vmul.f32 %v6311, %v6311
        %v6934 = vmul.f32 %v6316, %v6316
        %v6935 = vmul.f32 %v6321, %v6321
        %v6936 = vmul.f32 %v6326, %v6326
        %v6937 = vmul.f32 %v6331, %v6331
        %v6938 = vmul.f32 %v6336, %v6336
        %v6939 = vmul.f32 %v6341, %v6341
        %v6940 = vmul.f32 %v6346, %v6346
        %v6941 = vmul.f32 %v6351, %v6351
        %v6942 = vmul.f32 %v6356, %v6356
        %v6943 = vmul.f32 %v6361, %v6361
        %v6944 = vmul.f32 %v6366, %v6366
        %v6945 = vmul.f32 %v6371, %v6371
        %v6946 = vmul.f32 %v6376, %v6376
        %v6947 = vmul.f32 %v6381, %v6381
        %v6948 = vmul.f32 %v6386, %v6386
        %v6949 = vmul.f32 %v6391, %v6391
        %v6950 = vmul.f32 %v6396, %v6396
        %v6951 = vmul.f32 %v6401, %v6401
        %v6952 = vmul.f32 %v6406, %v6406
        %v6953 = vmul.f32 %v6411, %v6411
        %v6954 = vmul.f32 %v6416, %v6416
        %v6955 = vmul.f32 %v6421, %v6421
        %v6956 = vmul.f32 %v6426, %v6426
        %v6957 = vmul.f32 %v6431, %v6431
        %v6958 = vmul.f32 %v6436, %v6436
        %v6959 = vmul.f32 %v6441, %v6441
        %v6960 = vmul.f32 %v6446, %v6446
        %v6961 = vmul.f32 %v6451, %v6451
        %v6962 = vmul.f32 %v6456, %v6456
        %v6963 = vmul.f32 %v6461, %v6461
        %v6964 = vmul.f32 %v6466, %v6466
        %v6965 = vmul.f32 %v6471, %v6471
        %v6966 = vmul.f32 %v6476, %v6476
        %v6967 = vmul.f32 %v6481, %v6481
        %v6968 = vmul.f32 %v6486, %v6486
        %v6969 = vmul.f32 %v6491, %v6491
        %v6970 = vmul.f32 %v6496, %v6496
        %v6971 = vmul.f32 %v6501, %v6501
        %v6972 = vmul.f32 %v6506, %v6506
        %v6973 = vmul.f32 %v6511, %v6511
        %v6974 = vmul.f32 %v6516, %v6516
        %v6975 = vmul.f32 %v6521, %v6521
        %v6976 = vmul.f32 %v6526, %v6526
        %v6977 = vmul.f32 %v6531, %v6531
        %v6978 = vmul.f32 %v6536, %v6536
        %v6979 = vmul.f32 %v6541, %v6541
        %v6980 = vmul.f32 %v6546, %v6546
        %v6981 = vmul.f32 %v6551, %v6551
        %v6982 = vmul.f32 %v6556, %v6556
        %v6983 = vmul.f32 %v6561, %v6561
        %v6984 = vmul.f32 %v6566, %v6566
        %v6985 = vmul.f32 %v6571, %v6571
        %v6986 = vmul.f32 %v6576, %v6576
        %v6987 = vmul.f32 %v6581, %v6581
        %v6988 = vmul.f32 %v6586, %v6586
        %v6989 = vmul.f32 %v6591, %v6591
        %v6990 = vmul.f32 %v6596, %v6596
        %v6991 = vmul.f32 %v6601, %v6601
        %v6992 = vmul.f32 %v6606, %v6606
        %v6993 = vmul.f32 %v6611, %v6611
        %v6994 = vmul.f32 %v6616, %v6616
        %v6995 = vmul.f32 %v6621, %v6621
        %v6996 = vmul.f32 %v6626, %v6626
        %v6997 = vmul.f32 %v6631, %v6631
        %v6998 = vmul.f32 %v6636, %v6636
        %v6999 = vmul.f32 %v6641, %v6641
        %v7000 = vmul.f32 %v6646, %v6646
        %v7001 = vmul.f32 %v6651, %v6651
        %v7002 = vmul.f32 %v6656, %v6656
        %v7003 = vmul.f32 %v6661, %v6661
        %v7004 = vmul.f32 %v6666, %v6666
        %v7005 = vmul.f32 %v6671, %v6671
        %v7006 = vmul.f32 %v6676, %v6676
        %v7007 = vmul.f32 %v6681, %v6681
        %v7008 = vmul.f32 %v6686, %v6686
        %v7009 = vmul.f32 %v6691, %v6691
        %v7010 = vmul.f32 %v6696, %v6696
        %v7011 = vmul.f32 %v6701, %v6701
        %v7012 = vmul.f32 %v6706, %v6706
        %v7013 = vmul.f32 %v6711, %v6711
        %v7014 = vmul.f32 %v6716, %v6716
        %v7015 = vmul.f32 %v6721, %v6721
        %v7016 = vmul.f32 %v6726, %v6726
        %v7017 = vmul.f32 %v6731, %v6731
        %v7018 = vmul.f32 %v6736, %v6736
        %v7019 = vmul.f32 %v6741, %v6741
        %v7020 = vmul.f32 %v6746, %v6746
        %v7021 = vmul.f32 %v6751, %v6751
        %v7022 = vmul.f32 %v6756, %v6756
        %v7023 = vmul.f32 %v6761, %v6761
        %v7024 = vmul.f32 %v6766, %v6766
        %v7025 = vmul.f32 %v6771, %v6771
        %v7026 = vmul.f32 %v6776, %v6776
        %v7027 = vmul.f32 %v6781, %v6781
        %v7028 = vmul.f32 %v6786, %v6786
        %v7029 = vmul.f32 %v6791, %v6791
        %v7030 = vmul.f32 %v6796, %v6796
        %v7031 = vmul.f32 %v6801, %v6801
        %v7032 = vmul.f32 %v6806, %v6806
        %v7033 = vmul.f32 %v6811, %v6811
        %v7034 = vmul.f32 %v6816, %v6816
        %v7035 = vmul.f32 %v6821, %v6821
        %v7036 = vmul.f32 %v6826, %v6826
        %v7037 = vmul.f32 %v6831, %v6831
        %v7038 = vmul.f32 %v6836, %v6836
        %v7039 = vmul.f32 %v6841, %v6841
        %v7040 = vmul.f32 %v6846, %v6846
        %v7041 = vmul.f32 %v6851, %v6851
        %v7042 = vmul.f32 %v6856, %v6856
        %v7043 = vmul.f32 %v6861, %v6861
        %v7044 = vmul.f32 %v6866, %v6866
        %v7045 = vmul.f32 %v6871, %v6871
        %v7046 = vmul.f32 %v6876, %v6876
        %v7047 = vmul.f32 %v6881, %v6881
        %v7048 = vmul.f32 %v6886, %v6886
        %v7049 = vmul.f32 %v6891, %v6891
        %v7050 = vmul.f32 %v6896, %v6896
        %v7051 = vmul.f32 %v6901, %v6901
        %v7052 = vmul.f32 %v6906, %v6906
        %v7053 = vmul.f32 %v6911, %v6911
        %v7054 = vmul.f32 %v6916, %v6916
        %v7055 = vmul.f32 %v6921, %v6921
        %v7056 = vmul.f32 %v6926, %v6926
        %v7057 = vmul.f32 %v6929, %v6291
        %v7058 = vmul.f32 %v6930, %v6296
        %v7059 = vmul.f32 %v6931, %v6301
        %v7060 = vmul.f32 %v6932, %v6306
        %v7061 = vmul.f32 %v6933, %v6311
        %v7062 = vmul.f32 %v6934, %v6316
        %v7063 = vmul.f32 %v6935, %v6321
        %v7064 = vmul.f32 %v6936, %v6326
        %v7065 = vmul.f32 %v6937, %v6331
        %v7066 = vmul.f32 %v6938, %v6336
        %v7067 = vmul.f32 %v6939, %v6341
        %v7068 = vmul.f32 %v6940, %v6346
        %v7069 = vmul.f32 %v6941, %v6351
        %v7070 = vmul.f32 %v6942, %v6356
        %v7071 = vmul.f32 %v6943, %v6361
        %v7072 = vmul.f32 %v6944, %v6366
        %v7073 = vmul.f32 %v6945, %v6371
        %v7074 = vmul.f32 %v6946, %v6376
        %v7075 = vmul.f32 %v6947, %v6381
        %v7076 = vmul.f32 %v6948, %v6386
        %v7077 = vmul.f32 %v6949, %v6391
        %v7078 = vmul.f32 %v6950, %v6396
        %v7079 = vmul.f32 %v6951, %v6401
        %v7080 = vmul.f32 %v6952, %v6406
        %v7081 = vmul.f32 %v6953, %v6411
        %v7082 = vmul.f32 %v6954, %v6416
        %v7083 = vmul.f32 %v6955, %v6421
        %v7084 = vmul.f32 %v6956, %v6426
        %v7085 = vmul.f32 %v6957, %v6431
        %v7086 = vmul.f32 %v6958, %v6436
        %v7087 = vmul.f32 %v6959, %v6441
        %v7088 = vmul.f32 %v6960, %v6446
        %v7089 = vmul.f32 %v6961, %v6451
        %v7090 = vmul.f32 %v6962, %v6456
        %v7091 = vmul.f32 %v6963, %v6461
        %v7092 = vmul.f32 %v6964, %v6466
        %v7093 = vmul.f32 %v6965, %v6471
        %v7094 = vmul.f32 %v6966, %v6476
        %v7095 = vmul.f32 %v6967, %v6481
        %v7096 = vmul.f32 %v6968, %v6486
        %v7097 = vmul.f32 %v6969, %v6491
        %v7098 = vmul.f32 %v6970, %v6496
        %v7099 = vmul.f32 %v6971, %v6501
        %v7100 = vmul.f32 %v6972, %v6506
        %v7101 = vmul.f32 %v6973, %v6511
        %v7102 = vmul.f32 %v6974, %v6516
        %v7103 = vmul.f32 %v6975, %v6521
        %v7104 = vmul.f32 %v6976, %v6526
        %v7105 = vmul.f32 %v6977, %v6531
        %v7106 = vmul.f32 %v6978, %v6536
        %v7107 = vmul.f32 %v6979, %v6541
        %v7108 = vmul.f32 %v6980, %v6546
        %v7109 = vmul.f32 %v6981, %v6551
        %v7110 = vmul.f32 %v6982, %v6556
        %v7111 = vmul.f32 %v6983, %v6561
        %v7112 = vmul.f32 %v6984, %v6566
        %v7113 = vmul.f32 %v6985, %v6571
        %v7114 = vmul.f32 %v6986, %v6576
        %v7115 = vmul.f32 %v6987, %v6581
        %v7116 = vmul.f32 %v6988, %v6586
        %v7117 = vmul.f32 %v6989, %v6591
        %v7118 = vmul.f32 %v6990, %v6596
        %v7119 = vmul.f32 %v6991, %v6601
        %v7120 = vmul.f32 %v6992, %v6606
        %v7121 = vmul.f32 %v6993, %v6611
        %v7122 = vmul.f32 %v6994, %v6616
        %v7123 = vmul.f32 %v6995, %v6621
        %v7124 = vmul.f32 %v6996, %v6626
        %v7125 = vmul.f32 %v6997, %v6631
        %v7126 = vmul.f32 %v6998, %v6636
        %v7127 = vmul.f32 %v6999, %v6641
        %v7128 = vmul.f32 %v7000, %v6646
        %v7129 = vmul.f32 %v7001, %v6651
        %v7130 = vmul.f32 %v7002, %v6656
        %v7131 = vmul.f32 %v7003, %v6661
        %v7132 = vmul.f32 %v7004, %v6666
        %v7133 = vmul.f32 %v7005, %v6671
        %v7134 = vmul.f32 %v7006, %v6676
        %v7135 = vmul.f32 %v7007, %v6681
        %v7136 = vmul.f32 %v7008, %v6686
        %v7137 = vmul.f32 %v7009, %v6691
        %v7138 = vmul.f32 %v7010, %v6696
        %v7139 = vmul.f32 %v7011, %v6701
        %v7140 = vmul.f32 %v7012, %v6706
        %v7141 = vmul.f32 %v7013, %v6711
        %v7142 = vmul.f32 %v7014, %v6716
        %v7143 = vmul.f32 %v7015, %v6721
        %v7144 = vmul.f32 %v7016, %v6726
        %v7145 = vmul.f32 %v7017, %v6731
        %v7146 = vmul.f32 %v7018, %v6736
        %v7147 = vmul.f32 %v7019, %v6741
        %v7148 = vmul.f32 %v7020, %v6746
        %v7149 = vmul.f32 %v7021, %v6751
        %v7150 = vmul.f32 %v7022, %v6756
        %v7151 = vmul.f32 %v7023, %v6761
        %v7152 = vmul.f32 %v7024, %v6766
        %v7153 = vmul.f32 %v7025, %v6771
        %v7154 = vmul.f32 %v7026, %v6776
        %v7155 = vmul.f32 %v7027, %v6781
        %v7156 = vmul.f32 %v7028, %v6786
        %v7157 = vmul.f32 %v7029, %v6791
        %v7158 = vmul.f32 %v7030, %v6796
        %v7159 = vmul.f32 %v7031, %v6801
        %v7160 = vmul.f32 %v7032, %v6806
        %v7161 = vmul.f32 %v7033, %v6811
        %v7162 = vmul.f32 %v7034, %v6816
        %v7163 = vmul.f32 %v7035, %v6821
        %v7164 = vmul.f32 %v7036, %v6826
        %v7165 = vmul.f32 %v7037, %v6831
        %v7166 = vmul.f32 %v7038, %v6836
        %v7167 = vmul.f32 %v7039, %v6841
        %v7168 = vmul.f32 %v7040, %v6846
        %v7169 = vmul.f32 %v7041, %v6851
        %v7170 = vmul.f32 %v7042, %v6856
        %v7171 = vmul.f32 %v7043, %v6861
        %v7172 = vmul.f32 %v7044, %v6866
        %v7173 = vmul.f32 %v7045, %v6871
        %v7174 = vmul.f32 %v7046, %v6876
        %v7175 = vmul.f32 %v7047, %v6881
        %v7176 = vmul.f32 %v7048, %v6886
        %v7177 = vmul.f32 %v7049, %v6891
        %v7178 = vmul.f32 %v7050, %v6896
        %v7179 = vmul.f32 %v7051, %v6901
        %v7180 = vmul.f32 %v7052, %v6906
        %v7181 = vmul.f32 %v7053, %v6911
        %v7182 = vmul.f32 %v7054, %v6916
        %v7183 = vmul.f32 %v7055, %v6921
        %v7184 = vmul.f32 %v7056, %v6926
        %v7185 = vmul.f32 %v7057, 0.044715
        %v7186 = vmul.f32 %v7058, 0.044715
        %v7187 = vmul.f32 %v7059, 0.044715
        %v7188 = vmul.f32 %v7060, 0.044715
        %v7189 = vmul.f32 %v7061, 0.044715
        %v7190 = vmul.f32 %v7062, 0.044715
        %v7191 = vmul.f32 %v7063, 0.044715
        %v7192 = vmul.f32 %v7064, 0.044715
        %v7193 = vmul.f32 %v7065, 0.044715
        %v7194 = vmul.f32 %v7066, 0.044715
        %v7195 = vmul.f32 %v7067, 0.044715
        %v7196 = vmul.f32 %v7068, 0.044715
        %v7197 = vmul.f32 %v7069, 0.044715
        %v7198 = vmul.f32 %v7070, 0.044715
        %v7199 = vmul.f32 %v7071, 0.044715
        %v7200 = vmul.f32 %v7072, 0.044715
        %v7201 = vmul.f32 %v7073, 0.044715
        %v7202 = vmul.f32 %v7074, 0.044715
        %v7203 = vmul.f32 %v7075, 0.044715
        %v7204 = vmul.f32 %v7076, 0.044715
        %v7205 = vmul.f32 %v7077, 0.044715
        %v7206 = vmul.f32 %v7078, 0.044715
        %v7207 = vmul.f32 %v7079, 0.044715
        %v7208 = vmul.f32 %v7080, 0.044715
        %v7209 = vmul.f32 %v7081, 0.044715
        %v7210 = vmul.f32 %v7082, 0.044715
        %v7211 = vmul.f32 %v7083, 0.044715
        %v7212 = vmul.f32 %v7084, 0.044715
        %v7213 = vmul.f32 %v7085, 0.044715
        %v7214 = vmul.f32 %v7086, 0.044715
        %v7215 = vmul.f32 %v7087, 0.044715
        %v7216 = vmul.f32 %v7088, 0.044715
        %v7217 = vmul.f32 %v7089, 0.044715
        %v7218 = vmul.f32 %v7090, 0.044715
        %v7219 = vmul.f32 %v7091, 0.044715
        %v7220 = vmul.f32 %v7092, 0.044715
        %v7221 = vmul.f32 %v7093, 0.044715
        %v7222 = vmul.f32 %v7094, 0.044715
        %v7223 = vmul.f32 %v7095, 0.044715
        %v7224 = vmul.f32 %v7096, 0.044715
        %v7225 = vmul.f32 %v7097, 0.044715
        %v7226 = vmul.f32 %v7098, 0.044715
        %v7227 = vmul.f32 %v7099, 0.044715
        %v7228 = vmul.f32 %v7100, 0.044715
        %v7229 = vmul.f32 %v7101, 0.044715
        %v7230 = vmul.f32 %v7102, 0.044715
        %v7231 = vmul.f32 %v7103, 0.044715
        %v7232 = vmul.f32 %v7104, 0.044715
        %v7233 = vmul.f32 %v7105, 0.044715
        %v7234 = vmul.f32 %v7106, 0.044715
        %v7235 = vmul.f32 %v7107, 0.044715
        %v7236 = vmul.f32 %v7108, 0.044715
        %v7237 = vmul.f32 %v7109, 0.044715
        %v7238 = vmul.f32 %v7110, 0.044715
        %v7239 = vmul.f32 %v7111, 0.044715
        %v7240 = vmul.f32 %v7112, 0.044715
        %v7241 = vmul.f32 %v7113, 0.044715
        %v7242 = vmul.f32 %v7114, 0.044715
        %v7243 = vmul.f32 %v7115, 0.044715
        %v7244 = vmul.f32 %v7116, 0.044715
        %v7245 = vmul.f32 %v7117, 0.044715
        %v7246 = vmul.f32 %v7118, 0.044715
        %v7247 = vmul.f32 %v7119, 0.044715
        %v7248 = vmul.f32 %v7120, 0.044715
        %v7249 = vmul.f32 %v7121, 0.044715
        %v7250 = vmul.f32 %v7122, 0.044715
        %v7251 = vmul.f32 %v7123, 0.044715
        %v7252 = vmul.f32 %v7124, 0.044715
        %v7253 = vmul.f32 %v7125, 0.044715
        %v7254 = vmul.f32 %v7126, 0.044715
        %v7255 = vmul.f32 %v7127, 0.044715
        %v7256 = vmul.f32 %v7128, 0.044715
        %v7257 = vmul.f32 %v7129, 0.044715
        %v7258 = vmul.f32 %v7130, 0.044715
        %v7259 = vmul.f32 %v7131, 0.044715
        %v7260 = vmul.f32 %v7132, 0.044715
        %v7261 = vmul.f32 %v7133, 0.044715
        %v7262 = vmul.f32 %v7134, 0.044715
        %v7263 = vmul.f32 %v7135, 0.044715
        %v7264 = vmul.f32 %v7136, 0.044715
        %v7265 = vmul.f32 %v7137, 0.044715
        %v7266 = vmul.f32 %v7138, 0.044715
        %v7267 = vmul.f32 %v7139, 0.044715
        %v7268 = vmul.f32 %v7140, 0.044715
        %v7269 = vmul.f32 %v7141, 0.044715
        %v7270 = vmul.f32 %v7142, 0.044715
        %v7271 = vmul.f32 %v7143, 0.044715
        %v7272 = vmul.f32 %v7144, 0.044715
        %v7273 = vmul.f32 %v7145, 0.044715
        %v7274 = vmul.f32 %v7146, 0.044715
        %v7275 = vmul.f32 %v7147, 0.044715
        %v7276 = vmul.f32 %v7148, 0.044715
        %v7277 = vmul.f32 %v7149, 0.044715
        %v7278 = vmul.f32 %v7150, 0.044715
        %v7279 = vmul.f32 %v7151, 0.044715
        %v7280 = vmul.f32 %v7152, 0.044715
        %v7281 = vmul.f32 %v7153, 0.044715
        %v7282 = vmul.f32 %v7154, 0.044715
        %v7283 = vmul.f32 %v7155, 0.044715
        %v7284 = vmul.f32 %v7156, 0.044715
        %v7285 = vmul.f32 %v7157, 0.044715
        %v7286 = vmul.f32 %v7158, 0.044715
        %v7287 = vmul.f32 %v7159, 0.044715
        %v7288 = vmul.f32 %v7160, 0.044715
        %v7289 = vmul.f32 %v7161, 0.044715
        %v7290 = vmul.f32 %v7162, 0.044715
        %v7291 = vmul.f32 %v7163, 0.044715
        %v7292 = vmul.f32 %v7164, 0.044715
        %v7293 = vmul.f32 %v7165, 0.044715
        %v7294 = vmul.f32 %v7166, 0.044715
        %v7295 = vmul.f32 %v7167, 0.044715
        %v7296 = vmul.f32 %v7168, 0.044715
        %v7297 = vmul.f32 %v7169, 0.044715
        %v7298 = vmul.f32 %v7170, 0.044715
        %v7299 = vmul.f32 %v7171, 0.044715
        %v7300 = vmul.f32 %v7172, 0.044715
        %v7301 = vmul.f32 %v7173, 0.044715
        %v7302 = vmul.f32 %v7174, 0.044715
        %v7303 = vmul.f32 %v7175, 0.044715
        %v7304 = vmul.f32 %v7176, 0.044715
        %v7305 = vmul.f32 %v7177, 0.044715
        %v7306 = vmul.f32 %v7178, 0.044715
        %v7307 = vmul.f32 %v7179, 0.044715
        %v7308 = vmul.f32 %v7180, 0.044715
        %v7309 = vmul.f32 %v7181, 0.044715
        %v7310 = vmul.f32 %v7182, 0.044715
        %v7311 = vmul.f32 %v7183, 0.044715
        %v7312 = vmul.f32 %v7184, 0.044715
        %v7313 = vadd.f32 %v6291, %v7185
        %v7314 = vadd.f32 %v6296, %v7186
        %v7315 = vadd.f32 %v6301, %v7187
        %v7316 = vadd.f32 %v6306, %v7188
        %v7317 = vadd.f32 %v6311, %v7189
        %v7318 = vadd.f32 %v6316, %v7190
        %v7319 = vadd.f32 %v6321, %v7191
        %v7320 = vadd.f32 %v6326, %v7192
        %v7321 = vadd.f32 %v6331, %v7193
        %v7322 = vadd.f32 %v6336, %v7194
        %v7323 = vadd.f32 %v6341, %v7195
        %v7324 = vadd.f32 %v6346, %v7196
        %v7325 = vadd.f32 %v6351, %v7197
        %v7326 = vadd.f32 %v6356, %v7198
        %v7327 = vadd.f32 %v6361, %v7199
        %v7328 = vadd.f32 %v6366, %v7200
        %v7329 = vadd.f32 %v6371, %v7201
        %v7330 = vadd.f32 %v6376, %v7202
        %v7331 = vadd.f32 %v6381, %v7203
        %v7332 = vadd.f32 %v6386, %v7204
        %v7333 = vadd.f32 %v6391, %v7205
        %v7334 = vadd.f32 %v6396, %v7206
        %v7335 = vadd.f32 %v6401, %v7207
        %v7336 = vadd.f32 %v6406, %v7208
        %v7337 = vadd.f32 %v6411, %v7209
        %v7338 = vadd.f32 %v6416, %v7210
        %v7339 = vadd.f32 %v6421, %v7211
        %v7340 = vadd.f32 %v6426, %v7212
        %v7341 = vadd.f32 %v6431, %v7213
        %v7342 = vadd.f32 %v6436, %v7214
        %v7343 = vadd.f32 %v6441, %v7215
        %v7344 = vadd.f32 %v6446, %v7216
        %v7345 = vadd.f32 %v6451, %v7217
        %v7346 = vadd.f32 %v6456, %v7218
        %v7347 = vadd.f32 %v6461, %v7219
        %v7348 = vadd.f32 %v6466, %v7220
        %v7349 = vadd.f32 %v6471, %v7221
        %v7350 = vadd.f32 %v6476, %v7222
        %v7351 = vadd.f32 %v6481, %v7223
        %v7352 = vadd.f32 %v6486, %v7224
        %v7353 = vadd.f32 %v6491, %v7225
        %v7354 = vadd.f32 %v6496, %v7226
        %v7355 = vadd.f32 %v6501, %v7227
        %v7356 = vadd.f32 %v6506, %v7228
        %v7357 = vadd.f32 %v6511, %v7229
        %v7358 = vadd.f32 %v6516, %v7230
        %v7359 = vadd.f32 %v6521, %v7231
        %v7360 = vadd.f32 %v6526, %v7232
        %v7361 = vadd.f32 %v6531, %v7233
        %v7362 = vadd.f32 %v6536, %v7234
        %v7363 = vadd.f32 %v6541, %v7235
        %v7364 = vadd.f32 %v6546, %v7236
        %v7365 = vadd.f32 %v6551, %v7237
        %v7366 = vadd.f32 %v6556, %v7238
        %v7367 = vadd.f32 %v6561, %v7239
        %v7368 = vadd.f32 %v6566, %v7240
        %v7369 = vadd.f32 %v6571, %v7241
        %v7370 = vadd.f32 %v6576, %v7242
        %v7371 = vadd.f32 %v6581, %v7243
        %v7372 = vadd.f32 %v6586, %v7244
        %v7373 = vadd.f32 %v6591, %v7245
        %v7374 = vadd.f32 %v6596, %v7246
        %v7375 = vadd.f32 %v6601, %v7247
        %v7376 = vadd.f32 %v6606, %v7248
        %v7377 = vadd.f32 %v6611, %v7249
        %v7378 = vadd.f32 %v6616, %v7250
        %v7379 = vadd.f32 %v6621, %v7251
        %v7380 = vadd.f32 %v6626, %v7252
        %v7381 = vadd.f32 %v6631, %v7253
        %v7382 = vadd.f32 %v6636, %v7254
        %v7383 = vadd.f32 %v6641, %v7255
        %v7384 = vadd.f32 %v6646, %v7256
        %v7385 = vadd.f32 %v6651, %v7257
        %v7386 = vadd.f32 %v6656, %v7258
        %v7387 = vadd.f32 %v6661, %v7259
        %v7388 = vadd.f32 %v6666, %v7260
        %v7389 = vadd.f32 %v6671, %v7261
        %v7390 = vadd.f32 %v6676, %v7262
        %v7391 = vadd.f32 %v6681, %v7263
        %v7392 = vadd.f32 %v6686, %v7264
        %v7393 = vadd.f32 %v6691, %v7265
        %v7394 = vadd.f32 %v6696, %v7266
        %v7395 = vadd.f32 %v6701, %v7267
        %v7396 = vadd.f32 %v6706, %v7268
        %v7397 = vadd.f32 %v6711, %v7269
        %v7398 = vadd.f32 %v6716, %v7270
        %v7399 = vadd.f32 %v6721, %v7271
        %v7400 = vadd.f32 %v6726, %v7272
        %v7401 = vadd.f32 %v6731, %v7273
        %v7402 = vadd.f32 %v6736, %v7274
        %v7403 = vadd.f32 %v6741, %v7275
        %v7404 = vadd.f32 %v6746, %v7276
        %v7405 = vadd.f32 %v6751, %v7277
        %v7406 = vadd.f32 %v6756, %v7278
        %v7407 = vadd.f32 %v6761, %v7279
        %v7408 = vadd.f32 %v6766, %v7280
        %v7409 = vadd.f32 %v6771, %v7281
        %v7410 = vadd.f32 %v6776, %v7282
        %v7411 = vadd.f32 %v6781, %v7283
        %v7412 = vadd.f32 %v6786, %v7284
        %v7413 = vadd.f32 %v6791, %v7285
        %v7414 = vadd.f32 %v6796, %v7286
        %v7415 = vadd.f32 %v6801, %v7287
        %v7416 = vadd.f32 %v6806, %v7288
        %v7417 = vadd.f32 %v6811, %v7289
        %v7418 = vadd.f32 %v6816, %v7290
        %v7419 = vadd.f32 %v6821, %v7291
        %v7420 = vadd.f32 %v6826, %v7292
        %v7421 = vadd.f32 %v6831, %v7293
        %v7422 = vadd.f32 %v6836, %v7294
        %v7423 = vadd.f32 %v6841, %v7295
        %v7424 = vadd.f32 %v6846, %v7296
        %v7425 = vadd.f32 %v6851, %v7297
        %v7426 = vadd.f32 %v6856, %v7298
        %v7427 = vadd.f32 %v6861, %v7299
        %v7428 = vadd.f32 %v6866, %v7300
        %v7429 = vadd.f32 %v6871, %v7301
        %v7430 = vadd.f32 %v6876, %v7302
        %v7431 = vadd.f32 %v6881, %v7303
        %v7432 = vadd.f32 %v6886, %v7304
        %v7433 = vadd.f32 %v6891, %v7305
        %v7434 = vadd.f32 %v6896, %v7306
        %v7435 = vadd.f32 %v6901, %v7307
        %v7436 = vadd.f32 %v6906, %v7308
        %v7437 = vadd.f32 %v6911, %v7309
        %v7438 = vadd.f32 %v6916, %v7310
        %v7439 = vadd.f32 %v6921, %v7311
        %v7440 = vadd.f32 %v6926, %v7312
        %v7441 = vmul.f32 %v7313, 0.7978846
        %v7442 = vmul.f32 %v7314, 0.7978846
        %v7443 = vmul.f32 %v7315, 0.7978846
        %v7444 = vmul.f32 %v7316, 0.7978846
        %v7445 = vmul.f32 %v7317, 0.7978846
        %v7446 = vmul.f32 %v7318, 0.7978846
        %v7447 = vmul.f32 %v7319, 0.7978846
        %v7448 = vmul.f32 %v7320, 0.7978846
        %v7449 = vmul.f32 %v7321, 0.7978846
        %v7450 = vmul.f32 %v7322, 0.7978846
        %v7451 = vmul.f32 %v7323, 0.7978846
        %v7452 = vmul.f32 %v7324, 0.7978846
        %v7453 = vmul.f32 %v7325, 0.7978846
        %v7454 = vmul.f32 %v7326, 0.7978846
        %v7455 = vmul.f32 %v7327, 0.7978846
        %v7456 = vmul.f32 %v7328, 0.7978846
        %v7457 = vmul.f32 %v7329, 0.7978846
        %v7458 = vmul.f32 %v7330, 0.7978846
        %v7459 = vmul.f32 %v7331, 0.7978846
        %v7460 = vmul.f32 %v7332, 0.7978846
        %v7461 = vmul.f32 %v7333, 0.7978846
        %v7462 = vmul.f32 %v7334, 0.7978846
        %v7463 = vmul.f32 %v7335, 0.7978846
        %v7464 = vmul.f32 %v7336, 0.7978846
        %v7465 = vmul.f32 %v7337, 0.7978846
        %v7466 = vmul.f32 %v7338, 0.7978846
        %v7467 = vmul.f32 %v7339, 0.7978846
        %v7468 = vmul.f32 %v7340, 0.7978846
        %v7469 = vmul.f32 %v7341, 0.7978846
        %v7470 = vmul.f32 %v7342, 0.7978846
        %v7471 = vmul.f32 %v7343, 0.7978846
        %v7472 = vmul.f32 %v7344, 0.7978846
        %v7473 = vmul.f32 %v7345, 0.7978846
        %v7474 = vmul.f32 %v7346, 0.7978846
        %v7475 = vmul.f32 %v7347, 0.7978846
        %v7476 = vmul.f32 %v7348, 0.7978846
        %v7477 = vmul.f32 %v7349, 0.7978846
        %v7478 = vmul.f32 %v7350, 0.7978846
        %v7479 = vmul.f32 %v7351, 0.7978846
        %v7480 = vmul.f32 %v7352, 0.7978846
        %v7481 = vmul.f32 %v7353, 0.7978846
        %v7482 = vmul.f32 %v7354, 0.7978846
        %v7483 = vmul.f32 %v7355, 0.7978846
        %v7484 = vmul.f32 %v7356, 0.7978846
        %v7485 = vmul.f32 %v7357, 0.7978846
        %v7486 = vmul.f32 %v7358, 0.7978846
        %v7487 = vmul.f32 %v7359, 0.7978846
        %v7488 = vmul.f32 %v7360, 0.7978846
        %v7489 = vmul.f32 %v7361, 0.7978846
        %v7490 = vmul.f32 %v7362, 0.7978846
        %v7491 = vmul.f32 %v7363, 0.7978846
        %v7492 = vmul.f32 %v7364, 0.7978846
        %v7493 = vmul.f32 %v7365, 0.7978846
        %v7494 = vmul.f32 %v7366, 0.7978846
        %v7495 = vmul.f32 %v7367, 0.7978846
        %v7496 = vmul.f32 %v7368, 0.7978846
        %v7497 = vmul.f32 %v7369, 0.7978846
        %v7498 = vmul.f32 %v7370, 0.7978846
        %v7499 = vmul.f32 %v7371, 0.7978846
        %v7500 = vmul.f32 %v7372, 0.7978846
        %v7501 = vmul.f32 %v7373, 0.7978846
        %v7502 = vmul.f32 %v7374, 0.7978846
        %v7503 = vmul.f32 %v7375, 0.7978846
        %v7504 = vmul.f32 %v7376, 0.7978846
        %v7505 = vmul.f32 %v7377, 0.7978846
        %v7506 = vmul.f32 %v7378, 0.7978846
        %v7507 = vmul.f32 %v7379, 0.7978846
        %v7508 = vmul.f32 %v7380, 0.7978846
        %v7509 = vmul.f32 %v7381, 0.7978846
        %v7510 = vmul.f32 %v7382, 0.7978846
        %v7511 = vmul.f32 %v7383, 0.7978846
        %v7512 = vmul.f32 %v7384, 0.7978846
        %v7513 = vmul.f32 %v7385, 0.7978846
        %v7514 = vmul.f32 %v7386, 0.7978846
        %v7515 = vmul.f32 %v7387, 0.7978846
        %v7516 = vmul.f32 %v7388, 0.7978846
        %v7517 = vmul.f32 %v7389, 0.7978846
        %v7518 = vmul.f32 %v7390, 0.7978846
        %v7519 = vmul.f32 %v7391, 0.7978846
        %v7520 = vmul.f32 %v7392, 0.7978846
        %v7521 = vmul.f32 %v7393, 0.7978846
        %v7522 = vmul.f32 %v7394, 0.7978846
        %v7523 = vmul.f32 %v7395, 0.7978846
        %v7524 = vmul.f32 %v7396, 0.7978846
        %v7525 = vmul.f32 %v7397, 0.7978846
        %v7526 = vmul.f32 %v7398, 0.7978846
        %v7527 = vmul.f32 %v7399, 0.7978846
        %v7528 = vmul.f32 %v7400, 0.7978846
        %v7529 = vmul.f32 %v7401, 0.7978846
        %v7530 = vmul.f32 %v7402, 0.7978846
        %v7531 = vmul.f32 %v7403, 0.7978846
        %v7532 = vmul.f32 %v7404, 0.7978846
        %v7533 = vmul.f32 %v7405, 0.7978846
        %v7534 = vmul.f32 %v7406, 0.7978846
        %v7535 = vmul.f32 %v7407, 0.7978846
        %v7536 = vmul.f32 %v7408, 0.7978846
        %v7537 = vmul.f32 %v7409, 0.7978846
        %v7538 = vmul.f32 %v7410, 0.7978846
        %v7539 = vmul.f32 %v7411, 0.7978846
        %v7540 = vmul.f32 %v7412, 0.7978846
        %v7541 = vmul.f32 %v7413, 0.7978846
        %v7542 = vmul.f32 %v7414, 0.7978846
        %v7543 = vmul.f32 %v7415, 0.7978846
        %v7544 = vmul.f32 %v7416, 0.7978846
        %v7545 = vmul.f32 %v7417, 0.7978846
        %v7546 = vmul.f32 %v7418, 0.7978846
        %v7547 = vmul.f32 %v7419, 0.7978846
        %v7548 = vmul.f32 %v7420, 0.7978846
        %v7549 = vmul.f32 %v7421, 0.7978846
        %v7550 = vmul.f32 %v7422, 0.7978846
        %v7551 = vmul.f32 %v7423, 0.7978846
        %v7552 = vmul.f32 %v7424, 0.7978846
        %v7553 = vmul.f32 %v7425, 0.7978846
        %v7554 = vmul.f32 %v7426, 0.7978846
        %v7555 = vmul.f32 %v7427, 0.7978846
        %v7556 = vmul.f32 %v7428, 0.7978846
        %v7557 = vmul.f32 %v7429, 0.7978846
        %v7558 = vmul.f32 %v7430, 0.7978846
        %v7559 = vmul.f32 %v7431, 0.7978846
        %v7560 = vmul.f32 %v7432, 0.7978846
        %v7561 = vmul.f32 %v7433, 0.7978846
        %v7562 = vmul.f32 %v7434, 0.7978846
        %v7563 = vmul.f32 %v7435, 0.7978846
        %v7564 = vmul.f32 %v7436, 0.7978846
        %v7565 = vmul.f32 %v7437, 0.7978846
        %v7566 = vmul.f32 %v7438, 0.7978846
        %v7567 = vmul.f32 %v7439, 0.7978846
        %v7568 = vmul.f32 %v7440, 0.7978846
        %v7569 = vmul.f32 %v6291, 0.5
        %v7570 = vmul.f32 %v6296, 0.5
        %v7571 = vmul.f32 %v6301, 0.5
        %v7572 = vmul.f32 %v6306, 0.5
        %v7573 = vmul.f32 %v6311, 0.5
        %v7574 = vmul.f32 %v6316, 0.5
        %v7575 = vmul.f32 %v6321, 0.5
        %v7576 = vmul.f32 %v6326, 0.5
        %v7577 = vmul.f32 %v6331, 0.5
        %v7578 = vmul.f32 %v6336, 0.5
        %v7579 = vmul.f32 %v6341, 0.5
        %v7580 = vmul.f32 %v6346, 0.5
        %v7581 = vmul.f32 %v6351, 0.5
        %v7582 = vmul.f32 %v6356, 0.5
        %v7583 = vmul.f32 %v6361, 0.5
        %v7584 = vmul.f32 %v6366, 0.5
        %v7585 = vmul.f32 %v6371, 0.5
        %v7586 = vmul.f32 %v6376, 0.5
        %v7587 = vmul.f32 %v6381, 0.5
        %v7588 = vmul.f32 %v6386, 0.5
        %v7589 = vmul.f32 %v6391, 0.5
        %v7590 = vmul.f32 %v6396, 0.5
        %v7591 = vmul.f32 %v6401, 0.5
        %v7592 = vmul.f32 %v6406, 0.5
        %v7593 = vmul.f32 %v6411, 0.5
        %v7594 = vmul.f32 %v6416, 0.5
        %v7595 = vmul.f32 %v6421, 0.5
        %v7596 = vmul.f32 %v6426, 0.5
        %v7597 = vmul.f32 %v6431, 0.5
        %v7598 = vmul.f32 %v6436, 0.5
        %v7599 = vmul.f32 %v6441, 0.5
        %v7600 = vmul.f32 %v6446, 0.5
        %v7601 = vmul.f32 %v6451, 0.5
        %v7602 = vmul.f32 %v6456, 0.5
        %v7603 = vmul.f32 %v6461, 0.5
        %v7604 = vmul.f32 %v6466, 0.5
        %v7605 = vmul.f32 %v6471, 0.5
        %v7606 = vmul.f32 %v6476, 0.5
        %v7607 = vmul.f32 %v6481, 0.5
        %v7608 = vmul.f32 %v6486, 0.5
        %v7609 = vmul.f32 %v6491, 0.5
        %v7610 = vmul.f32 %v6496, 0.5
        %v7611 = vmul.f32 %v6501, 0.5
        %v7612 = vmul.f32 %v6506, 0.5
        %v7613 = vmul.f32 %v6511, 0.5
        %v7614 = vmul.f32 %v6516, 0.5
        %v7615 = vmul.f32 %v6521, 0.5
        %v7616 = vmul.f32 %v6526, 0.5
        %v7617 = vmul.f32 %v6531, 0.5
        %v7618 = vmul.f32 %v6536, 0.5
        %v7619 = vmul.f32 %v6541, 0.5
        %v7620 = vmul.f32 %v6546, 0.5
        %v7621 = vmul.f32 %v6551, 0.5
        %v7622 = vmul.f32 %v6556, 0.5
        %v7623 = vmul.f32 %v6561, 0.5
        %v7624 = vmul.f32 %v6566, 0.5
        %v7625 = vmul.f32 %v6571, 0.5
        %v7626 = vmul.f32 %v6576, 0.5
        %v7627 = vmul.f32 %v6581, 0.5
        %v7628 = vmul.f32 %v6586, 0.5
        %v7629 = vmul.f32 %v6591, 0.5
        %v7630 = vmul.f32 %v6596, 0.5
        %v7631 = vmul.f32 %v6601, 0.5
        %v7632 = vmul.f32 %v6606, 0.5
        %v7633 = vmul.f32 %v6611, 0.5
        %v7634 = vmul.f32 %v6616, 0.5
        %v7635 = vmul.f32 %v6621, 0.5
        %v7636 = vmul.f32 %v6626, 0.5
        %v7637 = vmul.f32 %v6631, 0.5
        %v7638 = vmul.f32 %v6636, 0.5
        %v7639 = vmul.f32 %v6641, 0.5
        %v7640 = vmul.f32 %v6646, 0.5
        %v7641 = vmul.f32 %v6651, 0.5
        %v7642 = vmul.f32 %v6656, 0.5
        %v7643 = vmul.f32 %v6661, 0.5
        %v7644 = vmul.f32 %v6666, 0.5
        %v7645 = vmul.f32 %v6671, 0.5
        %v7646 = vmul.f32 %v6676, 0.5
        %v7647 = vmul.f32 %v6681, 0.5
        %v7648 = vmul.f32 %v6686, 0.5
        %v7649 = vmul.f32 %v6691, 0.5
        %v7650 = vmul.f32 %v6696, 0.5
        %v7651 = vmul.f32 %v6701, 0.5
        %v7652 = vmul.f32 %v6706, 0.5
        %v7653 = vmul.f32 %v6711, 0.5
        %v7654 = vmul.f32 %v6716, 0.5
        %v7655 = vmul.f32 %v6721, 0.5
        %v7656 = vmul.f32 %v6726, 0.5
        %v7657 = vmul.f32 %v6731, 0.5
        %v7658 = vmul.f32 %v6736, 0.5
        %v7659 = vmul.f32 %v6741, 0.5
        %v7660 = vmul.f32 %v6746, 0.5
        %v7661 = vmul.f32 %v6751, 0.5
        %v7662 = vmul.f32 %v6756, 0.5
        %v7663 = vmul.f32 %v6761, 0.5
        %v7664 = vmul.f32 %v6766, 0.5
        %v7665 = vmul.f32 %v6771, 0.5
        %v7666 = vmul.f32 %v6776, 0.5
        %v7667 = vmul.f32 %v6781, 0.5
        %v7668 = vmul.f32 %v6786, 0.5
        %v7669 = vmul.f32 %v6791, 0.5
        %v7670 = vmul.f32 %v6796, 0.5
        %v7671 = vmul.f32 %v6801, 0.5
        %v7672 = vmul.f32 %v6806, 0.5
        %v7673 = vmul.f32 %v6811, 0.5
        %v7674 = vmul.f32 %v6816, 0.5
        %v7675 = vmul.f32 %v6821, 0.5
        %v7676 = vmul.f32 %v6826, 0.5
        %v7677 = vmul.f32 %v6831, 0.5
        %v7678 = vmul.f32 %v6836, 0.5
        %v7679 = vmul.f32 %v6841, 0.5
        %v7680 = vmul.f32 %v6846, 0.5
        %v7681 = vmul.f32 %v6851, 0.5
        %v7682 = vmul.f32 %v6856, 0.5
        %v7683 = vmul.f32 %v6861, 0.5
        %v7684 = vmul.f32 %v6866, 0.5
        %v7685 = vmul.f32 %v6871, 0.5
        %v7686 = vmul.f32 %v6876, 0.5
        %v7687 = vmul.f32 %v6881, 0.5
        %v7688 = vmul.f32 %v6886, 0.5
        %v7689 = vmul.f32 %v6891, 0.5
        %v7690 = vmul.f32 %v6896, 0.5
        %v7691 = vmul.f32 %v6901, 0.5
        %v7692 = vmul.f32 %v6906, 0.5
        %v7693 = vmul.f32 %v6911, 0.5
        %v7694 = vmul.f32 %v6916, 0.5
        %v7695 = vmul.f32 %v6921, 0.5
        %v7696 = vmul.f32 %v6926, 0.5
        %v7697 = vtanh.pop %v7441
        %v7698 = vtanh.pop %v7442
        %v7699 = vtanh.pop %v7443
        %v7700 = vtanh.pop %v7444
        %v7701 = vtanh.pop %v7445
        %v7702 = vtanh.pop %v7446
        %v7703 = vtanh.pop %v7447
        %v7704 = vtanh.pop %v7448
        %v7705 = vtanh.pop %v7449
        %v7706 = vtanh.pop %v7450
        %v7707 = vtanh.pop %v7451
        %v7708 = vtanh.pop %v7452
        %v7709 = vtanh.pop %v7453
        %v7710 = vtanh.pop %v7454
        %v7711 = vtanh.pop %v7455
        %v7712 = vtanh.pop %v7456
        %v7713 = vtanh.pop %v7457
        %v7714 = vtanh.pop %v7458
        %v7715 = vtanh.pop %v7459
        %v7716 = vtanh.pop %v7460
        %v7717 = vtanh.pop %v7461
        %v7718 = vtanh.pop %v7462
        %v7719 = vtanh.pop %v7463
        %v7720 = vtanh.pop %v7464
        %v7721 = vtanh.pop %v7465
        %v7722 = vtanh.pop %v7466
        %v7723 = vtanh.pop %v7467
        %v7724 = vtanh.pop %v7468
        %v7725 = vtanh.pop %v7469
        %v7726 = vtanh.pop %v7470
        %v7727 = vtanh.pop %v7471
        %v7728 = vtanh.pop %v7472
        %v7729 = vtanh.pop %v7473
        %v7730 = vtanh.pop %v7474
        %v7731 = vtanh.pop %v7475
        %v7732 = vtanh.pop %v7476
        %v7733 = vtanh.pop %v7477
        %v7734 = vtanh.pop %v7478
        %v7735 = vtanh.pop %v7479
        %v7736 = vtanh.pop %v7480
        %v7737 = vtanh.pop %v7481
        %v7738 = vtanh.pop %v7482
        %v7739 = vtanh.pop %v7483
        %v7740 = vtanh.pop %v7484
        %v7741 = vtanh.pop %v7485
        %v7742 = vtanh.pop %v7486
        %v7743 = vtanh.pop %v7487
        %v7744 = vtanh.pop %v7488
        %v7745 = vtanh.pop %v7489
        %v7746 = vtanh.pop %v7490
        %v7747 = vtanh.pop %v7491
        %v7748 = vtanh.pop %v7492
        %v7749 = vtanh.pop %v7493
        %v7750 = vtanh.pop %v7494
        %v7751 = vtanh.pop %v7495
        %v7752 = vtanh.pop %v7496
        %v7753 = vtanh.pop %v7497
        %v7754 = vtanh.pop %v7498
        %v7755 = vtanh.pop %v7499
        %v7756 = vtanh.pop %v7500
        %v7757 = vtanh.pop %v7501
        %v7758 = vtanh.pop %v7502
        %v7759 = vtanh.pop %v7503
        %v7760 = vtanh.pop %v7504
        %v7761 = vtanh.pop %v7505
        %v7762 = vtanh.pop %v7506
        %v7763 = vtanh.pop %v7507
        %v7764 = vtanh.pop %v7508
        %v7765 = vtanh.pop %v7509
        %v7766 = vtanh.pop %v7510
        %v7767 = vtanh.pop %v7511
        %v7768 = vtanh.pop %v7512
        %v7769 = vtanh.pop %v7513
        %v7770 = vtanh.pop %v7514
        %v7771 = vtanh.pop %v7515
        %v7772 = vtanh.pop %v7516
        %v7773 = vtanh.pop %v7517
        %v7774 = vtanh.pop %v7518
        %v7775 = vtanh.pop %v7519
        %v7776 = vtanh.pop %v7520
        %v7777 = vtanh.pop %v7521
        %v7778 = vtanh.pop %v7522
        %v7779 = vtanh.pop %v7523
        %v7780 = vtanh.pop %v7524
        %v7781 = vtanh.pop %v7525
        %v7782 = vtanh.pop %v7526
        %v7783 = vtanh.pop %v7527
        %v7784 = vtanh.pop %v7528
        %v7785 = vtanh.pop %v7529
        %v7786 = vtanh.pop %v7530
        %v7787 = vtanh.pop %v7531
        %v7788 = vtanh.pop %v7532
        %v7789 = vtanh.pop %v7533
        %v7790 = vtanh.pop %v7534
        %v7791 = vtanh.pop %v7535
        %v7792 = vtanh.pop %v7536
        %v7793 = vtanh.pop %v7537
        %v7794 = vtanh.pop %v7538
        %v7795 = vtanh.pop %v7539
        %v7796 = vtanh.pop %v7540
        %v7797 = vtanh.pop %v7541
        %v7798 = vtanh.pop %v7542
        %v7799 = vtanh.pop %v7543
        %v7800 = vtanh.pop %v7544
        %v7801 = vtanh.pop %v7545
        %v7802 = vtanh.pop %v7546
        %v7803 = vtanh.pop %v7547
        %v7804 = vtanh.pop %v7548
        %v7805 = vtanh.pop %v7549
        %v7806 = vtanh.pop %v7550
        %v7807 = vtanh.pop %v7551
        %v7808 = vtanh.pop %v7552
        %v7809 = vtanh.pop %v7553
        %v7810 = vtanh.pop %v7554
        %v7811 = vtanh.pop %v7555
        %v7812 = vtanh.pop %v7556
        %v7813 = vtanh.pop %v7557
        %v7814 = vtanh.pop %v7558
        %v7815 = vtanh.pop %v7559
        %v7816 = vtanh.pop %v7560
        %v7817 = vtanh.pop %v7561
        %v7818 = vtanh.pop %v7562
        %v7819 = vtanh.pop %v7563
        %v7820 = vtanh.pop %v7564
        %v7821 = vtanh.pop %v7565
        %v7822 = vtanh.pop %v7566
        %v7823 = vtanh.pop %v7567
        %v7824 = vtanh.pop %v7568
        %v7825 = vadd.f32 %v7697, 1.0
        %v7826 = vadd.f32 %v7698, 1.0
        %v7827 = vadd.f32 %v7699, 1.0
        %v7828 = vadd.f32 %v7700, 1.0
        %v7829 = vadd.f32 %v7701, 1.0
        %v7830 = vadd.f32 %v7702, 1.0
        %v7831 = vadd.f32 %v7703, 1.0
        %v7832 = vadd.f32 %v7704, 1.0
        %v7833 = vadd.f32 %v7705, 1.0
        %v7834 = vadd.f32 %v7706, 1.0
        %v7835 = vadd.f32 %v7707, 1.0
        %v7836 = vadd.f32 %v7708, 1.0
        %v7837 = vadd.f32 %v7709, 1.0
        %v7838 = vadd.f32 %v7710, 1.0
        %v7839 = vadd.f32 %v7711, 1.0
        %v7840 = vadd.f32 %v7712, 1.0
        %v7841 = vadd.f32 %v7713, 1.0
        %v7842 = vadd.f32 %v7714, 1.0
        %v7843 = vadd.f32 %v7715, 1.0
        %v7844 = vadd.f32 %v7716, 1.0
        %v7845 = vadd.f32 %v7717, 1.0
        %v7846 = vadd.f32 %v7718, 1.0
        %v7847 = vadd.f32 %v7719, 1.0
        %v7848 = vadd.f32 %v7720, 1.0
        %v7849 = vadd.f32 %v7721, 1.0
        %v7850 = vadd.f32 %v7722, 1.0
        %v7851 = vadd.f32 %v7723, 1.0
        %v7852 = vadd.f32 %v7724, 1.0
        %v7853 = vadd.f32 %v7725, 1.0
        %v7854 = vadd.f32 %v7726, 1.0
        %v7855 = vadd.f32 %v7727, 1.0
        %v7856 = vadd.f32 %v7728, 1.0
        %v7857 = vadd.f32 %v7729, 1.0
        %v7858 = vadd.f32 %v7730, 1.0
        %v7859 = vadd.f32 %v7731, 1.0
        %v7860 = vadd.f32 %v7732, 1.0
        %v7861 = vadd.f32 %v7733, 1.0
        %v7862 = vadd.f32 %v7734, 1.0
        %v7863 = vadd.f32 %v7735, 1.0
        %v7864 = vadd.f32 %v7736, 1.0
        %v7865 = vadd.f32 %v7737, 1.0
        %v7866 = vadd.f32 %v7738, 1.0
        %v7867 = vadd.f32 %v7739, 1.0
        %v7868 = vadd.f32 %v7740, 1.0
        %v7869 = vadd.f32 %v7741, 1.0
        %v7870 = vadd.f32 %v7742, 1.0
        %v7871 = vadd.f32 %v7743, 1.0
        %v7872 = vadd.f32 %v7744, 1.0
        %v7873 = vadd.f32 %v7745, 1.0
        %v7874 = vadd.f32 %v7746, 1.0
        %v7875 = vadd.f32 %v7747, 1.0
        %v7876 = vadd.f32 %v7748, 1.0
        %v7877 = vadd.f32 %v7749, 1.0
        %v7878 = vadd.f32 %v7750, 1.0
        %v7879 = vadd.f32 %v7751, 1.0
        %v7880 = vadd.f32 %v7752, 1.0
        %v7881 = vadd.f32 %v7753, 1.0
        %v7882 = vadd.f32 %v7754, 1.0
        %v7883 = vadd.f32 %v7755, 1.0
        %v7884 = vadd.f32 %v7756, 1.0
        %v7885 = vadd.f32 %v7757, 1.0
        %v7886 = vadd.f32 %v7758, 1.0
        %v7887 = vadd.f32 %v7759, 1.0
        %v7888 = vadd.f32 %v7760, 1.0
        %v7889 = vadd.f32 %v7761, 1.0
        %v7890 = vadd.f32 %v7762, 1.0
        %v7891 = vadd.f32 %v7763, 1.0
        %v7892 = vadd.f32 %v7764, 1.0
        %v7893 = vadd.f32 %v7765, 1.0
        %v7894 = vadd.f32 %v7766, 1.0
        %v7895 = vadd.f32 %v7767, 1.0
        %v7896 = vadd.f32 %v7768, 1.0
        %v7897 = vadd.f32 %v7769, 1.0
        %v7898 = vadd.f32 %v7770, 1.0
        %v7899 = vadd.f32 %v7771, 1.0
        %v7900 = vadd.f32 %v7772, 1.0
        %v7901 = vadd.f32 %v7773, 1.0
        %v7902 = vadd.f32 %v7774, 1.0
        %v7903 = vadd.f32 %v7775, 1.0
        %v7904 = vadd.f32 %v7776, 1.0
        %v7905 = vadd.f32 %v7777, 1.0
        %v7906 = vadd.f32 %v7778, 1.0
        %v7907 = vadd.f32 %v7779, 1.0
        %v7908 = vadd.f32 %v7780, 1.0
        %v7909 = vadd.f32 %v7781, 1.0
        %v7910 = vadd.f32 %v7782, 1.0
        %v7911 = vadd.f32 %v7783, 1.0
        %v7912 = vadd.f32 %v7784, 1.0
        %v7913 = vadd.f32 %v7785, 1.0
        %v7914 = vadd.f32 %v7786, 1.0
        %v7915 = vadd.f32 %v7787, 1.0
        %v7916 = vadd.f32 %v7788, 1.0
        %v7917 = vadd.f32 %v7789, 1.0
        %v7918 = vadd.f32 %v7790, 1.0
        %v7919 = vadd.f32 %v7791, 1.0
        %v7920 = vadd.f32 %v7792, 1.0
        %v7921 = vadd.f32 %v7793, 1.0
        %v7922 = vadd.f32 %v7794, 1.0
        %v7923 = vadd.f32 %v7795, 1.0
        %v7924 = vadd.f32 %v7796, 1.0
        %v7925 = vadd.f32 %v7797, 1.0
        %v7926 = vadd.f32 %v7798, 1.0
        %v7927 = vadd.f32 %v7799, 1.0
        %v7928 = vadd.f32 %v7800, 1.0
        %v7929 = vadd.f32 %v7801, 1.0
        %v7930 = vadd.f32 %v7802, 1.0
        %v7931 = vadd.f32 %v7803, 1.0
        %v7932 = vadd.f32 %v7804, 1.0
        %v7933 = vadd.f32 %v7805, 1.0
        %v7934 = vadd.f32 %v7806, 1.0
        %v7935 = vadd.f32 %v7807, 1.0
        %v7936 = vadd.f32 %v7808, 1.0
        %v7937 = vadd.f32 %v7809, 1.0
        %v7938 = vadd.f32 %v7810, 1.0
        %v7939 = vadd.f32 %v7811, 1.0
        %v7940 = vadd.f32 %v7812, 1.0
        %v7941 = vadd.f32 %v7813, 1.0
        %v7942 = vadd.f32 %v7814, 1.0
        %v7943 = vadd.f32 %v7815, 1.0
        %v7944 = vadd.f32 %v7816, 1.0
        %v7945 = vadd.f32 %v7817, 1.0
        %v7946 = vadd.f32 %v7818, 1.0
        %v7947 = vadd.f32 %v7819, 1.0
        %v7948 = vadd.f32 %v7820, 1.0
        %v7949 = vadd.f32 %v7821, 1.0
        %v7950 = vadd.f32 %v7822, 1.0
        %v7951 = vadd.f32 %v7823, 1.0
        %v7952 = vadd.f32 %v7824, 1.0
        %v7953 = vmul.f32 %v7569, %v7825
        %v7954 = vmul.f32 %v7570, %v7826
        %v7955 = vmul.f32 %v7571, %v7827
        %v7956 = vmul.f32 %v7572, %v7828
        %v7957 = vmul.f32 %v7573, %v7829
        %v7958 = vmul.f32 %v7574, %v7830
        %v7959 = vmul.f32 %v7575, %v7831
        %v7960 = vmul.f32 %v7576, %v7832
        %v7961 = vmul.f32 %v7577, %v7833
        %v7962 = vmul.f32 %v7578, %v7834
        %v7963 = vmul.f32 %v7579, %v7835
        %v7964 = vmul.f32 %v7580, %v7836
        %v7965 = vmul.f32 %v7581, %v7837
        %v7966 = vmul.f32 %v7582, %v7838
        %v7967 = vmul.f32 %v7583, %v7839
        %v7968 = vmul.f32 %v7584, %v7840
        %v7969 = vmul.f32 %v7585, %v7841
        %v7970 = vmul.f32 %v7586, %v7842
        %v7971 = vmul.f32 %v7587, %v7843
        %v7972 = vmul.f32 %v7588, %v7844
        %v7973 = vmul.f32 %v7589, %v7845
        %v7974 = vmul.f32 %v7590, %v7846
        %v7975 = vmul.f32 %v7591, %v7847
        %v7976 = vmul.f32 %v7592, %v7848
        %v7977 = vmul.f32 %v7593, %v7849
        %v7978 = vmul.f32 %v7594, %v7850
        %v7979 = vmul.f32 %v7595, %v7851
        %v7980 = vmul.f32 %v7596, %v7852
        %v7981 = vmul.f32 %v7597, %v7853
        %v7982 = vmul.f32 %v7598, %v7854
        %v7983 = vmul.f32 %v7599, %v7855
        %v7984 = vmul.f32 %v7600, %v7856
        %v7985 = vmul.f32 %v7601, %v7857
        %v7986 = vmul.f32 %v7602, %v7858
        %v7987 = vmul.f32 %v7603, %v7859
        %v7988 = vmul.f32 %v7604, %v7860
        %v7989 = vmul.f32 %v7605, %v7861
        %v7990 = vmul.f32 %v7606, %v7862
        %v7991 = vmul.f32 %v7607, %v7863
        %v7992 = vmul.f32 %v7608, %v7864
        %v7993 = vmul.f32 %v7609, %v7865
        %v7994 = vmul.f32 %v7610, %v7866
        %v7995 = vmul.f32 %v7611, %v7867
        %v7996 = vmul.f32 %v7612, %v7868
        %v7997 = vmul.f32 %v7613, %v7869
        %v7998 = vmul.f32 %v7614, %v7870
        %v7999 = vmul.f32 %v7615, %v7871
        %v8000 = vmul.f32 %v7616, %v7872
        %v8001 = vmul.f32 %v7617, %v7873
        %v8002 = vmul.f32 %v7618, %v7874
        %v8003 = vmul.f32 %v7619, %v7875
        %v8004 = vmul.f32 %v7620, %v7876
        %v8005 = vmul.f32 %v7621, %v7877
        %v8006 = vmul.f32 %v7622, %v7878
        %v8007 = vmul.f32 %v7623, %v7879
        %v8008 = vmul.f32 %v7624, %v7880
        %v8009 = vmul.f32 %v7625, %v7881
        %v8010 = vmul.f32 %v7626, %v7882
        %v8011 = vmul.f32 %v7627, %v7883
        %v8012 = vmul.f32 %v7628, %v7884
        %v8013 = vmul.f32 %v7629, %v7885
        %v8014 = vmul.f32 %v7630, %v7886
        %v8015 = vmul.f32 %v7631, %v7887
        %v8016 = vmul.f32 %v7632, %v7888
        %v8017 = vmul.f32 %v7633, %v7889
        %v8018 = vmul.f32 %v7634, %v7890
        %v8019 = vmul.f32 %v7635, %v7891
        %v8020 = vmul.f32 %v7636, %v7892
        %v8021 = vmul.f32 %v7637, %v7893
        %v8022 = vmul.f32 %v7638, %v7894
        %v8023 = vmul.f32 %v7639, %v7895
        %v8024 = vmul.f32 %v7640, %v7896
        %v8025 = vmul.f32 %v7641, %v7897
        %v8026 = vmul.f32 %v7642, %v7898
        %v8027 = vmul.f32 %v7643, %v7899
        %v8028 = vmul.f32 %v7644, %v7900
        %v8029 = vmul.f32 %v7645, %v7901
        %v8030 = vmul.f32 %v7646, %v7902
        %v8031 = vmul.f32 %v7647, %v7903
        %v8032 = vmul.f32 %v7648, %v7904
        %v8033 = vmul.f32 %v7649, %v7905
        %v8034 = vmul.f32 %v7650, %v7906
        %v8035 = vmul.f32 %v7651, %v7907
        %v8036 = vmul.f32 %v7652, %v7908
        %v8037 = vmul.f32 %v7653, %v7909
        %v8038 = vmul.f32 %v7654, %v7910
        %v8039 = vmul.f32 %v7655, %v7911
        %v8040 = vmul.f32 %v7656, %v7912
        %v8041 = vmul.f32 %v7657, %v7913
        %v8042 = vmul.f32 %v7658, %v7914
        %v8043 = vmul.f32 %v7659, %v7915
        %v8044 = vmul.f32 %v7660, %v7916
        %v8045 = vmul.f32 %v7661, %v7917
        %v8046 = vmul.f32 %v7662, %v7918
        %v8047 = vmul.f32 %v7663, %v7919
        %v8048 = vmul.f32 %v7664, %v7920
        %v8049 = vmul.f32 %v7665, %v7921
        %v8050 = vmul.f32 %v7666, %v7922
        %v8051 = vmul.f32 %v7667, %v7923
        %v8052 = vmul.f32 %v7668, %v7924
        %v8053 = vmul.f32 %v7669, %v7925
        %v8054 = vmul.f32 %v7670, %v7926
        %v8055 = vmul.f32 %v7671, %v7927
        %v8056 = vmul.f32 %v7672, %v7928
        %v8057 = vmul.f32 %v7673, %v7929
        %v8058 = vmul.f32 %v7674, %v7930
        %v8059 = vmul.f32 %v7675, %v7931
        %v8060 = vmul.f32 %v7676, %v7932
        %v8061 = vmul.f32 %v7677, %v7933
        %v8062 = vmul.f32 %v7678, %v7934
        %v8063 = vmul.f32 %v7679, %v7935
        %v8064 = vmul.f32 %v7680, %v7936
        %v8065 = vmul.f32 %v7681, %v7937
        %v8066 = vmul.f32 %v7682, %v7938
        %v8067 = vmul.f32 %v7683, %v7939
        %v8068 = vmul.f32 %v7684, %v7940
        %v8069 = vmul.f32 %v7685, %v7941
        %v8070 = vmul.f32 %v7686, %v7942
        %v8071 = vmul.f32 %v7687, %v7943
        %v8072 = vmul.f32 %v7688, %v7944
        %v8073 = vmul.f32 %v7689, %v7945
        %v8074 = vmul.f32 %v7690, %v7946
        %v8075 = vmul.f32 %v7691, %v7947
        %v8076 = vmul.f32 %v7692, %v7948
        %v8077 = vmul.f32 %v7693, %v7949
        %v8078 = vmul.f32 %v7694, %v7950
        %v8079 = vmul.f32 %v7695, %v7951
        %v8080 = vmul.f32 %v7696, %v7952
        %v8082 = vlaneseq
        %v8083 = vshrl.u32 %v8082, 7
        %v8084 = vsub.s32 0, %v8083
        %v8085 = vrot.slane %v391, %v8084
        %8087 = vmatprep.subr.mxu0 0.0
        %8088 = vmatpush1.msra.mxu0 %v375
        %8089 = vmatprep.subr.mxu0 0.0
        %8090 = vmatpush1.msra.mxu0 %v376
        %8091 = vmatprep.subr.mxu0 0.0
        %8092 = vmatpush1.msra.mxu0 %v377
        %8093 = vmatprep.subr.mxu0 0.0
        %8094 = vmatpush1.msra.mxu0 %v378
        %8095 = vmatprep.subr.mxu0 0.0
        %8096 = vmatpush1.msra.mxu0 %v379
        %8097 = vmatprep.subr.mxu0 0.0
        %8098 = vmatpush1.msra.mxu0 %v380
        %8099 = vmatprep.subr.mxu0 0.0
        %8100 = vmatpush1.msra.mxu0 %v381
        %8101 = vmatprep.subr.mxu0 0.0
        %8102 = vmatpush1.msra.mxu0 %v382
        %8103 = vmatprep.subr.mxu0 0.0
        %8104 = vmatpush1.msra.mxu0 %v383
        %8105 = vmatprep.subr.mxu0 0.0
        %8106 = vmatpush1.msra.mxu0 %v384
        %8107 = vmatprep.subr.mxu0 0.0
        %8108 = vmatpush1.msra.mxu0 %v385
        %8109 = vmatprep.subr.mxu0 0.0
        %8110 = vmatpush1.msra.mxu0 %v386
        %8111 = vmatprep.subr.mxu0 0.0
        %8112 = vmatpush1.msra.mxu0 %v387
        %8113 = vmatprep.subr.mxu0 0.0
        %8114 = vmatpush1.msra.mxu0 %v388
        %8115 = vmatprep.subr.mxu0 0.0
        %8116 = vmatpush1.msra.mxu0 %v389
        %8117 = vmatprep.subr.mxu0 0.0
        %8118 = vmatpush1.msra.mxu0 %v390
        %8119 = vmatprep.subr.mxu0 0.0
        %8120 = vmatpush1.msra.mxu0 0.0
        %8121 = vmatprep.subr.mxu0 0.0
        %8122 = vmatpush1.msra.mxu0 0.0
        %8123 = vmatprep.subr.mxu0 0.0
        %8124 = vmatpush1.msra.mxu0 0.0
        %8125 = vmatprep.subr.mxu0 0.0
        %8126 = vmatpush1.msra.mxu0 0.0
        %8127 = vmatprep.subr.mxu0 0.0
        %8128 = vmatpush1.msra.mxu0 0.0
        %8129 = vmatprep.subr.mxu0 0.0
        %8130 = vmatpush1.msra.mxu0 0.0
        %8131 = vmatprep.subr.mxu0 0.0
        %8132 = vmatpush1.msra.mxu0 0.0
        %8133 = vmatprep.subr.mxu0 0.0
        %8134 = vmatpush1.msra.mxu0 0.0
        %8135 = vmatprep.subr.mxu0 0.0
        %8136 = vmatpush1.msra.mxu0 0.0
        %8137 = vmatprep.subr.mxu0 0.0
        %8138 = vmatpush1.msra.mxu0 0.0
        %8139 = vmatprep.subr.mxu0 0.0
        %8140 = vmatpush1.msra.mxu0 0.0
        %8141 = vmatprep.subr.mxu0 0.0
        %8142 = vmatpush1.msra.mxu0 0.0
        %8143 = vmatprep.subr.mxu0 0.0
        %8144 = vmatpush1.msra.mxu0 0.0
        %8145 = vmatprep.subr.mxu0 0.0
        %8146 = vmatpush1.msra.mxu0 0.0
        %8147 = vmatprep.subr.mxu0 0.0
        %8148 = vmatpush1.msra.mxu0 0.0
        %8149 = vmatprep.subr.mxu0 0.0
        %8150 = vmatpush1.msra.mxu0 0.0
        %8151 = vmatprep.mubr.f32.mxu0 0.0
        %8152 = vmatmul.mubr.f32.gmra.mrb[0].mxu0 %v7953
        %v8153 = vpop.f32.mrb[0].mxu0
        %v8154 = vadd.f32 %v8085, %v8153
        %v8155 = vpop.f32.mrb[0].mxu0
        %8156 = vmatprep.mubr.f32.mxu0 0.0
        %8157 = vmatmul.mubr.f32.gmra.mrb[0].mxu0 %v7954
        %v8158 = vpop.f32.mrb[0].mxu0
        %v8159 = vadd.f32 %v8085, %v8158
        %v8160 = vpop.f32.mrb[0].mxu0
        %8161 = vmatprep.mubr.f32.mxu0 0.0
        %8162 = vmatmul.mubr.f32.gmra.mrb[0].mxu0 %v7955
        %v8163 = vpop.f32.mrb[0].mxu0
        %v8164 = vadd.f32 %v8085, %v8163
        %v8165 = vpop.f32.mrb[0].mxu0
        %8166 = vmatprep.mubr.f32.mxu0 0.0
        %8167 = vmatmul.mubr.f32.gmra.mrb[0].mxu0 %v7956
        %v8168 = vpop.f32.mrb[0].mxu0
        %v8169 = vadd.f32 %v8085, %v8168
        %v8170 = vpop.f32.mrb[0].mxu0
        %8171 = vmatprep.mubr.f32.mxu0 0.0
        %8172 = vmatmul.mubr.f32.gmra.mrb[0].mxu0 %v7957
        %v8173 = vpop.f32.mrb[0].mxu0
        %v8174 = vadd.f32 %v8085, %v8173
        %v8175 = vpop.f32.mrb[0].mxu0
        %8176 = vmatprep.mubr.f32.mxu0 0.0
        %8177 = vmatmul.mubr.f32.gmra.mrb[0].mxu0 %v7958
        %v8178 = vpop.f32.mrb[0].mxu0
        %v8179 = vadd.f32 %v8085, %v8178
        %v8180 = vpop.f32.mrb[0].mxu0
        %8181 = vmatprep.mubr.f32.mxu0 0.0
        %8182 = vmatmul.mubr.f32.gmra.mrb[0].mxu0 %v7959
        %v8183 = vpop.f32.mrb[0].mxu0
        %v8184 = vadd.f32 %v8085, %v8183
        %v8185 = vpop.f32.mrb[0].mxu0
        %8186 = vmatprep.mubr.f32.mxu0 0.0
        %8187 = vmatmul.mubr.f32.gmra.mrb[0].mxu0 %v7960
        %v8188 = vpop.f32.mrb[0].mxu0
        %v8189 = vadd.f32 %v8085, %v8188
        %v8190 = vpop.f32.mrb[0].mxu0
        %8191 = vmatprep.mubr.f32.mxu0 0.0
        %8192 = vmatmul.mubr.f32.gmra.mrb[0].mxu0 %v7961
        %v8193 = vpop.f32.mrb[0].mxu0
        %v8194 = vadd.f32 %v8085, %v8193
        %v8195 = vpop.f32.mrb[0].mxu0
        %8196 = vmatprep.mubr.f32.mxu0 0.0
        %8197 = vmatmul.mubr.f32.gmra.mrb[0].mxu0 %v7962
        %v8198 = vpop.f32.mrb[0].mxu0
        %v8199 = vadd.f32 %v8085, %v8198
        %v8200 = vpop.f32.mrb[0].mxu0
        %8201 = vmatprep.mubr.f32.mxu0 0.0
        %8202 = vmatmul.mubr.f32.gmra.mrb[0].mxu0 %v7963
        %v8203 = vpop.f32.mrb[0].mxu0
        %v8204 = vadd.f32 %v8085, %v8203
        %v8205 = vpop.f32.mrb[0].mxu0
        %8206 = vmatprep.mubr.f32.mxu0 0.0
        %8207 = vmatmul.mubr.f32.gmra.mrb[0].mxu0 %v7964
        %v8208 = vpop.f32.mrb[0].mxu0
        %v8209 = vadd.f32 %v8085, %v8208
        %v8210 = vpop.f32.mrb[0].mxu0
        %8211 = vmatprep.mubr.f32.mxu0 0.0
        %8212 = vmatmul.mubr.f32.gmra.mrb[0].mxu0 %v7965
        %v8213 = vpop.f32.mrb[0].mxu0
        %v8214 = vadd.f32 %v8085, %v8213
        %v8215 = vpop.f32.mrb[0].mxu0
        %8216 = vmatprep.mubr.f32.mxu0 0.0
        %8217 = vmatmul.mubr.f32.gmra.mrb[0].mxu0 %v7966
        %v8218 = vpop.f32.mrb[0].mxu0
        %v8219 = vadd.f32 %v8085, %v8218
        %v8220 = vpop.f32.mrb[0].mxu0
        %8221 = vmatprep.mubr.f32.mxu0 0.0
        %8222 = vmatmul.mubr.f32.gmra.mrb[0].mxu0 %v7967
        %v8223 = vpop.f32.mrb[0].mxu0
        %v8224 = vadd.f32 %v8085, %v8223
        %v8225 = vpop.f32.mrb[0].mxu0
        %8226 = vmatprep.mubr.f32.mxu0 0.0
        %8227 = vmatmul.mubr.f32.gmra.mrb[0].mxu0 %v7968
        %v8228 = vpop.f32.mrb[0].mxu0
        %v8229 = vadd.f32 %v8085, %v8228
        %v8230 = vpop.f32.mrb[0].mxu0
        %8231 = vmatprep.mubr.f32.mxu0 0.0
        %8232 = vmatmul.mubr.f32.gmra.mrb[0].mxu0 %v7969
        %v8233 = vpop.f32.mrb[0].mxu0
        %v8234 = vadd.f32 %v8085, %v8233
        %v8235 = vpop.f32.mrb[0].mxu0
        %8236 = vmatprep.mubr.f32.mxu0 0.0
        %8237 = vmatmul.mubr.f32.gmra.mrb[0].mxu0 %v7970
        %v8238 = vpop.f32.mrb[0].mxu0
        %v8239 = vadd.f32 %v8085, %v8238
        %v8240 = vpop.f32.mrb[0].mxu0
        %8241 = vmatprep.mubr.f32.mxu0 0.0
        %8242 = vmatmul.mubr.f32.gmra.mrb[0].mxu0 %v7971
        %v8243 = vpop.f32.mrb[0].mxu0
        %v8244 = vadd.f32 %v8085, %v8243
        %v8245 = vpop.f32.mrb[0].mxu0
        %8246 = vmatprep.mubr.f32.mxu0 0.0
        %8247 = vmatmul.mubr.f32.gmra.mrb[0].mxu0 %v7972
        %v8248 = vpop.f32.mrb[0].mxu0
        %v8249 = vadd.f32 %v8085, %v8248
        %v8250 = vpop.f32.mrb[0].mxu0
        %8251 = vmatprep.mubr.f32.mxu0 0.0
        %8252 = vmatmul.mubr.f32.gmra.mrb[0].mxu0 %v7973
        %v8253 = vpop.f32.mrb[0].mxu0
        %v8254 = vadd.f32 %v8085, %v8253
        %v8255 = vpop.f32.mrb[0].mxu0
        %8256 = vmatprep.mubr.f32.mxu0 0.0
        %8257 = vmatmul.mubr.f32.gmra.mrb[0].mxu0 %v7974
        %v8258 = vpop.f32.mrb[0].mxu0
        %v8259 = vadd.f32 %v8085, %v8258
        %v8260 = vpop.f32.mrb[0].mxu0
        %8261 = vmatprep.mubr.f32.mxu0 0.0
        %8262 = vmatmul.mubr.f32.gmra.mrb[0].mxu0 %v7975
        %v8263 = vpop.f32.mrb[0].mxu0
        %v8264 = vadd.f32 %v8085, %v8263
        %v8265 = vpop.f32.mrb[0].mxu0
        %8266 = vmatprep.mubr.f32.mxu0 0.0
        %8267 = vmatmul.mubr.f32.gmra.mrb[0].mxu0 %v7976
        %v8268 = vpop.f32.mrb[0].mxu0
        %v8269 = vadd.f32 %v8085, %v8268
        %v8270 = vpop.f32.mrb[0].mxu0
        %8271 = vmatprep.mubr.f32.mxu0 0.0
        %8272 = vmatmul.mubr.f32.gmra.mrb[0].mxu0 %v7977
        %v8273 = vpop.f32.mrb[0].mxu0
        %v8274 = vadd.f32 %v8085, %v8273
        %v8275 = vpop.f32.mrb[0].mxu0
        %8276 = vmatprep.mubr.f32.mxu0 0.0
        %8277 = vmatmul.mubr.f32.gmra.mrb[0].mxu0 %v7978
        %v8278 = vpop.f32.mrb[0].mxu0
        %v8279 = vadd.f32 %v8085, %v8278
        %v8280 = vpop.f32.mrb[0].mxu0
        %8281 = vmatprep.mubr.f32.mxu0 0.0
        %8282 = vmatmul.mubr.f32.gmra.mrb[0].mxu0 %v7979
        %v8283 = vpop.f32.mrb[0].mxu0
        %v8284 = vadd.f32 %v8085, %v8283
        %v8285 = vpop.f32.mrb[0].mxu0
        %8286 = vmatprep.mubr.f32.mxu0 0.0
        %8287 = vmatmul.mubr.f32.gmra.mrb[0].mxu0 %v7980
        %v8288 = vpop.f32.mrb[0].mxu0
        %v8289 = vadd.f32 %v8085, %v8288
        %v8290 = vpop.f32.mrb[0].mxu0
        %8291 = vmatprep.mubr.f32.mxu0 0.0
        %8292 = vmatmul.mubr.f32.gmra.mrb[0].mxu0 %v7981
        %v8293 = vpop.f32.mrb[0].mxu0
        %v8294 = vadd.f32 %v8085, %v8293
        %v8295 = vpop.f32.mrb[0].mxu0
        %8296 = vmatprep.mubr.f32.mxu0 0.0
        %8297 = vmatmul.mubr.f32.gmra.mrb[0].mxu0 %v7982
        %v8298 = vpop.f32.mrb[0].mxu0
        %v8299 = vadd.f32 %v8085, %v8298
        %v8300 = vpop.f32.mrb[0].mxu0
        %8301 = vmatprep.mubr.f32.mxu0 0.0
        %8302 = vmatmul.mubr.f32.gmra.mrb[0].mxu0 %v7983
        %v8303 = vpop.f32.mrb[0].mxu0
        %v8304 = vadd.f32 %v8085, %v8303
        %v8305 = vpop.f32.mrb[0].mxu0
        %8306 = vmatprep.mubr.f32.mxu0 0.0
        %8307 = vmatmul.mubr.f32.gmra.mrb[0].mxu0 %v7984
        %v8308 = vpop.f32.mrb[0].mxu0
        %v8309 = vadd.f32 %v8085, %v8308
        %v8310 = vpop.f32.mrb[0].mxu0
        %8311 = vmatprep.mubr.f32.mxu0 0.0
        %8312 = vmatmul.mubr.f32.gmra.mrb[0].mxu0 %v7985
        %v8313 = vpop.f32.mrb[0].mxu0
        %v8314 = vadd.f32 %v8085, %v8313
        %v8315 = vpop.f32.mrb[0].mxu0
        %8316 = vmatprep.mubr.f32.mxu0 0.0
        %8317 = vmatmul.mubr.f32.gmra.mrb[0].mxu0 %v7986
        %v8318 = vpop.f32.mrb[0].mxu0
        %v8319 = vadd.f32 %v8085, %v8318
        %v8320 = vpop.f32.mrb[0].mxu0
        %8321 = vmatprep.mubr.f32.mxu0 0.0
        %8322 = vmatmul.mubr.f32.gmra.mrb[0].mxu0 %v7987
        %v8323 = vpop.f32.mrb[0].mxu0
        %v8324 = vadd.f32 %v8085, %v8323
        %v8325 = vpop.f32.mrb[0].mxu0
        %8326 = vmatprep.mubr.f32.mxu0 0.0
        %8327 = vmatmul.mubr.f32.gmra.mrb[0].mxu0 %v7988
        %v8328 = vpop.f32.mrb[0].mxu0
        %v8329 = vadd.f32 %v8085, %v8328
        %v8330 = vpop.f32.mrb[0].mxu0
        %8331 = vmatprep.mubr.f32.mxu0 0.0
        %8332 = vmatmul.mubr.f32.gmra.mrb[0].mxu0 %v7989
        %v8333 = vpop.f32.mrb[0].mxu0
        %v8334 = vadd.f32 %v8085, %v8333
        %v8335 = vpop.f32.mrb[0].mxu0
        %8336 = vmatprep.mubr.f32.mxu0 0.0
        %8337 = vmatmul.mubr.f32.gmra.mrb[0].mxu0 %v7990
        %v8338 = vpop.f32.mrb[0].mxu0
        %v8339 = vadd.f32 %v8085, %v8338
        %v8340 = vpop.f32.mrb[0].mxu0
        %8341 = vmatprep.mubr.f32.mxu0 0.0
        %8342 = vmatmul.mubr.f32.gmra.mrb[0].mxu0 %v7991
        %v8343 = vpop.f32.mrb[0].mxu0
        %v8344 = vadd.f32 %v8085, %v8343
        %v8345 = vpop.f32.mrb[0].mxu0
        %8346 = vmatprep.mubr.f32.mxu0 0.0
        %8347 = vmatmul.mubr.f32.gmra.mrb[0].mxu0 %v7992
        %v8348 = vpop.f32.mrb[0].mxu0
        %v8349 = vadd.f32 %v8085, %v8348
        %v8350 = vpop.f32.mrb[0].mxu0
        %8351 = vmatprep.mubr.f32.mxu0 0.0
        %8352 = vmatmul.mubr.f32.gmra.mrb[0].mxu0 %v7993
        %v8353 = vpop.f32.mrb[0].mxu0
        %v8354 = vadd.f32 %v8085, %v8353
        %v8355 = vpop.f32.mrb[0].mxu0
        %8356 = vmatprep.mubr.f32.mxu0 0.0
        %8357 = vmatmul.mubr.f32.gmra.mrb[0].mxu0 %v7994
        %v8358 = vpop.f32.mrb[0].mxu0
        %v8359 = vadd.f32 %v8085, %v8358
        %v8360 = vpop.f32.mrb[0].mxu0
        %8361 = vmatprep.mubr.f32.mxu0 0.0
        %8362 = vmatmul.mubr.f32.gmra.mrb[0].mxu0 %v7995
        %v8363 = vpop.f32.mrb[0].mxu0
        %v8364 = vadd.f32 %v8085, %v8363
        %v8365 = vpop.f32.mrb[0].mxu0
        %8366 = vmatprep.mubr.f32.mxu0 0.0
        %8367 = vmatmul.mubr.f32.gmra.mrb[0].mxu0 %v7996
        %v8368 = vpop.f32.mrb[0].mxu0
        %v8369 = vadd.f32 %v8085, %v8368
        %v8370 = vpop.f32.mrb[0].mxu0
        %8371 = vmatprep.mubr.f32.mxu0 0.0
        %8372 = vmatmul.mubr.f32.gmra.mrb[0].mxu0 %v7997
        %v8373 = vpop.f32.mrb[0].mxu0
        %v8374 = vadd.f32 %v8085, %v8373
        %v8375 = vpop.f32.mrb[0].mxu0
        %8376 = vmatprep.mubr.f32.mxu0 0.0
        %8377 = vmatmul.mubr.f32.gmra.mrb[0].mxu0 %v7998
        %v8378 = vpop.f32.mrb[0].mxu0
        %v8379 = vadd.f32 %v8085, %v8378
        %v8380 = vpop.f32.mrb[0].mxu0
        %8381 = vmatprep.mubr.f32.mxu0 0.0
        %8382 = vmatmul.mubr.f32.gmra.mrb[0].mxu0 %v7999
        %v8383 = vpop.f32.mrb[0].mxu0
        %v8384 = vadd.f32 %v8085, %v8383
        %v8385 = vpop.f32.mrb[0].mxu0
        %8386 = vmatprep.mubr.f32.mxu0 0.0
        %8387 = vmatmul.mubr.f32.gmra.mrb[0].mxu0 %v8000
        %v8388 = vpop.f32.mrb[0].mxu0
        %v8389 = vadd.f32 %v8085, %v8388
        %v8390 = vpop.f32.mrb[0].mxu0
        %8391 = vmatprep.mubr.f32.mxu0 0.0
        %8392 = vmatmul.mubr.f32.gmra.mrb[0].mxu0 %v8001
        %v8393 = vpop.f32.mrb[0].mxu0
        %v8394 = vadd.f32 %v8085, %v8393
        %v8395 = vpop.f32.mrb[0].mxu0
        %8396 = vmatprep.mubr.f32.mxu0 0.0
        %8397 = vmatmul.mubr.f32.gmra.mrb[0].mxu0 %v8002
        %v8398 = vpop.f32.mrb[0].mxu0
        %v8399 = vadd.f32 %v8085, %v8398
        %v8400 = vpop.f32.mrb[0].mxu0
        %8401 = vmatprep.mubr.f32.mxu0 0.0
        %8402 = vmatmul.mubr.f32.gmra.mrb[0].mxu0 %v8003
        %v8403 = vpop.f32.mrb[0].mxu0
        %v8404 = vadd.f32 %v8085, %v8403
        %v8405 = vpop.f32.mrb[0].mxu0
        %8406 = vmatprep.mubr.f32.mxu0 0.0
        %8407 = vmatmul.mubr.f32.gmra.mrb[0].mxu0 %v8004
        %v8408 = vpop.f32.mrb[0].mxu0
        %v8409 = vadd.f32 %v8085, %v8408
        %v8410 = vpop.f32.mrb[0].mxu0
        %8411 = vmatprep.mubr.f32.mxu0 0.0
        %8412 = vmatmul.mubr.f32.gmra.mrb[0].mxu0 %v8005
        %v8413 = vpop.f32.mrb[0].mxu0
        %v8414 = vadd.f32 %v8085, %v8413
        %v8415 = vpop.f32.mrb[0].mxu0
        %8416 = vmatprep.mubr.f32.mxu0 0.0
        %8417 = vmatmul.mubr.f32.gmra.mrb[0].mxu0 %v8006
        %v8418 = vpop.f32.mrb[0].mxu0
        %v8419 = vadd.f32 %v8085, %v8418
        %v8420 = vpop.f32.mrb[0].mxu0
        %8421 = vmatprep.mubr.f32.mxu0 0.0
        %8422 = vmatmul.mubr.f32.gmra.mrb[0].mxu0 %v8007
        %v8423 = vpop.f32.mrb[0].mxu0
        %v8424 = vadd.f32 %v8085, %v8423
        %v8425 = vpop.f32.mrb[0].mxu0
        %8426 = vmatprep.mubr.f32.mxu0 0.0
        %8427 = vmatmul.mubr.f32.gmra.mrb[0].mxu0 %v8008
        %v8428 = vpop.f32.mrb[0].mxu0
        %v8429 = vadd.f32 %v8085, %v8428
        %v8430 = vpop.f32.mrb[0].mxu0
        %8431 = vmatprep.mubr.f32.mxu0 0.0
        %8432 = vmatmul.mubr.f32.gmra.mrb[0].mxu0 %v8009
        %v8433 = vpop.f32.mrb[0].mxu0
        %v8434 = vadd.f32 %v8085, %v8433
        %v8435 = vpop.f32.mrb[0].mxu0
        %8436 = vmatprep.mubr.f32.mxu0 0.0
        %8437 = vmatmul.mubr.f32.gmra.mrb[0].mxu0 %v8010
        %v8438 = vpop.f32.mrb[0].mxu0
        %v8439 = vadd.f32 %v8085, %v8438
        %v8440 = vpop.f32.mrb[0].mxu0
        %8441 = vmatprep.mubr.f32.mxu0 0.0
        %8442 = vmatmul.mubr.f32.gmra.mrb[0].mxu0 %v8011
        %v8443 = vpop.f32.mrb[0].mxu0
        %v8444 = vadd.f32 %v8085, %v8443
        %v8445 = vpop.f32.mrb[0].mxu0
        %8446 = vmatprep.mubr.f32.mxu0 0.0
        %8447 = vmatmul.mubr.f32.gmra.mrb[0].mxu0 %v8012
        %v8448 = vpop.f32.mrb[0].mxu0
        %v8449 = vadd.f32 %v8085, %v8448
        %v8450 = vpop.f32.mrb[0].mxu0
        %8451 = vmatprep.mubr.f32.mxu0 0.0
        %8452 = vmatmul.mubr.f32.gmra.mrb[0].mxu0 %v8013
        %v8453 = vpop.f32.mrb[0].mxu0
        %v8454 = vadd.f32 %v8085, %v8453
        %v8455 = vpop.f32.mrb[0].mxu0
        %8456 = vmatprep.mubr.f32.mxu0 0.0
        %8457 = vmatmul.mubr.f32.gmra.mrb[0].mxu0 %v8014
        %v8458 = vpop.f32.mrb[0].mxu0
        %v8459 = vadd.f32 %v8085, %v8458
        %v8460 = vpop.f32.mrb[0].mxu0
        %8461 = vmatprep.mubr.f32.mxu0 0.0
        %8462 = vmatmul.mubr.f32.gmra.mrb[0].mxu0 %v8015
        %v8463 = vpop.f32.mrb[0].mxu0
        %v8464 = vadd.f32 %v8085, %v8463
        %v8465 = vpop.f32.mrb[0].mxu0
        %8466 = vmatprep.mubr.f32.mxu0 0.0
        %8467 = vmatmul.mubr.f32.gmra.mrb[0].mxu0 %v8016
        %v8468 = vpop.f32.mrb[0].mxu0
        %v8469 = vadd.f32 %v8085, %v8468
        %v8470 = vpop.f32.mrb[0].mxu0
        %8471 = vmatprep.mubr.f32.mxu0 0.0
        %8472 = vmatmul.mubr.f32.gmra.mrb[0].mxu0 %v8017
        %v8473 = vpop.f32.mrb[0].mxu0
        %v8474 = vadd.f32 %v8085, %v8473
        %v8475 = vpop.f32.mrb[0].mxu0
        %8476 = vmatprep.mubr.f32.mxu0 0.0
        %8477 = vmatmul.mubr.f32.gmra.mrb[0].mxu0 %v8018
        %v8478 = vpop.f32.mrb[0].mxu0
        %v8479 = vadd.f32 %v8085, %v8478
        %v8480 = vpop.f32.mrb[0].mxu0
        %8481 = vmatprep.mubr.f32.mxu0 0.0
        %8482 = vmatmul.mubr.f32.gmra.mrb[0].mxu0 %v8019
        %v8483 = vpop.f32.mrb[0].mxu0
        %v8484 = vadd.f32 %v8085, %v8483
        %v8485 = vpop.f32.mrb[0].mxu0
        %8486 = vmatprep.mubr.f32.mxu0 0.0
        %8487 = vmatmul.mubr.f32.gmra.mrb[0].mxu0 %v8020
        %v8488 = vpop.f32.mrb[0].mxu0
        %v8489 = vadd.f32 %v8085, %v8488
        %v8490 = vpop.f32.mrb[0].mxu0
        %8491 = vmatprep.mubr.f32.mxu0 0.0
        %8492 = vmatmul.mubr.f32.gmra.mrb[0].mxu0 %v8021
        %v8493 = vpop.f32.mrb[0].mxu0
        %v8494 = vadd.f32 %v8085, %v8493
        %v8495 = vpop.f32.mrb[0].mxu0
        %8496 = vmatprep.mubr.f32.mxu0 0.0
        %8497 = vmatmul.mubr.f32.gmra.mrb[0].mxu0 %v8022
        %v8498 = vpop.f32.mrb[0].mxu0
        %v8499 = vadd.f32 %v8085, %v8498
        %v8500 = vpop.f32.mrb[0].mxu0
        %8501 = vmatprep.mubr.f32.mxu0 0.0
        %8502 = vmatmul.mubr.f32.gmra.mrb[0].mxu0 %v8023
        %v8503 = vpop.f32.mrb[0].mxu0
        %v8504 = vadd.f32 %v8085, %v8503
        %v8505 = vpop.f32.mrb[0].mxu0
        %8506 = vmatprep.mubr.f32.mxu0 0.0
        %8507 = vmatmul.mubr.f32.gmra.mrb[0].mxu0 %v8024
        %v8508 = vpop.f32.mrb[0].mxu0
        %v8509 = vadd.f32 %v8085, %v8508
        %v8510 = vpop.f32.mrb[0].mxu0
        %8511 = vmatprep.mubr.f32.mxu0 0.0
        %8512 = vmatmul.mubr.f32.gmra.mrb[0].mxu0 %v8025
        %v8513 = vpop.f32.mrb[0].mxu0
        %v8514 = vadd.f32 %v8085, %v8513
        %v8515 = vpop.f32.mrb[0].mxu0
        %8516 = vmatprep.mubr.f32.mxu0 0.0
        %8517 = vmatmul.mubr.f32.gmra.mrb[0].mxu0 %v8026
        %v8518 = vpop.f32.mrb[0].mxu0
        %v8519 = vadd.f32 %v8085, %v8518
        %v8520 = vpop.f32.mrb[0].mxu0
        %8521 = vmatprep.mubr.f32.mxu0 0.0
        %8522 = vmatmul.mubr.f32.gmra.mrb[0].mxu0 %v8027
        %v8523 = vpop.f32.mrb[0].mxu0
        %v8524 = vadd.f32 %v8085, %v8523
        %v8525 = vpop.f32.mrb[0].mxu0
        %8526 = vmatprep.mubr.f32.mxu0 0.0
        %8527 = vmatmul.mubr.f32.gmra.mrb[0].mxu0 %v8028
        %v8528 = vpop.f32.mrb[0].mxu0
        %v8529 = vadd.f32 %v8085, %v8528
        %v8530 = vpop.f32.mrb[0].mxu0
        %8531 = vmatprep.mubr.f32.mxu0 0.0
        %8532 = vmatmul.mubr.f32.gmra.mrb[0].mxu0 %v8029
        %v8533 = vpop.f32.mrb[0].mxu0
        %v8534 = vadd.f32 %v8085, %v8533
        %v8535 = vpop.f32.mrb[0].mxu0
        %8536 = vmatprep.mubr.f32.mxu0 0.0
        %8537 = vmatmul.mubr.f32.gmra.mrb[0].mxu0 %v8030
        %v8538 = vpop.f32.mrb[0].mxu0
        %v8539 = vadd.f32 %v8085, %v8538
        %v8540 = vpop.f32.mrb[0].mxu0
        %8541 = vmatprep.mubr.f32.mxu0 0.0
        %8542 = vmatmul.mubr.f32.gmra.mrb[0].mxu0 %v8031
        %v8543 = vpop.f32.mrb[0].mxu0
        %v8544 = vadd.f32 %v8085, %v8543
        %v8545 = vpop.f32.mrb[0].mxu0
        %8546 = vmatprep.mubr.f32.mxu0 0.0
        %8547 = vmatmul.mubr.f32.gmra.mrb[0].mxu0 %v8032
        %v8548 = vpop.f32.mrb[0].mxu0
        %v8549 = vadd.f32 %v8085, %v8548
        %v8550 = vpop.f32.mrb[0].mxu0
        %8551 = vmatprep.mubr.f32.mxu0 0.0
        %8552 = vmatmul.mubr.f32.gmra.mrb[0].mxu0 %v8033
        %v8553 = vpop.f32.mrb[0].mxu0
        %v8554 = vadd.f32 %v8085, %v8553
        %v8555 = vpop.f32.mrb[0].mxu0
        %8556 = vmatprep.mubr.f32.mxu0 0.0
        %8557 = vmatmul.mubr.f32.gmra.mrb[0].mxu0 %v8034
        %v8558 = vpop.f32.mrb[0].mxu0
        %v8559 = vadd.f32 %v8085, %v8558
        %v8560 = vpop.f32.mrb[0].mxu0
        %8561 = vmatprep.mubr.f32.mxu0 0.0
        %8562 = vmatmul.mubr.f32.gmra.mrb[0].mxu0 %v8035
        %v8563 = vpop.f32.mrb[0].mxu0
        %v8564 = vadd.f32 %v8085, %v8563
        %v8565 = vpop.f32.mrb[0].mxu0
        %8566 = vmatprep.mubr.f32.mxu0 0.0
        %8567 = vmatmul.mubr.f32.gmra.mrb[0].mxu0 %v8036
        %v8568 = vpop.f32.mrb[0].mxu0
        %v8569 = vadd.f32 %v8085, %v8568
        %v8570 = vpop.f32.mrb[0].mxu0
        %8571 = vmatprep.mubr.f32.mxu0 0.0
        %8572 = vmatmul.mubr.f32.gmra.mrb[0].mxu0 %v8037
        %v8573 = vpop.f32.mrb[0].mxu0
        %v8574 = vadd.f32 %v8085, %v8573
        %v8575 = vpop.f32.mrb[0].mxu0
        %8576 = vmatprep.mubr.f32.mxu0 0.0
        %8577 = vmatmul.mubr.f32.gmra.mrb[0].mxu0 %v8038
        %v8578 = vpop.f32.mrb[0].mxu0
        %v8579 = vadd.f32 %v8085, %v8578
        %v8580 = vpop.f32.mrb[0].mxu0
        %8581 = vmatprep.mubr.f32.mxu0 0.0
        %8582 = vmatmul.mubr.f32.gmra.mrb[0].mxu0 %v8039
        %v8583 = vpop.f32.mrb[0].mxu0
        %v8584 = vadd.f32 %v8085, %v8583
        %v8585 = vpop.f32.mrb[0].mxu0
        %8586 = vmatprep.mubr.f32.mxu0 0.0
        %8587 = vmatmul.mubr.f32.gmra.mrb[0].mxu0 %v8040
        %v8588 = vpop.f32.mrb[0].mxu0
        %v8589 = vadd.f32 %v8085, %v8588
        %v8590 = vpop.f32.mrb[0].mxu0
        %8591 = vmatprep.mubr.f32.mxu0 0.0
        %8592 = vmatmul.mubr.f32.gmra.mrb[0].mxu0 %v8041
        %v8593 = vpop.f32.mrb[0].mxu0
        %v8594 = vadd.f32 %v8085, %v8593
        %v8595 = vpop.f32.mrb[0].mxu0
        %8596 = vmatprep.mubr.f32.mxu0 0.0
        %8597 = vmatmul.mubr.f32.gmra.mrb[0].mxu0 %v8042
        %v8598 = vpop.f32.mrb[0].mxu0
        %v8599 = vadd.f32 %v8085, %v8598
        %v8600 = vpop.f32.mrb[0].mxu0
        %8601 = vmatprep.mubr.f32.mxu0 0.0
        %8602 = vmatmul.mubr.f32.gmra.mrb[0].mxu0 %v8043
        %v8603 = vpop.f32.mrb[0].mxu0
        %v8604 = vadd.f32 %v8085, %v8603
        %v8605 = vpop.f32.mrb[0].mxu0
        %8606 = vmatprep.mubr.f32.mxu0 0.0
        %8607 = vmatmul.mubr.f32.gmra.mrb[0].mxu0 %v8044
        %v8608 = vpop.f32.mrb[0].mxu0
        %v8609 = vadd.f32 %v8085, %v8608
        %v8610 = vpop.f32.mrb[0].mxu0
        %8611 = vmatprep.mubr.f32.mxu0 0.0
        %8612 = vmatmul.mubr.f32.gmra.mrb[0].mxu0 %v8045
        %v8613 = vpop.f32.mrb[0].mxu0
        %v8614 = vadd.f32 %v8085, %v8613
        %v8615 = vpop.f32.mrb[0].mxu0
        %8616 = vmatprep.mubr.f32.mxu0 0.0
        %8617 = vmatmul.mubr.f32.gmra.mrb[0].mxu0 %v8046
        %v8618 = vpop.f32.mrb[0].mxu0
        %v8619 = vadd.f32 %v8085, %v8618
        %v8620 = vpop.f32.mrb[0].mxu0
        %8621 = vmatprep.mubr.f32.mxu0 0.0
        %8622 = vmatmul.mubr.f32.gmra.mrb[0].mxu0 %v8047
        %v8623 = vpop.f32.mrb[0].mxu0
        %v8624 = vadd.f32 %v8085, %v8623
        %v8625 = vpop.f32.mrb[0].mxu0
        %8626 = vmatprep.mubr.f32.mxu0 0.0
        %8627 = vmatmul.mubr.f32.gmra.mrb[0].mxu0 %v8048
        %v8628 = vpop.f32.mrb[0].mxu0
        %v8629 = vadd.f32 %v8085, %v8628
        %v8630 = vpop.f32.mrb[0].mxu0
        %8631 = vmatprep.mubr.f32.mxu0 0.0
        %8632 = vmatmul.mubr.f32.gmra.mrb[0].mxu0 %v8049
        %v8633 = vpop.f32.mrb[0].mxu0
        %v8634 = vadd.f32 %v8085, %v8633
        %v8635 = vpop.f32.mrb[0].mxu0
        %8636 = vmatprep.mubr.f32.mxu0 0.0
        %8637 = vmatmul.mubr.f32.gmra.mrb[0].mxu0 %v8050
        %v8638 = vpop.f32.mrb[0].mxu0
        %v8639 = vadd.f32 %v8085, %v8638
        %v8640 = vpop.f32.mrb[0].mxu0
        %8641 = vmatprep.mubr.f32.mxu0 0.0
        %8642 = vmatmul.mubr.f32.gmra.mrb[0].mxu0 %v8051
        %v8643 = vpop.f32.mrb[0].mxu0
        %v8644 = vadd.f32 %v8085, %v8643
        %v8645 = vpop.f32.mrb[0].mxu0
        %8646 = vmatprep.mubr.f32.mxu0 0.0
        %8647 = vmatmul.mubr.f32.gmra.mrb[0].mxu0 %v8052
        %v8648 = vpop.f32.mrb[0].mxu0
        %v8649 = vadd.f32 %v8085, %v8648
        %v8650 = vpop.f32.mrb[0].mxu0
        %8651 = vmatprep.mubr.f32.mxu0 0.0
        %8652 = vmatmul.mubr.f32.gmra.mrb[0].mxu0 %v8053
        %v8653 = vpop.f32.mrb[0].mxu0
        %v8654 = vadd.f32 %v8085, %v8653
        %v8655 = vpop.f32.mrb[0].mxu0
        %8656 = vmatprep.mubr.f32.mxu0 0.0
        %8657 = vmatmul.mubr.f32.gmra.mrb[0].mxu0 %v8054
        %v8658 = vpop.f32.mrb[0].mxu0
        %v8659 = vadd.f32 %v8085, %v8658
        %v8660 = vpop.f32.mrb[0].mxu0
        %8661 = vmatprep.mubr.f32.mxu0 0.0
        %8662 = vmatmul.mubr.f32.gmra.mrb[0].mxu0 %v8055
        %v8663 = vpop.f32.mrb[0].mxu0
        %v8664 = vadd.f32 %v8085, %v8663
        %v8665 = vpop.f32.mrb[0].mxu0
        %8666 = vmatprep.mubr.f32.mxu0 0.0
        %8667 = vmatmul.mubr.f32.gmra.mrb[0].mxu0 %v8056
        %v8668 = vpop.f32.mrb[0].mxu0
        %v8669 = vadd.f32 %v8085, %v8668
        %v8670 = vpop.f32.mrb[0].mxu0
        %8671 = vmatprep.mubr.f32.mxu0 0.0
        %8672 = vmatmul.mubr.f32.gmra.mrb[0].mxu0 %v8057
        %v8673 = vpop.f32.mrb[0].mxu0
        %v8674 = vadd.f32 %v8085, %v8673
        %v8675 = vpop.f32.mrb[0].mxu0
        %8676 = vmatprep.mubr.f32.mxu0 0.0
        %8677 = vmatmul.mubr.f32.gmra.mrb[0].mxu0 %v8058
        %v8678 = vpop.f32.mrb[0].mxu0
        %v8679 = vadd.f32 %v8085, %v8678
        %v8680 = vpop.f32.mrb[0].mxu0
        %8681 = vmatprep.mubr.f32.mxu0 0.0
        %8682 = vmatmul.mubr.f32.gmra.mrb[0].mxu0 %v8059
        %v8683 = vpop.f32.mrb[0].mxu0
        %v8684 = vadd.f32 %v8085, %v8683
        %v8685 = vpop.f32.mrb[0].mxu0
        %8686 = vmatprep.mubr.f32.mxu0 0.0
        %8687 = vmatmul.mubr.f32.gmra.mrb[0].mxu0 %v8060
        %v8688 = vpop.f32.mrb[0].mxu0
        %v8689 = vadd.f32 %v8085, %v8688
        %v8690 = vpop.f32.mrb[0].mxu0
        %8691 = vmatprep.mubr.f32.mxu0 0.0
        %8692 = vmatmul.mubr.f32.gmra.mrb[0].mxu0 %v8061
        %v8693 = vpop.f32.mrb[0].mxu0
        %v8694 = vadd.f32 %v8085, %v8693
        %v8695 = vpop.f32.mrb[0].mxu0
        %8696 = vmatprep.mubr.f32.mxu0 0.0
        %8697 = vmatmul.mubr.f32.gmra.mrb[0].mxu0 %v8062
        %v8698 = vpop.f32.mrb[0].mxu0
        %v8699 = vadd.f32 %v8085, %v8698
        %v8700 = vpop.f32.mrb[0].mxu0
        %8701 = vmatprep.mubr.f32.mxu0 0.0
        %8702 = vmatmul.mubr.f32.gmra.mrb[0].mxu0 %v8063
        %v8703 = vpop.f32.mrb[0].mxu0
        %v8704 = vadd.f32 %v8085, %v8703
        %v8705 = vpop.f32.mrb[0].mxu0
        %8706 = vmatprep.mubr.f32.mxu0 0.0
        %8707 = vmatmul.mubr.f32.gmra.mrb[0].mxu0 %v8064
        %v8708 = vpop.f32.mrb[0].mxu0
        %v8709 = vadd.f32 %v8085, %v8708
        %v8710 = vpop.f32.mrb[0].mxu0
        %8711 = vmatprep.mubr.f32.mxu0 0.0
        %8712 = vmatmul.mubr.f32.gmra.mrb[0].mxu0 %v8065
        %v8713 = vpop.f32.mrb[0].mxu0
        %v8714 = vadd.f32 %v8085, %v8713
        %v8715 = vpop.f32.mrb[0].mxu0
        %8716 = vmatprep.mubr.f32.mxu0 0.0
        %8717 = vmatmul.mubr.f32.gmra.mrb[0].mxu0 %v8066
        %v8718 = vpop.f32.mrb[0].mxu0
        %v8719 = vadd.f32 %v8085, %v8718
        %v8720 = vpop.f32.mrb[0].mxu0
        %8721 = vmatprep.mubr.f32.mxu0 0.0
        %8722 = vmatmul.mubr.f32.gmra.mrb[0].mxu0 %v8067
        %v8723 = vpop.f32.mrb[0].mxu0
        %v8724 = vadd.f32 %v8085, %v8723
        %v8725 = vpop.f32.mrb[0].mxu0
        %8726 = vmatprep.mubr.f32.mxu0 0.0
        %8727 = vmatmul.mubr.f32.gmra.mrb[0].mxu0 %v8068
        %v8728 = vpop.f32.mrb[0].mxu0
        %v8729 = vadd.f32 %v8085, %v8728
        %v8730 = vpop.f32.mrb[0].mxu0
        %8731 = vmatprep.mubr.f32.mxu0 0.0
        %8732 = vmatmul.mubr.f32.gmra.mrb[0].mxu0 %v8069
        %v8733 = vpop.f32.mrb[0].mxu0
        %v8734 = vadd.f32 %v8085, %v8733
        %v8735 = vpop.f32.mrb[0].mxu0
        %8736 = vmatprep.mubr.f32.mxu0 0.0
        %8737 = vmatmul.mubr.f32.gmra.mrb[0].mxu0 %v8070
        %v8738 = vpop.f32.mrb[0].mxu0
        %v8739 = vadd.f32 %v8085, %v8738
        %v8740 = vpop.f32.mrb[0].mxu0
        %8741 = vmatprep.mubr.f32.mxu0 0.0
        %8742 = vmatmul.mubr.f32.gmra.mrb[0].mxu0 %v8071
        %v8743 = vpop.f32.mrb[0].mxu0
        %v8744 = vadd.f32 %v8085, %v8743
        %v8745 = vpop.f32.mrb[0].mxu0
        %8746 = vmatprep.mubr.f32.mxu0 0.0
        %8747 = vmatmul.mubr.f32.gmra.mrb[0].mxu0 %v8072
        %v8748 = vpop.f32.mrb[0].mxu0
        %v8749 = vadd.f32 %v8085, %v8748
        %v8750 = vpop.f32.mrb[0].mxu0
        %8751 = vmatprep.mubr.f32.mxu0 0.0
        %8752 = vmatmul.mubr.f32.gmra.mrb[0].mxu0 %v8073
        %v8753 = vpop.f32.mrb[0].mxu0
        %v8754 = vadd.f32 %v8085, %v8753
        %v8755 = vpop.f32.mrb[0].mxu0
        %8756 = vmatprep.mubr.f32.mxu0 0.0
        %8757 = vmatmul.mubr.f32.gmra.mrb[0].mxu0 %v8074
        %v8758 = vpop.f32.mrb[0].mxu0
        %v8759 = vadd.f32 %v8085, %v8758
        %v8760 = vpop.f32.mrb[0].mxu0
        %8761 = vmatprep.mubr.f32.mxu0 0.0
        %8762 = vmatmul.mubr.f32.gmra.mrb[0].mxu0 %v8075
        %v8763 = vpop.f32.mrb[0].mxu0
        %v8764 = vadd.f32 %v8085, %v8763
        %v8765 = vpop.f32.mrb[0].mxu0
        %8766 = vmatprep.mubr.f32.mxu0 0.0
        %8767 = vmatmul.mubr.f32.gmra.mrb[0].mxu0 %v8076
        %v8768 = vpop.f32.mrb[0].mxu0
        %v8769 = vadd.f32 %v8085, %v8768
        %v8770 = vpop.f32.mrb[0].mxu0
        %8771 = vmatprep.mubr.f32.mxu0 0.0
        %8772 = vmatmul.mubr.f32.gmra.mrb[0].mxu0 %v8077
        %v8773 = vpop.f32.mrb[0].mxu0
        %v8774 = vadd.f32 %v8085, %v8773
        %v8775 = vpop.f32.mrb[0].mxu0
        %8776 = vmatprep.mubr.f32.mxu0 0.0
        %8777 = vmatmul.mubr.f32.gmra.mrb[0].mxu0 %v8078
        %v8778 = vpop.f32.mrb[0].mxu0
        %v8779 = vadd.f32 %v8085, %v8778
        %v8780 = vpop.f32.mrb[0].mxu0
        %8781 = vmatprep.mubr.f32.mxu0 0.0
        %8782 = vmatmul.mubr.f32.gmra.mrb[0].mxu0 %v8079
        %v8783 = vpop.f32.mrb[0].mxu0
        %v8784 = vadd.f32 %v8085, %v8783
        %v8785 = vpop.f32.mrb[0].mxu0
        %8786 = vmatprep.mubr.f32.mxu0 0.0
        %8787 = vmatmul.mubr.f32.gmra.mrb[0].mxu0 %v8080
        %v8788 = vpop.f32.mrb[0].mxu0
        %v8789 = vadd.f32 %v8085, %v8788
        %v8790 = vpop.f32.mrb[0].mxu0
        %8791 = vdwg.mxu0
        %vm8792 = vcmask 64512
        %8793 = vst.msk [vmem:[%s226] sm:$0xff] %vm8792, %v8154
        %8794 = vst.msk [vmem:[%s226 + $0x8] sm:$0xff] %vm8792, %v8159
        %8795 = vst.msk [vmem:[%s226 + $0x10] sm:$0xff] %vm8792, %v8164
        %8796 = vst.msk [vmem:[%s226 + $0x18] sm:$0xff] %vm8792, %v8169
        %8797 = vst.msk [vmem:[%s226 + $0x20] sm:$0xff] %vm8792, %v8174
        %8798 = vst.msk [vmem:[%s226 + $0x28] sm:$0xff] %vm8792, %v8179
        %8799 = vst.msk [vmem:[%s226 + $0x30] sm:$0xff] %vm8792, %v8184
        %8800 = vst.msk [vmem:[%s226 + $0x38] sm:$0xff] %vm8792, %v8189
        %8801 = vst.msk [vmem:[%s226 + $0x40] sm:$0xff] %vm8792, %v8194
        %8802 = vst.msk [vmem:[%s226 + $0x48] sm:$0xff] %vm8792, %v8199
        %8803 = vst.msk [vmem:[%s226 + $0x50] sm:$0xff] %vm8792, %v8204
        %8804 = vst.msk [vmem:[%s226 + $0x58] sm:$0xff] %vm8792, %v8209
        %8805 = vst.msk [vmem:[%s226 + $0x60] sm:$0xff] %vm8792, %v8214
        %8806 = vst.msk [vmem:[%s226 + $0x68] sm:$0xff] %vm8792, %v8219
        %8807 = vst.msk [vmem:[%s226 + $0x70] sm:$0xff] %vm8792, %v8224
        %8808 = vst.msk [vmem:[%s226 + $0x78] sm:$0xff] %vm8792, %v8229
        %8809 = vst.msk [vmem:[%s226 + $0x80] sm:$0xff] %vm8792, %v8234
        %8810 = vst.msk [vmem:[%s226 + $0x88] sm:$0xff] %vm8792, %v8239
        %8811 = vst.msk [vmem:[%s226 + $0x90] sm:$0xff] %vm8792, %v8244
        %8812 = vst.msk [vmem:[%s226 + $0x98] sm:$0xff] %vm8792, %v8249
        %8813 = vst.msk [vmem:[%s226 + $0xa0] sm:$0xff] %vm8792, %v8254
        %8814 = vst.msk [vmem:[%s226 + $0xa8] sm:$0xff] %vm8792, %v8259
        %8815 = vst.msk [vmem:[%s226 + $0xb0] sm:$0xff] %vm8792, %v8264
        %8816 = vst.msk [vmem:[%s226 + $0xb8] sm:$0xff] %vm8792, %v8269
        %8817 = vst.msk [vmem:[%s226 + $0xc0] sm:$0xff] %vm8792, %v8274
        %8818 = vst.msk [vmem:[%s226 + $0xc8] sm:$0xff] %vm8792, %v8279
        %8819 = vst.msk [vmem:[%s226 + $0xd0] sm:$0xff] %vm8792, %v8284
        %8820 = vst.msk [vmem:[%s226 + $0xd8] sm:$0xff] %vm8792, %v8289
        %8821 = vst.msk [vmem:[%s226 + $0xe0] sm:$0xff] %vm8792, %v8294
        %8822 = vst.msk [vmem:[%s226 + $0xe8] sm:$0xff] %vm8792, %v8299
        %8823 = vst.msk [vmem:[%s226 + $0xf0] sm:$0xff] %vm8792, %v8304
        %8824 = vst.msk [vmem:[%s226 + $0xf8] sm:$0xff] %vm8792, %v8309
        %8825 = vst.msk [vmem:[%s226 + $0x100] sm:$0xff] %vm8792, %v8314
        %8826 = vst.msk [vmem:[%s226 + $0x108] sm:$0xff] %vm8792, %v8319
        %8827 = vst.msk [vmem:[%s226 + $0x110] sm:$0xff] %vm8792, %v8324
        %8828 = vst.msk [vmem:[%s226 + $0x118] sm:$0xff] %vm8792, %v8329
        %8829 = vst.msk [vmem:[%s226 + $0x120] sm:$0xff] %vm8792, %v8334
        %8830 = vst.msk [vmem:[%s226 + $0x128] sm:$0xff] %vm8792, %v8339
        %8831 = vst.msk [vmem:[%s226 + $0x130] sm:$0xff] %vm8792, %v8344
        %8832 = vst.msk [vmem:[%s226 + $0x138] sm:$0xff] %vm8792, %v8349
        %8833 = vst.msk [vmem:[%s226 + $0x140] sm:$0xff] %vm8792, %v8354
        %8834 = vst.msk [vmem:[%s226 + $0x148] sm:$0xff] %vm8792, %v8359
        %8835 = vst.msk [vmem:[%s226 + $0x150] sm:$0xff] %vm8792, %v8364
        %8836 = vst.msk [vmem:[%s226 + $0x158] sm:$0xff] %vm8792, %v8369
        %8837 = vst.msk [vmem:[%s226 + $0x160] sm:$0xff] %vm8792, %v8374
        %8838 = vst.msk [vmem:[%s226 + $0x168] sm:$0xff] %vm8792, %v8379
        %8839 = vst.msk [vmem:[%s226 + $0x170] sm:$0xff] %vm8792, %v8384
        %8840 = vst.msk [vmem:[%s226 + $0x178] sm:$0xff] %vm8792, %v8389
        %8841 = vst.msk [vmem:[%s226 + $0x180] sm:$0xff] %vm8792, %v8394
        %8842 = vst.msk [vmem:[%s226 + $0x188] sm:$0xff] %vm8792, %v8399
        %8843 = vst.msk [vmem:[%s226 + $0x190] sm:$0xff] %vm8792, %v8404
        %8844 = vst.msk [vmem:[%s226 + $0x198] sm:$0xff] %vm8792, %v8409
        %8845 = vst.msk [vmem:[%s226 + $0x1a0] sm:$0xff] %vm8792, %v8414
        %8846 = vst.msk [vmem:[%s226 + $0x1a8] sm:$0xff] %vm8792, %v8419
        %8847 = vst.msk [vmem:[%s226 + $0x1b0] sm:$0xff] %vm8792, %v8424
        %8848 = vst.msk [vmem:[%s226 + $0x1b8] sm:$0xff] %vm8792, %v8429
        %8849 = vst.msk [vmem:[%s226 + $0x1c0] sm:$0xff] %vm8792, %v8434
        %8850 = vst.msk [vmem:[%s226 + $0x1c8] sm:$0xff] %vm8792, %v8439
        %8851 = vst.msk [vmem:[%s226 + $0x1d0] sm:$0xff] %vm8792, %v8444
        %8852 = vst.msk [vmem:[%s226 + $0x1d8] sm:$0xff] %vm8792, %v8449
        %8853 = vst.msk [vmem:[%s226 + $0x1e0] sm:$0xff] %vm8792, %v8454
        %8854 = vst.msk [vmem:[%s226 + $0x1e8] sm:$0xff] %vm8792, %v8459
        %8855 = vst.msk [vmem:[%s226 + $0x1f0] sm:$0xff] %vm8792, %v8464
        %8856 = vst.msk [vmem:[%s226 + $0x1f8] sm:$0xff] %vm8792, %v8469
        %8857 = vst.msk [vmem:[%s226 + $0x200] sm:$0xff] %vm8792, %v8474
        %8858 = vst.msk [vmem:[%s226 + $0x208] sm:$0xff] %vm8792, %v8479
        %8859 = vst.msk [vmem:[%s226 + $0x210] sm:$0xff] %vm8792, %v8484
        %8860 = vst.msk [vmem:[%s226 + $0x218] sm:$0xff] %vm8792, %v8489
        %8861 = vst.msk [vmem:[%s226 + $0x220] sm:$0xff] %vm8792, %v8494
        %8862 = vst.msk [vmem:[%s226 + $0x228] sm:$0xff] %vm8792, %v8499
        %8863 = vst.msk [vmem:[%s226 + $0x230] sm:$0xff] %vm8792, %v8504
        %8864 = vst.msk [vmem:[%s226 + $0x238] sm:$0xff] %vm8792, %v8509
        %8865 = vst.msk [vmem:[%s226 + $0x240] sm:$0xff] %vm8792, %v8514
        %8866 = vst.msk [vmem:[%s226 + $0x248] sm:$0xff] %vm8792, %v8519
        %8867 = vst.msk [vmem:[%s226 + $0x250] sm:$0xff] %vm8792, %v8524
        %8868 = vst.msk [vmem:[%s226 + $0x258] sm:$0xff] %vm8792, %v8529
        %8869 = vst.msk [vmem:[%s226 + $0x260] sm:$0xff] %vm8792, %v8534
        %8870 = vst.msk [vmem:[%s226 + $0x268] sm:$0xff] %vm8792, %v8539
        %8871 = vst.msk [vmem:[%s226 + $0x270] sm:$0xff] %vm8792, %v8544
        %8872 = vst.msk [vmem:[%s226 + $0x278] sm:$0xff] %vm8792, %v8549
        %8873 = vst.msk [vmem:[%s226 + $0x280] sm:$0xff] %vm8792, %v8554
        %8874 = vst.msk [vmem:[%s226 + $0x288] sm:$0xff] %vm8792, %v8559
        %8875 = vst.msk [vmem:[%s226 + $0x290] sm:$0xff] %vm8792, %v8564
        %8876 = vst.msk [vmem:[%s226 + $0x298] sm:$0xff] %vm8792, %v8569
        %8877 = vst.msk [vmem:[%s226 + $0x2a0] sm:$0xff] %vm8792, %v8574
        %8878 = vst.msk [vmem:[%s226 + $0x2a8] sm:$0xff] %vm8792, %v8579
        %8879 = vst.msk [vmem:[%s226 + $0x2b0] sm:$0xff] %vm8792, %v8584
        %8880 = vst.msk [vmem:[%s226 + $0x2b8] sm:$0xff] %vm8792, %v8589
        %8881 = vst.msk [vmem:[%s226 + $0x2c0] sm:$0xff] %vm8792, %v8594
        %8882 = vst.msk [vmem:[%s226 + $0x2c8] sm:$0xff] %vm8792, %v8599
        %8883 = vst.msk [vmem:[%s226 + $0x2d0] sm:$0xff] %vm8792, %v8604
        %8884 = vst.msk [vmem:[%s226 + $0x2d8] sm:$0xff] %vm8792, %v8609
        %8885 = vst.msk [vmem:[%s226 + $0x2e0] sm:$0xff] %vm8792, %v8614
        %8886 = vst.msk [vmem:[%s226 + $0x2e8] sm:$0xff] %vm8792, %v8619
        %8887 = vst.msk [vmem:[%s226 + $0x2f0] sm:$0xff] %vm8792, %v8624
        %8888 = vst.msk [vmem:[%s226 + $0x2f8] sm:$0xff] %vm8792, %v8629
        %8889 = vst.msk [vmem:[%s226 + $0x300] sm:$0xff] %vm8792, %v8634
        %8890 = vst.msk [vmem:[%s226 + $0x308] sm:$0xff] %vm8792, %v8639
        %8891 = vst.msk [vmem:[%s226 + $0x310] sm:$0xff] %vm8792, %v8644
        %8892 = vst.msk [vmem:[%s226 + $0x318] sm:$0xff] %vm8792, %v8649
        %8893 = vst.msk [vmem:[%s226 + $0x320] sm:$0xff] %vm8792, %v8654
        %8894 = vst.msk [vmem:[%s226 + $0x328] sm:$0xff] %vm8792, %v8659
        %8895 = vst.msk [vmem:[%s226 + $0x330] sm:$0xff] %vm8792, %v8664
        %8896 = vst.msk [vmem:[%s226 + $0x338] sm:$0xff] %vm8792, %v8669
        %8897 = vst.msk [vmem:[%s226 + $0x340] sm:$0xff] %vm8792, %v8674
        %8898 = vst.msk [vmem:[%s226 + $0x348] sm:$0xff] %vm8792, %v8679
        %8899 = vst.msk [vmem:[%s226 + $0x350] sm:$0xff] %vm8792, %v8684
        %8900 = vst.msk [vmem:[%s226 + $0x358] sm:$0xff] %vm8792, %v8689
        %8901 = vst.msk [vmem:[%s226 + $0x360] sm:$0xff] %vm8792, %v8694
        %8902 = vst.msk [vmem:[%s226 + $0x368] sm:$0xff] %vm8792, %v8699
        %8903 = vst.msk [vmem:[%s226 + $0x370] sm:$0xff] %vm8792, %v8704
        %8904 = vst.msk [vmem:[%s226 + $0x378] sm:$0xff] %vm8792, %v8709
        %8905 = vst.msk [vmem:[%s226 + $0x380] sm:$0xff] %vm8792, %v8714
        %8906 = vst.msk [vmem:[%s226 + $0x388] sm:$0xff] %vm8792, %v8719
        %8907 = vst.msk [vmem:[%s226 + $0x390] sm:$0xff] %vm8792, %v8724
        %8908 = vst.msk [vmem:[%s226 + $0x398] sm:$0xff] %vm8792, %v8729
        %8909 = vst.msk [vmem:[%s226 + $0x3a0] sm:$0xff] %vm8792, %v8734
        %8910 = vst.msk [vmem:[%s226 + $0x3a8] sm:$0xff] %vm8792, %v8739
        %8911 = vst.msk [vmem:[%s226 + $0x3b0] sm:$0xff] %vm8792, %v8744
        %8912 = vst.msk [vmem:[%s226 + $0x3b8] sm:$0xff] %vm8792, %v8749
        %8913 = vst.msk [vmem:[%s226 + $0x3c0] sm:$0xff] %vm8792, %v8754
        %8914 = vst.msk [vmem:[%s226 + $0x3c8] sm:$0xff] %vm8792, %v8759
        %8915 = vst.msk [vmem:[%s226 + $0x3d0] sm:$0xff] %vm8792, %v8764
        %8916 = vst.msk [vmem:[%s226 + $0x3d8] sm:$0xff] %vm8792, %v8769
        %8917 = vst.msk [vmem:[%s226 + $0x3e0] sm:$0xff] %vm8792, %v8774
        %8918 = vst.msk [vmem:[%s226 + $0x3e8] sm:$0xff] %vm8792, %v8779
        %8919 = vst.msk [vmem:[%s226 + $0x3f0] sm:$0xff] %vm8792, %v8784
        %8920 = vst.msk [vmem:[%s226 + $0x3f8] sm:$0xff] %vm8792, %v8789
        %s8921 = sand.u32 %s134, 1
        %s8922 = sand.u32 %s134, 1
        %s8923 = smul.addr %s8922, 1024
        %s8924 = scalar_lea.vmem [#allocation2], %s8923
        // Predicated region
        $region41: #{pinn_forward.1} parent=39 // pred_check
          %p8925 = pneg %p144
        $region42: #{pinn_forward.1} parent=39 // pred_check_branch
          %8927 = sbr.rel (%p8925) target = $region44
        $region43: #{pinn_forward.1} parent=39 // pred_region
          %s8928 = smul.u32 128, %s16
          %s8929 = ssub.s32 313, %s8928
          %p8930 = scmp.lt.s32.totalorder %s8929, 128
          %s8931 = scalar_select %p8930, %s8929, 128
          %s8932 = smul.u32 128, %s8931
          %p8933 = scmp.ne.s32.totalorder 0, %s8932
          %s8934 = smul.addr %s8928, 8
          %s8935 = scalar_lea.vmem %s5, %s8934
          // Predicated region
          $region45: #{pinn_forward.1} parent=43 // pred_check
            %p8936 = pneg %p8933
          $region46: #{pinn_forward.1} parent=43 // pred_check_branch
            %8938 = sbr.rel (%p8936) target = $region48
          $region47: #{pinn_forward.1} parent=43 // pred_region
            // Predicated region
            $region49: #{pinn_forward.1} parent=47 // pred_check
              _
            $region50: #{pinn_forward.1} parent=47 // pred_check_branch
              %8940 = sbr.rel (0) target = $region52
            $region51: #{pinn_forward.1} parent=47 // pred_region
              // Predicated region
              $region71: #{pinn_forward.1} parent=51 // pred_check
                _
              $region72: #{pinn_forward.1} parent=51 // pred_check_branch
                %9115 = sbr.rel (0) target = $region74
              $region73: #{pinn_forward.1} parent=51 // pred_region
                %s9116 = sshrl.u32 %s8931, 6
                // While loop
                $region75: #{pinn_forward.1} parent=73 // loop_pre_header
                  _
                $region76: #{pinn_forward.1} parent=73 // loop_header
                  %s9118 = sphi 0, %s9120
                  %p9119 = scmp.ge.s32.totalorder %s9118, %s9116
                  %s9123 = sphi 0, %s9256
                  %s9124 = sphi %s8924, %s9259
                  %s9125 = sphi %s8935, %s9260
                $region77: #{pinn_forward.1} parent=73 // loop_header_branch
                  %9122 = sbr.rel (%p9119) target = $region81
                $region78: #{pinn_forward.1} parent=73 // loop_body
                  %v9126 = vld [vmem:[%s9124] sm:$0xff]
                  %9127 = vst [vmem:[%s9125] sm:$0xff] %v9126
                  %v9128 = vld [vmem:[%s9124 + $0x8] sm:$0xff]
                  %9129 = vst [vmem:[%s9125 + $0x8] sm:$0xff] %v9128
                  %v9130 = vld [vmem:[%s9124 + $0x10] sm:$0xff]
                  %9131 = vst [vmem:[%s9125 + $0x10] sm:$0xff] %v9130
                  %v9132 = vld [vmem:[%s9124 + $0x18] sm:$0xff]
                  %9133 = vst [vmem:[%s9125 + $0x18] sm:$0xff] %v9132
                  %v9134 = vld [vmem:[%s9124 + $0x20] sm:$0xff]
                  %9135 = vst [vmem:[%s9125 + $0x20] sm:$0xff] %v9134
                  %v9136 = vld [vmem:[%s9124 + $0x28] sm:$0xff]
                  %9137 = vst [vmem:[%s9125 + $0x28] sm:$0xff] %v9136
                  %v9138 = vld [vmem:[%s9124 + $0x30] sm:$0xff]
                  %9139 = vst [vmem:[%s9125 + $0x30] sm:$0xff] %v9138
                  %v9140 = vld [vmem:[%s9124 + $0x38] sm:$0xff]
                  %9141 = vst [vmem:[%s9125 + $0x38] sm:$0xff] %v9140
                  %v9142 = vld [vmem:[%s9124 + $0x40] sm:$0xff]
                  %9143 = vst [vmem:[%s9125 + $0x40] sm:$0xff] %v9142
                  %v9144 = vld [vmem:[%s9124 + $0x48] sm:$0xff]
                  %9145 = vst [vmem:[%s9125 + $0x48] sm:$0xff] %v9144
                  %v9146 = vld [vmem:[%s9124 + $0x50] sm:$0xff]
                  %9147 = vst [vmem:[%s9125 + $0x50] sm:$0xff] %v9146
                  %v9148 = vld [vmem:[%s9124 + $0x58] sm:$0xff]
                  %9149 = vst [vmem:[%s9125 + $0x58] sm:$0xff] %v9148
                  %v9150 = vld [vmem:[%s9124 + $0x60] sm:$0xff]
                  %9151 = vst [vmem:[%s9125 + $0x60] sm:$0xff] %v9150
                  %v9152 = vld [vmem:[%s9124 + $0x68] sm:$0xff]
                  %9153 = vst [vmem:[%s9125 + $0x68] sm:$0xff] %v9152
                  %v9154 = vld [vmem:[%s9124 + $0x70] sm:$0xff]
                  %9155 = vst [vmem:[%s9125 + $0x70] sm:$0xff] %v9154
                  %v9156 = vld [vmem:[%s9124 + $0x78] sm:$0xff]
                  %9157 = vst [vmem:[%s9125 + $0x78] sm:$0xff] %v9156
                  %v9158 = vld [vmem:[%s9124 + $0x80] sm:$0xff]
                  %9159 = vst [vmem:[%s9125 + $0x80] sm:$0xff] %v9158
                  %v9160 = vld [vmem:[%s9124 + $0x88] sm:$0xff]
                  %9161 = vst [vmem:[%s9125 + $0x88] sm:$0xff] %v9160
                  %v9162 = vld [vmem:[%s9124 + $0x90] sm:$0xff]
                  %9163 = vst [vmem:[%s9125 + $0x90] sm:$0xff] %v9162
                  %v9164 = vld [vmem:[%s9124 + $0x98] sm:$0xff]
                  %9165 = vst [vmem:[%s9125 + $0x98] sm:$0xff] %v9164
                  %v9166 = vld [vmem:[%s9124 + $0xa0] sm:$0xff]
                  %9167 = vst [vmem:[%s9125 + $0xa0] sm:$0xff] %v9166
                  %v9168 = vld [vmem:[%s9124 + $0xa8] sm:$0xff]
                  %9169 = vst [vmem:[%s9125 + $0xa8] sm:$0xff] %v9168
                  %v9170 = vld [vmem:[%s9124 + $0xb0] sm:$0xff]
                  %9171 = vst [vmem:[%s9125 + $0xb0] sm:$0xff] %v9170
                  %v9172 = vld [vmem:[%s9124 + $0xb8] sm:$0xff]
                  %9173 = vst [vmem:[%s9125 + $0xb8] sm:$0xff] %v9172
                  %v9174 = vld [vmem:[%s9124 + $0xc0] sm:$0xff]
                  %9175 = vst [vmem:[%s9125 + $0xc0] sm:$0xff] %v9174
                  %v9176 = vld [vmem:[%s9124 + $0xc8] sm:$0xff]
                  %9177 = vst [vmem:[%s9125 + $0xc8] sm:$0xff] %v9176
                  %v9178 = vld [vmem:[%s9124 + $0xd0] sm:$0xff]
                  %9179 = vst [vmem:[%s9125 + $0xd0] sm:$0xff] %v9178
                  %v9180 = vld [vmem:[%s9124 + $0xd8] sm:$0xff]
                  %9181 = vst [vmem:[%s9125 + $0xd8] sm:$0xff] %v9180
                  %v9182 = vld [vmem:[%s9124 + $0xe0] sm:$0xff]
                  %9183 = vst [vmem:[%s9125 + $0xe0] sm:$0xff] %v9182
                  %v9184 = vld [vmem:[%s9124 + $0xe8] sm:$0xff]
                  %9185 = vst [vmem:[%s9125 + $0xe8] sm:$0xff] %v9184
                  %v9186 = vld [vmem:[%s9124 + $0xf0] sm:$0xff]
                  %9187 = vst [vmem:[%s9125 + $0xf0] sm:$0xff] %v9186
                  %v9188 = vld [vmem:[%s9124 + $0xf8] sm:$0xff]
                  %9189 = vst [vmem:[%s9125 + $0xf8] sm:$0xff] %v9188
                  %v9190 = vld [vmem:[%s9124 + $0x100] sm:$0xff]
                  %9191 = vst [vmem:[%s9125 + $0x100] sm:$0xff] %v9190
                  %v9192 = vld [vmem:[%s9124 + $0x108] sm:$0xff]
                  %9193 = vst [vmem:[%s9125 + $0x108] sm:$0xff] %v9192
                  %v9194 = vld [vmem:[%s9124 + $0x110] sm:$0xff]
                  %9195 = vst [vmem:[%s9125 + $0x110] sm:$0xff] %v9194
                  %v9196 = vld [vmem:[%s9124 + $0x118] sm:$0xff]
                  %9197 = vst [vmem:[%s9125 + $0x118] sm:$0xff] %v9196
                  %v9198 = vld [vmem:[%s9124 + $0x120] sm:$0xff]
                  %9199 = vst [vmem:[%s9125 + $0x120] sm:$0xff] %v9198
                  %v9200 = vld [vmem:[%s9124 + $0x128] sm:$0xff]
                  %9201 = vst [vmem:[%s9125 + $0x128] sm:$0xff] %v9200
                  %v9202 = vld [vmem:[%s9124 + $0x130] sm:$0xff]
                  %9203 = vst [vmem:[%s9125 + $0x130] sm:$0xff] %v9202
                  %v9204 = vld [vmem:[%s9124 + $0x138] sm:$0xff]
                  %9205 = vst [vmem:[%s9125 + $0x138] sm:$0xff] %v9204
                  %v9206 = vld [vmem:[%s9124 + $0x140] sm:$0xff]
                  %9207 = vst [vmem:[%s9125 + $0x140] sm:$0xff] %v9206
                  %v9208 = vld [vmem:[%s9124 + $0x148] sm:$0xff]
                  %9209 = vst [vmem:[%s9125 + $0x148] sm:$0xff] %v9208
                  %v9210 = vld [vmem:[%s9124 + $0x150] sm:$0xff]
                  %9211 = vst [vmem:[%s9125 + $0x150] sm:$0xff] %v9210
                  %v9212 = vld [vmem:[%s9124 + $0x158] sm:$0xff]
                  %9213 = vst [vmem:[%s9125 + $0x158] sm:$0xff] %v9212
                  %v9214 = vld [vmem:[%s9124 + $0x160] sm:$0xff]
                  %9215 = vst [vmem:[%s9125 + $0x160] sm:$0xff] %v9214
                  %v9216 = vld [vmem:[%s9124 + $0x168] sm:$0xff]
                  %9217 = vst [vmem:[%s9125 + $0x168] sm:$0xff] %v9216
                  %v9218 = vld [vmem:[%s9124 + $0x170] sm:$0xff]
                  %9219 = vst [vmem:[%s9125 + $0x170] sm:$0xff] %v9218
                  %v9220 = vld [vmem:[%s9124 + $0x178] sm:$0xff]
                  %9221 = vst [vmem:[%s9125 + $0x178] sm:$0xff] %v9220
                  %v9222 = vld [vmem:[%s9124 + $0x180] sm:$0xff]
                  %9223 = vst [vmem:[%s9125 + $0x180] sm:$0xff] %v9222
                  %v9224 = vld [vmem:[%s9124 + $0x188] sm:$0xff]
                  %9225 = vst [vmem:[%s9125 + $0x188] sm:$0xff] %v9224
                  %v9226 = vld [vmem:[%s9124 + $0x190] sm:$0xff]
                  %9227 = vst [vmem:[%s9125 + $0x190] sm:$0xff] %v9226
                  %v9228 = vld [vmem:[%s9124 + $0x198] sm:$0xff]
                  %9229 = vst [vmem:[%s9125 + $0x198] sm:$0xff] %v9228
                  %v9230 = vld [vmem:[%s9124 + $0x1a0] sm:$0xff]
                  %9231 = vst [vmem:[%s9125 + $0x1a0] sm:$0xff] %v9230
                  %v9232 = vld [vmem:[%s9124 + $0x1a8] sm:$0xff]
                  %9233 = vst [vmem:[%s9125 + $0x1a8] sm:$0xff] %v9232
                  %v9234 = vld [vmem:[%s9124 + $0x1b0] sm:$0xff]
                  %9235 = vst [vmem:[%s9125 + $0x1b0] sm:$0xff] %v9234
                  %v9236 = vld [vmem:[%s9124 + $0x1b8] sm:$0xff]
                  %9237 = vst [vmem:[%s9125 + $0x1b8] sm:$0xff] %v9236
                  %v9238 = vld [vmem:[%s9124 + $0x1c0] sm:$0xff]
                  %9239 = vst [vmem:[%s9125 + $0x1c0] sm:$0xff] %v9238
                  %v9240 = vld [vmem:[%s9124 + $0x1c8] sm:$0xff]
                  %9241 = vst [vmem:[%s9125 + $0x1c8] sm:$0xff] %v9240
                  %v9242 = vld [vmem:[%s9124 + $0x1d0] sm:$0xff]
                  %9243 = vst [vmem:[%s9125 + $0x1d0] sm:$0xff] %v9242
                  %v9244 = vld [vmem:[%s9124 + $0x1d8] sm:$0xff]
                  %9245 = vst [vmem:[%s9125 + $0x1d8] sm:$0xff] %v9244
                  %v9246 = vld [vmem:[%s9124 + $0x1e0] sm:$0xff]
                  %9247 = vst [vmem:[%s9125 + $0x1e0] sm:$0xff] %v9246
                  %v9248 = vld [vmem:[%s9124 + $0x1e8] sm:$0xff]
                  %9249 = vst [vmem:[%s9125 + $0x1e8] sm:$0xff] %v9248
                  %v9250 = vld [vmem:[%s9124 + $0x1f0] sm:$0xff]
                  %9251 = vst [vmem:[%s9125 + $0x1f0] sm:$0xff] %v9250
                  %v9252 = vld [vmem:[%s9124 + $0x1f8] sm:$0xff]
                  %9253 = vst [vmem:[%s9125 + $0x1f8] sm:$0xff] %v9252
                  %s9254 = sadd.s32 1, %s9123
                  %p9255 = scmp.ge.s32.totalorder %s9254, %s9116
                  %s9256 = scalar_select %p9255, 0, %s9254
                  %s9257 = smul.u32 %s9256, 512
                  %s9258 = smul.u32 %s9256, 512
                  %s9259 = scalar_lea.vmem %s8924, %s9257 [#allocation2]
                  %s9260 = scalar_lea.vmem %s8935, %s9258
                $region79: #{pinn_forward.1} parent=73 // loop_footer
                  %s9120 = sadd.s32 %s9118, 1
                $region80: #{pinn_forward.1} parent=73 // loop_footer_branch
                  %9117 = sbr.rel target = $region76
                $region81: #{pinn_forward.1} parent=73 // loop_exit
                  _
                %s9261 = sshrl.u32 %s8931, 6
                %s9262 = sand.u32 %s8931, 63
                %s9263 = smul.u32 %s9261, 64
                %s9264 = smul.u32 8, %s9263
                %s9265 = scalar_lea.vmem %s8924, %s9264 [#allocation2]
                %s9266 = smul.u32 8, %s9263
                %s9267 = scalar_lea.vmem %s8935, %s9266
                // While loop
                $region82: #{pinn_forward.1} parent=73 // loop_pre_header
                  _
                $region83: #{pinn_forward.1} parent=73 // loop_header
                  %s9269 = sphi 0, %s9271
                  %p9270 = scmp.ge.s32.totalorder %s9269, %s9262
                  %s9274 = sphi 0, %s9281
                  %s9275 = sphi %s9265, %s9284
                  %s9276 = sphi %s9267, %s9285
                $region84: #{pinn_forward.1} parent=73 // loop_header_branch
                  %9273 = sbr.rel (%p9270) target = $region88
                $region85: #{pinn_forward.1} parent=73 // loop_body
                  %v9277 = vld [vmem:[%s9275] sm:$0xff]
                  %9278 = vst [vmem:[%s9276] sm:$0xff] %v9277
                  %s9279 = sadd.s32 1, %s9274
                  %p9280 = scmp.ge.s32.totalorder %s9279, %s9262
                  %s9281 = scalar_select %p9280, 0, %s9279
                  %s9282 = smul.u32 %s9281, 8
                  %s9283 = smul.u32 %s9281, 8
                  %s9284 = scalar_lea.vmem %s9265, %s9282 [#allocation2]
                  %s9285 = scalar_lea.vmem %s9267, %s9283
                $region86: #{pinn_forward.1} parent=73 // loop_footer
                  %s9271 = sadd.s32 %s9269, 1
                $region87: #{pinn_forward.1} parent=73 // loop_footer_branch
                  %9268 = sbr.rel target = $region83
                $region88: #{pinn_forward.1} parent=73 // loop_exit
                  _
              $region74: #{pinn_forward.1} parent=51 // pred_fallthru
                _
              // Predicated region
              $region89: #{pinn_forward.1} parent=51 // pred_check
                _
              $region90: #{pinn_forward.1} parent=51 // pred_check_branch
                %9287 = sbr.rel target = $region92
              $region91: #{pinn_forward.1} parent=51 // pred_region
                _
              $region92: #{pinn_forward.1} parent=51 // pred_fallthru
                _
            $region52: #{pinn_forward.1} parent=47 // pred_fallthru
              _
            // Predicated region
            $region53: #{pinn_forward.1} parent=47 // pred_check
              _
            $region54: #{pinn_forward.1} parent=47 // pred_check_branch
              %8942 = sbr.rel target = $region56
            $region55: #{pinn_forward.1} parent=47 // pred_region
              %s8944 = sshrl.u32 %s8931, 6
              // While loop
              $region57: #{pinn_forward.1} parent=55 // loop_pre_header
                _
              $region58: #{pinn_forward.1} parent=55 // loop_header
                %s8946 = sphi 0, %s8948
                %p8947 = scmp.ge.s32.totalorder %s8946, %s8944
                %s8951 = sphi 0, %s9084
                %s8952 = sphi %s8924, %s9087
                %s8953 = sphi %s8935, %s9088
              $region59: #{pinn_forward.1} parent=55 // loop_header_branch
                %8950 = sbr.rel (%p8947) target = $region63
              $region60: #{pinn_forward.1} parent=55 // loop_body
                %v8954 = vld [vmem:[%s8952] sm:$0xff]
                %8955 = vst [vmem:[%s8953] sm:$0xff] %v8954
                %v8956 = vld [vmem:[%s8952 + $0x8] sm:$0xff]
                %8957 = vst [vmem:[%s8953 + $0x8] sm:$0xff] %v8956
                %v8958 = vld [vmem:[%s8952 + $0x10] sm:$0xff]
                %8959 = vst [vmem:[%s8953 + $0x10] sm:$0xff] %v8958
                %v8960 = vld [vmem:[%s8952 + $0x18] sm:$0xff]
                %8961 = vst [vmem:[%s8953 + $0x18] sm:$0xff] %v8960
                %v8962 = vld [vmem:[%s8952 + $0x20] sm:$0xff]
                %8963 = vst [vmem:[%s8953 + $0x20] sm:$0xff] %v8962
                %v8964 = vld [vmem:[%s8952 + $0x28] sm:$0xff]
                %8965 = vst [vmem:[%s8953 + $0x28] sm:$0xff] %v8964
                %v8966 = vld [vmem:[%s8952 + $0x30] sm:$0xff]
                %8967 = vst [vmem:[%s8953 + $0x30] sm:$0xff] %v8966
                %v8968 = vld [vmem:[%s8952 + $0x38] sm:$0xff]
                %8969 = vst [vmem:[%s8953 + $0x38] sm:$0xff] %v8968
                %v8970 = vld [vmem:[%s8952 + $0x40] sm:$0xff]
                %8971 = vst [vmem:[%s8953 + $0x40] sm:$0xff] %v8970
                %v8972 = vld [vmem:[%s8952 + $0x48] sm:$0xff]
                %8973 = vst [vmem:[%s8953 + $0x48] sm:$0xff] %v8972
                %v8974 = vld [vmem:[%s8952 + $0x50] sm:$0xff]
                %8975 = vst [vmem:[%s8953 + $0x50] sm:$0xff] %v8974
                %v8976 = vld [vmem:[%s8952 + $0x58] sm:$0xff]
                %8977 = vst [vmem:[%s8953 + $0x58] sm:$0xff] %v8976
                %v8978 = vld [vmem:[%s8952 + $0x60] sm:$0xff]
                %8979 = vst [vmem:[%s8953 + $0x60] sm:$0xff] %v8978
                %v8980 = vld [vmem:[%s8952 + $0x68] sm:$0xff]
                %8981 = vst [vmem:[%s8953 + $0x68] sm:$0xff] %v8980
                %v8982 = vld [vmem:[%s8952 + $0x70] sm:$0xff]
                %8983 = vst [vmem:[%s8953 + $0x70] sm:$0xff] %v8982
                %v8984 = vld [vmem:[%s8952 + $0x78] sm:$0xff]
                %8985 = vst [vmem:[%s8953 + $0x78] sm:$0xff] %v8984
                %v8986 = vld [vmem:[%s8952 + $0x80] sm:$0xff]
                %8987 = vst [vmem:[%s8953 + $0x80] sm:$0xff] %v8986
                %v8988 = vld [vmem:[%s8952 + $0x88] sm:$0xff]
                %8989 = vst [vmem:[%s8953 + $0x88] sm:$0xff] %v8988
                %v8990 = vld [vmem:[%s8952 + $0x90] sm:$0xff]
                %8991 = vst [vmem:[%s8953 + $0x90] sm:$0xff] %v8990
                %v8992 = vld [vmem:[%s8952 + $0x98] sm:$0xff]
                %8993 = vst [vmem:[%s8953 + $0x98] sm:$0xff] %v8992
                %v8994 = vld [vmem:[%s8952 + $0xa0] sm:$0xff]
                %8995 = vst [vmem:[%s8953 + $0xa0] sm:$0xff] %v8994
                %v8996 = vld [vmem:[%s8952 + $0xa8] sm:$0xff]
                %8997 = vst [vmem:[%s8953 + $0xa8] sm:$0xff] %v8996
                %v8998 = vld [vmem:[%s8952 + $0xb0] sm:$0xff]
                %8999 = vst [vmem:[%s8953 + $0xb0] sm:$0xff] %v8998
                %v9000 = vld [vmem:[%s8952 + $0xb8] sm:$0xff]
                %9001 = vst [vmem:[%s8953 + $0xb8] sm:$0xff] %v9000
                %v9002 = vld [vmem:[%s8952 + $0xc0] sm:$0xff]
                %9003 = vst [vmem:[%s8953 + $0xc0] sm:$0xff] %v9002
                %v9004 = vld [vmem:[%s8952 + $0xc8] sm:$0xff]
                %9005 = vst [vmem:[%s8953 + $0xc8] sm:$0xff] %v9004
                %v9006 = vld [vmem:[%s8952 + $0xd0] sm:$0xff]
                %9007 = vst [vmem:[%s8953 + $0xd0] sm:$0xff] %v9006
                %v9008 = vld [vmem:[%s8952 + $0xd8] sm:$0xff]
                %9009 = vst [vmem:[%s8953 + $0xd8] sm:$0xff] %v9008
                %v9010 = vld [vmem:[%s8952 + $0xe0] sm:$0xff]
                %9011 = vst [vmem:[%s8953 + $0xe0] sm:$0xff] %v9010
                %v9012 = vld [vmem:[%s8952 + $0xe8] sm:$0xff]
                %9013 = vst [vmem:[%s8953 + $0xe8] sm:$0xff] %v9012
                %v9014 = vld [vmem:[%s8952 + $0xf0] sm:$0xff]
                %9015 = vst [vmem:[%s8953 + $0xf0] sm:$0xff] %v9014
                %v9016 = vld [vmem:[%s8952 + $0xf8] sm:$0xff]
                %9017 = vst [vmem:[%s8953 + $0xf8] sm:$0xff] %v9016
                %v9018 = vld [vmem:[%s8952 + $0x100] sm:$0xff]
                %9019 = vst [vmem:[%s8953 + $0x100] sm:$0xff] %v9018
                %v9020 = vld [vmem:[%s8952 + $0x108] sm:$0xff]
                %9021 = vst [vmem:[%s8953 + $0x108] sm:$0xff] %v9020
                %v9022 = vld [vmem:[%s8952 + $0x110] sm:$0xff]
                %9023 = vst [vmem:[%s8953 + $0x110] sm:$0xff] %v9022
                %v9024 = vld [vmem:[%s8952 + $0x118] sm:$0xff]
                %9025 = vst [vmem:[%s8953 + $0x118] sm:$0xff] %v9024
                %v9026 = vld [vmem:[%s8952 + $0x120] sm:$0xff]
                %9027 = vst [vmem:[%s8953 + $0x120] sm:$0xff] %v9026
                %v9028 = vld [vmem:[%s8952 + $0x128] sm:$0xff]
                %9029 = vst [vmem:[%s8953 + $0x128] sm:$0xff] %v9028
                %v9030 = vld [vmem:[%s8952 + $0x130] sm:$0xff]
                %9031 = vst [vmem:[%s8953 + $0x130] sm:$0xff] %v9030
                %v9032 = vld [vmem:[%s8952 + $0x138] sm:$0xff]
                %9033 = vst [vmem:[%s8953 + $0x138] sm:$0xff] %v9032
                %v9034 = vld [vmem:[%s8952 + $0x140] sm:$0xff]
                %9035 = vst [vmem:[%s8953 + $0x140] sm:$0xff] %v9034
                %v9036 = vld [vmem:[%s8952 + $0x148] sm:$0xff]
                %9037 = vst [vmem:[%s8953 + $0x148] sm:$0xff] %v9036
                %v9038 = vld [vmem:[%s8952 + $0x150] sm:$0xff]
                %9039 = vst [vmem:[%s8953 + $0x150] sm:$0xff] %v9038
                %v9040 = vld [vmem:[%s8952 + $0x158] sm:$0xff]
                %9041 = vst [vmem:[%s8953 + $0x158] sm:$0xff] %v9040
                %v9042 = vld [vmem:[%s8952 + $0x160] sm:$0xff]
                %9043 = vst [vmem:[%s8953 + $0x160] sm:$0xff] %v9042
                %v9044 = vld [vmem:[%s8952 + $0x168] sm:$0xff]
                %9045 = vst [vmem:[%s8953 + $0x168] sm:$0xff] %v9044
                %v9046 = vld [vmem:[%s8952 + $0x170] sm:$0xff]
                %9047 = vst [vmem:[%s8953 + $0x170] sm:$0xff] %v9046
                %v9048 = vld [vmem:[%s8952 + $0x178] sm:$0xff]
                %9049 = vst [vmem:[%s8953 + $0x178] sm:$0xff] %v9048
                %v9050 = vld [vmem:[%s8952 + $0x180] sm:$0xff]
                %9051 = vst [vmem:[%s8953 + $0x180] sm:$0xff] %v9050
                %v9052 = vld [vmem:[%s8952 + $0x188] sm:$0xff]
                %9053 = vst [vmem:[%s8953 + $0x188] sm:$0xff] %v9052
                %v9054 = vld [vmem:[%s8952 + $0x190] sm:$0xff]
                %9055 = vst [vmem:[%s8953 + $0x190] sm:$0xff] %v9054
                %v9056 = vld [vmem:[%s8952 + $0x198] sm:$0xff]
                %9057 = vst [vmem:[%s8953 + $0x198] sm:$0xff] %v9056
                %v9058 = vld [vmem:[%s8952 + $0x1a0] sm:$0xff]
                %9059 = vst [vmem:[%s8953 + $0x1a0] sm:$0xff] %v9058
                %v9060 = vld [vmem:[%s8952 + $0x1a8] sm:$0xff]
                %9061 = vst [vmem:[%s8953 + $0x1a8] sm:$0xff] %v9060
                %v9062 = vld [vmem:[%s8952 + $0x1b0] sm:$0xff]
                %9063 = vst [vmem:[%s8953 + $0x1b0] sm:$0xff] %v9062
                %v9064 = vld [vmem:[%s8952 + $0x1b8] sm:$0xff]
                %9065 = vst [vmem:[%s8953 + $0x1b8] sm:$0xff] %v9064
                %v9066 = vld [vmem:[%s8952 + $0x1c0] sm:$0xff]
                %9067 = vst [vmem:[%s8953 + $0x1c0] sm:$0xff] %v9066
                %v9068 = vld [vmem:[%s8952 + $0x1c8] sm:$0xff]
                %9069 = vst [vmem:[%s8953 + $0x1c8] sm:$0xff] %v9068
                %v9070 = vld [vmem:[%s8952 + $0x1d0] sm:$0xff]
                %9071 = vst [vmem:[%s8953 + $0x1d0] sm:$0xff] %v9070
                %v9072 = vld [vmem:[%s8952 + $0x1d8] sm:$0xff]
                %9073 = vst [vmem:[%s8953 + $0x1d8] sm:$0xff] %v9072
                %v9074 = vld [vmem:[%s8952 + $0x1e0] sm:$0xff]
                %9075 = vst [vmem:[%s8953 + $0x1e0] sm:$0xff] %v9074
                %v9076 = vld [vmem:[%s8952 + $0x1e8] sm:$0xff]
                %9077 = vst [vmem:[%s8953 + $0x1e8] sm:$0xff] %v9076
                %v9078 = vld [vmem:[%s8952 + $0x1f0] sm:$0xff]
                %9079 = vst [vmem:[%s8953 + $0x1f0] sm:$0xff] %v9078
                %v9080 = vld [vmem:[%s8952 + $0x1f8] sm:$0xff]
                %9081 = vst [vmem:[%s8953 + $0x1f8] sm:$0xff] %v9080
                %s9082 = sadd.s32 1, %s8951
                %p9083 = scmp.ge.s32.totalorder %s9082, %s8944
                %s9084 = scalar_select %p9083, 0, %s9082
                %s9085 = smul.u32 %s9084, 512
                %s9086 = smul.u32 %s9084, 512
                %s9087 = scalar_lea.vmem %s8924, %s9085 [#allocation2]
                %s9088 = scalar_lea.vmem %s8935, %s9086
              $region61: #{pinn_forward.1} parent=55 // loop_footer
                %s8948 = sadd.s32 %s8946, 1
              $region62: #{pinn_forward.1} parent=55 // loop_footer_branch
                %8945 = sbr.rel target = $region58
              $region63: #{pinn_forward.1} parent=55 // loop_exit
                _
              %s9089 = sshrl.u32 %s8931, 6
              %s9090 = sand.u32 %s8931, 63
              %s9091 = smul.u32 %s9089, 64
              %s9092 = smul.u32 8, %s9091
              %s9093 = scalar_lea.vmem %s8924, %s9092 [#allocation2]
              %s9094 = smul.u32 8, %s9091
              %s9095 = scalar_lea.vmem %s8935, %s9094
              // While loop
              $region64: #{pinn_forward.1} parent=55 // loop_pre_header
                _
              $region65: #{pinn_forward.1} parent=55 // loop_header
                %s9097 = sphi 0, %s9099
                %p9098 = scmp.ge.s32.totalorder %s9097, %s9090
                %s9102 = sphi 0, %s9109
                %s9103 = sphi %s9093, %s9112
                %s9104 = sphi %s9095, %s9113
              $region66: #{pinn_forward.1} parent=55 // loop_header_branch
                %9101 = sbr.rel (%p9098) target = $region70
              $region67: #{pinn_forward.1} parent=55 // loop_body
                %v9105 = vld [vmem:[%s9103] sm:$0xff]
                %9106 = vst [vmem:[%s9104] sm:$0xff] %v9105
                %s9107 = sadd.s32 1, %s9102
                %p9108 = scmp.ge.s32.totalorder %s9107, %s9090
                %s9109 = scalar_select %p9108, 0, %s9107
                %s9110 = smul.u32 %s9109, 8
                %s9111 = smul.u32 %s9109, 8
                %s9112 = scalar_lea.vmem %s9093, %s9110 [#allocation2]
                %s9113 = scalar_lea.vmem %s9095, %s9111
              $region68: #{pinn_forward.1} parent=55 // loop_footer
                %s9099 = sadd.s32 %s9097, 1
              $region69: #{pinn_forward.1} parent=55 // loop_footer_branch
                %9096 = sbr.rel target = $region65
              $region70: #{pinn_forward.1} parent=55 // loop_exit
                _
            $region56: #{pinn_forward.1} parent=47 // pred_fallthru
              _
          $region48: #{pinn_forward.1} parent=43 // pred_fallthru
            _
          %9288 = vnop
        $region44: #{pinn_forward.1} parent=39 // pred_fallthru
          _
      $region40: #{pinn_forward.1} parent=5 // pred_fallthru
        _
      %p9289 = scmp.le.s32.totalorder 2, %s11
      // Predicated region
      $region93: #{pinn_forward.1} parent=5 // pred_check
        %p9290 = pneg %p9289
      $region94: #{pinn_forward.1} parent=5 // pred_check_branch
        %9292 = sbr.rel (%p9290) target = $region96
      $region95: #{pinn_forward.1} parent=5 // pred_region
        %s9293 = ssub.s32 %s11, 2
        // Predicated region
        $region97: #{pinn_forward.1} parent=95 // pred_check
          %p9294 = pneg %p150
        $region98: #{pinn_forward.1} parent=95 // pred_check_branch
          %9296 = sbr.rel (%p9294) target = $region100
        $region99: #{pinn_forward.1} parent=95 // pred_region
          %s9297 = sand.u32 %s135, 1
          %s9298 = sand.u32 %s135, 1
          %s9299 = smul.addr %s9298, 1024
          %s9300 = scalar_lea.vmem [#allocation2], %s9299
        $region100: #{pinn_forward.1} parent=95 // pred_fallthru
          _
      $region96: #{pinn_forward.1} parent=5 // pred_fallthru
        _
    $region6: #{pinn_forward.1} parent=1 // loop_footer
      %s15 = sadd.s32 1, %s11
    $region7: #{pinn_forward.1} parent=1 // loop_footer_branch
      %10 = sbr.rel target = $region3
    $region8: #{pinn_forward.1} parent=1 // loop_exit
      _

</llo_original>
